<compile_context>
chip_gen: v7x
topology: tpu7x:2x2x1
jax: 0.10.0
libtpu: 0.0.40
codegen_flags: <defaults>
</compile_context>

<pallas_src>
import jax
import jax.numpy as jnp
from jax.experimental import pallas as pl
from jax.experimental.pallas import tpu as pltpu


def _round_up(a, b):
    return ((a + b - 1) // b) * b


# --------------------------- Pallas kernel ---------------------------

def _make_hgblock_kernel(n, c1, cm, c2, k, Wp, Pl, G, add_shortcut):
    ctot = c1 + n * cm
    half = k // 2

    def kernel(*refs):
        x_ref = refs[0]                              # (1, c1, Pl) bf16, zero border/tail
        valid_ref = refs[1]                          # (1, Pl) f32, 1.0 on interior
        conv_refs = refs[2:2 + 2 * n]                # per layer: (k*k, cm, cin), (cm, 1)
        wsc_ref, bsc_ref, wec_ref, bec_ref = refs[2 + 2 * n:6 + 2 * n]
        o_ref = refs[6 + 2 * n]                      # (1, c2, Pl) f32
        buf_ref = refs[7 + 2 * n]                    # VMEM (ctot, G+Pl+G) bf16

        # Zero the two lane-aligned guard bands (tiny: 2*ctot*G bf16).  Done every
        # grid step so correctness never depends on scratch persistence when the
        # "parallel" batch axis is sharded across cores; the interior [G, G+Pl) is
        # fully rewritten below every step.
        zeros_g = jnp.zeros((ctot, G), jnp.bfloat16)
        buf_ref[:, 0:G] = zeros_g
        buf_ref[:, G + Pl:G + Pl + G] = zeros_g

        valid = valid_ref[...]                       # (1, Pl) f32

        # Stage the (pre-padded) input channels into rows [0, c1) of the concat buffer.
        buf_ref[0:c1, G:G + Pl] = x_ref[0]

        src, row, cin = 0, c1, c1
        for layer in range(n):
            w_ref = conv_refs[2 * layer]             # (k*k, cm, cin) bf16
            b_ref = conv_refs[2 * layer + 1]         # (cm, 1) f32
            acc = jnp.zeros((cm, Pl), jnp.float32)
            for dh in range(k):
                for dw in range(k):
                    s = (dh - half) * Wp + (dw - half)
                    # Shifted stencil window: static lane-offset read from the
                    # guard-banded buffer (out-of-image taps hit zeroed lanes).
                    tap = buf_ref[src:src + cin, G + s:G + s + Pl]   # (cin, Pl) bf16
                    acc = acc + jnp.dot(w_ref[dh * k + dw], tap,
                                        preferred_element_type=jnp.float32)
            # Folded-BN bias + ReLU; zero padded-border / lane-tail positions so the
            # next layer's stencil reads proper zero padding.
            act = jnp.maximum(acc + b_ref[...], 0.0) * valid
            buf_ref[row:row + cm, G:G + Pl] = act.astype(jnp.bfloat16)
            src, row, cin = row, row + cm, cm

        # sc: 1x1 conv over the channel concat [x, m1..mn]; ec: 1x1 conv on top.
        cat = buf_ref[:, G:G + Pl]                                   # (ctot, Pl) bf16
        sc = jnp.dot(wsc_ref[...], cat, preferred_element_type=jnp.float32)
        sc = jnp.maximum(sc + bsc_ref[...], 0.0).astype(jnp.bfloat16)
        ec = jnp.dot(wec_ref[...], sc, preferred_element_type=jnp.float32)
        ec = jnp.maximum(ec + bec_ref[...], 0.0)
        if add_shortcut:                             # shortcut=True and c1 == c2 only
            ec = ec + buf_ref[0:c1, G:G + Pl].astype(jnp.float32)
        o_ref[0] = ec.astype(o_ref.dtype)            # single lane-dense store

    return kernel


def hgblock_pallas(x_nchw, params, *, k=3, shortcut=False):
    """HGBlock forward.  x_nchw: (N, c1, H, W) float32 (PyTorch layout)."""
    conv_ws, conv_bs, wsc, bsc, wec, bec = params
    n = len(conv_ws)
    N, c1, H, W = x_nchw.shape
    cm = conv_ws[0].shape[2]
    c2 = wec.shape[0]
    assert k % 2 == 1, "only odd kernel sizes (autopad = k//2) are supported"
    assert wsc.shape[1] == c1 + n * cm

    half = k // 2
    Hp, Wp = H + 2 * half, W + 2 * half
    P = Hp * Wp
    Pl = _round_up(P, 128)                     # lane-dense flattened spatial extent
    # Lane guard band: big enough for the largest stencil shift, 128-aligned so the
    # buffer interior [G, G+Pl) stays lane-aligned for stores / 1x1-conv reads.
    G = _round_up(max(128, half * Wp + half), 128)

    # Host-side layout plumbing: zero-pad spatially, flatten H,W to lanes, pad to Pl.
    xp = jnp.pad(x_nchw, ((0, 0), (0, 0), (half, half), (half, half)))
    xp = xp.reshape(N, c1, P)
    xp = jnp.pad(xp, ((0, 0), (0, 0), (0, Pl - P))).astype(jnp.bfloat16)

    # Interior-position mask (also zeroes the Pl - P lane tail), built once on host.
    pos = jnp.arange(Pl)
    hh, ww = pos // Wp, pos % Wp
    valid = ((hh >= half) & (hh < Hp - half) & (ww >= half) & (ww < Wp - half)
             & (pos < P)).astype(jnp.float32).reshape(1, Pl)

    def _const_spec(a):
        nd = a.ndim
        return pl.BlockSpec(a.shape, lambda i: (0,) * nd)

    ops = [xp, valid]
    specs = [pl.BlockSpec((1, c1, Pl), lambda i: (i, 0, 0)), _const_spec(valid)]
    for w, b in zip(conv_ws, conv_bs):
        wk = w.reshape(k * k, w.shape[2], w.shape[3]).astype(jnp.bfloat16)
        bk = b.reshape(-1, 1).astype(jnp.float32)
        ops += [wk, bk]
        specs += [_const_spec(wk), _const_spec(bk)]
    for a in (wsc.astype(jnp.bfloat16), bsc.reshape(-1, 1).astype(jnp.float32),
              wec.astype(jnp.bfloat16), bec.reshape(-1, 1).astype(jnp.float32)):
        ops.append(a)
        specs.append(_const_spec(a))

    kernel = _make_hgblock_kernel(n, c1, cm, c2, k, Wp, Pl, G,
                                  add_shortcut=bool(shortcut) and c1 == c2)

    out = pl.pallas_call(
        kernel,
        out_shape=jax.ShapeDtypeStruct((N, c2, Pl), jnp.float32),
        grid=(N,),
        in_specs=specs,
        out_specs=pl.BlockSpec((1, c2, Pl), lambda i: (i, 0, 0)),
        scratch_shapes=[pltpu.VMEM((c1 + n * cm, G + Pl + G), jnp.bfloat16)],
        compiler_params=pltpu.CompilerParams(dimension_semantics=("parallel",)),
    )(*ops)

    # Crop the padded / flattened result back to NCHW (layout plumbing, not compute).
    out = out[:, :, :P].reshape(N, c2, Hp, Wp)[:, :, half:half + H, half:half + W]
    return out


# ------------------- parameter construction (plain JAX glue) -------------------

def make_params(key, c1, cm, c2, n=6, k=3, eps=1e-5):
    """Deterministic synthetic weights for HGBlock(c1, cm, c2, k, n) with BN folded."""
    keys = jax.random.split(key, 2 * n + 4)
    ki = iter(range(len(keys)))

    def bn_fold(kk, c):
        k1, k2, k3, k4 = jax.random.split(kk, 4)
        gamma = 1.0 + 0.1 * jax.random.normal(k1, (c,), jnp.float32)
        beta = 0.1 * jax.random.normal(k2, (c,), jnp.float32)
        mean = 0.1 * jax.random.normal(k3, (c,), jnp.float32)
        var = 0.5 + jax.random.uniform(k4, (c,), jnp.float32)
        s = gamma / jnp.sqrt(var + eps)
        return s, beta - mean * s

    conv_ws, conv_bs = [], []
    cin = c1
    for _ in range(n):
        fan_in = k * k * cin
        w = (jnp.sqrt(2.0 / fan_in)
             * jax.random.normal(keys[next(ki)], (k, k, cm, cin), jnp.float32))
        s, b = bn_fold(keys[next(ki)], cm)
        conv_ws.append(w * s[None, None, :, None])
        conv_bs.append(b)
        cin = cm

    ctot = c1 + n * cm
    wsc = (jnp.sqrt(2.0 / ctot)
           * jax.random.normal(keys[next(ki)], (c2 // 2, ctot), jnp.float32))
    s, b = bn_fold(keys[next(ki)], c2 // 2)
    wsc, bsc = wsc * s[:, None], b

    wec = (jnp.sqrt(2.0 / (c2 // 2))
           * jax.random.normal(keys[next(ki)], (c2, c2 // 2), jnp.float32))
    s, b = bn_fold(keys[next(ki)], c2)
    wec, bec = wec * s[:, None], b

    return conv_ws, conv_bs, wsc, bsc, wec, bec


# ---------------- pure-JAX reference (f32, for correctness check) ----------------

def hgblock_ref(x, params, *, k=3, shortcut=False):
    conv_ws, conv_bs, wsc, bsc, wec, bec = params
    half = k // 2
    ys = [x]
    cur = x
    for w, b in zip(conv_ws, conv_bs):
        H, W = cur.shape[2], cur.shape[3]
        xp = jnp.pad(cur, ((0, 0), (0, 0), (half, half), (half, half)))
        acc = 0.0
        for dh in range(k):
            for dw in range(k):
                acc = acc + jnp.einsum('oc,nchw->nohw', w[dh, dw],
                                       xp[:, :, dh:dh + H, dw:dw + W],
                                       precision='highest')
        cur = jax.nn.relu(acc + b[None, :, None, None])
        ys.append(cur)
    cat = jnp.concatenate(ys, axis=1)
    sc = jax.nn.relu(jnp.einsum('oc,nchw->nohw', wsc, cat, precision='highest')
                     + bsc[None, :, None, None])
    ec = jax.nn.relu(jnp.einsum('oc,nchw->nohw', wec, sc, precision='highest')
                     + bec[None, :, None, None])
    return ec + x if (shortcut and x.shape[1] == ec.shape[1]) else ec


if __name__ == "__main__":
    key = jax.random.PRNGKey(0)
    kx, kp = jax.random.split(key)

    # HGBlock(c1=16, cm=16, c2=32, k=3, n=6, lightconv=False, shortcut=False, act=ReLU)
    N, C1, H, W = 2, 16, 16, 16
    CM, C2, NLAYERS = 16, 32, 6

    x = jax.random.normal(kx, (N, C1, H, W), jnp.float32)        # PyTorch NCHW layout
    params = make_params(kp, C1, CM, C2, n=NLAYERS, k=3)

    out = hgblock_pallas(x, params, k=3, shortcut=False)
    out = jax.block_until_ready(out)

    ref = jax.block_until_ready(hgblock_ref(x, params, k=3, shortcut=False))
    assert out.shape == ref.shape

    # Kernel runs the matmuls in bf16 (f32 accumulation); allow bf16-level deviation
    # from the f32 reference — structural bugs would produce O(max|ref|) errors.
    err = float(jnp.max(jnp.abs(out - ref)))
    scale = float(jnp.max(jnp.abs(ref)))
    if not err <= 0.06 * scale + 0.05:
        raise AssertionError(
            f"Pallas kernel mismatch vs JAX reference: max|err|={err}, max|ref|={scale}")

    print("KERNEL_OK")
</pallas_src>

<mosaic_0001>
module attributes {stable_mosaic.version = 11 : i64} {
  func.func @kernel(%arg0: i32, %arg1: memref<1x16x384xbf16, #tpu.memory_space<vmem>>, %arg2: memref<1x384xf32, #tpu.memory_space<vmem>>, %arg3: memref<9x16x16xbf16, #tpu.memory_space<vmem>>, %arg4: memref<16x1xf32, #tpu.memory_space<vmem>>, %arg5: memref<9x16x16xbf16, #tpu.memory_space<vmem>>, %arg6: memref<16x1xf32, #tpu.memory_space<vmem>>, %arg7: memref<9x16x16xbf16, #tpu.memory_space<vmem>>, %arg8: memref<16x1xf32, #tpu.memory_space<vmem>>, %arg9: memref<9x16x16xbf16, #tpu.memory_space<vmem>>, %arg10: memref<16x1xf32, #tpu.memory_space<vmem>>, %arg11: memref<9x16x16xbf16, #tpu.memory_space<vmem>>, %arg12: memref<16x1xf32, #tpu.memory_space<vmem>>, %arg13: memref<9x16x16xbf16, #tpu.memory_space<vmem>>, %arg14: memref<16x1xf32, #tpu.memory_space<vmem>>, %arg15: memref<16x112xbf16, #tpu.memory_space<vmem>>, %arg16: memref<16x1xf32, #tpu.memory_space<vmem>>, %arg17: memref<32x16xbf16, #tpu.memory_space<vmem>>, %arg18: memref<32x1xf32, #tpu.memory_space<vmem>>, %arg19: memref<1x32x384xf32, #tpu.memory_space<vmem>>, %arg20: memref<112x640xbf16, #tpu.memory_space<vmem>>) attributes {dimension_semantics = [#tpu.dimension_semantics<parallel>], iteration_bounds = array<i64: 2>, scalar_prefetch = 0 : i64, scratch_operands = 1 : i64, tpu.core_type = #tpu.core_type<tc>, window_params = [{transform_indices = @transform_0, window_bounds = array<i64: 1, 16, 384>}, {pipeline_mode = #tpu.pipeline_mode<synchronous>, transform_indices = @transform_1, window_bounds = array<i64: 1, 384>}, {pipeline_mode = #tpu.pipeline_mode<synchronous>, transform_indices = @transform_2, window_bounds = array<i64: 9, 16, 16>}, {pipeline_mode = #tpu.pipeline_mode<synchronous>, transform_indices = @transform_3, window_bounds = array<i64: 16, 1>}, {pipeline_mode = #tpu.pipeline_mode<synchronous>, transform_indices = @transform_4, window_bounds = array<i64: 9, 16, 16>}, {pipeline_mode = #tpu.pipeline_mode<synchronous>, transform_indices = @transform_5, window_bounds = array<i64: 16, 1>}, {pipeline_mode = #tpu.pipeline_mode<synchronous>, transform_indices = @transform_6, window_bounds = array<i64: 9, 16, 16>}, {pipeline_mode = #tpu.pipeline_mode<synchronous>, transform_indices = @transform_7, window_bounds = array<i64: 16, 1>}, {pipeline_mode = #tpu.pipeline_mode<synchronous>, transform_indices = @transform_8, window_bounds = array<i64: 9, 16, 16>}, {pipeline_mode = #tpu.pipeline_mode<synchronous>, transform_indices = @transform_9, window_bounds = array<i64: 16, 1>}, {pipeline_mode = #tpu.pipeline_mode<synchronous>, transform_indices = @transform_10, window_bounds = array<i64: 9, 16, 16>}, {pipeline_mode = #tpu.pipeline_mode<synchronous>, transform_indices = @transform_11, window_bounds = array<i64: 16, 1>}, {pipeline_mode = #tpu.pipeline_mode<synchronous>, transform_indices = @transform_12, window_bounds = array<i64: 9, 16, 16>}, {pipeline_mode = #tpu.pipeline_mode<synchronous>, transform_indices = @transform_13, window_bounds = array<i64: 16, 1>}, {pipeline_mode = #tpu.pipeline_mode<synchronous>, transform_indices = @transform_14, window_bounds = array<i64: 16, 112>}, {pipeline_mode = #tpu.pipeline_mode<synchronous>, transform_indices = @transform_15, window_bounds = array<i64: 16, 1>}, {pipeline_mode = #tpu.pipeline_mode<synchronous>, transform_indices = @transform_16, window_bounds = array<i64: 32, 16>}, {pipeline_mode = #tpu.pipeline_mode<synchronous>, transform_indices = @transform_17, window_bounds = array<i64: 32, 1>}, {transform_indices = @transform_18, window_bounds = array<i64: 1, 32, 384>}]} {
    %cst = arith.constant 0.000000e+00 : bf16
    %0 = vector.broadcast %cst : bf16 to vector<112x128xbf16>
    %c0 = arith.constant 0 : index
    %c0_0 = arith.constant 0 : index
    %1 = vector.load %arg20[%c0, %c0_0] : memref<112x640xbf16, #tpu.memory_space<vmem>>, vector<112x128xbf16>
    tpu.vector_store %arg20[%c0, %c0_0], %0 {strides = array<i32>} : memref<112x640xbf16, #tpu.memory_space<vmem>>, vector<112x128xbf16>,
    %c0_1 = arith.constant 0 : index
    %c512 = arith.constant 512 : index
    %2 = vector.load %arg20[%c0_1, %c512] : memref<112x640xbf16, #tpu.memory_space<vmem>>, vector<112x128xbf16>
    tpu.vector_store %arg20[%c0_1, %c512], %0 {strides = array<i32>} : memref<112x640xbf16, #tpu.memory_space<vmem>>, vector<112x128xbf16>,
    %c0_2 = arith.constant 0 : index
    %c0_3 = arith.constant 0 : index
    %3 = vector.load %arg2[%c0_2, %c0_3] : memref<1x384xf32, #tpu.memory_space<vmem>>, vector<1x384xf32>
    %c0_4 = arith.constant 0 : index
    %c0_5 = arith.constant 0 : index
    %c0_6 = arith.constant 0 : index
    %4 = vector.load %arg1[%c0_4, %c0_5, %c0_6] : memref<1x16x384xbf16, #tpu.memory_space<vmem>>, vector<1x16x384xbf16>
    %5 = vector.shape_cast %4 : vector<1x16x384xbf16> to vector<16x384xbf16>
    %c0_7 = arith.constant 0 : index
    %c128 = arith.constant 128 : index
    %6 = vector.load %arg20[%c0_7, %c128] : memref<112x640xbf16, #tpu.memory_space<vmem>>, vector<16x384xbf16>
    tpu.vector_store %arg20[%c0_7, %c128], %5 {strides = array<i32>} : memref<112x640xbf16, #tpu.memory_space<vmem>>, vector<16x384xbf16>,
    %cst_8 = arith.constant 0.000000e+00 : f32
    %7 = vector.broadcast %cst_8 : f32 to vector<16x384xf32>
    %c0_9 = arith.constant 0 : index
    %c109 = arith.constant 109 : index
    %8 = vector.load %arg20[%c0_9, %c109] : memref<112x640xbf16, #tpu.memory_space<vmem>>, vector<16x384xbf16>
    %c0_10 = arith.constant 0 : index
    %c0_11 = arith.constant 0 : index
    %c0_12 = arith.constant 0 : index
    %9 = vector.load %arg3[%c0_10, %c0_11, %c0_12] : memref<9x16x16xbf16, #tpu.memory_space<vmem>>, vector<1x16x16xbf16>
    %10 = vector.shape_cast %9 : vector<1x16x16xbf16> to vector<16x16xbf16>
    %cst_13 = arith.constant dense<0.000000e+00> : vector<16x384xf32>
    %11 = tpu.matmul %10, %8, %cst_13 {dimension_numbers = #tpu.dot_dimension_numbers<[1], [0], [0], [1], [0, 0, 1, 1], [], []>} : vector<16x16xbf16>, vector<16x384xbf16>, vector<16x384xf32> -> vector<16x384xf32>
    %12 = arith.addf %7, %11 : vector<16x384xf32>
    %c0_14 = arith.constant 0 : index
    %c110 = arith.constant 110 : index
    %13 = vector.load %arg20[%c0_14, %c110] : memref<112x640xbf16, #tpu.memory_space<vmem>>, vector<16x384xbf16>
    %c1 = arith.constant 1 : index
    %c0_15 = arith.constant 0 : index
    %c0_16 = arith.constant 0 : index
    %14 = vector.load %arg3[%c1, %c0_15, %c0_16] : memref<9x16x16xbf16, #tpu.memory_space<vmem>>, vector<1x16x16xbf16>
    %15 = vector.shape_cast %14 : vector<1x16x16xbf16> to vector<16x16xbf16>
    %cst_17 = arith.constant dense<0.000000e+00> : vector<16x384xf32>
    %16 = tpu.matmul %15, %13, %cst_17 {dimension_numbers = #tpu.dot_dimension_numbers<[1], [0], [0], [1], [0, 0, 1, 1], [], []>} : vector<16x16xbf16>, vector<16x384xbf16>, vector<16x384xf32> -> vector<16x384xf32>
    %17 = arith.addf %12, %16 : vector<16x384xf32>
    %c0_18 = arith.constant 0 : index
    %c111 = arith.constant 111 : index
    %18 = vector.load %arg20[%c0_18, %c111] : memref<112x640xbf16, #tpu.memory_space<vmem>>, vector<16x384xbf16>
    %c2 = arith.constant 2 : index
    %c0_19 = arith.constant 0 : index
    %c0_20 = arith.constant 0 : index
    %19 = vector.load %arg3[%c2, %c0_19, %c0_20] : memref<9x16x16xbf16, #tpu.memory_space<vmem>>, vector<1x16x16xbf16>
    %20 = vector.shape_cast %19 : vector<1x16x16xbf16> to vector<16x16xbf16>
    %cst_21 = arith.constant dense<0.000000e+00> : vector<16x384xf32>
    %21 = tpu.matmul %20, %18, %cst_21 {dimension_numbers = #tpu.dot_dimension_numbers<[1], [0], [0], [1], [0, 0, 1, 1], [], []>} : vector<16x16xbf16>, vector<16x384xbf16>, vector<16x384xf32> -> vector<16x384xf32>
    %22 = arith.addf %17, %21 : vector<16x384xf32>
    %c0_22 = arith.constant 0 : index
    %c127 = arith.constant 127 : index
    %23 = vector.load %arg20[%c0_22, %c127] : memref<112x640xbf16, #tpu.memory_space<vmem>>, vector<16x384xbf16>
    %c3 = arith.constant 3 : index
    %c0_23 = arith.constant 0 : index
    %c0_24 = arith.constant 0 : index
    %24 = vector.load %arg3[%c3, %c0_23, %c0_24] : memref<9x16x16xbf16, #tpu.memory_space<vmem>>, vector<1x16x16xbf16>
    %25 = vector.shape_cast %24 : vector<1x16x16xbf16> to vector<16x16xbf16>
    %cst_25 = arith.constant dense<0.000000e+00> : vector<16x384xf32>
    %26 = tpu.matmul %25, %23, %cst_25 {dimension_numbers = #tpu.dot_dimension_numbers<[1], [0], [0], [1], [0, 0, 1, 1], [], []>} : vector<16x16xbf16>, vector<16x384xbf16>, vector<16x384xf32> -> vector<16x384xf32>
    %27 = arith.addf %22, %26 : vector<16x384xf32>
    %c0_26 = arith.constant 0 : index
    %c128_27 = arith.constant 128 : index
    %28 = vector.load %arg20[%c0_26, %c128_27] : memref<112x640xbf16, #tpu.memory_space<vmem>>, vector<16x384xbf16>
    %c4 = arith.constant 4 : index
    %c0_28 = arith.constant 0 : index
    %c0_29 = arith.constant 0 : index
    %29 = vector.load %arg3[%c4, %c0_28, %c0_29] : memref<9x16x16xbf16, #tpu.memory_space<vmem>>, vector<1x16x16xbf16>
    %30 = vector.shape_cast %29 : vector<1x16x16xbf16> to vector<16x16xbf16>
    %cst_30 = arith.constant dense<0.000000e+00> : vector<16x384xf32>
    %31 = tpu.matmul %30, %28, %cst_30 {dimension_numbers = #tpu.dot_dimension_numbers<[1], [0], [0], [1], [0, 0, 1, 1], [], []>} : vector<16x16xbf16>, vector<16x384xbf16>, vector<16x384xf32> -> vector<16x384xf32>
    %32 = arith.addf %27, %31 : vector<16x384xf32>
    %c0_31 = arith.constant 0 : index
    %c129 = arith.constant 129 : index
    %33 = vector.load %arg20[%c0_31, %c129] : memref<112x640xbf16, #tpu.memory_space<vmem>>, vector<16x384xbf16>
    %c5 = arith.constant 5 : index
    %c0_32 = arith.constant 0 : index
    %c0_33 = arith.constant 0 : index
    %34 = vector.load %arg3[%c5, %c0_32, %c0_33] : memref<9x16x16xbf16, #tpu.memory_space<vmem>>, vector<1x16x16xbf16>
    %35 = vector.shape_cast %34 : vector<1x16x16xbf16> to vector<16x16xbf16>
    %cst_34 = arith.constant dense<0.000000e+00> : vector<16x384xf32>
    %36 = tpu.matmul %35, %33, %cst_34 {dimension_numbers = #tpu.dot_dimension_numbers<[1], [0], [0], [1], [0, 0, 1, 1], [], []>} : vector<16x16xbf16>, vector<16x384xbf16>, vector<16x384xf32> -> vector<16x384xf32>
    %37 = arith.addf %32, %36 : vector<16x384xf32>
    %c0_35 = arith.constant 0 : index
    %c145 = arith.constant 145 : index
    %38 = vector.load %arg20[%c0_35, %c145] : memref<112x640xbf16, #tpu.memory_space<vmem>>, vector<16x384xbf16>
    %c6 = arith.constant 6 : index
    %c0_36 = arith.constant 0 : index
    %c0_37 = arith.constant 0 : index
    %39 = vector.load %arg3[%c6, %c0_36, %c0_37] : memref<9x16x16xbf16, #tpu.memory_space<vmem>>, vector<1x16x16xbf16>
    %40 = vector.shape_cast %39 : vector<1x16x16xbf16> to vector<16x16xbf16>
    %cst_38 = arith.constant dense<0.000000e+00> : vector<16x384xf32>
    %41 = tpu.matmul %40, %38, %cst_38 {dimension_numbers = #tpu.dot_dimension_numbers<[1], [0], [0], [1], [0, 0, 1, 1], [], []>} : vector<16x16xbf16>, vector<16x384xbf16>, vector<16x384xf32> -> vector<16x384xf32>
    %42 = arith.addf %37, %41 : vector<16x384xf32>
    %c0_39 = arith.constant 0 : index
    %c146 = arith.constant 146 : index
    %43 = vector.load %arg20[%c0_39, %c146] : memref<112x640xbf16, #tpu.memory_space<vmem>>, vector<16x384xbf16>
    %c7 = arith.constant 7 : index
    %c0_40 = arith.constant 0 : index
    %c0_41 = arith.constant 0 : index
    %44 = vector.load %arg3[%c7, %c0_40, %c0_41] : memref<9x16x16xbf16, #tpu.memory_space<vmem>>, vector<1x16x16xbf16>
    %45 = vector.shape_cast %44 : vector<1x16x16xbf16> to vector<16x16xbf16>
    %cst_42 = arith.constant dense<0.000000e+00> : vector<16x384xf32>
    %46 = tpu.matmul %45, %43, %cst_42 {dimension_numbers = #tpu.dot_dimension_numbers<[1], [0], [0], [1], [0, 0, 1, 1], [], []>} : vector<16x16xbf16>, vector<16x384xbf16>, vector<16x384xf32> -> vector<16x384xf32>
    %47 = arith.addf %42, %46 : vector<16x384xf32>
    %c0_43 = arith.constant 0 : index
    %c147 = arith.constant 147 : index
    %48 = vector.load %arg20[%c0_43, %c147] : memref<112x640xbf16, #tpu.memory_space<vmem>>, vector<16x384xbf16>
    %c8 = arith.constant 8 : index
    %c0_44 = arith.constant 0 : index
    %c0_45 = arith.constant 0 : index
    %49 = vector.load %arg3[%c8, %c0_44, %c0_45] : memref<9x16x16xbf16, #tpu.memory_space<vmem>>, vector<1x16x16xbf16>
    %50 = vector.shape_cast %49 : vector<1x16x16xbf16> to vector<16x16xbf16>
    %cst_46 = arith.constant dense<0.000000e+00> : vector<16x384xf32>
    %51 = tpu.matmul %50, %48, %cst_46 {dimension_numbers = #tpu.dot_dimension_numbers<[1], [0], [0], [1], [0, 0, 1, 1], [], []>} : vector<16x16xbf16>, vector<16x384xbf16>, vector<16x384xf32> -> vector<16x384xf32>
    %52 = arith.addf %47, %51 : vector<16x384xf32>
    %c0_47 = arith.constant 0 : index
    %c0_48 = arith.constant 0 : index
    %53 = vector.load %arg4[%c0_47, %c0_48] : memref<16x1xf32, #tpu.memory_space<vmem>>, vector<16x1xf32>
    %54 = vector.broadcast %53 : vector<16x1xf32> to vector<16x384xf32>
    %55 = arith.addf %52, %54 : vector<16x384xf32>
    %cst_49 = arith.constant 0.000000e+00 : f32
    %56 = vector.broadcast %cst_49 : f32 to vector<16x384xf32>
    %57 = arith.maximumf %55, %56 : vector<16x384xf32>
    %58 = vector.broadcast %3 : vector<1x384xf32> to vector<16x384xf32>
    %59 = arith.mulf %57, %58 : vector<16x384xf32>
    %60 = arith.truncf %59 : vector<16x384xf32> to vector<16x384xbf16>
    %c16 = arith.constant 16 : index
    %c128_50 = arith.constant 128 : index
    %61 = vector.load %arg20[%c16, %c128_50] : memref<112x640xbf16, #tpu.memory_space<vmem>>, vector<16x384xbf16>
    tpu.vector_store %arg20[%c16, %c128_50], %60 {strides = array<i32>} : memref<112x640xbf16, #tpu.memory_space<vmem>>, vector<16x384xbf16>,
    %cst_51 = arith.constant 0.000000e+00 : f32
    %62 = vector.broadcast %cst_51 : f32 to vector<16x384xf32>
    %c16_52 = arith.constant 16 : index
    %c109_53 = arith.constant 109 : index
    %63 = vector.load %arg20[%c16_52, %c109_53] : memref<112x640xbf16, #tpu.memory_space<vmem>>, vector<16x384xbf16>
    %c0_54 = arith.constant 0 : index
    %c0_55 = arith.constant 0 : index
    %c0_56 = arith.constant 0 : index
    %64 = vector.load %arg5[%c0_54, %c0_55, %c0_56] : memref<9x16x16xbf16, #tpu.memory_space<vmem>>, vector<1x16x16xbf16>
    %65 = vector.shape_cast %64 : vector<1x16x16xbf16> to vector<16x16xbf16>
    %cst_57 = arith.constant dense<0.000000e+00> : vector<16x384xf32>
    %66 = tpu.matmul %65, %63, %cst_57 {dimension_numbers = #tpu.dot_dimension_numbers<[1], [0], [0], [1], [0, 0, 1, 1], [], []>} : vector<16x16xbf16>, vector<16x384xbf16>, vector<16x384xf32> -> vector<16x384xf32>
    %67 = arith.addf %62, %66 : vector<16x384xf32>
    %c16_58 = arith.constant 16 : index
    %c110_59 = arith.constant 110 : index
    %68 = vector.load %arg20[%c16_58, %c110_59] : memref<112x640xbf16, #tpu.memory_space<vmem>>, vector<16x384xbf16>
    %c1_60 = arith.constant 1 : index
    %c0_61 = arith.constant 0 : index
    %c0_62 = arith.constant 0 : index
    %69 = vector.load %arg5[%c1_60, %c0_61, %c0_62] : memref<9x16x16xbf16, #tpu.memory_space<vmem>>, vector<1x16x16xbf16>
    %70 = vector.shape_cast %69 : vector<1x16x16xbf16> to vector<16x16xbf16>
    %cst_63 = arith.constant dense<0.000000e+00> : vector<16x384xf32>
    %71 = tpu.matmul %70, %68, %cst_63 {dimension_numbers = #tpu.dot_dimension_numbers<[1], [0], [0], [1], [0, 0, 1, 1], [], []>} : vector<16x16xbf16>, vector<16x384xbf16>, vector<16x384xf32> -> vector<16x384xf32>
    %72 = arith.addf %67, %71 : vector<16x384xf32>
    %c16_64 = arith.constant 16 : index
    %c111_65 = arith.constant 111 : index
    %73 = vector.load %arg20[%c16_64, %c111_65] : memref<112x640xbf16, #tpu.memory_space<vmem>>, vector<16x384xbf16>
    %c2_66 = arith.constant 2 : index
    %c0_67 = arith.constant 0 : index
    %c0_68 = arith.constant 0 : index
    %74 = vector.load %arg5[%c2_66, %c0_67, %c0_68] : memref<9x16x16xbf16, #tpu.memory_space<vmem>>, vector<1x16x16xbf16>
    %75 = vector.shape_cast %74 : vector<1x16x16xbf16> to vector<16x16xbf16>
    %cst_69 = arith.constant dense<0.000000e+00> : vector<16x384xf32>
    %76 = tpu.matmul %75, %73, %cst_69 {dimension_numbers = #tpu.dot_dimension_numbers<[1], [0], [0], [1], [0, 0, 1, 1], [], []>} : vector<16x16xbf16>, vector<16x384xbf16>, vector<16x384xf32> -> vector<16x384xf32>
    %77 = arith.addf %72, %76 : vector<16x384xf32>
    %c16_70 = arith.constant 16 : index
    %c127_71 = arith.constant 127 : index
    %78 = vector.load %arg20[%c16_70, %c127_71] : memref<112x640xbf16, #tpu.memory_space<vmem>>, vector<16x384xbf16>
    %c3_72 = arith.constant 3 : index
    %c0_73 = arith.constant 0 : index
    %c0_74 = arith.constant 0 : index
    %79 = vector.load %arg5[%c3_72, %c0_73, %c0_74] : memref<9x16x16xbf16, #tpu.memory_space<vmem>>, vector<1x16x16xbf16>
    %80 = vector.shape_cast %79 : vector<1x16x16xbf16> to vector<16x16xbf16>
    %cst_75 = arith.constant dense<0.000000e+00> : vector<16x384xf32>
    %81 = tpu.matmul %80, %78, %cst_75 {dimension_numbers = #tpu.dot_dimension_numbers<[1], [0], [0], [1], [0, 0, 1, 1], [], []>} : vector<16x16xbf16>, vector<16x384xbf16>, vector<16x384xf32> -> vector<16x384xf32>
    %82 = arith.addf %77, %81 : vector<16x384xf32>
    %c16_76 = arith.constant 16 : index
    %c128_77 = arith.constant 128 : index
    %83 = vector.load %arg20[%c16_76, %c128_77] : memref<112x640xbf16, #tpu.memory_space<vmem>>, vector<16x384xbf16>
    %c4_78 = arith.constant 4 : index
    %c0_79 = arith.constant 0 : index
    %c0_80 = arith.constant 0 : index
    %84 = vector.load %arg5[%c4_78, %c0_79, %c0_80] : memref<9x16x16xbf16, #tpu.memory_space<vmem>>, vector<1x16x16xbf16>
    %85 = vector.shape_cast %84 : vector<1x16x16xbf16> to vector<16x16xbf16>
    %cst_81 = arith.constant dense<0.000000e+00> : vector<16x384xf32>
    %86 = tpu.matmul %85, %83, %cst_81 {dimension_numbers = #tpu.dot_dimension_numbers<[1], [0], [0], [1], [0, 0, 1, 1], [], []>} : vector<16x16xbf16>, vector<16x384xbf16>, vector<16x384xf32> -> vector<16x384xf32>
    %87 = arith.addf %82, %86 : vector<16x384xf32>
    %c16_82 = arith.constant 16 : index
    %c129_83 = arith.constant 129 : index
    %88 = vector.load %arg20[%c16_82, %c129_83] : memref<112x640xbf16, #tpu.memory_space<vmem>>, vector<16x384xbf16>
    %c5_84 = arith.constant 5 : index
    %c0_85 = arith.constant 0 : index
    %c0_86 = arith.constant 0 : index
    %89 = vector.load %arg5[%c5_84, %c0_85, %c0_86] : memref<9x16x16xbf16, #tpu.memory_space<vmem>>, vector<1x16x16xbf16>
    %90 = vector.shape_cast %89 : vector<1x16x16xbf16> to vector<16x16xbf16>
    %cst_87 = arith.constant dense<0.000000e+00> : vector<16x384xf32>
    %91 = tpu.matmul %90, %88, %cst_87 {dimension_numbers = #tpu.dot_dimension_numbers<[1], [0], [0], [1], [0, 0, 1, 1], [], []>} : vector<16x16xbf16>, vector<16x384xbf16>, vector<16x384xf32> -> vector<16x384xf32>
    %92 = arith.addf %87, %91 : vector<16x384xf32>
    %c16_88 = arith.constant 16 : index
    %c145_89 = arith.constant 145 : index
    %93 = vector.load %arg20[%c16_88, %c145_89] : memref<112x640xbf16, #tpu.memory_space<vmem>>, vector<16x384xbf16>
    %c6_90 = arith.constant 6 : index
    %c0_91 = arith.constant 0 : index
    %c0_92 = arith.constant 0 : index
    %94 = vector.load %arg5[%c6_90, %c0_91, %c0_92] : memref<9x16x16xbf16, #tpu.memory_space<vmem>>, vector<1x16x16xbf16>
    %95 = vector.shape_cast %94 : vector<1x16x16xbf16> to vector<16x16xbf16>
    %cst_93 = arith.constant dense<0.000000e+00> : vector<16x384xf32>
    %96 = tpu.matmul %95, %93, %cst_93 {dimension_numbers = #tpu.dot_dimension_numbers<[1], [0], [0], [1], [0, 0, 1, 1], [], []>} : vector<16x16xbf16>, vector<16x384xbf16>, vector<16x384xf32> -> vector<16x384xf32>
    %97 = arith.addf %92, %96 : vector<16x384xf32>
    %c16_94 = arith.constant 16 : index
    %c146_95 = arith.constant 146 : index
    %98 = vector.load %arg20[%c16_94, %c146_95] : memref<112x640xbf16, #tpu.memory_space<vmem>>, vector<16x384xbf16>
    %c7_96 = arith.constant 7 : index
    %c0_97 = arith.constant 0 : index
    %c0_98 = arith.constant 0 : index
    %99 = vector.load %arg5[%c7_96, %c0_97, %c0_98] : memref<9x16x16xbf16, #tpu.memory_space<vmem>>, vector<1x16x16xbf16>
    %100 = vector.shape_cast %99 : vector<1x16x16xbf16> to vector<16x16xbf16>
    %cst_99 = arith.constant dense<0.000000e+00> : vector<16x384xf32>
    %101 = tpu.matmul %100, %98, %cst_99 {dimension_numbers = #tpu.dot_dimension_numbers<[1], [0], [0], [1], [0, 0, 1, 1], [], []>} : vector<16x16xbf16>, vector<16x384xbf16>, vector<16x384xf32> -> vector<16x384xf32>
    %102 = arith.addf %97, %101 : vector<16x384xf32>
    %c16_100 = arith.constant 16 : index
    %c147_101 = arith.constant 147 : index
    %103 = vector.load %arg20[%c16_100, %c147_101] : memref<112x640xbf16, #tpu.memory_space<vmem>>, vector<16x384xbf16>
    %c8_102 = arith.constant 8 : index
    %c0_103 = arith.constant 0 : index
    %c0_104 = arith.constant 0 : index
    %104 = vector.load %arg5[%c8_102, %c0_103, %c0_104] : memref<9x16x16xbf16, #tpu.memory_space<vmem>>, vector<1x16x16xbf16>
    %105 = vector.shape_cast %104 : vector<1x16x16xbf16> to vector<16x16xbf16>
    %cst_105 = arith.constant dense<0.000000e+00> : vector<16x384xf32>
    %106 = tpu.matmul %105, %103, %cst_105 {dimension_numbers = #tpu.dot_dimension_numbers<[1], [0], [0], [1], [0, 0, 1, 1], [], []>} : vector<16x16xbf16>, vector<16x384xbf16>, vector<16x384xf32> -> vector<16x384xf32>
    %107 = arith.addf %102, %106 : vector<16x384xf32>
    %c0_106 = arith.constant 0 : index
    %c0_107 = arith.constant 0 : index
    %108 = vector.load %arg6[%c0_106, %c0_107] : memref<16x1xf32, #tpu.memory_space<vmem>>, vector<16x1xf32>
    %109 = vector.broadcast %108 : vector<16x1xf32> to vector<16x384xf32>
    %110 = arith.addf %107, %109 : vector<16x384xf32>
    %cst_108 = arith.constant 0.000000e+00 : f32
    %111 = vector.broadcast %cst_108 : f32 to vector<16x384xf32>
    %112 = arith.maximumf %110, %111 : vector<16x384xf32>
    %113 = vector.broadcast %3 : vector<1x384xf32> to vector<16x384xf32>
    %114 = arith.mulf %112, %113 : vector<16x384xf32>
    %115 = arith.truncf %114 : vector<16x384xf32> to vector<16x384xbf16>
    %c32 = arith.constant 32 : index
    %c128_109 = arith.constant 128 : index
    %116 = vector.load %arg20[%c32, %c128_109] : memref<112x640xbf16, #tpu.memory_space<vmem>>, vector<16x384xbf16>
    tpu.vector_store %arg20[%c32, %c128_109], %115 {strides = array<i32>} : memref<112x640xbf16, #tpu.memory_space<vmem>>, vector<16x384xbf16>,
    %cst_110 = arith.constant 0.000000e+00 : f32
    %117 = vector.broadcast %cst_110 : f32 to vector<16x384xf32>
    %c32_111 = arith.constant 32 : index
    %c109_112 = arith.constant 109 : index
    %118 = vector.load %arg20[%c32_111, %c109_112] : memref<112x640xbf16, #tpu.memory_space<vmem>>, vector<16x384xbf16>
    %c0_113 = arith.constant 0 : index
    %c0_114 = arith.constant 0 : index
    %c0_115 = arith.constant 0 : index
    %119 = vector.load %arg7[%c0_113, %c0_114, %c0_115] : memref<9x16x16xbf16, #tpu.memory_space<vmem>>, vector<1x16x16xbf16>
    %120 = vector.shape_cast %119 : vector<1x16x16xbf16> to vector<16x16xbf16>
    %cst_116 = arith.constant dense<0.000000e+00> : vector<16x384xf32>
    %121 = tpu.matmul %120, %118, %cst_116 {dimension_numbers = #tpu.dot_dimension_numbers<[1], [0], [0], [1], [0, 0, 1, 1], [], []>} : vector<16x16xbf16>, vector<16x384xbf16>, vector<16x384xf32> -> vector<16x384xf32>
    %122 = arith.addf %117, %121 : vector<16x384xf32>
    %c32_117 = arith.constant 32 : index
    %c110_118 = arith.constant 110 : index
    %123 = vector.load %arg20[%c32_117, %c110_118] : memref<112x640xbf16, #tpu.memory_space<vmem>>, vector<16x384xbf16>
    %c1_119 = arith.constant 1 : index
    %c0_120 = arith.constant 0 : index
    %c0_121 = arith.constant 0 : index
    %124 = vector.load %arg7[%c1_119, %c0_120, %c0_121] : memref<9x16x16xbf16, #tpu.memory_space<vmem>>, vector<1x16x16xbf16>
    %125 = vector.shape_cast %124 : vector<1x16x16xbf16> to vector<16x16xbf16>
    %cst_122 = arith.constant dense<0.000000e+00> : vector<16x384xf32>
    %126 = tpu.matmul %125, %123, %cst_122 {dimension_numbers = #tpu.dot_dimension_numbers<[1], [0], [0], [1], [0, 0, 1, 1], [], []>} : vector<16x16xbf16>, vector<16x384xbf16>, vector<16x384xf32> -> vector<16x384xf32>
    %127 = arith.addf %122, %126 : vector<16x384xf32>
    %c32_123 = arith.constant 32 : index
    %c111_124 = arith.constant 111 : index
    %128 = vector.load %arg20[%c32_123, %c111_124] : memref<112x640xbf16, #tpu.memory_space<vmem>>, vector<16x384xbf16>
    %c2_125 = arith.constant 2 : index
    %c0_126 = arith.constant 0 : index
    %c0_127 = arith.constant 0 : index
    %129 = vector.load %arg7[%c2_125, %c0_126, %c0_127] : memref<9x16x16xbf16, #tpu.memory_space<vmem>>, vector<1x16x16xbf16>
    %130 = vector.shape_cast %129 : vector<1x16x16xbf16> to vector<16x16xbf16>
    %cst_128 = arith.constant dense<0.000000e+00> : vector<16x384xf32>
    %131 = tpu.matmul %130, %128, %cst_128 {dimension_numbers = #tpu.dot_dimension_numbers<[1], [0], [0], [1], [0, 0, 1, 1], [], []>} : vector<16x16xbf16>, vector<16x384xbf16>, vector<16x384xf32> -> vector<16x384xf32>
    %132 = arith.addf %127, %131 : vector<16x384xf32>
    %c32_129 = arith.constant 32 : index
    %c127_130 = arith.constant 127 : index
    %133 = vector.load %arg20[%c32_129, %c127_130] : memref<112x640xbf16, #tpu.memory_space<vmem>>, vector<16x384xbf16>
    %c3_131 = arith.constant 3 : index
    %c0_132 = arith.constant 0 : index
    %c0_133 = arith.constant 0 : index
    %134 = vector.load %arg7[%c3_131, %c0_132, %c0_133] : memref<9x16x16xbf16, #tpu.memory_space<vmem>>, vector<1x16x16xbf16>
    %135 = vector.shape_cast %134 : vector<1x16x16xbf16> to vector<16x16xbf16>
    %cst_134 = arith.constant dense<0.000000e+00> : vector<16x384xf32>
    %136 = tpu.matmul %135, %133, %cst_134 {dimension_numbers = #tpu.dot_dimension_numbers<[1], [0], [0], [1], [0, 0, 1, 1], [], []>} : vector<16x16xbf16>, vector<16x384xbf16>, vector<16x384xf32> -> vector<16x384xf32>
    %137 = arith.addf %132, %136 : vector<16x384xf32>
    %c32_135 = arith.constant 32 : index
    %c128_136 = arith.constant 128 : index
    %138 = vector.load %arg20[%c32_135, %c128_136] : memref<112x640xbf16, #tpu.memory_space<vmem>>, vector<16x384xbf16>
    %c4_137 = arith.constant 4 : index
    %c0_138 = arith.constant 0 : index
    %c0_139 = arith.constant 0 : index
    %139 = vector.load %arg7[%c4_137, %c0_138, %c0_139] : memref<9x16x16xbf16, #tpu.memory_space<vmem>>, vector<1x16x16xbf16>
    %140 = vector.shape_cast %139 : vector<1x16x16xbf16> to vector<16x16xbf16>
    %cst_140 = arith.constant dense<0.000000e+00> : vector<16x384xf32>
    %141 = tpu.matmul %140, %138, %cst_140 {dimension_numbers = #tpu.dot_dimension_numbers<[1], [0], [0], [1], [0, 0, 1, 1], [], []>} : vector<16x16xbf16>, vector<16x384xbf16>, vector<16x384xf32> -> vector<16x384xf32>
    %142 = arith.addf %137, %141 : vector<16x384xf32>
    %c32_141 = arith.constant 32 : index
    %c129_142 = arith.constant 129 : index
    %143 = vector.load %arg20[%c32_141, %c129_142] : memref<112x640xbf16, #tpu.memory_space<vmem>>, vector<16x384xbf16>
    %c5_143 = arith.constant 5 : index
    %c0_144 = arith.constant 0 : index
    %c0_145 = arith.constant 0 : index
    %144 = vector.load %arg7[%c5_143, %c0_144, %c0_145] : memref<9x16x16xbf16, #tpu.memory_space<vmem>>, vector<1x16x16xbf16>
    %145 = vector.shape_cast %144 : vector<1x16x16xbf16> to vector<16x16xbf16>
    %cst_146 = arith.constant dense<0.000000e+00> : vector<16x384xf32>
    %146 = tpu.matmul %145, %143, %cst_146 {dimension_numbers = #tpu.dot_dimension_numbers<[1], [0], [0], [1], [0, 0, 1, 1], [], []>} : vector<16x16xbf16>, vector<16x384xbf16>, vector<16x384xf32> -> vector<16x384xf32>
    %147 = arith.addf %142, %146 : vector<16x384xf32>
    %c32_147 = arith.constant 32 : index
    %c145_148 = arith.constant 145 : index
    %148 = vector.load %arg20[%c32_147, %c145_148] : memref<112x640xbf16, #tpu.memory_space<vmem>>, vector<16x384xbf16>
    %c6_149 = arith.constant 6 : index
    %c0_150 = arith.constant 0 : index
    %c0_151 = arith.constant 0 : index
    %149 = vector.load %arg7[%c6_149, %c0_150, %c0_151] : memref<9x16x16xbf16, #tpu.memory_space<vmem>>, vector<1x16x16xbf16>
    %150 = vector.shape_cast %149 : vector<1x16x16xbf16> to vector<16x16xbf16>
    %cst_152 = arith.constant dense<0.000000e+00> : vector<16x384xf32>
    %151 = tpu.matmul %150, %148, %cst_152 {dimension_numbers = #tpu.dot_dimension_numbers<[1], [0], [0], [1], [0, 0, 1, 1], [], []>} : vector<16x16xbf16>, vector<16x384xbf16>, vector<16x384xf32> -> vector<16x384xf32>
    %152 = arith.addf %147, %151 : vector<16x384xf32>
    %c32_153 = arith.constant 32 : index
    %c146_154 = arith.constant 146 : index
    %153 = vector.load %arg20[%c32_153, %c146_154] : memref<112x640xbf16, #tpu.memory_space<vmem>>, vector<16x384xbf16>
    %c7_155 = arith.constant 7 : index
    %c0_156 = arith.constant 0 : index
    %c0_157 = arith.constant 0 : index
    %154 = vector.load %arg7[%c7_155, %c0_156, %c0_157] : memref<9x16x16xbf16, #tpu.memory_space<vmem>>, vector<1x16x16xbf16>
    %155 = vector.shape_cast %154 : vector<1x16x16xbf16> to vector<16x16xbf16>
    %cst_158 = arith.constant dense<0.000000e+00> : vector<16x384xf32>
    %156 = tpu.matmul %155, %153, %cst_158 {dimension_numbers = #tpu.dot_dimension_numbers<[1], [0], [0], [1], [0, 0, 1, 1], [], []>} : vector<16x16xbf16>, vector<16x384xbf16>, vector<16x384xf32> -> vector<16x384xf32>
    %157 = arith.addf %152, %156 : vector<16x384xf32>
    %c32_159 = arith.constant 32 : index
    %c147_160 = arith.constant 147 : index
    %158 = vector.load %arg20[%c32_159, %c147_160] : memref<112x640xbf16, #tpu.memory_space<vmem>>, vector<16x384xbf16>
    %c8_161 = arith.constant 8 : index
    %c0_162 = arith.constant 0 : index
    %c0_163 = arith.constant 0 : index
    %159 = vector.load %arg7[%c8_161, %c0_162, %c0_163] : memref<9x16x16xbf16, #tpu.memory_space<vmem>>, vector<1x16x16xbf16>
    %160 = vector.shape_cast %159 : vector<1x16x16xbf16> to vector<16x16xbf16>
    %cst_164 = arith.constant dense<0.000000e+00> : vector<16x384xf32>
    %161 = tpu.matmul %160, %158, %cst_164 {dimension_numbers = #tpu.dot_dimension_numbers<[1], [0], [0], [1], [0, 0, 1, 1], [], []>} : vector<16x16xbf16>, vector<16x384xbf16>, vector<16x384xf32> -> vector<16x384xf32>
    %162 = arith.addf %157, %161 : vector<16x384xf32>
    %c0_165 = arith.constant 0 : index
    %c0_166 = arith.constant 0 : index
    %163 = vector.load %arg8[%c0_165, %c0_166] : memref<16x1xf32, #tpu.memory_space<vmem>>, vector<16x1xf32>
    %164 = vector.broadcast %163 : vector<16x1xf32> to vector<16x384xf32>
    %165 = arith.addf %162, %164 : vector<16x384xf32>
    %cst_167 = arith.constant 0.000000e+00 : f32
    %166 = vector.broadcast %cst_167 : f32 to vector<16x384xf32>
    %167 = arith.maximumf %165, %166 : vector<16x384xf32>
    %168 = vector.broadcast %3 : vector<1x384xf32> to vector<16x384xf32>
    %169 = arith.mulf %167, %168 : vector<16x384xf32>
    %170 = arith.truncf %169 : vector<16x384xf32> to vector<16x384xbf16>
    %c48 = arith.constant 48 : index
    %c128_168 = arith.constant 128 : index
    %171 = vector.load %arg20[%c48, %c128_168] : memref<112x640xbf16, #tpu.memory_space<vmem>>, vector<16x384xbf16>
    tpu.vector_store %arg20[%c48, %c128_168], %170 {strides = array<i32>} : memref<112x640xbf16, #tpu.memory_space<vmem>>, vector<16x384xbf16>,
    %cst_169 = arith.constant 0.000000e+00 : f32
    %172 = vector.broadcast %cst_169 : f32 to vector<16x384xf32>
    %c48_170 = arith.constant 48 : index
    %c109_171 = arith.constant 109 : index
    %173 = vector.load %arg20[%c48_170, %c109_171] : memref<112x640xbf16, #tpu.memory_space<vmem>>, vector<16x384xbf16>
    %c0_172 = arith.constant 0 : index
    %c0_173 = arith.constant 0 : index
    %c0_174 = arith.constant 0 : index
    %174 = vector.load %arg9[%c0_172, %c0_173, %c0_174] : memref<9x16x16xbf16, #tpu.memory_space<vmem>>, vector<1x16x16xbf16>
    %175 = vector.shape_cast %174 : vector<1x16x16xbf16> to vector<16x16xbf16>
    %cst_175 = arith.constant dense<0.000000e+00> : vector<16x384xf32>
    %176 = tpu.matmul %175, %173, %cst_175 {dimension_numbers = #tpu.dot_dimension_numbers<[1], [0], [0], [1], [0, 0, 1, 1], [], []>} : vector<16x16xbf16>, vector<16x384xbf16>, vector<16x384xf32> -> vector<16x384xf32>
    %177 = arith.addf %172, %176 : vector<16x384xf32>
    %c48_176 = arith.constant 48 : index
    %c110_177 = arith.constant 110 : index
    %178 = vector.load %arg20[%c48_176, %c110_177] : memref<112x640xbf16, #tpu.memory_space<vmem>>, vector<16x384xbf16>
    %c1_178 = arith.constant 1 : index
    %c0_179 = arith.constant 0 : index
    %c0_180 = arith.constant 0 : index
    %179 = vector.load %arg9[%c1_178, %c0_179, %c0_180] : memref<9x16x16xbf16, #tpu.memory_space<vmem>>, vector<1x16x16xbf16>
    %180 = vector.shape_cast %179 : vector<1x16x16xbf16> to vector<16x16xbf16>
    %cst_181 = arith.constant dense<0.000000e+00> : vector<16x384xf32>
    %181 = tpu.matmul %180, %178, %cst_181 {dimension_numbers = #tpu.dot_dimension_numbers<[1], [0], [0], [1], [0, 0, 1, 1], [], []>} : vector<16x16xbf16>, vector<16x384xbf16>, vector<16x384xf32> -> vector<16x384xf32>
    %182 = arith.addf %177, %181 : vector<16x384xf32>
    %c48_182 = arith.constant 48 : index
    %c111_183 = arith.constant 111 : index
    %183 = vector.load %arg20[%c48_182, %c111_183] : memref<112x640xbf16, #tpu.memory_space<vmem>>, vector<16x384xbf16>
    %c2_184 = arith.constant 2 : index
    %c0_185 = arith.constant 0 : index
    %c0_186 = arith.constant 0 : index
    %184 = vector.load %arg9[%c2_184, %c0_185, %c0_186] : memref<9x16x16xbf16, #tpu.memory_space<vmem>>, vector<1x16x16xbf16>
    %185 = vector.shape_cast %184 : vector<1x16x16xbf16> to vector<16x16xbf16>
    %cst_187 = arith.constant dense<0.000000e+00> : vector<16x384xf32>
    %186 = tpu.matmul %185, %183, %cst_187 {dimension_numbers = #tpu.dot_dimension_numbers<[1], [0], [0], [1], [0, 0, 1, 1], [], []>} : vector<16x16xbf16>, vector<16x384xbf16>, vector<16x384xf32> -> vector<16x384xf32>
    %187 = arith.addf %182, %186 : vector<16x384xf32>
    %c48_188 = arith.constant 48 : index
    %c127_189 = arith.constant 127 : index
    %188 = vector.load %arg20[%c48_188, %c127_189] : memref<112x640xbf16, #tpu.memory_space<vmem>>, vector<16x384xbf16>
    %c3_190 = arith.constant 3 : index
    %c0_191 = arith.constant 0 : index
    %c0_192 = arith.constant 0 : index
    %189 = vector.load %arg9[%c3_190, %c0_191, %c0_192] : memref<9x16x16xbf16, #tpu.memory_space<vmem>>, vector<1x16x16xbf16>
    %190 = vector.shape_cast %189 : vector<1x16x16xbf16> to vector<16x16xbf16>
    %cst_193 = arith.constant dense<0.000000e+00> : vector<16x384xf32>
    %191 = tpu.matmul %190, %188, %cst_193 {dimension_numbers = #tpu.dot_dimension_numbers<[1], [0], [0], [1], [0, 0, 1, 1], [], []>} : vector<16x16xbf16>, vector<16x384xbf16>, vector<16x384xf32> -> vector<16x384xf32>
    %192 = arith.addf %187, %191 : vector<16x384xf32>
    %c48_194 = arith.constant 48 : index
    %c128_195 = arith.constant 128 : index
    %193 = vector.load %arg20[%c48_194, %c128_195] : memref<112x640xbf16, #tpu.memory_space<vmem>>, vector<16x384xbf16>
    %c4_196 = arith.constant 4 : index
    %c0_197 = arith.constant 0 : index
    %c0_198 = arith.constant 0 : index
    %194 = vector.load %arg9[%c4_196, %c0_197, %c0_198] : memref<9x16x16xbf16, #tpu.memory_space<vmem>>, vector<1x16x16xbf16>
    %195 = vector.shape_cast %194 : vector<1x16x16xbf16> to vector<16x16xbf16>
    %cst_199 = arith.constant dense<0.000000e+00> : vector<16x384xf32>
    %196 = tpu.matmul %195, %193, %cst_199 {dimension_numbers = #tpu.dot_dimension_numbers<[1], [0], [0], [1], [0, 0, 1, 1], [], []>} : vector<16x16xbf16>, vector<16x384xbf16>, vector<16x384xf32> -> vector<16x384xf32>
    %197 = arith.addf %192, %196 : vector<16x384xf32>
    %c48_200 = arith.constant 48 : index
    %c129_201 = arith.constant 129 : index
    %198 = vector.load %arg20[%c48_200, %c129_201] : memref<112x640xbf16, #tpu.memory_space<vmem>>, vector<16x384xbf16>
    %c5_202 = arith.constant 5 : index
    %c0_203 = arith.constant 0 : index
    %c0_204 = arith.constant 0 : index
    %199 = vector.load %arg9[%c5_202, %c0_203, %c0_204] : memref<9x16x16xbf16, #tpu.memory_space<vmem>>, vector<1x16x16xbf16>
    %200 = vector.shape_cast %199 : vector<1x16x16xbf16> to vector<16x16xbf16>
    %cst_205 = arith.constant dense<0.000000e+00> : vector<16x384xf32>
    %201 = tpu.matmul %200, %198, %cst_205 {dimension_numbers = #tpu.dot_dimension_numbers<[1], [0], [0], [1], [0, 0, 1, 1], [], []>} : vector<16x16xbf16>, vector<16x384xbf16>, vector<16x384xf32> -> vector<16x384xf32>
    %202 = arith.addf %197, %201 : vector<16x384xf32>
    %c48_206 = arith.constant 48 : index
    %c145_207 = arith.constant 145 : index
    %203 = vector.load %arg20[%c48_206, %c145_207] : memref<112x640xbf16, #tpu.memory_space<vmem>>, vector<16x384xbf16>
    %c6_208 = arith.constant 6 : index
    %c0_209 = arith.constant 0 : index
    %c0_210 = arith.constant 0 : index
    %204 = vector.load %arg9[%c6_208, %c0_209, %c0_210] : memref<9x16x16xbf16, #tpu.memory_space<vmem>>, vector<1x16x16xbf16>
    %205 = vector.shape_cast %204 : vector<1x16x16xbf16> to vector<16x16xbf16>
    %cst_211 = arith.constant dense<0.000000e+00> : vector<16x384xf32>
    %206 = tpu.matmul %205, %203, %cst_211 {dimension_numbers = #tpu.dot_dimension_numbers<[1], [0], [0], [1], [0, 0, 1, 1], [], []>} : vector<16x16xbf16>, vector<16x384xbf16>, vector<16x384xf32> -> vector<16x384xf32>
    %207 = arith.addf %202, %206 : vector<16x384xf32>
    %c48_212 = arith.constant 48 : index
    %c146_213 = arith.constant 146 : index
    %208 = vector.load %arg20[%c48_212, %c146_213] : memref<112x640xbf16, #tpu.memory_space<vmem>>, vector<16x384xbf16>
    %c7_214 = arith.constant 7 : index
    %c0_215 = arith.constant 0 : index
    %c0_216 = arith.constant 0 : index
    %209 = vector.load %arg9[%c7_214, %c0_215, %c0_216] : memref<9x16x16xbf16, #tpu.memory_space<vmem>>, vector<1x16x16xbf16>
    %210 = vector.shape_cast %209 : vector<1x16x16xbf16> to vector<16x16xbf16>
    %cst_217 = arith.constant dense<0.000000e+00> : vector<16x384xf32>
    %211 = tpu.matmul %210, %208, %cst_217 {dimension_numbers = #tpu.dot_dimension_numbers<[1], [0], [0], [1], [0, 0, 1, 1], [], []>} : vector<16x16xbf16>, vector<16x384xbf16>, vector<16x384xf32> -> vector<16x384xf32>
    %212 = arith.addf %207, %211 : vector<16x384xf32>
    %c48_218 = arith.constant 48 : index
    %c147_219 = arith.constant 147 : index
    %213 = vector.load %arg20[%c48_218, %c147_219] : memref<112x640xbf16, #tpu.memory_space<vmem>>, vector<16x384xbf16>
    %c8_220 = arith.constant 8 : index
    %c0_221 = arith.constant 0 : index
    %c0_222 = arith.constant 0 : index
    %214 = vector.load %arg9[%c8_220, %c0_221, %c0_222] : memref<9x16x16xbf16, #tpu.memory_space<vmem>>, vector<1x16x16xbf16>
    %215 = vector.shape_cast %214 : vector<1x16x16xbf16> to vector<16x16xbf16>
    %cst_223 = arith.constant dense<0.000000e+00> : vector<16x384xf32>
    %216 = tpu.matmul %215, %213, %cst_223 {dimension_numbers = #tpu.dot_dimension_numbers<[1], [0], [0], [1], [0, 0, 1, 1], [], []>} : vector<16x16xbf16>, vector<16x384xbf16>, vector<16x384xf32> -> vector<16x384xf32>
    %217 = arith.addf %212, %216 : vector<16x384xf32>
    %c0_224 = arith.constant 0 : index
    %c0_225 = arith.constant 0 : index
    %218 = vector.load %arg10[%c0_224, %c0_225] : memref<16x1xf32, #tpu.memory_space<vmem>>, vector<16x1xf32>
    %219 = vector.broadcast %218 : vector<16x1xf32> to vector<16x384xf32>
    %220 = arith.addf %217, %219 : vector<16x384xf32>
    %cst_226 = arith.constant 0.000000e+00 : f32
    %221 = vector.broadcast %cst_226 : f32 to vector<16x384xf32>
    %222 = arith.maximumf %220, %221 : vector<16x384xf32>
    %223 = vector.broadcast %3 : vector<1x384xf32> to vector<16x384xf32>
    %224 = arith.mulf %222, %223 : vector<16x384xf32>
    %225 = arith.truncf %224 : vector<16x384xf32> to vector<16x384xbf16>
    %c64 = arith.constant 64 : index
    %c128_227 = arith.constant 128 : index
    %226 = vector.load %arg20[%c64, %c128_227] : memref<112x640xbf16, #tpu.memory_space<vmem>>, vector<16x384xbf16>
    tpu.vector_store %arg20[%c64, %c128_227], %225 {strides = array<i32>} : memref<112x640xbf16, #tpu.memory_space<vmem>>, vector<16x384xbf16>,
    %cst_228 = arith.constant 0.000000e+00 : f32
    %227 = vector.broadcast %cst_228 : f32 to vector<16x384xf32>
    %c64_229 = arith.constant 64 : index
    %c109_230 = arith.constant 109 : index
    %228 = vector.load %arg20[%c64_229, %c109_230] : memref<112x640xbf16, #tpu.memory_space<vmem>>, vector<16x384xbf16>
    %c0_231 = arith.constant 0 : index
    %c0_232 = arith.constant 0 : index
    %c0_233 = arith.constant 0 : index
    %229 = vector.load %arg11[%c0_231, %c0_232, %c0_233] : memref<9x16x16xbf16, #tpu.memory_space<vmem>>, vector<1x16x16xbf16>
    %230 = vector.shape_cast %229 : vector<1x16x16xbf16> to vector<16x16xbf16>
    %cst_234 = arith.constant dense<0.000000e+00> : vector<16x384xf32>
    %231 = tpu.matmul %230, %228, %cst_234 {dimension_numbers = #tpu.dot_dimension_numbers<[1], [0], [0], [1], [0, 0, 1, 1], [], []>} : vector<16x16xbf16>, vector<16x384xbf16>, vector<16x384xf32> -> vector<16x384xf32>
    %232 = arith.addf %227, %231 : vector<16x384xf32>
    %c64_235 = arith.constant 64 : index
    %c110_236 = arith.constant 110 : index
    %233 = vector.load %arg20[%c64_235, %c110_236] : memref<112x640xbf16, #tpu.memory_space<vmem>>, vector<16x384xbf16>
    %c1_237 = arith.constant 1 : index
    %c0_238 = arith.constant 0 : index
    %c0_239 = arith.constant 0 : index
    %234 = vector.load %arg11[%c1_237, %c0_238, %c0_239] : memref<9x16x16xbf16, #tpu.memory_space<vmem>>, vector<1x16x16xbf16>
    %235 = vector.shape_cast %234 : vector<1x16x16xbf16> to vector<16x16xbf16>
    %cst_240 = arith.constant dense<0.000000e+00> : vector<16x384xf32>
    %236 = tpu.matmul %235, %233, %cst_240 {dimension_numbers = #tpu.dot_dimension_numbers<[1], [0], [0], [1], [0, 0, 1, 1], [], []>} : vector<16x16xbf16>, vector<16x384xbf16>, vector<16x384xf32> -> vector<16x384xf32>
    %237 = arith.addf %232, %236 : vector<16x384xf32>
    %c64_241 = arith.constant 64 : index
    %c111_242 = arith.constant 111 : index
    %238 = vector.load %arg20[%c64_241, %c111_242] : memref<112x640xbf16, #tpu.memory_space<vmem>>, vector<16x384xbf16>
    %c2_243 = arith.constant 2 : index
    %c0_244 = arith.constant 0 : index
    %c0_245 = arith.constant 0 : index
    %239 = vector.load %arg11[%c2_243, %c0_244, %c0_245] : memref<9x16x16xbf16, #tpu.memory_space<vmem>>, vector<1x16x16xbf16>
    %240 = vector.shape_cast %239 : vector<1x16x16xbf16> to vector<16x16xbf16>
    %cst_246 = arith.constant dense<0.000000e+00> : vector<16x384xf32>
    %241 = tpu.matmul %240, %238, %cst_246 {dimension_numbers = #tpu.dot_dimension_numbers<[1], [0], [0], [1], [0, 0, 1, 1], [], []>} : vector<16x16xbf16>, vector<16x384xbf16>, vector<16x384xf32> -> vector<16x384xf32>
    %242 = arith.addf %237, %241 : vector<16x384xf32>
    %c64_247 = arith.constant 64 : index
    %c127_248 = arith.constant 127 : index
    %243 = vector.load %arg20[%c64_247, %c127_248] : memref<112x640xbf16, #tpu.memory_space<vmem>>, vector<16x384xbf16>
    %c3_249 = arith.constant 3 : index
    %c0_250 = arith.constant 0 : index
    %c0_251 = arith.constant 0 : index
    %244 = vector.load %arg11[%c3_249, %c0_250, %c0_251] : memref<9x16x16xbf16, #tpu.memory_space<vmem>>, vector<1x16x16xbf16>
    %245 = vector.shape_cast %244 : vector<1x16x16xbf16> to vector<16x16xbf16>
    %cst_252 = arith.constant dense<0.000000e+00> : vector<16x384xf32>
    %246 = tpu.matmul %245, %243, %cst_252 {dimension_numbers = #tpu.dot_dimension_numbers<[1], [0], [0], [1], [0, 0, 1, 1], [], []>} : vector<16x16xbf16>, vector<16x384xbf16>, vector<16x384xf32> -> vector<16x384xf32>
    %247 = arith.addf %242, %246 : vector<16x384xf32>
    %c64_253 = arith.constant 64 : index
    %c128_254 = arith.constant 128 : index
    %248 = vector.load %arg20[%c64_253, %c128_254] : memref<112x640xbf16, #tpu.memory_space<vmem>>, vector<16x384xbf16>
    %c4_255 = arith.constant 4 : index
    %c0_256 = arith.constant 0 : index
    %c0_257 = arith.constant 0 : index
    %249 = vector.load %arg11[%c4_255, %c0_256, %c0_257] : memref<9x16x16xbf16, #tpu.memory_space<vmem>>, vector<1x16x16xbf16>
    %250 = vector.shape_cast %249 : vector<1x16x16xbf16> to vector<16x16xbf16>
    %cst_258 = arith.constant dense<0.000000e+00> : vector<16x384xf32>
    %251 = tpu.matmul %250, %248, %cst_258 {dimension_numbers = #tpu.dot_dimension_numbers<[1], [0], [0], [1], [0, 0, 1, 1], [], []>} : vector<16x16xbf16>, vector<16x384xbf16>, vector<16x384xf32> -> vector<16x384xf32>
    %252 = arith.addf %247, %251 : vector<16x384xf32>
    %c64_259 = arith.constant 64 : index
    %c129_260 = arith.constant 129 : index
    %253 = vector.load %arg20[%c64_259, %c129_260] : memref<112x640xbf16, #tpu.memory_space<vmem>>, vector<16x384xbf16>
    %c5_261 = arith.constant 5 : index
    %c0_262 = arith.constant 0 : index
    %c0_263 = arith.constant 0 : index
    %254 = vector.load %arg11[%c5_261, %c0_262, %c0_263] : memref<9x16x16xbf16, #tpu.memory_space<vmem>>, vector<1x16x16xbf16>
    %255 = vector.shape_cast %254 : vector<1x16x16xbf16> to vector<16x16xbf16>
    %cst_264 = arith.constant dense<0.000000e+00> : vector<16x384xf32>
    %256 = tpu.matmul %255, %253, %cst_264 {dimension_numbers = #tpu.dot_dimension_numbers<[1], [0], [0], [1], [0, 0, 1, 1], [], []>} : vector<16x16xbf16>, vector<16x384xbf16>, vector<16x384xf32> -> vector<16x384xf32>
    %257 = arith.addf %252, %256 : vector<16x384xf32>
    %c64_265 = arith.constant 64 : index
    %c145_266 = arith.constant 145 : index
    %258 = vector.load %arg20[%c64_265, %c145_266] : memref<112x640xbf16, #tpu.memory_space<vmem>>, vector<16x384xbf16>
    %c6_267 = arith.constant 6 : index
    %c0_268 = arith.constant 0 : index
    %c0_269 = arith.constant 0 : index
    %259 = vector.load %arg11[%c6_267, %c0_268, %c0_269] : memref<9x16x16xbf16, #tpu.memory_space<vmem>>, vector<1x16x16xbf16>
    %260 = vector.shape_cast %259 : vector<1x16x16xbf16> to vector<16x16xbf16>
    %cst_270 = arith.constant dense<0.000000e+00> : vector<16x384xf32>
    %261 = tpu.matmul %260, %258, %cst_270 {dimension_numbers = #tpu.dot_dimension_numbers<[1], [0], [0], [1], [0, 0, 1, 1], [], []>} : vector<16x16xbf16>, vector<16x384xbf16>, vector<16x384xf32> -> vector<16x384xf32>
    %262 = arith.addf %257, %261 : vector<16x384xf32>
    %c64_271 = arith.constant 64 : index
    %c146_272 = arith.constant 146 : index
    %263 = vector.load %arg20[%c64_271, %c146_272] : memref<112x640xbf16, #tpu.memory_space<vmem>>, vector<16x384xbf16>
    %c7_273 = arith.constant 7 : index
    %c0_274 = arith.constant 0 : index
    %c0_275 = arith.constant 0 : index
    %264 = vector.load %arg11[%c7_273, %c0_274, %c0_275] : memref<9x16x16xbf16, #tpu.memory_space<vmem>>, vector<1x16x16xbf16>
    %265 = vector.shape_cast %264 : vector<1x16x16xbf16> to vector<16x16xbf16>
    %cst_276 = arith.constant dense<0.000000e+00> : vector<16x384xf32>
    %266 = tpu.matmul %265, %263, %cst_276 {dimension_numbers = #tpu.dot_dimension_numbers<[1], [0], [0], [1], [0, 0, 1, 1], [], []>} : vector<16x16xbf16>, vector<16x384xbf16>, vector<16x384xf32> -> vector<16x384xf32>
    %267 = arith.addf %262, %266 : vector<16x384xf32>
    %c64_277 = arith.constant 64 : index
    %c147_278 = arith.constant 147 : index
    %268 = vector.load %arg20[%c64_277, %c147_278] : memref<112x640xbf16, #tpu.memory_space<vmem>>, vector<16x384xbf16>
    %c8_279 = arith.constant 8 : index
    %c0_280 = arith.constant 0 : index
    %c0_281 = arith.constant 0 : index
    %269 = vector.load %arg11[%c8_279, %c0_280, %c0_281] : memref<9x16x16xbf16, #tpu.memory_space<vmem>>, vector<1x16x16xbf16>
    %270 = vector.shape_cast %269 : vector<1x16x16xbf16> to vector<16x16xbf16>
    %cst_282 = arith.constant dense<0.000000e+00> : vector<16x384xf32>
    %271 = tpu.matmul %270, %268, %cst_282 {dimension_numbers = #tpu.dot_dimension_numbers<[1], [0], [0], [1], [0, 0, 1, 1], [], []>} : vector<16x16xbf16>, vector<16x384xbf16>, vector<16x384xf32> -> vector<16x384xf32>
    %272 = arith.addf %267, %271 : vector<16x384xf32>
    %c0_283 = arith.constant 0 : index
    %c0_284 = arith.constant 0 : index
    %273 = vector.load %arg12[%c0_283, %c0_284] : memref<16x1xf32, #tpu.memory_space<vmem>>, vector<16x1xf32>
    %274 = vector.broadcast %273 : vector<16x1xf32> to vector<16x384xf32>
    %275 = arith.addf %272, %274 : vector<16x384xf32>
    %cst_285 = arith.constant 0.000000e+00 : f32
    %276 = vector.broadcast %cst_285 : f32 to vector<16x384xf32>
    %277 = arith.maximumf %275, %276 : vector<16x384xf32>
    %278 = vector.broadcast %3 : vector<1x384xf32> to vector<16x384xf32>
    %279 = arith.mulf %277, %278 : vector<16x384xf32>
    %280 = arith.truncf %279 : vector<16x384xf32> to vector<16x384xbf16>
    %c80 = arith.constant 80 : index
    %c128_286 = arith.constant 128 : index
    %281 = vector.load %arg20[%c80, %c128_286] : memref<112x640xbf16, #tpu.memory_space<vmem>>, vector<16x384xbf16>
    tpu.vector_store %arg20[%c80, %c128_286], %280 {strides = array<i32>} : memref<112x640xbf16, #tpu.memory_space<vmem>>, vector<16x384xbf16>,
    %cst_287 = arith.constant 0.000000e+00 : f32
    %282 = vector.broadcast %cst_287 : f32 to vector<16x384xf32>
    %c80_288 = arith.constant 80 : index
    %c109_289 = arith.constant 109 : index
    %283 = vector.load %arg20[%c80_288, %c109_289] : memref<112x640xbf16, #tpu.memory_space<vmem>>, vector<16x384xbf16>
    %c0_290 = arith.constant 0 : index
    %c0_291 = arith.constant 0 : index
    %c0_292 = arith.constant 0 : index
    %284 = vector.load %arg13[%c0_290, %c0_291, %c0_292] : memref<9x16x16xbf16, #tpu.memory_space<vmem>>, vector<1x16x16xbf16>
    %285 = vector.shape_cast %284 : vector<1x16x16xbf16> to vector<16x16xbf16>
    %cst_293 = arith.constant dense<0.000000e+00> : vector<16x384xf32>
    %286 = tpu.matmul %285, %283, %cst_293 {dimension_numbers = #tpu.dot_dimension_numbers<[1], [0], [0], [1], [0, 0, 1, 1], [], []>} : vector<16x16xbf16>, vector<16x384xbf16>, vector<16x384xf32> -> vector<16x384xf32>
    %287 = arith.addf %282, %286 : vector<16x384xf32>
    %c80_294 = arith.constant 80 : index
    %c110_295 = arith.constant 110 : index
    %288 = vector.load %arg20[%c80_294, %c110_295] : memref<112x640xbf16, #tpu.memory_space<vmem>>, vector<16x384xbf16>
    %c1_296 = arith.constant 1 : index
    %c0_297 = arith.constant 0 : index
    %c0_298 = arith.constant 0 : index
    %289 = vector.load %arg13[%c1_296, %c0_297, %c0_298] : memref<9x16x16xbf16, #tpu.memory_space<vmem>>, vector<1x16x16xbf16>
    %290 = vector.shape_cast %289 : vector<1x16x16xbf16> to vector<16x16xbf16>
    %cst_299 = arith.constant dense<0.000000e+00> : vector<16x384xf32>
    %291 = tpu.matmul %290, %288, %cst_299 {dimension_numbers = #tpu.dot_dimension_numbers<[1], [0], [0], [1], [0, 0, 1, 1], [], []>} : vector<16x16xbf16>, vector<16x384xbf16>, vector<16x384xf32> -> vector<16x384xf32>
    %292 = arith.addf %287, %291 : vector<16x384xf32>
    %c80_300 = arith.constant 80 : index
    %c111_301 = arith.constant 111 : index
    %293 = vector.load %arg20[%c80_300, %c111_301] : memref<112x640xbf16, #tpu.memory_space<vmem>>, vector<16x384xbf16>
    %c2_302 = arith.constant 2 : index
    %c0_303 = arith.constant 0 : index
    %c0_304 = arith.constant 0 : index
    %294 = vector.load %arg13[%c2_302, %c0_303, %c0_304] : memref<9x16x16xbf16, #tpu.memory_space<vmem>>, vector<1x16x16xbf16>
    %295 = vector.shape_cast %294 : vector<1x16x16xbf16> to vector<16x16xbf16>
    %cst_305 = arith.constant dense<0.000000e+00> : vector<16x384xf32>
    %296 = tpu.matmul %295, %293, %cst_305 {dimension_numbers = #tpu.dot_dimension_numbers<[1], [0], [0], [1], [0, 0, 1, 1], [], []>} : vector<16x16xbf16>, vector<16x384xbf16>, vector<16x384xf32> -> vector<16x384xf32>
    %297 = arith.addf %292, %296 : vector<16x384xf32>
    %c80_306 = arith.constant 80 : index
    %c127_307 = arith.constant 127 : index
    %298 = vector.load %arg20[%c80_306, %c127_307] : memref<112x640xbf16, #tpu.memory_space<vmem>>, vector<16x384xbf16>
    %c3_308 = arith.constant 3 : index
    %c0_309 = arith.constant 0 : index
    %c0_310 = arith.constant 0 : index
    %299 = vector.load %arg13[%c3_308, %c0_309, %c0_310] : memref<9x16x16xbf16, #tpu.memory_space<vmem>>, vector<1x16x16xbf16>
    %300 = vector.shape_cast %299 : vector<1x16x16xbf16> to vector<16x16xbf16>
    %cst_311 = arith.constant dense<0.000000e+00> : vector<16x384xf32>
    %301 = tpu.matmul %300, %298, %cst_311 {dimension_numbers = #tpu.dot_dimension_numbers<[1], [0], [0], [1], [0, 0, 1, 1], [], []>} : vector<16x16xbf16>, vector<16x384xbf16>, vector<16x384xf32> -> vector<16x384xf32>
    %302 = arith.addf %297, %301 : vector<16x384xf32>
    %c80_312 = arith.constant 80 : index
    %c128_313 = arith.constant 128 : index
    %303 = vector.load %arg20[%c80_312, %c128_313] : memref<112x640xbf16, #tpu.memory_space<vmem>>, vector<16x384xbf16>
    %c4_314 = arith.constant 4 : index
    %c0_315 = arith.constant 0 : index
    %c0_316 = arith.constant 0 : index
    %304 = vector.load %arg13[%c4_314, %c0_315, %c0_316] : memref<9x16x16xbf16, #tpu.memory_space<vmem>>, vector<1x16x16xbf16>
    %305 = vector.shape_cast %304 : vector<1x16x16xbf16> to vector<16x16xbf16>
    %cst_317 = arith.constant dense<0.000000e+00> : vector<16x384xf32>
    %306 = tpu.matmul %305, %303, %cst_317 {dimension_numbers = #tpu.dot_dimension_numbers<[1], [0], [0], [1], [0, 0, 1, 1], [], []>} : vector<16x16xbf16>, vector<16x384xbf16>, vector<16x384xf32> -> vector<16x384xf32>
    %307 = arith.addf %302, %306 : vector<16x384xf32>
    %c80_318 = arith.constant 80 : index
    %c129_319 = arith.constant 129 : index
    %308 = vector.load %arg20[%c80_318, %c129_319] : memref<112x640xbf16, #tpu.memory_space<vmem>>, vector<16x384xbf16>
    %c5_320 = arith.constant 5 : index
    %c0_321 = arith.constant 0 : index
    %c0_322 = arith.constant 0 : index
    %309 = vector.load %arg13[%c5_320, %c0_321, %c0_322] : memref<9x16x16xbf16, #tpu.memory_space<vmem>>, vector<1x16x16xbf16>
    %310 = vector.shape_cast %309 : vector<1x16x16xbf16> to vector<16x16xbf16>
    %cst_323 = arith.constant dense<0.000000e+00> : vector<16x384xf32>
    %311 = tpu.matmul %310, %308, %cst_323 {dimension_numbers = #tpu.dot_dimension_numbers<[1], [0], [0], [1], [0, 0, 1, 1], [], []>} : vector<16x16xbf16>, vector<16x384xbf16>, vector<16x384xf32> -> vector<16x384xf32>
    %312 = arith.addf %307, %311 : vector<16x384xf32>
    %c80_324 = arith.constant 80 : index
    %c145_325 = arith.constant 145 : index
    %313 = vector.load %arg20[%c80_324, %c145_325] : memref<112x640xbf16, #tpu.memory_space<vmem>>, vector<16x384xbf16>
    %c6_326 = arith.constant 6 : index
    %c0_327 = arith.constant 0 : index
    %c0_328 = arith.constant 0 : index
    %314 = vector.load %arg13[%c6_326, %c0_327, %c0_328] : memref<9x16x16xbf16, #tpu.memory_space<vmem>>, vector<1x16x16xbf16>
    %315 = vector.shape_cast %314 : vector<1x16x16xbf16> to vector<16x16xbf16>
    %cst_329 = arith.constant dense<0.000000e+00> : vector<16x384xf32>
    %316 = tpu.matmul %315, %313, %cst_329 {dimension_numbers = #tpu.dot_dimension_numbers<[1], [0], [0], [1], [0, 0, 1, 1], [], []>} : vector<16x16xbf16>, vector<16x384xbf16>, vector<16x384xf32> -> vector<16x384xf32>
    %317 = arith.addf %312, %316 : vector<16x384xf32>
    %c80_330 = arith.constant 80 : index
    %c146_331 = arith.constant 146 : index
    %318 = vector.load %arg20[%c80_330, %c146_331] : memref<112x640xbf16, #tpu.memory_space<vmem>>, vector<16x384xbf16>
    %c7_332 = arith.constant 7 : index
    %c0_333 = arith.constant 0 : index
    %c0_334 = arith.constant 0 : index
    %319 = vector.load %arg13[%c7_332, %c0_333, %c0_334] : memref<9x16x16xbf16, #tpu.memory_space<vmem>>, vector<1x16x16xbf16>
    %320 = vector.shape_cast %319 : vector<1x16x16xbf16> to vector<16x16xbf16>
    %cst_335 = arith.constant dense<0.000000e+00> : vector<16x384xf32>
    %321 = tpu.matmul %320, %318, %cst_335 {dimension_numbers = #tpu.dot_dimension_numbers<[1], [0], [0], [1], [0, 0, 1, 1], [], []>} : vector<16x16xbf16>, vector<16x384xbf16>, vector<16x384xf32> -> vector<16x384xf32>
    %322 = arith.addf %317, %321 : vector<16x384xf32>
    %c80_336 = arith.constant 80 : index
    %c147_337 = arith.constant 147 : index
    %323 = vector.load %arg20[%c80_336, %c147_337] : memref<112x640xbf16, #tpu.memory_space<vmem>>, vector<16x384xbf16>
    %c8_338 = arith.constant 8 : index
    %c0_339 = arith.constant 0 : index
    %c0_340 = arith.constant 0 : index
    %324 = vector.load %arg13[%c8_338, %c0_339, %c0_340] : memref<9x16x16xbf16, #tpu.memory_space<vmem>>, vector<1x16x16xbf16>
    %325 = vector.shape_cast %324 : vector<1x16x16xbf16> to vector<16x16xbf16>
    %cst_341 = arith.constant dense<0.000000e+00> : vector<16x384xf32>
    %326 = tpu.matmul %325, %323, %cst_341 {dimension_numbers = #tpu.dot_dimension_numbers<[1], [0], [0], [1], [0, 0, 1, 1], [], []>} : vector<16x16xbf16>, vector<16x384xbf16>, vector<16x384xf32> -> vector<16x384xf32>
    %327 = arith.addf %322, %326 : vector<16x384xf32>
    %c0_342 = arith.constant 0 : index
    %c0_343 = arith.constant 0 : index
    %328 = vector.load %arg14[%c0_342, %c0_343] : memref<16x1xf32, #tpu.memory_space<vmem>>, vector<16x1xf32>
    %329 = vector.broadcast %328 : vector<16x1xf32> to vector<16x384xf32>
    %330 = arith.addf %327, %329 : vector<16x384xf32>
    %cst_344 = arith.constant 0.000000e+00 : f32
    %331 = vector.broadcast %cst_344 : f32 to vector<16x384xf32>
    %332 = arith.maximumf %330, %331 : vector<16x384xf32>
    %333 = vector.broadcast %3 : vector<1x384xf32> to vector<16x384xf32>
    %334 = arith.mulf %332, %333 : vector<16x384xf32>
    %335 = arith.truncf %334 : vector<16x384xf32> to vector<16x384xbf16>
    %c96 = arith.constant 96 : index
    %c128_345 = arith.constant 128 : index
    %336 = vector.load %arg20[%c96, %c128_345] : memref<112x640xbf16, #tpu.memory_space<vmem>>, vector<16x384xbf16>
    tpu.vector_store %arg20[%c96, %c128_345], %335 {strides = array<i32>} : memref<112x640xbf16, #tpu.memory_space<vmem>>, vector<16x384xbf16>,
    %c0_346 = arith.constant 0 : index
    %c128_347 = arith.constant 128 : index
    %337 = vector.load %arg20[%c0_346, %c128_347] : memref<112x640xbf16, #tpu.memory_space<vmem>>, vector<112x384xbf16>
    %c0_348 = arith.constant 0 : index
    %c0_349 = arith.constant 0 : index
    %338 = vector.load %arg15[%c0_348, %c0_349] : memref<16x112xbf16, #tpu.memory_space<vmem>>, vector<16x112xbf16>
    %cst_350 = arith.constant dense<0.000000e+00> : vector<16x384xf32>
    %339 = tpu.matmul %338, %337, %cst_350 {dimension_numbers = #tpu.dot_dimension_numbers<[1], [0], [0], [1], [0, 0, 1, 1], [], []>} : vector<16x112xbf16>, vector<112x384xbf16>, vector<16x384xf32> -> vector<16x384xf32>
    %c0_351 = arith.constant 0 : index
    %c0_352 = arith.constant 0 : index
    %340 = vector.load %arg16[%c0_351, %c0_352] : memref<16x1xf32, #tpu.memory_space<vmem>>, vector<16x1xf32>
    %341 = vector.broadcast %340 : vector<16x1xf32> to vector<16x384xf32>
    %342 = arith.addf %339, %341 : vector<16x384xf32>
    %cst_353 = arith.constant 0.000000e+00 : f32
    %343 = vector.broadcast %cst_353 : f32 to vector<16x384xf32>
    %344 = arith.maximumf %342, %343 : vector<16x384xf32>
    %345 = arith.truncf %344 : vector<16x384xf32> to vector<16x384xbf16>
    %c0_354 = arith.constant 0 : index
    %c0_355 = arith.constant 0 : index
    %346 = vector.load %arg17[%c0_354, %c0_355] : memref<32x16xbf16, #tpu.memory_space<vmem>>, vector<32x16xbf16>
    %cst_356 = arith.constant dense<0.000000e+00> : vector<32x384xf32>
    %347 = tpu.matmul %346, %345, %cst_356 {dimension_numbers = #tpu.dot_dimension_numbers<[1], [0], [0], [1], [0, 0, 1, 1], [], []>} : vector<32x16xbf16>, vector<16x384xbf16>, vector<32x384xf32> -> vector<32x384xf32>
    %c0_357 = arith.constant 0 : index
    %c0_358 = arith.constant 0 : index
    %348 = vector.load %arg18[%c0_357, %c0_358] : memref<32x1xf32, #tpu.memory_space<vmem>>, vector<32x1xf32>
    %349 = vector.broadcast %348 : vector<32x1xf32> to vector<32x384xf32>
    %350 = arith.addf %347, %349 : vector<32x384xf32>
    %cst_359 = arith.constant 0.000000e+00 : f32
    %351 = vector.broadcast %cst_359 : f32 to vector<32x384xf32>
    %352 = arith.maximumf %350, %351 : vector<32x384xf32>
    %c0_360 = arith.constant 0 : index
    %c0_361 = arith.constant 0 : index
    %c0_362 = arith.constant 0 : index
    %353 = vector.load %arg19[%c0_360, %c0_361, %c0_362] : memref<1x32x384xf32, #tpu.memory_space<vmem>>, vector<1x32x384xf32>
    %354 = vector.shape_cast %353 : vector<1x32x384xf32> to vector<32x384xf32>
    %355 = vector.shape_cast %352 : vector<32x384xf32> to vector<1x32x384xf32>
    tpu.vector_store %arg19[%c0_360, %c0_361, %c0_362], %355 {strides = array<i32>} : memref<1x32x384xf32, #tpu.memory_space<vmem>>, vector<1x32x384xf32>,
    return
  }
  func.func @transform_0(%arg0: i32) -> (i32, i32, i32) {
    %c0_i32 = arith.constant 0 : i32
    %c0_i32_0 = arith.constant 0 : i32
    %c0_i32_1 = arith.constant 0 : i32
    return %arg0, %c0_i32, %c0_i32_0 : i32, i32, i32
  }
  func.func @transform_1(%arg0: i32) -> (i32, i32) {
    %c0_i32 = arith.constant 0 : i32
    %c0_i32_0 = arith.constant 0 : i32
    %c0_i32_1 = arith.constant 0 : i32
    return %c0_i32, %c0_i32_0 : i32, i32
  }
  func.func @transform_2(%arg0: i32) -> (i32, i32, i32) {
    %c0_i32 = arith.constant 0 : i32
    %c0_i32_0 = arith.constant 0 : i32
    %c0_i32_1 = arith.constant 0 : i32
    %c0_i32_2 = arith.constant 0 : i32
    return %c0_i32, %c0_i32_0, %c0_i32_1 : i32, i32, i32
  }
  func.func @transform_3(%arg0: i32) -> (i32, i32) {
    %c0_i32 = arith.constant 0 : i32
    %c0_i32_0 = arith.constant 0 : i32
    %c0_i32_1 = arith.constant 0 : i32
    return %c0_i32, %c0_i32_0 : i32, i32
  }
  func.func @transform_4(%arg0: i32) -> (i32, i32, i32) {
    %c0_i32 = arith.constant 0 : i32
    %c0_i32_0 = arith.constant 0 : i32
    %c0_i32_1 = arith.constant 0 : i32
    %c0_i32_2 = arith.constant 0 : i32
    return %c0_i32, %c0_i32_0, %c0_i32_1 : i32, i32, i32
  }
  func.func @transform_5(%arg0: i32) -> (i32, i32) {
    %c0_i32 = arith.constant 0 : i32
    %c0_i32_0 = arith.constant 0 : i32
    %c0_i32_1 = arith.constant 0 : i32
    return %c0_i32, %c0_i32_0 : i32, i32
  }
  func.func @transform_6(%arg0: i32) -> (i32, i32, i32) {
    %c0_i32 = arith.constant 0 : i32
    %c0_i32_0 = arith.constant 0 : i32
    %c0_i32_1 = arith.constant 0 : i32
    %c0_i32_2 = arith.constant 0 : i32
    return %c0_i32, %c0_i32_0, %c0_i32_1 : i32, i32, i32
  }
  func.func @transform_7(%arg0: i32) -> (i32, i32) {
    %c0_i32 = arith.constant 0 : i32
    %c0_i32_0 = arith.constant 0 : i32
    %c0_i32_1 = arith.constant 0 : i32
    return %c0_i32, %c0_i32_0 : i32, i32
  }
  func.func @transform_8(%arg0: i32) -> (i32, i32, i32) {
    %c0_i32 = arith.constant 0 : i32
    %c0_i32_0 = arith.constant 0 : i32
    %c0_i32_1 = arith.constant 0 : i32
    %c0_i32_2 = arith.constant 0 : i32
    return %c0_i32, %c0_i32_0, %c0_i32_1 : i32, i32, i32
  }
  func.func @transform_9(%arg0: i32) -> (i32, i32) {
    %c0_i32 = arith.constant 0 : i32
    %c0_i32_0 = arith.constant 0 : i32
    %c0_i32_1 = arith.constant 0 : i32
    return %c0_i32, %c0_i32_0 : i32, i32
  }
  func.func @transform_10(%arg0: i32) -> (i32, i32, i32) {
    %c0_i32 = arith.constant 0 : i32
    %c0_i32_0 = arith.constant 0 : i32
    %c0_i32_1 = arith.constant 0 : i32
    %c0_i32_2 = arith.constant 0 : i32
    return %c0_i32, %c0_i32_0, %c0_i32_1 : i32, i32, i32
  }
  func.func @transform_11(%arg0: i32) -> (i32, i32) {
    %c0_i32 = arith.constant 0 : i32
    %c0_i32_0 = arith.constant 0 : i32
    %c0_i32_1 = arith.constant 0 : i32
    return %c0_i32, %c0_i32_0 : i32, i32
  }
  func.func @transform_12(%arg0: i32) -> (i32, i32, i32) {
    %c0_i32 = arith.constant 0 : i32
    %c0_i32_0 = arith.constant 0 : i32
    %c0_i32_1 = arith.constant 0 : i32
    %c0_i32_2 = arith.constant 0 : i32
    return %c0_i32, %c0_i32_0, %c0_i32_1 : i32, i32, i32
  }
  func.func @transform_13(%arg0: i32) -> (i32, i32) {
    %c0_i32 = arith.constant 0 : i32
    %c0_i32_0 = arith.constant 0 : i32
    %c0_i32_1 = arith.constant 0 : i32
    return %c0_i32, %c0_i32_0 : i32, i32
  }
  func.func @transform_14(%arg0: i32) -> (i32, i32) {
    %c0_i32 = arith.constant 0 : i32
    %c0_i32_0 = arith.constant 0 : i32
    %c0_i32_1 = arith.constant 0 : i32
    return %c0_i32, %c0_i32_0 : i32, i32
  }
  func.func @transform_15(%arg0: i32) -> (i32, i32) {
    %c0_i32 = arith.constant 0 : i32
    %c0_i32_0 = arith.constant 0 : i32
    %c0_i32_1 = arith.constant 0 : i32
    return %c0_i32, %c0_i32_0 : i32, i32
  }
  func.func @transform_16(%arg0: i32) -> (i32, i32) {
    %c0_i32 = arith.constant 0 : i32
    %c0_i32_0 = arith.constant 0 : i32
    %c0_i32_1 = arith.constant 0 : i32
    return %c0_i32, %c0_i32_0 : i32, i32
  }
  func.func @transform_17(%arg0: i32) -> (i32, i32) {
    %c0_i32 = arith.constant 0 : i32
    %c0_i32_0 = arith.constant 0 : i32
    %c0_i32_1 = arith.constant 0 : i32
    return %c0_i32, %c0_i32_0 : i32, i32
  }
  func.func @transform_18(%arg0: i32) -> (i32, i32, i32) {
    %c0_i32 = arith.constant 0 : i32
    %c0_i32_0 = arith.constant 0 : i32
    %c0_i32_1 = arith.constant 0 : i32
    return %arg0, %c0_i32, %c0_i32_0 : i32, i32, i32
  }
}

</mosaic_0001>

<llo_original>
// kernel: tpu_custom_call.1
$region0: #{tpu_custom_call.1}
  #allocation0 [shape = 'u32[]', space=smem, size = 0x4, offset = 0x4, fixed_abs, tag = 'smem constant byte address 0x4 - core index']
  #allocation1 [shape = 'u32[144,128]{1,0:T(1,128)}', space=vmem, size = 0x12000, scoped, tag = 'internal scratch']
  #allocation2 [shape = 'bf16[112,640]{1,0:T(16,128)(2,1)}', space=vmem, size = 0x23000, scoped, tag = 'scratch operand']
  %s0 = inlined_call_operand.hbm [shape: bf16[2,16,384], index: 0, kind: input, shape index: {}]
  %s1 = inlined_call_operand.hbm [shape: f32[1,384], index: 1, kind: input, shape index: {}]
  %s2 = inlined_call_operand.vmem [shape: bf16[9,16,16], index: 2, kind: input, shape index: {}]
  %s3 = inlined_call_operand.vmem [shape: f32[16,1], index: 3, kind: input, shape index: {}]
  %s4 = inlined_call_operand.vmem [shape: bf16[9,16,16], index: 4, kind: input, shape index: {}]
  %s5 = inlined_call_operand.vmem [shape: f32[16,1], index: 5, kind: input, shape index: {}]
  %s6 = inlined_call_operand.hbm [shape: bf16[9,16,16], index: 6, kind: input, shape index: {}]
  %s7 = inlined_call_operand.vmem [shape: f32[16,1], index: 7, kind: input, shape index: {}]
  %s8 = inlined_call_operand.hbm [shape: bf16[9,16,16], index: 8, kind: input, shape index: {}]
  %s9 = inlined_call_operand.vmem [shape: f32[16,1], index: 9, kind: input, shape index: {}]
  %s10 = inlined_call_operand.hbm [shape: bf16[9,16,16], index: 10, kind: input, shape index: {}]
  %s11 = inlined_call_operand.vmem [shape: f32[16,1], index: 11, kind: input, shape index: {}]
  %s12 = inlined_call_operand.vmem [shape: bf16[9,16,16], index: 12, kind: input, shape index: {}]
  %s13 = inlined_call_operand.vmem [shape: f32[16,1], index: 13, kind: input, shape index: {}]
  %s14 = inlined_call_operand.vmem [shape: bf16[16,112], index: 14, kind: input, shape index: {}]
  %s15 = inlined_call_operand.vmem [shape: f32[16,1], index: 15, kind: input, shape index: {}]
  %s16 = inlined_call_operand.vmem [shape: bf16[32,16], index: 16, kind: input, shape index: {}]
  %s17 = inlined_call_operand.vmem [shape: f32[32,1], index: 17, kind: input, shape index: {}]
  %s18 = inlined_call_operand.hbm [shape: f32[2,32,384], index: 18, kind: output, shape index: {}]
  %s19 = sld [smem:[#allocation0]]
  $region125: #{tpu_custom_call.1} parent=0
    _
  %s21 = ssub.s32 1, %s19
  %s22 = scalar_select 0, %s21, %s19
  $region1: #{tpu_custom_call.1} parent=0
    #allocation3 [shape = 'u8[24576]{0}', space=vmem, size = 0x6000, scoped, tag = 'input window, operand 0']
    #allocation4 [shape = 's32[2]{0}', space=sflag, size = 0x8, scoped, tag = 'scoped memory for tpu_custom_call.1']
    #allocation5 [shape = 's32[2]{0}', space=sflag, size = 0x8, scoped, tag = 'scoped memory for tpu_custom_call.1']
    #allocation6 [shape = 'u8[1536]{0}', space=vmem, size = 0x800, scoped, tag = 'input window, operand 1, single buffered']
    #allocation7 [shape = 's32[1]{0}', space=sflag, size = 0x4, scoped, tag = 'scoped memory for tpu_custom_call.1']
    #allocation8 [shape = 'u8[36864]{0}', space=vmem, size = 0x9000, scoped, tag = 'input window, operand 6, single buffered']
    #allocation9 [shape = 'u8[36864]{0}', space=vmem, size = 0x9000, scoped, tag = 'input window, operand 8, single buffered']
    #allocation10 [shape = 's32[1]{0}', space=sflag, size = 0x4, scoped, tag = 'scoped memory for tpu_custom_call.1']
    #allocation11 [shape = 'u8[36864]{0}', space=vmem, size = 0x9000, scoped, tag = 'input window, operand 10, single buffered']
    #allocation12 [shape = 'u8[98304]{0}', space=vmem, size = 0x18000, scoped, tag = 'output window, operand 0']
    %23 = vsyncpa [#allocation4], 0
    %s24 = scalar_lea.sflag [#allocation4], 1
    %25 = vsyncpa %s24, 0
    %26 = vsyncpa [#allocation7], 0
    %27 = vsyncpa [#allocation10], 0
    %28 = vsyncpa [#allocation5], 0
    %s29 = scalar_lea.sflag [#allocation5], 1
    %30 = vsyncpa %s29, 0
    loop: start=0, step=1, limit=4
    $region2: #{tpu_custom_call.1} parent=1 // loop_pre_header
      _
    $region3: #{tpu_custom_call.1} parent=1 // loop_header
      %s32 = sphi 0, %s36
      %p33 = scmp.ge.s32.totalorder %s32, 4
      %s42 = sphi 0, %s44
      %s45 = sphi 0, %s42
      %s46 = sphi 0, %s45
      %s62 = sphi 0, %s46
      %s66 = sphi 0, %s66
      %s68 = sphi 0, %s66
      %s69 = sphi 0, %s68
      %s83 = sphi 0, %s69
      %s87 = sphi 0, %s87
      %s89 = sphi 0, %s87
      %s90 = sphi 0, %s89
      %s104 = sphi 0, %s90
      %s108 = sphi 0, %s108
      %s110 = sphi 0, %s108
      %s111 = sphi 0, %s110
      %s125 = sphi 0, %s111
      %s129 = sphi 0, %s129
      %s131 = sphi 0, %s129
      %s132 = sphi 0, %s131
      %s146 = sphi 0, %s132
      %s150 = sphi 0, %s150
      %s152 = sphi 0, %s150
      %s153 = sphi 0, %s152
      %s167 = sphi 0, %s153
      %s171 = sphi 0, %s171
      %s173 = sphi 0, %s171
      %s174 = sphi 0, %s173
      %s188 = sphi 0, %s174
      %s192 = sphi 0, %s192
      %s194 = sphi 0, %s192
      %s195 = sphi 0, %s194
      %s209 = sphi 0, %s195
      %s213 = sphi 0, %s213
      %s215 = sphi 0, %s213
      %s216 = sphi 0, %s215
      %s230 = sphi 0, %s216
      %s234 = sphi 0, %s234
      %s236 = sphi 0, %s234
      %s237 = sphi 0, %s236
      %s251 = sphi 0, %s237
      %s255 = sphi 0, %s255
      %s257 = sphi 0, %s255
      %s258 = sphi 0, %s257
      %s272 = sphi 0, %s258
      %s276 = sphi 0, %s276
      %s278 = sphi 0, %s276
      %s279 = sphi 0, %s278
      %s293 = sphi 0, %s279
      %s297 = sphi 0, %s297
      %s299 = sphi 0, %s297
      %s300 = sphi 0, %s299
      %s314 = sphi 0, %s300
      %s318 = sphi 0, %s318
      %s320 = sphi 0, %s318
      %s321 = sphi 0, %s320
      %s335 = sphi 0, %s321
      %s339 = sphi 0, %s339
      %s341 = sphi 0, %s339
      %s342 = sphi 0, %s341
      %s356 = sphi 0, %s342
      %s360 = sphi 0, %s360
      %s362 = sphi 0, %s360
      %s363 = sphi 0, %s362
      %s377 = sphi 0, %s363
      %s381 = sphi 0, %s381
      %s383 = sphi 0, %s381
      %s384 = sphi 0, %s383
      %s398 = sphi 0, %s384
      %s402 = sphi 0, %s402
      %s404 = sphi 0, %s402
      %s405 = sphi 0, %s404
      %s419 = sphi 0, %s405
      %s425 = sphi 0, %s427
      %s428 = sphi 0, %s425
      %s429 = sphi 0, %s428
      %s445 = sphi 0, %s429
    $region4: #{tpu_custom_call.1} parent=1 // loop_header_branch
      %35 = sbr.rel (%p33) target = $region8
    $region5: #{tpu_custom_call.1} parent=1 // loop_body
      %s37 = ssub.s32 %s32, 1
      %s38 = ssub.s32 %s32, 2
      %s39 = sadd.s32 %s32, 1
      %s40 = ssub.s32 %s32, %s39
      %p41 = scmp.eq.s32.totalorder %s40, 0
      %s43 = sadd.s32 %s42, 1
      %s44 = scalar_select %p41, %s42, %s43
      %p47 = pneg %p41
      %p48 = scmp.eq.s32.totalorder %s32, 1
      %p49 = por %p47, %p48
      %p50 = scmp.ne.s32.totalorder %s42, %s45
      %p51 = scmp.eq.s32.totalorder %s32, 0
      %p52 = por %p50, %p51
      %p53 = scmp.ne.s32.totalorder %s42, %s45
      %p54 = scmp.eq.s32.totalorder %s37, 1
      %p55 = por %p53, %p54
      %p56 = scmp.ne.s32.totalorder %s45, %s46
      %p57 = scmp.eq.s32.totalorder %s37, 0
      %p58 = por %p56, %p57
      %p59 = scmp.ne.s32.totalorder %s45, %s46
      %p60 = scmp.eq.s32.totalorder %s38, 1
      %p61 = por %p59, %p60
      %p63 = scmp.ne.s32.totalorder %s46, %s62
      %p64 = scmp.eq.s32.totalorder %s38, 0
      %p65 = por %p63, %p64
      %s67 = sadd.s32 %s66, 1
      %p70 = scmp.eq.s32.totalorder %s32, 1
      %p71 = scmp.ne.s32.totalorder %s66, %s68
      %p72 = scmp.eq.s32.totalorder %s32, 0
      %p73 = por %p71, %p72
      %p74 = scmp.ne.s32.totalorder %s66, %s68
      %p75 = scmp.eq.s32.totalorder %s37, 1
      %p76 = por %p74, %p75
      %p77 = scmp.ne.s32.totalorder %s68, %s69
      %p78 = scmp.eq.s32.totalorder %s37, 0
      %p79 = por %p77, %p78
      %p80 = scmp.ne.s32.totalorder %s68, %s69
      %p81 = scmp.eq.s32.totalorder %s38, 1
      %p82 = por %p80, %p81
      %p84 = scmp.ne.s32.totalorder %s69, %s83
      %p85 = scmp.eq.s32.totalorder %s38, 0
      %p86 = por %p84, %p85
      %s88 = sadd.s32 %s87, 1
      %p91 = scmp.eq.s32.totalorder %s32, 1
      %p92 = scmp.ne.s32.totalorder %s87, %s89
      %p93 = scmp.eq.s32.totalorder %s32, 0
      %p94 = por %p92, %p93
      %p95 = scmp.ne.s32.totalorder %s87, %s89
      %p96 = scmp.eq.s32.totalorder %s37, 1
      %p97 = por %p95, %p96
      %p98 = scmp.ne.s32.totalorder %s89, %s90
      %p99 = scmp.eq.s32.totalorder %s37, 0
      %p100 = por %p98, %p99
      %p101 = scmp.ne.s32.totalorder %s89, %s90
      %p102 = scmp.eq.s32.totalorder %s38, 1
      %p103 = por %p101, %p102
      %p105 = scmp.ne.s32.totalorder %s90, %s104
      %p106 = scmp.eq.s32.totalorder %s38, 0
      %p107 = por %p105, %p106
      %s109 = sadd.s32 %s108, 1
      %p112 = scmp.eq.s32.totalorder %s32, 1
      %p113 = scmp.ne.s32.totalorder %s108, %s110
      %p114 = scmp.eq.s32.totalorder %s32, 0
      %p115 = por %p113, %p114
      %p116 = scmp.ne.s32.totalorder %s108, %s110
      %p117 = scmp.eq.s32.totalorder %s37, 1
      %p118 = por %p116, %p117
      %p119 = scmp.ne.s32.totalorder %s110, %s111
      %p120 = scmp.eq.s32.totalorder %s37, 0
      %p121 = por %p119, %p120
      %p122 = scmp.ne.s32.totalorder %s110, %s111
      %p123 = scmp.eq.s32.totalorder %s38, 1
      %p124 = por %p122, %p123
      %p126 = scmp.ne.s32.totalorder %s111, %s125
      %p127 = scmp.eq.s32.totalorder %s38, 0
      %p128 = por %p126, %p127
      %s130 = sadd.s32 %s129, 1
      %p133 = scmp.eq.s32.totalorder %s32, 1
      %p134 = scmp.ne.s32.totalorder %s129, %s131
      %p135 = scmp.eq.s32.totalorder %s32, 0
      %p136 = por %p134, %p135
      %p137 = scmp.ne.s32.totalorder %s129, %s131
      %p138 = scmp.eq.s32.totalorder %s37, 1
      %p139 = por %p137, %p138
      %p140 = scmp.ne.s32.totalorder %s131, %s132
      %p141 = scmp.eq.s32.totalorder %s37, 0
      %p142 = por %p140, %p141
      %p143 = scmp.ne.s32.totalorder %s131, %s132
      %p144 = scmp.eq.s32.totalorder %s38, 1
      %p145 = por %p143, %p144
      %p147 = scmp.ne.s32.totalorder %s132, %s146
      %p148 = scmp.eq.s32.totalorder %s38, 0
      %p149 = por %p147, %p148
      %s151 = sadd.s32 %s150, 1
      %p154 = scmp.eq.s32.totalorder %s32, 1
      %p155 = scmp.ne.s32.totalorder %s150, %s152
      %p156 = scmp.eq.s32.totalorder %s32, 0
      %p157 = por %p155, %p156
      %p158 = scmp.ne.s32.totalorder %s150, %s152
      %p159 = scmp.eq.s32.totalorder %s37, 1
      %p160 = por %p158, %p159
      %p161 = scmp.ne.s32.totalorder %s152, %s153
      %p162 = scmp.eq.s32.totalorder %s37, 0
      %p163 = por %p161, %p162
      %p164 = scmp.ne.s32.totalorder %s152, %s153
      %p165 = scmp.eq.s32.totalorder %s38, 1
      %p166 = por %p164, %p165
      %p168 = scmp.ne.s32.totalorder %s153, %s167
      %p169 = scmp.eq.s32.totalorder %s38, 0
      %p170 = por %p168, %p169
      %s172 = sadd.s32 %s171, 1
      %p175 = scmp.eq.s32.totalorder %s32, 1
      %p176 = scmp.ne.s32.totalorder %s171, %s173
      %p177 = scmp.eq.s32.totalorder %s32, 0
      %p178 = por %p176, %p177
      %p179 = scmp.ne.s32.totalorder %s171, %s173
      %p180 = scmp.eq.s32.totalorder %s37, 1
      %p181 = por %p179, %p180
      %p182 = scmp.ne.s32.totalorder %s173, %s174
      %p183 = scmp.eq.s32.totalorder %s37, 0
      %p184 = por %p182, %p183
      %p185 = scmp.ne.s32.totalorder %s173, %s174
      %p186 = scmp.eq.s32.totalorder %s38, 1
      %p187 = por %p185, %p186
      %p189 = scmp.ne.s32.totalorder %s174, %s188
      %p190 = scmp.eq.s32.totalorder %s38, 0
      %p191 = por %p189, %p190
      %s193 = sadd.s32 %s192, 1
      %p196 = scmp.eq.s32.totalorder %s32, 1
      %p197 = scmp.ne.s32.totalorder %s192, %s194
      %p198 = scmp.eq.s32.totalorder %s32, 0
      %p199 = por %p197, %p198
      %p200 = scmp.ne.s32.totalorder %s192, %s194
      %p201 = scmp.eq.s32.totalorder %s37, 1
      %p202 = por %p200, %p201
      %p203 = scmp.ne.s32.totalorder %s194, %s195
      %p204 = scmp.eq.s32.totalorder %s37, 0
      %p205 = por %p203, %p204
      %p206 = scmp.ne.s32.totalorder %s194, %s195
      %p207 = scmp.eq.s32.totalorder %s38, 1
      %p208 = por %p206, %p207
      %p210 = scmp.ne.s32.totalorder %s195, %s209
      %p211 = scmp.eq.s32.totalorder %s38, 0
      %p212 = por %p210, %p211
      %s214 = sadd.s32 %s213, 1
      %p217 = scmp.eq.s32.totalorder %s32, 1
      %p218 = scmp.ne.s32.totalorder %s213, %s215
      %p219 = scmp.eq.s32.totalorder %s32, 0
      %p220 = por %p218, %p219
      %p221 = scmp.ne.s32.totalorder %s213, %s215
      %p222 = scmp.eq.s32.totalorder %s37, 1
      %p223 = por %p221, %p222
      %p224 = scmp.ne.s32.totalorder %s215, %s216
      %p225 = scmp.eq.s32.totalorder %s37, 0
      %p226 = por %p224, %p225
      %p227 = scmp.ne.s32.totalorder %s215, %s216
      %p228 = scmp.eq.s32.totalorder %s38, 1
      %p229 = por %p227, %p228
      %p231 = scmp.ne.s32.totalorder %s216, %s230
      %p232 = scmp.eq.s32.totalorder %s38, 0
      %p233 = por %p231, %p232
      %s235 = sadd.s32 %s234, 1
      %p238 = scmp.eq.s32.totalorder %s32, 1
      %p239 = scmp.ne.s32.totalorder %s234, %s236
      %p240 = scmp.eq.s32.totalorder %s32, 0
      %p241 = por %p239, %p240
      %p242 = scmp.ne.s32.totalorder %s234, %s236
      %p243 = scmp.eq.s32.totalorder %s37, 1
      %p244 = por %p242, %p243
      %p245 = scmp.ne.s32.totalorder %s236, %s237
      %p246 = scmp.eq.s32.totalorder %s37, 0
      %p247 = por %p245, %p246
      %p248 = scmp.ne.s32.totalorder %s236, %s237
      %p249 = scmp.eq.s32.totalorder %s38, 1
      %p250 = por %p248, %p249
      %p252 = scmp.ne.s32.totalorder %s237, %s251
      %p253 = scmp.eq.s32.totalorder %s38, 0
      %p254 = por %p252, %p253
      %s256 = sadd.s32 %s255, 1
      %p259 = scmp.eq.s32.totalorder %s32, 1
      %p260 = scmp.ne.s32.totalorder %s255, %s257
      %p261 = scmp.eq.s32.totalorder %s32, 0
      %p262 = por %p260, %p261
      %p263 = scmp.ne.s32.totalorder %s255, %s257
      %p264 = scmp.eq.s32.totalorder %s37, 1
      %p265 = por %p263, %p264
      %p266 = scmp.ne.s32.totalorder %s257, %s258
      %p267 = scmp.eq.s32.totalorder %s37, 0
      %p268 = por %p266, %p267
      %p269 = scmp.ne.s32.totalorder %s257, %s258
      %p270 = scmp.eq.s32.totalorder %s38, 1
      %p271 = por %p269, %p270
      %p273 = scmp.ne.s32.totalorder %s258, %s272
      %p274 = scmp.eq.s32.totalorder %s38, 0
      %p275 = por %p273, %p274
      %s277 = sadd.s32 %s276, 1
      %p280 = scmp.eq.s32.totalorder %s32, 1
      %p281 = scmp.ne.s32.totalorder %s276, %s278
      %p282 = scmp.eq.s32.totalorder %s32, 0
      %p283 = por %p281, %p282
      %p284 = scmp.ne.s32.totalorder %s276, %s278
      %p285 = scmp.eq.s32.totalorder %s37, 1
      %p286 = por %p284, %p285
      %p287 = scmp.ne.s32.totalorder %s278, %s279
      %p288 = scmp.eq.s32.totalorder %s37, 0
      %p289 = por %p287, %p288
      %p290 = scmp.ne.s32.totalorder %s278, %s279
      %p291 = scmp.eq.s32.totalorder %s38, 1
      %p292 = por %p290, %p291
      %p294 = scmp.ne.s32.totalorder %s279, %s293
      %p295 = scmp.eq.s32.totalorder %s38, 0
      %p296 = por %p294, %p295
      %s298 = sadd.s32 %s297, 1
      %p301 = scmp.eq.s32.totalorder %s32, 1
      %p302 = scmp.ne.s32.totalorder %s297, %s299
      %p303 = scmp.eq.s32.totalorder %s32, 0
      %p304 = por %p302, %p303
      %p305 = scmp.ne.s32.totalorder %s297, %s299
      %p306 = scmp.eq.s32.totalorder %s37, 1
      %p307 = por %p305, %p306
      %p308 = scmp.ne.s32.totalorder %s299, %s300
      %p309 = scmp.eq.s32.totalorder %s37, 0
      %p310 = por %p308, %p309
      %p311 = scmp.ne.s32.totalorder %s299, %s300
      %p312 = scmp.eq.s32.totalorder %s38, 1
      %p313 = por %p311, %p312
      %p315 = scmp.ne.s32.totalorder %s300, %s314
      %p316 = scmp.eq.s32.totalorder %s38, 0
      %p317 = por %p315, %p316
      %s319 = sadd.s32 %s318, 1
      %p322 = scmp.eq.s32.totalorder %s32, 1
      %p323 = scmp.ne.s32.totalorder %s318, %s320
      %p324 = scmp.eq.s32.totalorder %s32, 0
      %p325 = por %p323, %p324
      %p326 = scmp.ne.s32.totalorder %s318, %s320
      %p327 = scmp.eq.s32.totalorder %s37, 1
      %p328 = por %p326, %p327
      %p329 = scmp.ne.s32.totalorder %s320, %s321
      %p330 = scmp.eq.s32.totalorder %s37, 0
      %p331 = por %p329, %p330
      %p332 = scmp.ne.s32.totalorder %s320, %s321
      %p333 = scmp.eq.s32.totalorder %s38, 1
      %p334 = por %p332, %p333
      %p336 = scmp.ne.s32.totalorder %s321, %s335
      %p337 = scmp.eq.s32.totalorder %s38, 0
      %p338 = por %p336, %p337
      %s340 = sadd.s32 %s339, 1
      %p343 = scmp.eq.s32.totalorder %s32, 1
      %p344 = scmp.ne.s32.totalorder %s339, %s341
      %p345 = scmp.eq.s32.totalorder %s32, 0
      %p346 = por %p344, %p345
      %p347 = scmp.ne.s32.totalorder %s339, %s341
      %p348 = scmp.eq.s32.totalorder %s37, 1
      %p349 = por %p347, %p348
      %p350 = scmp.ne.s32.totalorder %s341, %s342
      %p351 = scmp.eq.s32.totalorder %s37, 0
      %p352 = por %p350, %p351
      %p353 = scmp.ne.s32.totalorder %s341, %s342
      %p354 = scmp.eq.s32.totalorder %s38, 1
      %p355 = por %p353, %p354
      %p357 = scmp.ne.s32.totalorder %s342, %s356
      %p358 = scmp.eq.s32.totalorder %s38, 0
      %p359 = por %p357, %p358
      %s361 = sadd.s32 %s360, 1
      %p364 = scmp.eq.s32.totalorder %s32, 1
      %p365 = scmp.ne.s32.totalorder %s360, %s362
      %p366 = scmp.eq.s32.totalorder %s32, 0
      %p367 = por %p365, %p366
      %p368 = scmp.ne.s32.totalorder %s360, %s362
      %p369 = scmp.eq.s32.totalorder %s37, 1
      %p370 = por %p368, %p369
      %p371 = scmp.ne.s32.totalorder %s362, %s363
      %p372 = scmp.eq.s32.totalorder %s37, 0
      %p373 = por %p371, %p372
      %p374 = scmp.ne.s32.totalorder %s362, %s363
      %p375 = scmp.eq.s32.totalorder %s38, 1
      %p376 = por %p374, %p375
      %p378 = scmp.ne.s32.totalorder %s363, %s377
      %p379 = scmp.eq.s32.totalorder %s38, 0
      %p380 = por %p378, %p379
      %s382 = sadd.s32 %s381, 1
      %p385 = scmp.eq.s32.totalorder %s32, 1
      %p386 = scmp.ne.s32.totalorder %s381, %s383
      %p387 = scmp.eq.s32.totalorder %s32, 0
      %p388 = por %p386, %p387
      %p389 = scmp.ne.s32.totalorder %s381, %s383
      %p390 = scmp.eq.s32.totalorder %s37, 1
      %p391 = por %p389, %p390
      %p392 = scmp.ne.s32.totalorder %s383, %s384
      %p393 = scmp.eq.s32.totalorder %s37, 0
      %p394 = por %p392, %p393
      %p395 = scmp.ne.s32.totalorder %s383, %s384
      %p396 = scmp.eq.s32.totalorder %s38, 1
      %p397 = por %p395, %p396
      %p399 = scmp.ne.s32.totalorder %s384, %s398
      %p400 = scmp.eq.s32.totalorder %s38, 0
      %p401 = por %p399, %p400
      %s403 = sadd.s32 %s402, 1
      %p406 = scmp.eq.s32.totalorder %s32, 1
      %p407 = scmp.ne.s32.totalorder %s402, %s404
      %p408 = scmp.eq.s32.totalorder %s32, 0
      %p409 = por %p407, %p408
      %p410 = scmp.ne.s32.totalorder %s402, %s404
      %p411 = scmp.eq.s32.totalorder %s37, 1
      %p412 = por %p410, %p411
      %p413 = scmp.ne.s32.totalorder %s404, %s405
      %p414 = scmp.eq.s32.totalorder %s37, 0
      %p415 = por %p413, %p414
      %p416 = scmp.ne.s32.totalorder %s404, %s405
      %p417 = scmp.eq.s32.totalorder %s38, 1
      %p418 = por %p416, %p417
      %p420 = scmp.ne.s32.totalorder %s405, %s419
      %p421 = scmp.eq.s32.totalorder %s38, 0
      %p422 = por %p420, %p421
      %s423 = ssub.s32 %s32, %s39
      %p424 = scmp.eq.s32.totalorder %s423, 0
      %s426 = sadd.s32 %s425, 1
      %s427 = scalar_select %p424, %s425, %s426
      %p430 = pneg %p424
      %p431 = scmp.eq.s32.totalorder %s32, 1
      %p432 = por %p430, %p431
      %p433 = scmp.ne.s32.totalorder %s425, %s428
      %p434 = scmp.eq.s32.totalorder %s32, 0
      %p435 = por %p433, %p434
      %p436 = scmp.ne.s32.totalorder %s425, %s428
      %p437 = scmp.eq.s32.totalorder %s37, 1
      %p438 = por %p436, %p437
      %p439 = scmp.ne.s32.totalorder %s428, %s429
      %p440 = scmp.eq.s32.totalorder %s37, 0
      %p441 = por %p439, %p440
      %p442 = scmp.ne.s32.totalorder %s428, %s429
      %p443 = scmp.eq.s32.totalorder %s38, 1
      %p444 = por %p442, %p443
      %p446 = scmp.ne.s32.totalorder %s429, %s445
      %p447 = scmp.eq.s32.totalorder %s38, 0
      %p448 = por %p446, %p447
      %p449 = scmp.le.s32.totalorder 1, %s32
      %p450 = scmp.lt.s32.totalorder %s32, 3
      %p451 = pnand %p449, %p450
      %p452 = pneg %p451
      // Predicated region
      $region9: #{tpu_custom_call.1} parent=5 // pred_check
        _
      $region10: #{tpu_custom_call.1} parent=5 // pred_check_branch
        %454 = sbr.rel (%p451) target = $region12
      $region11: #{tpu_custom_call.1} parent=5 // pred_region
        %s455 = ssub.s32 %s32, 1
        // Predicated region
        $region13: #{tpu_custom_call.1} parent=11 // pred_check
          %p456 = pneg %p79
        $region14: #{tpu_custom_call.1} parent=11 // pred_check_branch
          %458 = sbr.rel (%p456) target = $region16
        $region15: #{tpu_custom_call.1} parent=11 // pred_region
          %s460 = ssub.s32 48, 48
          %461 = vsyncadd [#allocation7], %s460
          %s463 = sshll.u32 [#allocation6], 4
          %s464 = int_to_ptr.vmem [resolvable:$true] %s463
          %466 = dma.hbm_to_vmem [thread:$0]  %s1, 48, %s464, [#allocation7]
        $region16: #{tpu_custom_call.1} parent=11 // pred_fallthru
          _
        // Predicated region
        $region17: #{tpu_custom_call.1} parent=11 // pred_check
          %p467 = pneg %p100
        $region18: #{tpu_custom_call.1} parent=11 // pred_check_branch
          %469 = sbr.rel (%p467) target = $region20
        $region19: #{tpu_custom_call.1} parent=11 // pred_region
          _
        $region20: #{tpu_custom_call.1} parent=11 // pred_fallthru
          _
        // Predicated region
        $region21: #{tpu_custom_call.1} parent=11 // pred_check
          %p470 = pneg %p121
        $region22: #{tpu_custom_call.1} parent=11 // pred_check_branch
          %472 = sbr.rel (%p470) target = $region24
        $region23: #{tpu_custom_call.1} parent=11 // pred_region
          _
        $region24: #{tpu_custom_call.1} parent=11 // pred_fallthru
          _
        // Predicated region
        $region25: #{tpu_custom_call.1} parent=11 // pred_check
          %p473 = pneg %p142
        $region26: #{tpu_custom_call.1} parent=11 // pred_check_branch
          %475 = sbr.rel (%p473) target = $region28
        $region27: #{tpu_custom_call.1} parent=11 // pred_region
          _
        $region28: #{tpu_custom_call.1} parent=11 // pred_fallthru
          _
        // Predicated region
        $region29: #{tpu_custom_call.1} parent=11 // pred_check
          %p476 = pneg %p163
        $region30: #{tpu_custom_call.1} parent=11 // pred_check_branch
          %478 = sbr.rel (%p476) target = $region32
        $region31: #{tpu_custom_call.1} parent=11 // pred_region
          _
        $region32: #{tpu_custom_call.1} parent=11 // pred_fallthru
          _
        // Predicated region
        $region33: #{tpu_custom_call.1} parent=11 // pred_check
          %p479 = pneg %p184
        $region34: #{tpu_custom_call.1} parent=11 // pred_check_branch
          %481 = sbr.rel (%p479) target = $region36
        $region35: #{tpu_custom_call.1} parent=11 // pred_region
          %s483 = ssub.s32 1152, 1152
          %484 = vsyncadd [#allocation7], %s483
          %s485 = sshll.u32 [#allocation8], 4
          %s486 = int_to_ptr.vmem [resolvable:$true] %s485
          %491 = dma.hbm_to_vmem [thread:$0]  %s6, 1152, %s486, [#allocation7], 64, 64, 4
        $region36: #{tpu_custom_call.1} parent=11 // pred_fallthru
          _
        // Predicated region
        $region37: #{tpu_custom_call.1} parent=11 // pred_check
          %p492 = pneg %p205
        $region38: #{tpu_custom_call.1} parent=11 // pred_check_branch
          %494 = sbr.rel (%p492) target = $region40
        $region39: #{tpu_custom_call.1} parent=11 // pred_region
          _
        $region40: #{tpu_custom_call.1} parent=11 // pred_fallthru
          _
        // Predicated region
        $region41: #{tpu_custom_call.1} parent=11 // pred_check
          %p495 = pneg %p226
        $region42: #{tpu_custom_call.1} parent=11 // pred_check_branch
          %497 = sbr.rel (%p495) target = $region44
        $region43: #{tpu_custom_call.1} parent=11 // pred_region
          %s499 = ssub.s32 1152, 1152
          %500 = vsyncadd [#allocation10], %s499
          %s501 = sshll.u32 [#allocation9], 4
          %s502 = int_to_ptr.vmem [resolvable:$true] %s501
          %507 = dma.hbm_to_vmem [thread:$0]  %s8, 1152, %s502, [#allocation10], 64, 64, 4
        $region44: #{tpu_custom_call.1} parent=11 // pred_fallthru
          _
        // Predicated region
        $region45: #{tpu_custom_call.1} parent=11 // pred_check
          %p508 = pneg %p247
        $region46: #{tpu_custom_call.1} parent=11 // pred_check_branch
          %510 = sbr.rel (%p508) target = $region48
        $region47: #{tpu_custom_call.1} parent=11 // pred_region
          _
        $region48: #{tpu_custom_call.1} parent=11 // pred_fallthru
          _
        // Predicated region
        $region49: #{tpu_custom_call.1} parent=11 // pred_check
          %p511 = pneg %p268
        $region50: #{tpu_custom_call.1} parent=11 // pred_check_branch
          %513 = sbr.rel (%p511) target = $region52
        $region51: #{tpu_custom_call.1} parent=11 // pred_region
          %s515 = ssub.s32 1152, 1152
          %516 = vsyncadd [#allocation10], %s515
          %s517 = sshll.u32 [#allocation11], 4
          %s518 = int_to_ptr.vmem [resolvable:$true] %s517
          %523 = dma.hbm_to_vmem [thread:$0]  %s10, 1152, %s518, [#allocation10], 64, 64, 4
        $region52: #{tpu_custom_call.1} parent=11 // pred_fallthru
          _
        // Predicated region
        $region53: #{tpu_custom_call.1} parent=11 // pred_check
          %p524 = pneg %p289
        $region54: #{tpu_custom_call.1} parent=11 // pred_check_branch
          %526 = sbr.rel (%p524) target = $region56
        $region55: #{tpu_custom_call.1} parent=11 // pred_region
          _
        $region56: #{tpu_custom_call.1} parent=11 // pred_fallthru
          _
        // Predicated region
        $region57: #{tpu_custom_call.1} parent=11 // pred_check
          %p527 = pneg %p310
        $region58: #{tpu_custom_call.1} parent=11 // pred_check_branch
          %529 = sbr.rel (%p527) target = $region60
        $region59: #{tpu_custom_call.1} parent=11 // pred_region
          _
        $region60: #{tpu_custom_call.1} parent=11 // pred_fallthru
          _
        // Predicated region
        $region61: #{tpu_custom_call.1} parent=11 // pred_check
          %p530 = pneg %p331
        $region62: #{tpu_custom_call.1} parent=11 // pred_check_branch
          %532 = sbr.rel (%p530) target = $region64
        $region63: #{tpu_custom_call.1} parent=11 // pred_region
          _
        $region64: #{tpu_custom_call.1} parent=11 // pred_fallthru
          _
        // Predicated region
        $region65: #{tpu_custom_call.1} parent=11 // pred_check
          %p533 = pneg %p352
        $region66: #{tpu_custom_call.1} parent=11 // pred_check_branch
          %535 = sbr.rel (%p533) target = $region68
        $region67: #{tpu_custom_call.1} parent=11 // pred_region
          _
        $region68: #{tpu_custom_call.1} parent=11 // pred_fallthru
          _
        // Predicated region
        $region69: #{tpu_custom_call.1} parent=11 // pred_check
          %p536 = pneg %p373
        $region70: #{tpu_custom_call.1} parent=11 // pred_check_branch
          %538 = sbr.rel (%p536) target = $region72
        $region71: #{tpu_custom_call.1} parent=11 // pred_region
          _
        $region72: #{tpu_custom_call.1} parent=11 // pred_fallthru
          _
        // Predicated region
        $region73: #{tpu_custom_call.1} parent=11 // pred_check
          %p539 = pneg %p394
        $region74: #{tpu_custom_call.1} parent=11 // pred_check_branch
          %541 = sbr.rel (%p539) target = $region76
        $region75: #{tpu_custom_call.1} parent=11 // pred_region
          _
        $region76: #{tpu_custom_call.1} parent=11 // pred_fallthru
          _
        // Predicated region
        $region77: #{tpu_custom_call.1} parent=11 // pred_check
          %p542 = pneg %p415
        $region78: #{tpu_custom_call.1} parent=11 // pred_check_branch
          %544 = sbr.rel (%p542) target = $region80
        $region79: #{tpu_custom_call.1} parent=11 // pred_region
          _
        $region80: #{tpu_custom_call.1} parent=11 // pred_fallthru
          _
      $region12: #{tpu_custom_call.1} parent=5 // pred_fallthru
        _
      %p545 = scmp.lt.s32.totalorder %s32, 2
      // Predicated region
      $region81: #{tpu_custom_call.1} parent=5 // pred_check
        %p546 = pneg %p545
      $region82: #{tpu_custom_call.1} parent=5 // pred_check_branch
        %548 = sbr.rel (%p546) target = $region84
      $region83: #{tpu_custom_call.1} parent=5 // pred_region
        // Predicated region
        $region85: #{tpu_custom_call.1} parent=83 // pred_check
          %p549 = pneg %p52
        $region86: #{tpu_custom_call.1} parent=83 // pred_check_branch
          %551 = sbr.rel (%p549) target = $region88
        $region87: #{tpu_custom_call.1} parent=83 // pred_region
          %s552 = sand.u32 %s42, 1
          %s553 = scalar_lea.sflag [#allocation4], %s552
          %s554 = sand.u32 %s42, 1
          %s555 = smul.addr %s554, 24
          %s556 = scalar_lea.vmem [#allocation3], %s555
          %s558 = ssub.s32 384, 384
          %559 = vsyncadd %s553, %s558
          %s560 = smul.addr %s32, 6
          %s561 = smul.addr %s560, 64
          %s562 = scalar_lea.hbm %s0, %s561
          %s563 = sshll.u32 %s556, 4
          %s564 = int_to_ptr.vmem [resolvable:$true] %s563
          %569 = dma.hbm_to_vmem [thread:$0]  %s562, 384, %s564, %s553, 192, 192, 12
        $region88: #{tpu_custom_call.1} parent=83 // pred_fallthru
          _
      $region84: #{tpu_custom_call.1} parent=5 // pred_fallthru
        _
      %p570 = scmp.le.s32.totalorder 1, %s32
      %p571 = scmp.lt.s32.totalorder %s32, 3
      %p572 = pnand %p570, %p571
      %p573 = pneg %p572
      // Predicated region
      $region89: #{tpu_custom_call.1} parent=5 // pred_check
        _
      $region90: #{tpu_custom_call.1} parent=5 // pred_check_branch
        %575 = sbr.rel (%p572) target = $region92
      $region91: #{tpu_custom_call.1} parent=5 // pred_region
        %s576 = ssub.s32 %s32, 1
        %s577 = sand.u32 %s45, 1
        %s578 = scalar_lea.sflag [#allocation4], %s577
        %s579 = sand.u32 %s45, 1
        %s580 = smul.addr %s579, 24
        %s581 = scalar_lea.vmem [#allocation3], %s580
        // Predicated region
        $region93: #{tpu_custom_call.1} parent=91 // pred_check
          %p582 = pneg %p58
        $region94: #{tpu_custom_call.1} parent=91 // pred_check_branch
          %584 = sbr.rel (%p582) target = $region96
        $region95: #{tpu_custom_call.1} parent=91 // pred_region
          %585 = dma.done %s578, 384
        $region96: #{tpu_custom_call.1} parent=91 // pred_fallthru
          _
        // Predicated region
        $region97: #{tpu_custom_call.1} parent=91 // pred_check
          %p586 = pneg %p79
        $region98: #{tpu_custom_call.1} parent=91 // pred_check_branch
          %588 = sbr.rel (%p586) target = $region100
        $region99: #{tpu_custom_call.1} parent=91 // pred_region
          %589 = dma.done [#allocation7], 48
        $region100: #{tpu_custom_call.1} parent=91 // pred_fallthru
          _
        // Predicated region
        $region101: #{tpu_custom_call.1} parent=91 // pred_check
          %p590 = pneg %p184
        $region102: #{tpu_custom_call.1} parent=91 // pred_check_branch
          %592 = sbr.rel (%p590) target = $region104
        $region103: #{tpu_custom_call.1} parent=91 // pred_region
          %593 = dma.done [#allocation7], 1152
        $region104: #{tpu_custom_call.1} parent=91 // pred_fallthru
          _
        // Predicated region
        $region105: #{tpu_custom_call.1} parent=91 // pred_check
          %p594 = pneg %p226
        $region106: #{tpu_custom_call.1} parent=91 // pred_check_branch
          %596 = sbr.rel (%p594) target = $region108
        $region107: #{tpu_custom_call.1} parent=91 // pred_region
          %597 = dma.done [#allocation10], 1152
        $region108: #{tpu_custom_call.1} parent=91 // pred_fallthru
          _
        // Predicated region
        $region109: #{tpu_custom_call.1} parent=91 // pred_check
          %p598 = pneg %p268
        $region110: #{tpu_custom_call.1} parent=91 // pred_check_branch
          %600 = sbr.rel (%p598) target = $region112
        $region111: #{tpu_custom_call.1} parent=91 // pred_region
          %601 = dma.done [#allocation10], 1152
        $region112: #{tpu_custom_call.1} parent=91 // pred_fallthru
          _
        %s602 = sand.u32 %s45, 1
        %s603 = scalar_lea.sflag [#allocation4], %s602
        %s604 = sand.u32 %s45, 1
        %s605 = smul.addr %s604, 24
        %s606 = scalar_lea.vmem [#allocation3], %s605
        %p607 = pneg %p58
        %p608 = pneg %p55
        %p609 = pneg %p79
        %p610 = pneg %p76
        %p611 = pneg %p100
        %p612 = pneg %p97
        %p613 = pneg %p121
        %p614 = pneg %p118
        %p615 = pneg %p142
        %p616 = pneg %p139
        %p617 = pneg %p163
        %p618 = pneg %p160
        %p619 = pneg %p184
        %p620 = pneg %p181
        %p621 = pneg %p205
        %p622 = pneg %p202
        %p623 = pneg %p226
        %p624 = pneg %p223
        %p625 = pneg %p247
        %p626 = pneg %p244
        %p627 = pneg %p268
        %p628 = pneg %p265
        %p629 = pneg %p289
        %p630 = pneg %p286
        %p631 = pneg %p310
        %p632 = pneg %p307
        %p633 = pneg %p331
        %p634 = pneg %p328
        %p635 = pneg %p352
        %p636 = pneg %p349
        %p637 = pneg %p373
        %p638 = pneg %p370
        %p639 = pneg %p394
        %p640 = pneg %p391
        %p641 = pneg %p415
        %p642 = pneg %p412
        %p643 = pneg %p441
        %p644 = pneg %p438
        %s645 = sand.u32 %s428, 1
        %s646 = scalar_lea.sflag [#allocation5], %s645
        %s647 = sand.u32 %s428, 1
        %s648 = smul.addr %s647, 96
        %s649 = scalar_lea.vmem [#allocation12], %s648
        %651 = vst [vmem:[#allocation2] sm:$0xff] 0
        %652 = vst [vmem:[#allocation2 + $0x28] sm:$0xff] 0
        %653 = vst [vmem:[#allocation2 + $0x50] sm:$0xff] 0
        %654 = vst [vmem:[#allocation2 + $0x78] sm:$0xff] 0
        %655 = vst [vmem:[#allocation2 + $0xa0] sm:$0xff] 0
        %656 = vst [vmem:[#allocation2 + $0xc8] sm:$0xff] 0
        %657 = vst [vmem:[#allocation2 + $0xf0] sm:$0xff] 0
        %658 = vst [vmem:[#allocation2 + $0x20] sm:$0xff] 0
        %659 = vst [vmem:[#allocation2 + $0x48] sm:$0xff] 0
        %660 = vst [vmem:[#allocation2 + $0x70] sm:$0xff] 0
        %661 = vst [vmem:[#allocation2 + $0x98] sm:$0xff] 0
        %662 = vst [vmem:[#allocation2 + $0xc0] sm:$0xff] 0
        %663 = vst [vmem:[#allocation2 + $0xe8] sm:$0xff] 0
        %664 = vst [vmem:[#allocation2 + $0x110] sm:$0xff] 0
        %v665 = vld [vmem:[#allocation6] sm:$0x7]
        %v666 = vld [vmem:[%s581] sm:$0xff]
        %v667 = vld [vmem:[%s581 + $0x8] sm:$0xf]
        %v668 = vld [vmem:[%s581 + $0xc] sm:$0xff]
        %v669 = vld [vmem:[%s581 + $0x14] sm:$0xf]
        %v674 = vunpack.c.l.b16 %v666
        %v675 = vunpack.c.h.b16 %v666
        %v676 = vunpack.c.l.b16 %v667
        %v677 = vunpack.c.l.b16 %v668
        %v678 = vunpack.c.h.b16 %v668
        %v679 = vunpack.c.l.b16 %v669
        %v680 = vpack.c.b16 %v677, %v674
        %v681 = vpack.c.b16 %v678, %v675
        %v682 = vpack.c.b16 %v679, %v676
        %686 = vst [vmem:[#allocation2 + $0x8] sm:$0xff] %v680
        %687 = vst [vmem:[#allocation2 + $0x10] sm:$0xff] %v681
        %688 = vst [vmem:[#allocation2 + $0x18] sm:$0xff] %v682
        %v689 = vld [vmem:[#allocation2] sm:$0xff]
        %v690 = vld [vmem:[#allocation2 + $0x8] sm:$0xff]
        %v691 = vld [vmem:[#allocation2 + $0x10] sm:$0xff]
        %v692 = vld [vmem:[#allocation2 + $0x18] sm:$0xff]
        %v693 = vld [vmem:[%s2] sm:$0xf]
        %v694 = vld [vmem:[%s2 + $0x4] sm:$0xf]
        %s695 = scalar_lea.vmem %s2, 8
        %v696 = vld [vmem:[%s695] sm:$0xf]
        %v697 = vld [vmem:[%s695 + $0x4] sm:$0xf]
        %v700 = vunpack.c.l.b16 %v696
        %v701 = vunpack.c.l.b16 %v697
        %v702 = vpack.c.b16 %v701, %v700
        %707 = vrot.lane.b32.xlu0 %v689, 18
        %v708 = vpop.permute.xlu0 %707
        %709 = vrot.lane.b32.xlu0 %v690, 18
        %v710 = vpop.permute.xlu0 %709
        %711 = vrot.lane.b32.xlu0 %v691, 18
        %v712 = vpop.permute.xlu0 %711
        %713 = vrot.lane.b32.xlu0 %v692, 18
        %v714 = vpop.permute.xlu0 %713
        %vm715 = vcmask 146432
        %v716 = vsel %vm715, %v708, %v710
        %v717 = vsel %vm715, %v710, %v712
        %v718 = vsel %vm715, %v712, %v714
        %vm722 = vcmask 130048
        %v724 = vsel %vm722, %v702, 0
        %726 = vmatprep.subr.bf16.mxu0 %v717
        %727 = vmatpush1.bf16.msra.mxu0 %v716
        %728 = vmatprep.subr.bf16.mxu0 0
        %729 = vmatpush1.bf16.msra.mxu0 0
        %730 = vmatprep.subr.bf16.mxu0 0
        %731 = vmatpush1.bf16.msra.mxu0 0
        %732 = vmatprep.subr.bf16.mxu0 0
        %733 = vmatpush1.bf16.msra.mxu0 0
        %734 = vmatprep.subr.bf16.mxu0 0
        %735 = vmatpush1.bf16.msra.mxu0 0
        %736 = vmatprep.subr.bf16.mxu0 0
        %737 = vmatpush1.bf16.msra.mxu0 0
        %738 = vmatprep.subr.bf16.mxu0 0
        %739 = vmatpush1.bf16.msra.mxu0 0
        %740 = vmatprep.subr.bf16.mxu0 0
        %741 = vmatpush1.bf16.msra.mxu0 0
        %742 = vmatprep.subr.bf16.mxu0 0
        %743 = vmatpush1.bf16.msra.mxu0 0
        %744 = vmatprep.subr.bf16.mxu0 0
        %745 = vmatpush1.bf16.msra.mxu0 0
        %746 = vmatprep.subr.bf16.mxu0 0
        %747 = vmatpush1.bf16.msra.mxu0 0
        %748 = vmatprep.subr.bf16.mxu0 0
        %749 = vmatpush1.bf16.msra.mxu0 0
        %750 = vmatprep.subr.bf16.mxu0 0
        %751 = vmatpush1.bf16.msra.mxu0 0
        %752 = vmatprep.subr.bf16.mxu0 0
        %753 = vmatpush1.bf16.msra.mxu0 0
        %754 = vmatprep.subr.bf16.mxu0 0
        %755 = vmatpush1.bf16.msra.mxu0 0
        %756 = vmatprep.subr.bf16.mxu0 0
        %757 = vmatpush1.bf16.msra.mxu0 0
        %758 = vmatprep.mubr.bf16.mxu0 0
        %759 = vmatmul.mubr.bf16.gmra.mrb[0].mxu0 %v724
        %v760 = vpop.f32.mrb[0].mxu0
        %v761 = vadd.f32 0.0, %v760
        %v762 = vpop.f32.mrb[0].mxu0
        %v763 = vadd.f32 0.0, %v762
        %v764 = vpop.f32.mrb[0].mxu0
        %v765 = vadd.f32 0.0, %v764
        %v766 = vpop.f32.mrb[0].mxu0
        %v767 = vadd.f32 0.0, %v766
        %768 = vdwg.mxu0
        %769 = vmatprep.subr.bf16.mxu0 0
        %770 = vmatpush1.bf16.msra.mxu0 %v718
        %771 = vmatprep.subr.bf16.mxu0 0
        %772 = vmatpush1.bf16.msra.mxu0 0
        %773 = vmatprep.subr.bf16.mxu0 0
        %774 = vmatpush1.bf16.msra.mxu0 0
        %775 = vmatprep.subr.bf16.mxu0 0
        %776 = vmatpush1.bf16.msra.mxu0 0
        %777 = vmatprep.subr.bf16.mxu0 0
        %778 = vmatpush1.bf16.msra.mxu0 0
        %779 = vmatprep.subr.bf16.mxu0 0
        %780 = vmatpush1.bf16.msra.mxu0 0
        %781 = vmatprep.subr.bf16.mxu0 0
        %782 = vmatpush1.bf16.msra.mxu0 0
        %783 = vmatprep.subr.bf16.mxu0 0
        %784 = vmatpush1.bf16.msra.mxu0 0
        %785 = vmatprep.subr.bf16.mxu0 0
        %786 = vmatpush1.bf16.msra.mxu0 0
        %787 = vmatprep.subr.bf16.mxu0 0
        %788 = vmatpush1.bf16.msra.mxu0 0
        %789 = vmatprep.subr.bf16.mxu0 0
        %790 = vmatpush1.bf16.msra.mxu0 0
        %791 = vmatprep.subr.bf16.mxu0 0
        %792 = vmatpush1.bf16.msra.mxu0 0
        %793 = vmatprep.subr.bf16.mxu0 0
        %794 = vmatpush1.bf16.msra.mxu0 0
        %795 = vmatprep.subr.bf16.mxu0 0
        %796 = vmatpush1.bf16.msra.mxu0 0
        %797 = vmatprep.subr.bf16.mxu0 0
        %798 = vmatpush1.bf16.msra.mxu0 0
        %799 = vmatprep.subr.bf16.mxu0 0
        %800 = vmatpush1.bf16.msra.mxu0 0
        %801 = vmatprep.mubr.bf16.mxu0 0
        %802 = vmatmul.mubr.bf16.gmra.mrb[0].mxu0 %v724
        %v803 = vpop.f32.mrb[0].mxu0
        %v804 = vadd.f32 0.0, %v803
        %v805 = vpop.f32.mrb[0].mxu0
        %v806 = vpop.f32.mrb[0].mxu0
        %v807 = vadd.f32 0.0, %v806
        %v808 = vpop.f32.mrb[0].mxu0
        %809 = vdwg.mxu0
        %v812 = vunpack.c.l.b16 %v693
        %v813 = vunpack.c.l.b16 %v694
        %v814 = vpack.c.b16 %v813, %v812
        %815 = vrot.lane.b32.xlu0 %v689, 19
        %v816 = vpop.permute.xlu0 %815
        %817 = vrot.lane.b32.xlu0 %v690, 19
        %v818 = vpop.permute.xlu0 %817
        %819 = vrot.lane.b32.xlu0 %v691, 19
        %v820 = vpop.permute.xlu0 %819
        %821 = vrot.lane.b32.xlu0 %v692, 19
        %v822 = vpop.permute.xlu0 %821
        %vm823 = vcmask 154624
        %v824 = vsel %vm823, %v816, %v818
        %v825 = vsel %vm823, %v818, %v820
        %v826 = vsel %vm823, %v820, %v822
        %v831 = vsel %vm722, %v814, 0
        %833 = vmatprep.subr.bf16.mxu0 %v825
        %834 = vmatpush1.bf16.msra.mxu0 %v824
        %835 = vmatprep.subr.bf16.mxu0 0
        %836 = vmatpush1.bf16.msra.mxu0 0
        %837 = vmatprep.subr.bf16.mxu0 0
        %838 = vmatpush1.bf16.msra.mxu0 0
        %839 = vmatprep.subr.bf16.mxu0 0
        %840 = vmatpush1.bf16.msra.mxu0 0
        %841 = vmatprep.subr.bf16.mxu0 0
        %842 = vmatpush1.bf16.msra.mxu0 0
        %843 = vmatprep.subr.bf16.mxu0 0
        %844 = vmatpush1.bf16.msra.mxu0 0
        %845 = vmatprep.subr.bf16.mxu0 0
        %846 = vmatpush1.bf16.msra.mxu0 0
        %847 = vmatprep.subr.bf16.mxu0 0
        %848 = vmatpush1.bf16.msra.mxu0 0
        %849 = vmatprep.subr.bf16.mxu0 0
        %850 = vmatpush1.bf16.msra.mxu0 0
        %851 = vmatprep.subr.bf16.mxu0 0
        %852 = vmatpush1.bf16.msra.mxu0 0
        %853 = vmatprep.subr.bf16.mxu0 0
        %854 = vmatpush1.bf16.msra.mxu0 0
        %855 = vmatprep.subr.bf16.mxu0 0
        %856 = vmatpush1.bf16.msra.mxu0 0
        %857 = vmatprep.subr.bf16.mxu0 0
        %858 = vmatpush1.bf16.msra.mxu0 0
        %859 = vmatprep.subr.bf16.mxu0 0
        %860 = vmatpush1.bf16.msra.mxu0 0
        %861 = vmatprep.subr.bf16.mxu0 0
        %862 = vmatpush1.bf16.msra.mxu0 0
        %863 = vmatprep.subr.bf16.mxu0 0
        %864 = vmatpush1.bf16.msra.mxu0 0
        %865 = vmatprep.mubr.bf16.mxu0 0
        %866 = vmatmul.mubr.bf16.gmra.mrb[0].mxu0 %v831
        %v867 = vpop.f32.mrb[0].mxu0
        %v868 = vadd.f32 %v761, %v867
        %v869 = vpop.f32.mrb[0].mxu0
        %v870 = vadd.f32 %v763, %v869
        %v871 = vpop.f32.mrb[0].mxu0
        %v872 = vadd.f32 %v765, %v871
        %v873 = vpop.f32.mrb[0].mxu0
        %v874 = vadd.f32 %v767, %v873
        %875 = vdwg.mxu0
        %876 = vmatprep.subr.bf16.mxu0 0
        %877 = vmatpush1.bf16.msra.mxu0 %v826
        %878 = vmatprep.subr.bf16.mxu0 0
        %879 = vmatpush1.bf16.msra.mxu0 0
        %880 = vmatprep.subr.bf16.mxu0 0
        %881 = vmatpush1.bf16.msra.mxu0 0
        %882 = vmatprep.subr.bf16.mxu0 0
        %883 = vmatpush1.bf16.msra.mxu0 0
        %884 = vmatprep.subr.bf16.mxu0 0
        %885 = vmatpush1.bf16.msra.mxu0 0
        %886 = vmatprep.subr.bf16.mxu0 0
        %887 = vmatpush1.bf16.msra.mxu0 0
        %888 = vmatprep.subr.bf16.mxu0 0
        %889 = vmatpush1.bf16.msra.mxu0 0
        %890 = vmatprep.subr.bf16.mxu0 0
        %891 = vmatpush1.bf16.msra.mxu0 0
        %892 = vmatprep.subr.bf16.mxu0 0
        %893 = vmatpush1.bf16.msra.mxu0 0
        %894 = vmatprep.subr.bf16.mxu0 0
        %895 = vmatpush1.bf16.msra.mxu0 0
        %896 = vmatprep.subr.bf16.mxu0 0
        %897 = vmatpush1.bf16.msra.mxu0 0
        %898 = vmatprep.subr.bf16.mxu0 0
        %899 = vmatpush1.bf16.msra.mxu0 0
        %900 = vmatprep.subr.bf16.mxu0 0
        %901 = vmatpush1.bf16.msra.mxu0 0
        %902 = vmatprep.subr.bf16.mxu0 0
        %903 = vmatpush1.bf16.msra.mxu0 0
        %904 = vmatprep.subr.bf16.mxu0 0
        %905 = vmatpush1.bf16.msra.mxu0 0
        %906 = vmatprep.subr.bf16.mxu0 0
        %907 = vmatpush1.bf16.msra.mxu0 0
        %908 = vmatprep.mubr.bf16.mxu0 0
        %909 = vmatmul.mubr.bf16.gmra.mrb[0].mxu0 %v831
        %v910 = vpop.f32.mrb[0].mxu0
        %v911 = vadd.f32 %v804, %v910
        %v912 = vpop.f32.mrb[0].mxu0
        %v913 = vpop.f32.mrb[0].mxu0
        %v914 = vadd.f32 %v807, %v913
        %v915 = vpop.f32.mrb[0].mxu0
        %916 = vdwg.mxu0
        %s917 = scalar_lea.vmem %s2, 16
        %v918 = vld [vmem:[%s917] sm:$0xf]
        %v919 = vld [vmem:[%s917 + $0x4] sm:$0xf]
        %v922 = vunpack.c.l.b16 %v918
        %v923 = vunpack.c.l.b16 %v919
        %v924 = vpack.c.b16 %v923, %v922
        %925 = vrot.lane.b32.xlu0 %v689, 17
        %v926 = vpop.permute.xlu0 %925
        %927 = vrot.lane.b32.xlu0 %v690, 17
        %v928 = vpop.permute.xlu0 %927
        %929 = vrot.lane.b32.xlu0 %v691, 17
        %v930 = vpop.permute.xlu0 %929
        %931 = vrot.lane.b32.xlu0 %v692, 17
        %v932 = vpop.permute.xlu0 %931
        %vm933 = vcmask 138240
        %v934 = vsel %vm933, %v926, %v928
        %v935 = vsel %vm933, %v928, %v930
        %v936 = vsel %vm933, %v930, %v932
        %v941 = vsel %vm722, %v924, 0
        %943 = vmatprep.subr.bf16.mxu0 %v935
        %944 = vmatpush1.bf16.msra.mxu0 %v934
        %945 = vmatprep.subr.bf16.mxu0 0
        %946 = vmatpush1.bf16.msra.mxu0 0
        %947 = vmatprep.subr.bf16.mxu0 0
        %948 = vmatpush1.bf16.msra.mxu0 0
        %949 = vmatprep.subr.bf16.mxu0 0
        %950 = vmatpush1.bf16.msra.mxu0 0
        %951 = vmatprep.subr.bf16.mxu0 0
        %952 = vmatpush1.bf16.msra.mxu0 0
        %953 = vmatprep.subr.bf16.mxu0 0
        %954 = vmatpush1.bf16.msra.mxu0 0
        %955 = vmatprep.subr.bf16.mxu0 0
        %956 = vmatpush1.bf16.msra.mxu0 0
        %957 = vmatprep.subr.bf16.mxu0 0
        %958 = vmatpush1.bf16.msra.mxu0 0
        %959 = vmatprep.subr.bf16.mxu0 0
        %960 = vmatpush1.bf16.msra.mxu0 0
        %961 = vmatprep.subr.bf16.mxu0 0
        %962 = vmatpush1.bf16.msra.mxu0 0
        %963 = vmatprep.subr.bf16.mxu0 0
        %964 = vmatpush1.bf16.msra.mxu0 0
        %965 = vmatprep.subr.bf16.mxu0 0
        %966 = vmatpush1.bf16.msra.mxu0 0
        %967 = vmatprep.subr.bf16.mxu0 0
        %968 = vmatpush1.bf16.msra.mxu0 0
        %969 = vmatprep.subr.bf16.mxu0 0
        %970 = vmatpush1.bf16.msra.mxu0 0
        %971 = vmatprep.subr.bf16.mxu0 0
        %972 = vmatpush1.bf16.msra.mxu0 0
        %973 = vmatprep.subr.bf16.mxu0 0
        %974 = vmatpush1.bf16.msra.mxu0 0
        %975 = vmatprep.mubr.bf16.mxu0 0
        %976 = vmatmul.mubr.bf16.gmra.mrb[0].mxu0 %v941
        %v977 = vpop.f32.mrb[0].mxu0
        %v978 = vadd.f32 0.0, %v977
        %v979 = vpop.f32.mrb[0].mxu0
        %v980 = vadd.f32 0.0, %v979
        %v981 = vpop.f32.mrb[0].mxu0
        %v982 = vadd.f32 0.0, %v981
        %v983 = vpop.f32.mrb[0].mxu0
        %v984 = vadd.f32 0.0, %v983
        %985 = vdwg.mxu0
        %986 = vmatprep.subr.bf16.mxu0 0
        %987 = vmatpush1.bf16.msra.mxu0 %v936
        %988 = vmatprep.subr.bf16.mxu0 0
        %989 = vmatpush1.bf16.msra.mxu0 0
        %990 = vmatprep.subr.bf16.mxu0 0
        %991 = vmatpush1.bf16.msra.mxu0 0
        %992 = vmatprep.subr.bf16.mxu0 0
        %993 = vmatpush1.bf16.msra.mxu0 0
        %994 = vmatprep.subr.bf16.mxu0 0
        %995 = vmatpush1.bf16.msra.mxu0 0
        %996 = vmatprep.subr.bf16.mxu0 0
        %997 = vmatpush1.bf16.msra.mxu0 0
        %998 = vmatprep.subr.bf16.mxu0 0
        %999 = vmatpush1.bf16.msra.mxu0 0
        %1000 = vmatprep.subr.bf16.mxu0 0
        %1001 = vmatpush1.bf16.msra.mxu0 0
        %1002 = vmatprep.subr.bf16.mxu0 0
        %1003 = vmatpush1.bf16.msra.mxu0 0
        %1004 = vmatprep.subr.bf16.mxu0 0
        %1005 = vmatpush1.bf16.msra.mxu0 0
        %1006 = vmatprep.subr.bf16.mxu0 0
        %1007 = vmatpush1.bf16.msra.mxu0 0
        %1008 = vmatprep.subr.bf16.mxu0 0
        %1009 = vmatpush1.bf16.msra.mxu0 0
        %1010 = vmatprep.subr.bf16.mxu0 0
        %1011 = vmatpush1.bf16.msra.mxu0 0
        %1012 = vmatprep.subr.bf16.mxu0 0
        %1013 = vmatpush1.bf16.msra.mxu0 0
        %1014 = vmatprep.subr.bf16.mxu0 0
        %1015 = vmatpush1.bf16.msra.mxu0 0
        %1016 = vmatprep.subr.bf16.mxu0 0
        %1017 = vmatpush1.bf16.msra.mxu0 0
        %1018 = vmatprep.mubr.bf16.mxu0 0
        %1019 = vmatmul.mubr.bf16.gmra.mrb[0].mxu0 %v941
        %v1020 = vpop.f32.mrb[0].mxu0
        %v1021 = vadd.f32 0.0, %v1020
        %v1022 = vpop.f32.mrb[0].mxu0
        %v1023 = vpop.f32.mrb[0].mxu0
        %v1024 = vadd.f32 0.0, %v1023
        %v1025 = vpop.f32.mrb[0].mxu0
        %1026 = vdwg.mxu0
        %v1027 = vadd.f32 %v868, %v978
        %v1028 = vadd.f32 %v870, %v980
        %v1029 = vadd.f32 %v911, %v1021
        %v1030 = vadd.f32 %v872, %v982
        %v1031 = vadd.f32 %v874, %v984
        %v1032 = vadd.f32 %v914, %v1024
        %s1033 = scalar_lea.vmem %s2, 24
        %v1034 = vld [vmem:[%s1033] sm:$0xf]
        %v1035 = vld [vmem:[%s1033 + $0x4] sm:$0xf]
        %v1038 = vunpack.c.l.b16 %v1034
        %v1039 = vunpack.c.l.b16 %v1035
        %v1040 = vpack.c.b16 %v1039, %v1038
        %1041 = vrot.lane.b32.xlu0 %v689, 1
        %v1042 = vpop.permute.xlu0 %1041
        %1043 = vrot.lane.b32.xlu0 %v690, 1
        %v1044 = vpop.permute.xlu0 %1043
        %1045 = vrot.lane.b32.xlu0 %v691, 1
        %v1046 = vpop.permute.xlu0 %1045
        %1047 = vrot.lane.b32.xlu0 %v692, 1
        %v1048 = vpop.permute.xlu0 %1047
        %vm1049 = vcmask 7168
        %v1050 = vsel %vm1049, %v1042, %v1044
        %v1051 = vsel %vm1049, %v1044, %v1046
        %v1052 = vsel %vm1049, %v1046, %v1048
        %v1057 = vsel %vm722, %v1040, 0
        %1059 = vmatprep.subr.bf16.mxu0 %v1051
        %1060 = vmatpush1.bf16.msra.mxu0 %v1050
        %1061 = vmatprep.subr.bf16.mxu0 0
        %1062 = vmatpush1.bf16.msra.mxu0 0
        %1063 = vmatprep.subr.bf16.mxu0 0
        %1064 = vmatpush1.bf16.msra.mxu0 0
        %1065 = vmatprep.subr.bf16.mxu0 0
        %1066 = vmatpush1.bf16.msra.mxu0 0
        %1067 = vmatprep.subr.bf16.mxu0 0
        %1068 = vmatpush1.bf16.msra.mxu0 0
        %1069 = vmatprep.subr.bf16.mxu0 0
        %1070 = vmatpush1.bf16.msra.mxu0 0
        %1071 = vmatprep.subr.bf16.mxu0 0
        %1072 = vmatpush1.bf16.msra.mxu0 0
        %1073 = vmatprep.subr.bf16.mxu0 0
        %1074 = vmatpush1.bf16.msra.mxu0 0
        %1075 = vmatprep.subr.bf16.mxu0 0
        %1076 = vmatpush1.bf16.msra.mxu0 0
        %1077 = vmatprep.subr.bf16.mxu0 0
        %1078 = vmatpush1.bf16.msra.mxu0 0
        %1079 = vmatprep.subr.bf16.mxu0 0
        %1080 = vmatpush1.bf16.msra.mxu0 0
        %1081 = vmatprep.subr.bf16.mxu0 0
        %1082 = vmatpush1.bf16.msra.mxu0 0
        %1083 = vmatprep.subr.bf16.mxu0 0
        %1084 = vmatpush1.bf16.msra.mxu0 0
        %1085 = vmatprep.subr.bf16.mxu0 0
        %1086 = vmatpush1.bf16.msra.mxu0 0
        %1087 = vmatprep.subr.bf16.mxu0 0
        %1088 = vmatpush1.bf16.msra.mxu0 0
        %1089 = vmatprep.subr.bf16.mxu0 0
        %1090 = vmatpush1.bf16.msra.mxu0 0
        %1091 = vmatprep.mubr.bf16.mxu0 0
        %1092 = vmatmul.mubr.bf16.gmra.mrb[0].mxu0 %v1057
        %v1093 = vpop.f32.mrb[0].mxu0
        %v1094 = vadd.f32 0.0, %v1093
        %v1095 = vpop.f32.mrb[0].mxu0
        %v1096 = vadd.f32 0.0, %v1095
        %v1097 = vpop.f32.mrb[0].mxu0
        %v1098 = vadd.f32 0.0, %v1097
        %v1099 = vpop.f32.mrb[0].mxu0
        %v1100 = vadd.f32 0.0, %v1099
        %1101 = vdwg.mxu0
        %1102 = vmatprep.subr.bf16.mxu0 0
        %1103 = vmatpush1.bf16.msra.mxu0 %v1052
        %1104 = vmatprep.subr.bf16.mxu0 0
        %1105 = vmatpush1.bf16.msra.mxu0 0
        %1106 = vmatprep.subr.bf16.mxu0 0
        %1107 = vmatpush1.bf16.msra.mxu0 0
        %1108 = vmatprep.subr.bf16.mxu0 0
        %1109 = vmatpush1.bf16.msra.mxu0 0
        %1110 = vmatprep.subr.bf16.mxu0 0
        %1111 = vmatpush1.bf16.msra.mxu0 0
        %1112 = vmatprep.subr.bf16.mxu0 0
        %1113 = vmatpush1.bf16.msra.mxu0 0
        %1114 = vmatprep.subr.bf16.mxu0 0
        %1115 = vmatpush1.bf16.msra.mxu0 0
        %1116 = vmatprep.subr.bf16.mxu0 0
        %1117 = vmatpush1.bf16.msra.mxu0 0
        %1118 = vmatprep.subr.bf16.mxu0 0
        %1119 = vmatpush1.bf16.msra.mxu0 0
        %1120 = vmatprep.subr.bf16.mxu0 0
        %1121 = vmatpush1.bf16.msra.mxu0 0
        %1122 = vmatprep.subr.bf16.mxu0 0
        %1123 = vmatpush1.bf16.msra.mxu0 0
        %1124 = vmatprep.subr.bf16.mxu0 0
        %1125 = vmatpush1.bf16.msra.mxu0 0
        %1126 = vmatprep.subr.bf16.mxu0 0
        %1127 = vmatpush1.bf16.msra.mxu0 0
        %1128 = vmatprep.subr.bf16.mxu0 0
        %1129 = vmatpush1.bf16.msra.mxu0 0
        %1130 = vmatprep.subr.bf16.mxu0 0
        %1131 = vmatpush1.bf16.msra.mxu0 0
        %1132 = vmatprep.subr.bf16.mxu0 0
        %1133 = vmatpush1.bf16.msra.mxu0 0
        %1134 = vmatprep.mubr.bf16.mxu0 0
        %1135 = vmatmul.mubr.bf16.gmra.mrb[0].mxu0 %v1057
        %v1136 = vpop.f32.mrb[0].mxu0
        %v1137 = vadd.f32 0.0, %v1136
        %v1138 = vpop.f32.mrb[0].mxu0
        %v1139 = vpop.f32.mrb[0].mxu0
        %v1140 = vadd.f32 0.0, %v1139
        %v1141 = vpop.f32.mrb[0].mxu0
        %1142 = vdwg.mxu0
        %v1143 = vadd.f32 %v1027, %v1094
        %v1144 = vadd.f32 %v1028, %v1096
        %v1145 = vadd.f32 %v1029, %v1137
        %v1146 = vadd.f32 %v1030, %v1098
        %v1147 = vadd.f32 %v1031, %v1100
        %v1148 = vadd.f32 %v1032, %v1140
        %s1149 = scalar_lea.vmem %s2, 32
        %v1150 = vld [vmem:[%s1149] sm:$0xf]
        %v1151 = vld [vmem:[%s1149 + $0x4] sm:$0xf]
        %v1154 = vunpack.c.l.b16 %v1150
        %v1155 = vunpack.c.l.b16 %v1151
        %v1156 = vpack.c.b16 %v1155, %v1154
        %v1158 = vsel %vm722, %v1156, 0
        %1160 = vmatprep.subr.bf16.mxu0 %v691
        %1161 = vmatpush1.bf16.msra.mxu0 %v690
        %1162 = vmatprep.subr.bf16.mxu0 0
        %1163 = vmatpush1.bf16.msra.mxu0 0
        %1164 = vmatprep.subr.bf16.mxu0 0
        %1165 = vmatpush1.bf16.msra.mxu0 0
        %1166 = vmatprep.subr.bf16.mxu0 0
        %1167 = vmatpush1.bf16.msra.mxu0 0
        %1168 = vmatprep.subr.bf16.mxu0 0
        %1169 = vmatpush1.bf16.msra.mxu0 0
        %1170 = vmatprep.subr.bf16.mxu0 0
        %1171 = vmatpush1.bf16.msra.mxu0 0
        %1172 = vmatprep.subr.bf16.mxu0 0
        %1173 = vmatpush1.bf16.msra.mxu0 0
        %1174 = vmatprep.subr.bf16.mxu0 0
        %1175 = vmatpush1.bf16.msra.mxu0 0
        %1176 = vmatprep.subr.bf16.mxu0 0
        %1177 = vmatpush1.bf16.msra.mxu0 0
        %1178 = vmatprep.subr.bf16.mxu0 0
        %1179 = vmatpush1.bf16.msra.mxu0 0
        %1180 = vmatprep.subr.bf16.mxu0 0
        %1181 = vmatpush1.bf16.msra.mxu0 0
        %1182 = vmatprep.subr.bf16.mxu0 0
        %1183 = vmatpush1.bf16.msra.mxu0 0
        %1184 = vmatprep.subr.bf16.mxu0 0
        %1185 = vmatpush1.bf16.msra.mxu0 0
        %1186 = vmatprep.subr.bf16.mxu0 0
        %1187 = vmatpush1.bf16.msra.mxu0 0
        %1188 = vmatprep.subr.bf16.mxu0 0
        %1189 = vmatpush1.bf16.msra.mxu0 0
        %1190 = vmatprep.subr.bf16.mxu0 0
        %1191 = vmatpush1.bf16.msra.mxu0 0
        %1192 = vmatprep.mubr.bf16.mxu0 0
        %1193 = vmatmul.mubr.bf16.gmra.mrb[0].mxu0 %v1158
        %v1194 = vpop.f32.mrb[0].mxu0
        %v1195 = vadd.f32 0.0, %v1194
        %v1196 = vpop.f32.mrb[0].mxu0
        %v1197 = vadd.f32 0.0, %v1196
        %v1198 = vpop.f32.mrb[0].mxu0
        %v1199 = vadd.f32 0.0, %v1198
        %v1200 = vpop.f32.mrb[0].mxu0
        %v1201 = vadd.f32 0.0, %v1200
        %1202 = vdwg.mxu0
        %1203 = vmatprep.subr.bf16.mxu0 0
        %1204 = vmatpush1.bf16.msra.mxu0 %v692
        %1205 = vmatprep.subr.bf16.mxu0 0
        %1206 = vmatpush1.bf16.msra.mxu0 0
        %1207 = vmatprep.subr.bf16.mxu0 0
        %1208 = vmatpush1.bf16.msra.mxu0 0
        %1209 = vmatprep.subr.bf16.mxu0 0
        %1210 = vmatpush1.bf16.msra.mxu0 0
        %1211 = vmatprep.subr.bf16.mxu0 0
        %1212 = vmatpush1.bf16.msra.mxu0 0
        %1213 = vmatprep.subr.bf16.mxu0 0
        %1214 = vmatpush1.bf16.msra.mxu0 0
        %1215 = vmatprep.subr.bf16.mxu0 0
        %1216 = vmatpush1.bf16.msra.mxu0 0
        %1217 = vmatprep.subr.bf16.mxu0 0
        %1218 = vmatpush1.bf16.msra.mxu0 0
        %1219 = vmatprep.subr.bf16.mxu0 0
        %1220 = vmatpush1.bf16.msra.mxu0 0
        %1221 = vmatprep.subr.bf16.mxu0 0
        %1222 = vmatpush1.bf16.msra.mxu0 0
        %1223 = vmatprep.subr.bf16.mxu0 0
        %1224 = vmatpush1.bf16.msra.mxu0 0
        %1225 = vmatprep.subr.bf16.mxu0 0
        %1226 = vmatpush1.bf16.msra.mxu0 0
        %1227 = vmatprep.subr.bf16.mxu0 0
        %1228 = vmatpush1.bf16.msra.mxu0 0
        %1229 = vmatprep.subr.bf16.mxu0 0
        %1230 = vmatpush1.bf16.msra.mxu0 0
        %1231 = vmatprep.subr.bf16.mxu0 0
        %1232 = vmatpush1.bf16.msra.mxu0 0
        %1233 = vmatprep.subr.bf16.mxu0 0
        %1234 = vmatpush1.bf16.msra.mxu0 0
        %1235 = vmatprep.mubr.bf16.mxu0 0
        %1236 = vmatmul.mubr.bf16.gmra.mrb[0].mxu0 %v1158
        %v1237 = vpop.f32.mrb[0].mxu0
        %v1238 = vadd.f32 0.0, %v1237
        %v1239 = vpop.f32.mrb[0].mxu0
        %v1240 = vpop.f32.mrb[0].mxu0
        %v1241 = vadd.f32 0.0, %v1240
        %v1242 = vpop.f32.mrb[0].mxu0
        %1243 = vdwg.mxu0
        %v1244 = vadd.f32 %v1143, %v1195
        %v1245 = vadd.f32 %v1144, %v1197
        %v1246 = vadd.f32 %v1145, %v1238
        %v1247 = vadd.f32 %v1146, %v1199
        %v1248 = vadd.f32 %v1147, %v1201
        %v1249 = vadd.f32 %v1148, %v1241
        %v1250 = vld [vmem:[#allocation2 + $0x8] sm:$0xff]
        %v1251 = vld [vmem:[#allocation2 + $0x10] sm:$0xff]
        %v1252 = vld [vmem:[#allocation2 + $0x18] sm:$0xff]
        %v1253 = vld [vmem:[#allocation2 + $0x20] sm:$0xff]
        %s1254 = scalar_lea.vmem %s2, 40
        %v1255 = vld [vmem:[%s1254] sm:$0xf]
        %v1256 = vld [vmem:[%s1254 + $0x4] sm:$0xf]
        %v1259 = vunpack.c.l.b16 %v1255
        %v1260 = vunpack.c.l.b16 %v1256
        %v1261 = vpack.c.b16 %v1260, %v1259
        %1266 = vrot.lane.b32.xlu0 %v1250, 127
        %v1267 = vpop.permute.xlu0 %1266
        %1268 = vrot.lane.b32.xlu0 %v1251, 127
        %v1269 = vpop.permute.xlu0 %1268
        %1270 = vrot.lane.b32.xlu0 %v1252, 127
        %v1271 = vpop.permute.xlu0 %1270
        %1272 = vrot.lane.b32.xlu0 %v1253, 127
        %v1273 = vpop.permute.xlu0 %1272
        %vm1274 = vcmask 1039360
        %v1275 = vsel %vm1274, %v1267, %v1269
        %v1276 = vsel %vm1274, %v1269, %v1271
        %v1277 = vsel %vm1274, %v1271, %v1273
        %v1282 = vsel %vm722, %v1261, 0
        %1284 = vmatprep.subr.bf16.mxu0 %v1276
        %1285 = vmatpush1.bf16.msra.mxu0 %v1275
        %1286 = vmatprep.subr.bf16.mxu0 0
        %1287 = vmatpush1.bf16.msra.mxu0 0
        %1288 = vmatprep.subr.bf16.mxu0 0
        %1289 = vmatpush1.bf16.msra.mxu0 0
        %1290 = vmatprep.subr.bf16.mxu0 0
        %1291 = vmatpush1.bf16.msra.mxu0 0
        %1292 = vmatprep.subr.bf16.mxu0 0
        %1293 = vmatpush1.bf16.msra.mxu0 0
        %1294 = vmatprep.subr.bf16.mxu0 0
        %1295 = vmatpush1.bf16.msra.mxu0 0
        %1296 = vmatprep.subr.bf16.mxu0 0
        %1297 = vmatpush1.bf16.msra.mxu0 0
        %1298 = vmatprep.subr.bf16.mxu0 0
        %1299 = vmatpush1.bf16.msra.mxu0 0
        %1300 = vmatprep.subr.bf16.mxu0 0
        %1301 = vmatpush1.bf16.msra.mxu0 0
        %1302 = vmatprep.subr.bf16.mxu0 0
        %1303 = vmatpush1.bf16.msra.mxu0 0
        %1304 = vmatprep.subr.bf16.mxu0 0
        %1305 = vmatpush1.bf16.msra.mxu0 0
        %1306 = vmatprep.subr.bf16.mxu0 0
        %1307 = vmatpush1.bf16.msra.mxu0 0
        %1308 = vmatprep.subr.bf16.mxu0 0
        %1309 = vmatpush1.bf16.msra.mxu0 0
        %1310 = vmatprep.subr.bf16.mxu0 0
        %1311 = vmatpush1.bf16.msra.mxu0 0
        %1312 = vmatprep.subr.bf16.mxu0 0
        %1313 = vmatpush1.bf16.msra.mxu0 0
        %1314 = vmatprep.subr.bf16.mxu0 0
        %1315 = vmatpush1.bf16.msra.mxu0 0
        %1316 = vmatprep.mubr.bf16.mxu0 0
        %1317 = vmatmul.mubr.bf16.gmra.mrb[0].mxu0 %v1282
        %v1318 = vpop.f32.mrb[0].mxu0
        %v1319 = vadd.f32 0.0, %v1318
        %v1320 = vpop.f32.mrb[0].mxu0
        %v1321 = vadd.f32 0.0, %v1320
        %v1322 = vpop.f32.mrb[0].mxu0
        %v1323 = vadd.f32 0.0, %v1322
        %v1324 = vpop.f32.mrb[0].mxu0
        %v1325 = vadd.f32 0.0, %v1324
        %1326 = vdwg.mxu0
        %1327 = vmatprep.subr.bf16.mxu0 0
        %1328 = vmatpush1.bf16.msra.mxu0 %v1277
        %1329 = vmatprep.subr.bf16.mxu0 0
        %1330 = vmatpush1.bf16.msra.mxu0 0
        %1331 = vmatprep.subr.bf16.mxu0 0
        %1332 = vmatpush1.bf16.msra.mxu0 0
        %1333 = vmatprep.subr.bf16.mxu0 0
        %1334 = vmatpush1.bf16.msra.mxu0 0
        %1335 = vmatprep.subr.bf16.mxu0 0
        %1336 = vmatpush1.bf16.msra.mxu0 0
        %1337 = vmatprep.subr.bf16.mxu0 0
        %1338 = vmatpush1.bf16.msra.mxu0 0
        %1339 = vmatprep.subr.bf16.mxu0 0
        %1340 = vmatpush1.bf16.msra.mxu0 0
        %1341 = vmatprep.subr.bf16.mxu0 0
        %1342 = vmatpush1.bf16.msra.mxu0 0
        %1343 = vmatprep.subr.bf16.mxu0 0
        %1344 = vmatpush1.bf16.msra.mxu0 0
        %1345 = vmatprep.subr.bf16.mxu0 0
        %1346 = vmatpush1.bf16.msra.mxu0 0
        %1347 = vmatprep.subr.bf16.mxu0 0
        %1348 = vmatpush1.bf16.msra.mxu0 0
        %1349 = vmatprep.subr.bf16.mxu0 0
        %1350 = vmatpush1.bf16.msra.mxu0 0
        %1351 = vmatprep.subr.bf16.mxu0 0
        %1352 = vmatpush1.bf16.msra.mxu0 0
        %1353 = vmatprep.subr.bf16.mxu0 0
        %1354 = vmatpush1.bf16.msra.mxu0 0
        %1355 = vmatprep.subr.bf16.mxu0 0
        %1356 = vmatpush1.bf16.msra.mxu0 0
        %1357 = vmatprep.subr.bf16.mxu0 0
        %1358 = vmatpush1.bf16.msra.mxu0 0
        %1359 = vmatprep.mubr.bf16.mxu0 0
        %1360 = vmatmul.mubr.bf16.gmra.mrb[0].mxu0 %v1282
        %v1361 = vpop.f32.mrb[0].mxu0
        %v1362 = vadd.f32 0.0, %v1361
        %v1363 = vpop.f32.mrb[0].mxu0
        %v1364 = vpop.f32.mrb[0].mxu0
        %v1365 = vadd.f32 0.0, %v1364
        %v1366 = vpop.f32.mrb[0].mxu0
        %1367 = vdwg.mxu0
        %v1368 = vadd.f32 %v1244, %v1319
        %v1369 = vadd.f32 %v1245, %v1321
        %v1370 = vadd.f32 %v1246, %v1362
        %v1371 = vadd.f32 %v1247, %v1323
        %v1372 = vadd.f32 %v1248, %v1325
        %v1373 = vadd.f32 %v1249, %v1365
        %s1374 = scalar_lea.vmem %s2, 48
        %v1375 = vld [vmem:[%s1374] sm:$0xf]
        %v1376 = vld [vmem:[%s1374 + $0x4] sm:$0xf]
        %v1379 = vunpack.c.l.b16 %v1375
        %v1380 = vunpack.c.l.b16 %v1376
        %v1381 = vpack.c.b16 %v1380, %v1379
        %1382 = vrot.lane.b32.xlu0 %v1250, 111
        %v1383 = vpop.permute.xlu0 %1382
        %1384 = vrot.lane.b32.xlu0 %v1251, 111
        %v1385 = vpop.permute.xlu0 %1384
        %1386 = vrot.lane.b32.xlu0 %v1252, 111
        %v1387 = vpop.permute.xlu0 %1386
        %1388 = vrot.lane.b32.xlu0 %v1253, 111
        %v1389 = vpop.permute.xlu0 %1388
        %vm1390 = vcmask 908288
        %v1391 = vsel %vm1390, %v1383, %v1385
        %v1392 = vsel %vm1390, %v1385, %v1387
        %v1393 = vsel %vm1390, %v1387, %v1389
        %v1398 = vsel %vm722, %v1381, 0
        %1400 = vmatprep.subr.bf16.mxu0 %v1392
        %1401 = vmatpush1.bf16.msra.mxu0 %v1391
        %1402 = vmatprep.subr.bf16.mxu0 0
        %1403 = vmatpush1.bf16.msra.mxu0 0
        %1404 = vmatprep.subr.bf16.mxu0 0
        %1405 = vmatpush1.bf16.msra.mxu0 0
        %1406 = vmatprep.subr.bf16.mxu0 0
        %1407 = vmatpush1.bf16.msra.mxu0 0
        %1408 = vmatprep.subr.bf16.mxu0 0
        %1409 = vmatpush1.bf16.msra.mxu0 0
        %1410 = vmatprep.subr.bf16.mxu0 0
        %1411 = vmatpush1.bf16.msra.mxu0 0
        %1412 = vmatprep.subr.bf16.mxu0 0
        %1413 = vmatpush1.bf16.msra.mxu0 0
        %1414 = vmatprep.subr.bf16.mxu0 0
        %1415 = vmatpush1.bf16.msra.mxu0 0
        %1416 = vmatprep.subr.bf16.mxu0 0
        %1417 = vmatpush1.bf16.msra.mxu0 0
        %1418 = vmatprep.subr.bf16.mxu0 0
        %1419 = vmatpush1.bf16.msra.mxu0 0
        %1420 = vmatprep.subr.bf16.mxu0 0
        %1421 = vmatpush1.bf16.msra.mxu0 0
        %1422 = vmatprep.subr.bf16.mxu0 0
        %1423 = vmatpush1.bf16.msra.mxu0 0
        %1424 = vmatprep.subr.bf16.mxu0 0
        %1425 = vmatpush1.bf16.msra.mxu0 0
        %1426 = vmatprep.subr.bf16.mxu0 0
        %1427 = vmatpush1.bf16.msra.mxu0 0
        %1428 = vmatprep.subr.bf16.mxu0 0
        %1429 = vmatpush1.bf16.msra.mxu0 0
        %1430 = vmatprep.subr.bf16.mxu0 0
        %1431 = vmatpush1.bf16.msra.mxu0 0
        %1432 = vmatprep.mubr.bf16.mxu0 0
        %1433 = vmatmul.mubr.bf16.gmra.mrb[0].mxu0 %v1398
        %v1434 = vpop.f32.mrb[0].mxu0
        %v1435 = vadd.f32 0.0, %v1434
        %v1436 = vpop.f32.mrb[0].mxu0
        %v1437 = vadd.f32 0.0, %v1436
        %v1438 = vpop.f32.mrb[0].mxu0
        %v1439 = vadd.f32 0.0, %v1438
        %v1440 = vpop.f32.mrb[0].mxu0
        %v1441 = vadd.f32 0.0, %v1440
        %1442 = vdwg.mxu0
        %1443 = vmatprep.subr.bf16.mxu0 0
        %1444 = vmatpush1.bf16.msra.mxu0 %v1393
        %1445 = vmatprep.subr.bf16.mxu0 0
        %1446 = vmatpush1.bf16.msra.mxu0 0
        %1447 = vmatprep.subr.bf16.mxu0 0
        %1448 = vmatpush1.bf16.msra.mxu0 0
        %1449 = vmatprep.subr.bf16.mxu0 0
        %1450 = vmatpush1.bf16.msra.mxu0 0
        %1451 = vmatprep.subr.bf16.mxu0 0
        %1452 = vmatpush1.bf16.msra.mxu0 0
        %1453 = vmatprep.subr.bf16.mxu0 0
        %1454 = vmatpush1.bf16.msra.mxu0 0
        %1455 = vmatprep.subr.bf16.mxu0 0
        %1456 = vmatpush1.bf16.msra.mxu0 0
        %1457 = vmatprep.subr.bf16.mxu0 0
        %1458 = vmatpush1.bf16.msra.mxu0 0
        %1459 = vmatprep.subr.bf16.mxu0 0
        %1460 = vmatpush1.bf16.msra.mxu0 0
        %1461 = vmatprep.subr.bf16.mxu0 0
        %1462 = vmatpush1.bf16.msra.mxu0 0
        %1463 = vmatprep.subr.bf16.mxu0 0
        %1464 = vmatpush1.bf16.msra.mxu0 0
        %1465 = vmatprep.subr.bf16.mxu0 0
        %1466 = vmatpush1.bf16.msra.mxu0 0
        %1467 = vmatprep.subr.bf16.mxu0 0
        %1468 = vmatpush1.bf16.msra.mxu0 0
        %1469 = vmatprep.subr.bf16.mxu0 0
        %1470 = vmatpush1.bf16.msra.mxu0 0
        %1471 = vmatprep.subr.bf16.mxu0 0
        %1472 = vmatpush1.bf16.msra.mxu0 0
        %1473 = vmatprep.subr.bf16.mxu0 0
        %1474 = vmatpush1.bf16.msra.mxu0 0
        %1475 = vmatprep.mubr.bf16.mxu0 0
        %1476 = vmatmul.mubr.bf16.gmra.mrb[0].mxu0 %v1398
        %v1477 = vpop.f32.mrb[0].mxu0
        %v1478 = vadd.f32 0.0, %v1477
        %v1479 = vpop.f32.mrb[0].mxu0
        %v1480 = vpop.f32.mrb[0].mxu0
        %v1481 = vadd.f32 0.0, %v1480
        %v1482 = vpop.f32.mrb[0].mxu0
        %1483 = vdwg.mxu0
        %v1484 = vadd.f32 %v1368, %v1435
        %v1485 = vadd.f32 %v1369, %v1437
        %v1486 = vadd.f32 %v1370, %v1478
        %v1487 = vadd.f32 %v1371, %v1439
        %v1488 = vadd.f32 %v1372, %v1441
        %v1489 = vadd.f32 %v1373, %v1481
        %s1490 = scalar_lea.vmem %s2, 56
        %v1491 = vld [vmem:[%s1490] sm:$0xf]
        %v1492 = vld [vmem:[%s1490 + $0x4] sm:$0xf]
        %v1495 = vunpack.c.l.b16 %v1491
        %v1496 = vunpack.c.l.b16 %v1492
        %v1497 = vpack.c.b16 %v1496, %v1495
        %1498 = vrot.lane.b32.xlu0 %v1250, 110
        %v1499 = vpop.permute.xlu0 %1498
        %1500 = vrot.lane.b32.xlu0 %v1251, 110
        %v1501 = vpop.permute.xlu0 %1500
        %1502 = vrot.lane.b32.xlu0 %v1252, 110
        %v1503 = vpop.permute.xlu0 %1502
        %1504 = vrot.lane.b32.xlu0 %v1253, 110
        %v1505 = vpop.permute.xlu0 %1504
        %vm1506 = vcmask 900096
        %v1507 = vsel %vm1506, %v1499, %v1501
        %v1508 = vsel %vm1506, %v1501, %v1503
        %v1509 = vsel %vm1506, %v1503, %v1505
        %v1514 = vsel %vm722, %v1497, 0
        %1516 = vmatprep.subr.bf16.mxu0 %v1508
        %1517 = vmatpush1.bf16.msra.mxu0 %v1507
        %1518 = vmatprep.subr.bf16.mxu0 0
        %1519 = vmatpush1.bf16.msra.mxu0 0
        %1520 = vmatprep.subr.bf16.mxu0 0
        %1521 = vmatpush1.bf16.msra.mxu0 0
        %1522 = vmatprep.subr.bf16.mxu0 0
        %1523 = vmatpush1.bf16.msra.mxu0 0
        %1524 = vmatprep.subr.bf16.mxu0 0
        %1525 = vmatpush1.bf16.msra.mxu0 0
        %1526 = vmatprep.subr.bf16.mxu0 0
        %1527 = vmatpush1.bf16.msra.mxu0 0
        %1528 = vmatprep.subr.bf16.mxu0 0
        %1529 = vmatpush1.bf16.msra.mxu0 0
        %1530 = vmatprep.subr.bf16.mxu0 0
        %1531 = vmatpush1.bf16.msra.mxu0 0
        %1532 = vmatprep.subr.bf16.mxu0 0
        %1533 = vmatpush1.bf16.msra.mxu0 0
        %1534 = vmatprep.subr.bf16.mxu0 0
        %1535 = vmatpush1.bf16.msra.mxu0 0
        %1536 = vmatprep.subr.bf16.mxu0 0
        %1537 = vmatpush1.bf16.msra.mxu0 0
        %1538 = vmatprep.subr.bf16.mxu0 0
        %1539 = vmatpush1.bf16.msra.mxu0 0
        %1540 = vmatprep.subr.bf16.mxu0 0
        %1541 = vmatpush1.bf16.msra.mxu0 0
        %1542 = vmatprep.subr.bf16.mxu0 0
        %1543 = vmatpush1.bf16.msra.mxu0 0
        %1544 = vmatprep.subr.bf16.mxu0 0
        %1545 = vmatpush1.bf16.msra.mxu0 0
        %1546 = vmatprep.subr.bf16.mxu0 0
        %1547 = vmatpush1.bf16.msra.mxu0 0
        %1548 = vmatprep.mubr.bf16.mxu0 0
        %1549 = vmatmul.mubr.bf16.gmra.mrb[0].mxu0 %v1514
        %v1550 = vpop.f32.mrb[0].mxu0
        %v1551 = vadd.f32 0.0, %v1550
        %v1552 = vpop.f32.mrb[0].mxu0
        %v1553 = vadd.f32 0.0, %v1552
        %v1554 = vpop.f32.mrb[0].mxu0
        %v1555 = vadd.f32 0.0, %v1554
        %v1556 = vpop.f32.mrb[0].mxu0
        %v1557 = vadd.f32 0.0, %v1556
        %1558 = vdwg.mxu0
        %1559 = vmatprep.subr.bf16.mxu0 0
        %1560 = vmatpush1.bf16.msra.mxu0 %v1509
        %1561 = vmatprep.subr.bf16.mxu0 0
        %1562 = vmatpush1.bf16.msra.mxu0 0
        %1563 = vmatprep.subr.bf16.mxu0 0
        %1564 = vmatpush1.bf16.msra.mxu0 0
        %1565 = vmatprep.subr.bf16.mxu0 0
        %1566 = vmatpush1.bf16.msra.mxu0 0
        %1567 = vmatprep.subr.bf16.mxu0 0
        %1568 = vmatpush1.bf16.msra.mxu0 0
        %1569 = vmatprep.subr.bf16.mxu0 0
        %1570 = vmatpush1.bf16.msra.mxu0 0
        %1571 = vmatprep.subr.bf16.mxu0 0
        %1572 = vmatpush1.bf16.msra.mxu0 0
        %1573 = vmatprep.subr.bf16.mxu0 0
        %1574 = vmatpush1.bf16.msra.mxu0 0
        %1575 = vmatprep.subr.bf16.mxu0 0
        %1576 = vmatpush1.bf16.msra.mxu0 0
        %1577 = vmatprep.subr.bf16.mxu0 0
        %1578 = vmatpush1.bf16.msra.mxu0 0
        %1579 = vmatprep.subr.bf16.mxu0 0
        %1580 = vmatpush1.bf16.msra.mxu0 0
        %1581 = vmatprep.subr.bf16.mxu0 0
        %1582 = vmatpush1.bf16.msra.mxu0 0
        %1583 = vmatprep.subr.bf16.mxu0 0
        %1584 = vmatpush1.bf16.msra.mxu0 0
        %1585 = vmatprep.subr.bf16.mxu0 0
        %1586 = vmatpush1.bf16.msra.mxu0 0
        %1587 = vmatprep.subr.bf16.mxu0 0
        %1588 = vmatpush1.bf16.msra.mxu0 0
        %1589 = vmatprep.subr.bf16.mxu0 0
        %1590 = vmatpush1.bf16.msra.mxu0 0
        %1591 = vmatprep.mubr.bf16.mxu0 0
        %1592 = vmatmul.mubr.bf16.gmra.mrb[0].mxu0 %v1514
        %v1593 = vpop.f32.mrb[0].mxu0
        %v1594 = vadd.f32 0.0, %v1593
        %v1595 = vpop.f32.mrb[0].mxu0
        %v1596 = vpop.f32.mrb[0].mxu0
        %v1597 = vadd.f32 0.0, %v1596
        %v1598 = vpop.f32.mrb[0].mxu0
        %1599 = vdwg.mxu0
        %v1600 = vadd.f32 %v1484, %v1551
        %v1601 = vadd.f32 %v1485, %v1553
        %v1602 = vadd.f32 %v1486, %v1594
        %v1603 = vadd.f32 %v1487, %v1555
        %v1604 = vadd.f32 %v1488, %v1557
        %v1605 = vadd.f32 %v1489, %v1597
        %s1606 = scalar_lea.vmem %s2, 64
        %v1607 = vld [vmem:[%s1606] sm:$0xf]
        %v1608 = vld [vmem:[%s1606 + $0x4] sm:$0xf]
        %v1611 = vunpack.c.l.b16 %v1607
        %v1612 = vunpack.c.l.b16 %v1608
        %v1613 = vpack.c.b16 %v1612, %v1611
        %1614 = vrot.lane.b32.xlu0 %v1250, 109
        %v1615 = vpop.permute.xlu0 %1614
        %1616 = vrot.lane.b32.xlu0 %v1251, 109
        %v1617 = vpop.permute.xlu0 %1616
        %1618 = vrot.lane.b32.xlu0 %v1252, 109
        %v1619 = vpop.permute.xlu0 %1618
        %1620 = vrot.lane.b32.xlu0 %v1253, 109
        %v1621 = vpop.permute.xlu0 %1620
        %vm1622 = vcmask 891904
        %v1623 = vsel %vm1622, %v1615, %v1617
        %v1624 = vsel %vm1622, %v1617, %v1619
        %v1625 = vsel %vm1622, %v1619, %v1621
        %v1630 = vsel %vm722, %v1613, 0
        %1632 = vmatprep.subr.bf16.mxu0 %v1624
        %1633 = vmatpush1.bf16.msra.mxu0 %v1623
        %1634 = vmatprep.subr.bf16.mxu0 0
        %1635 = vmatpush1.bf16.msra.mxu0 0
        %1636 = vmatprep.subr.bf16.mxu0 0
        %1637 = vmatpush1.bf16.msra.mxu0 0
        %1638 = vmatprep.subr.bf16.mxu0 0
        %1639 = vmatpush1.bf16.msra.mxu0 0
        %1640 = vmatprep.subr.bf16.mxu0 0
        %1641 = vmatpush1.bf16.msra.mxu0 0
        %1642 = vmatprep.subr.bf16.mxu0 0
        %1643 = vmatpush1.bf16.msra.mxu0 0
        %1644 = vmatprep.subr.bf16.mxu0 0
        %1645 = vmatpush1.bf16.msra.mxu0 0
        %1646 = vmatprep.subr.bf16.mxu0 0
        %1647 = vmatpush1.bf16.msra.mxu0 0
        %1648 = vmatprep.subr.bf16.mxu0 0
        %1649 = vmatpush1.bf16.msra.mxu0 0
        %1650 = vmatprep.subr.bf16.mxu0 0
        %1651 = vmatpush1.bf16.msra.mxu0 0
        %1652 = vmatprep.subr.bf16.mxu0 0
        %1653 = vmatpush1.bf16.msra.mxu0 0
        %1654 = vmatprep.subr.bf16.mxu0 0
        %1655 = vmatpush1.bf16.msra.mxu0 0
        %1656 = vmatprep.subr.bf16.mxu0 0
        %1657 = vmatpush1.bf16.msra.mxu0 0
        %1658 = vmatprep.subr.bf16.mxu0 0
        %1659 = vmatpush1.bf16.msra.mxu0 0
        %1660 = vmatprep.subr.bf16.mxu0 0
        %1661 = vmatpush1.bf16.msra.mxu0 0
        %1662 = vmatprep.subr.bf16.mxu0 0
        %1663 = vmatpush1.bf16.msra.mxu0 0
        %1664 = vmatprep.mubr.bf16.mxu0 0
        %1665 = vmatmul.mubr.bf16.gmra.mrb[0].mxu0 %v1630
        %v1666 = vpop.f32.mrb[0].mxu0
        %v1667 = vadd.f32 0.0, %v1666
        %v1668 = vpop.f32.mrb[0].mxu0
        %v1669 = vadd.f32 0.0, %v1668
        %v1670 = vpop.f32.mrb[0].mxu0
        %v1671 = vadd.f32 0.0, %v1670
        %v1672 = vpop.f32.mrb[0].mxu0
        %v1673 = vadd.f32 0.0, %v1672
        %1674 = vdwg.mxu0
        %1675 = vmatprep.subr.bf16.mxu0 0
        %1676 = vmatpush1.bf16.msra.mxu0 %v1625
        %1677 = vmatprep.subr.bf16.mxu0 0
        %1678 = vmatpush1.bf16.msra.mxu0 0
        %1679 = vmatprep.subr.bf16.mxu0 0
        %1680 = vmatpush1.bf16.msra.mxu0 0
        %1681 = vmatprep.subr.bf16.mxu0 0
        %1682 = vmatpush1.bf16.msra.mxu0 0
        %1683 = vmatprep.subr.bf16.mxu0 0
        %1684 = vmatpush1.bf16.msra.mxu0 0
        %1685 = vmatprep.subr.bf16.mxu0 0
        %1686 = vmatpush1.bf16.msra.mxu0 0
        %1687 = vmatprep.subr.bf16.mxu0 0
        %1688 = vmatpush1.bf16.msra.mxu0 0
        %1689 = vmatprep.subr.bf16.mxu0 0
        %1690 = vmatpush1.bf16.msra.mxu0 0
        %1691 = vmatprep.subr.bf16.mxu0 0
        %1692 = vmatpush1.bf16.msra.mxu0 0
        %1693 = vmatprep.subr.bf16.mxu0 0
        %1694 = vmatpush1.bf16.msra.mxu0 0
        %1695 = vmatprep.subr.bf16.mxu0 0
        %1696 = vmatpush1.bf16.msra.mxu0 0
        %1697 = vmatprep.subr.bf16.mxu0 0
        %1698 = vmatpush1.bf16.msra.mxu0 0
        %1699 = vmatprep.subr.bf16.mxu0 0
        %1700 = vmatpush1.bf16.msra.mxu0 0
        %1701 = vmatprep.subr.bf16.mxu0 0
        %1702 = vmatpush1.bf16.msra.mxu0 0
        %1703 = vmatprep.subr.bf16.mxu0 0
        %1704 = vmatpush1.bf16.msra.mxu0 0
        %1705 = vmatprep.subr.bf16.mxu0 0
        %1706 = vmatpush1.bf16.msra.mxu0 0
        %1707 = vmatprep.mubr.bf16.mxu0 0
        %1708 = vmatmul.mubr.bf16.gmra.mrb[0].mxu0 %v1630
        %v1709 = vpop.f32.mrb[0].mxu0
        %v1710 = vadd.f32 0.0, %v1709
        %v1711 = vpop.f32.mrb[0].mxu0
        %v1712 = vpop.f32.mrb[0].mxu0
        %v1713 = vadd.f32 0.0, %v1712
        %v1714 = vpop.f32.mrb[0].mxu0
        %1715 = vdwg.mxu0
        %v1716 = vadd.f32 %v1600, %v1667
        %v1717 = vadd.f32 %v1601, %v1669
        %v1718 = vadd.f32 %v1602, %v1710
        %v1719 = vadd.f32 %v1603, %v1671
        %v1720 = vadd.f32 %v1604, %v1673
        %v1721 = vadd.f32 %v1605, %v1713
        %v1722 = vld [vmem:[%s3] sm:$0xff]
        %v1723 = vld [vmem:[%s3 + $0x8] sm:$0xff]
        %1725 = vset.pattern.permute.xlu0 0
        %1726 = vperm.xlu0 %1725, %v1722
        %v1727 = vpop.permute.xlu0 %1726
        %1730 = vset.pattern.permute.xlu0 0
        %1731 = vperm.xlu0 %1730, %v1723
        %v1732 = vpop.permute.xlu0 %1731
        %v1734 = vadd.f32 %v1716, %v1727
        %v1735 = vadd.f32 %v1717, %v1727
        %v1736 = vadd.f32 %v1718, %v1727
        %v1737 = vadd.f32 %v1719, %v1732
        %v1738 = vadd.f32 %v1720, %v1732
        %v1739 = vadd.f32 %v1721, %v1732
        %v1740 = vmax.f32 %v1734, 0.0
        %v1741 = vmax.f32 %v1735, 0.0
        %v1742 = vmax.f32 %v1736, 0.0
        %v1743 = vmax.f32 %v1737, 0.0
        %v1744 = vmax.f32 %v1738, 0.0
        %v1745 = vmax.f32 %v1739, 0.0
        %v1747 = vlaneseq
        %v1748 = vshrl.u32 %v1747, 7
        %v1749 = vsub.s32 0, %v1748
        %v1750 = vrot.slane %v665, %v1749
        %v1751 = vlaneseq
        %v1752 = vshrl.u32 %v1751, 7
        %v1753 = vsub.s32 1, %v1752
        %v1754 = vrot.slane %v665, %v1753
        %v1755 = vlaneseq
        %v1756 = vshrl.u32 %v1755, 7
        %v1757 = vsub.s32 2, %v1756
        %v1758 = vrot.slane %v665, %v1757
        %v1762 = vmul.f32 %v1740, %v1750
        %v1763 = vmul.f32 %v1741, %v1754
        %v1764 = vmul.f32 %v1742, %v1758
        %v1765 = vmul.f32 %v1743, %v1750
        %v1766 = vmul.f32 %v1744, %v1754
        %v1767 = vmul.f32 %v1745, %v1758
        %v1768 = vpack.c.bf16 %v1765, %v1762
        %v1769 = vpack.c.bf16 %v1766, %v1763
        %v1770 = vpack.c.bf16 %v1767, %v1764
        %1771 = vst [vmem:[#allocation2 + $0x30] sm:$0xff] %v1768
        %1772 = vst [vmem:[#allocation2 + $0x38] sm:$0xff] %v1769
        %1773 = vst [vmem:[#allocation2 + $0x40] sm:$0xff] %v1770
        %v1774 = vld [vmem:[#allocation2 + $0x28] sm:$0xff]
        %v1775 = vld [vmem:[#allocation2 + $0x30] sm:$0xff]
        %v1776 = vld [vmem:[#allocation2 + $0x38] sm:$0xff]
        %v1777 = vld [vmem:[#allocation2 + $0x40] sm:$0xff]
        %v1778 = vld [vmem:[%s4] sm:$0xf]
        %v1779 = vld [vmem:[%s4 + $0x4] sm:$0xf]
        %s1780 = scalar_lea.vmem %s4, 8
        %v1781 = vld [vmem:[%s1780] sm:$0xf]
        %v1782 = vld [vmem:[%s1780 + $0x4] sm:$0xf]
        %v1785 = vunpack.c.l.b16 %v1781
        %v1786 = vunpack.c.l.b16 %v1782
        %v1787 = vpack.c.b16 %v1786, %v1785
        %1792 = vrot.lane.b32.xlu0 %v1774, 18
        %v1793 = vpop.permute.xlu0 %1792
        %1794 = vrot.lane.b32.xlu0 %v1775, 18
        %v1795 = vpop.permute.xlu0 %1794
        %1796 = vrot.lane.b32.xlu0 %v1776, 18
        %v1797 = vpop.permute.xlu0 %1796
        %1798 = vrot.lane.b32.xlu0 %v1777, 18
        %v1799 = vpop.permute.xlu0 %1798
        %v1800 = vsel %vm715, %v1793, %v1795
        %v1801 = vsel %vm715, %v1795, %v1797
        %v1802 = vsel %vm715, %v1797, %v1799
        %v1807 = vsel %vm722, %v1787, 0
        %1809 = vmatprep.subr.bf16.mxu0 %v1801
        %1810 = vmatpush1.bf16.msra.mxu0 %v1800
        %1811 = vmatprep.subr.bf16.mxu0 0
        %1812 = vmatpush1.bf16.msra.mxu0 0
        %1813 = vmatprep.subr.bf16.mxu0 0
        %1814 = vmatpush1.bf16.msra.mxu0 0
        %1815 = vmatprep.subr.bf16.mxu0 0
        %1816 = vmatpush1.bf16.msra.mxu0 0
        %1817 = vmatprep.subr.bf16.mxu0 0
        %1818 = vmatpush1.bf16.msra.mxu0 0
        %1819 = vmatprep.subr.bf16.mxu0 0
        %1820 = vmatpush1.bf16.msra.mxu0 0
        %1821 = vmatprep.subr.bf16.mxu0 0
        %1822 = vmatpush1.bf16.msra.mxu0 0
        %1823 = vmatprep.subr.bf16.mxu0 0
        %1824 = vmatpush1.bf16.msra.mxu0 0
        %1825 = vmatprep.subr.bf16.mxu0 0
        %1826 = vmatpush1.bf16.msra.mxu0 0
        %1827 = vmatprep.subr.bf16.mxu0 0
        %1828 = vmatpush1.bf16.msra.mxu0 0
        %1829 = vmatprep.subr.bf16.mxu0 0
        %1830 = vmatpush1.bf16.msra.mxu0 0
        %1831 = vmatprep.subr.bf16.mxu0 0
        %1832 = vmatpush1.bf16.msra.mxu0 0
        %1833 = vmatprep.subr.bf16.mxu0 0
        %1834 = vmatpush1.bf16.msra.mxu0 0
        %1835 = vmatprep.subr.bf16.mxu0 0
        %1836 = vmatpush1.bf16.msra.mxu0 0
        %1837 = vmatprep.subr.bf16.mxu0 0
        %1838 = vmatpush1.bf16.msra.mxu0 0
        %1839 = vmatprep.subr.bf16.mxu0 0
        %1840 = vmatpush1.bf16.msra.mxu0 0
        %1841 = vmatprep.mubr.bf16.mxu0 0
        %1842 = vmatmul.mubr.bf16.gmra.mrb[0].mxu0 %v1807
        %v1843 = vpop.f32.mrb[0].mxu0
        %v1844 = vadd.f32 0.0, %v1843
        %v1845 = vpop.f32.mrb[0].mxu0
        %v1846 = vadd.f32 0.0, %v1845
        %v1847 = vpop.f32.mrb[0].mxu0
        %v1848 = vadd.f32 0.0, %v1847
        %v1849 = vpop.f32.mrb[0].mxu0
        %v1850 = vadd.f32 0.0, %v1849
        %1851 = vdwg.mxu0
        %1852 = vmatprep.subr.bf16.mxu0 0
        %1853 = vmatpush1.bf16.msra.mxu0 %v1802
        %1854 = vmatprep.subr.bf16.mxu0 0
        %1855 = vmatpush1.bf16.msra.mxu0 0
        %1856 = vmatprep.subr.bf16.mxu0 0
        %1857 = vmatpush1.bf16.msra.mxu0 0
        %1858 = vmatprep.subr.bf16.mxu0 0
        %1859 = vmatpush1.bf16.msra.mxu0 0
        %1860 = vmatprep.subr.bf16.mxu0 0
        %1861 = vmatpush1.bf16.msra.mxu0 0
        %1862 = vmatprep.subr.bf16.mxu0 0
        %1863 = vmatpush1.bf16.msra.mxu0 0
        %1864 = vmatprep.subr.bf16.mxu0 0
        %1865 = vmatpush1.bf16.msra.mxu0 0
        %1866 = vmatprep.subr.bf16.mxu0 0
        %1867 = vmatpush1.bf16.msra.mxu0 0
        %1868 = vmatprep.subr.bf16.mxu0 0
        %1869 = vmatpush1.bf16.msra.mxu0 0
        %1870 = vmatprep.subr.bf16.mxu0 0
        %1871 = vmatpush1.bf16.msra.mxu0 0
        %1872 = vmatprep.subr.bf16.mxu0 0
        %1873 = vmatpush1.bf16.msra.mxu0 0
        %1874 = vmatprep.subr.bf16.mxu0 0
        %1875 = vmatpush1.bf16.msra.mxu0 0
        %1876 = vmatprep.subr.bf16.mxu0 0
        %1877 = vmatpush1.bf16.msra.mxu0 0
        %1878 = vmatprep.subr.bf16.mxu0 0
        %1879 = vmatpush1.bf16.msra.mxu0 0
        %1880 = vmatprep.subr.bf16.mxu0 0
        %1881 = vmatpush1.bf16.msra.mxu0 0
        %1882 = vmatprep.subr.bf16.mxu0 0
        %1883 = vmatpush1.bf16.msra.mxu0 0
        %1884 = vmatprep.mubr.bf16.mxu0 0
        %1885 = vmatmul.mubr.bf16.gmra.mrb[0].mxu0 %v1807
        %v1886 = vpop.f32.mrb[0].mxu0
        %v1887 = vadd.f32 0.0, %v1886
        %v1888 = vpop.f32.mrb[0].mxu0
        %v1889 = vpop.f32.mrb[0].mxu0
        %v1890 = vadd.f32 0.0, %v1889
        %v1891 = vpop.f32.mrb[0].mxu0
        %1892 = vdwg.mxu0
        %v1895 = vunpack.c.l.b16 %v1778
        %v1896 = vunpack.c.l.b16 %v1779
        %v1897 = vpack.c.b16 %v1896, %v1895
        %1898 = vrot.lane.b32.xlu0 %v1774, 19
        %v1899 = vpop.permute.xlu0 %1898
        %1900 = vrot.lane.b32.xlu0 %v1775, 19
        %v1901 = vpop.permute.xlu0 %1900
        %1902 = vrot.lane.b32.xlu0 %v1776, 19
        %v1903 = vpop.permute.xlu0 %1902
        %1904 = vrot.lane.b32.xlu0 %v1777, 19
        %v1905 = vpop.permute.xlu0 %1904
        %v1906 = vsel %vm823, %v1899, %v1901
        %v1907 = vsel %vm823, %v1901, %v1903
        %v1908 = vsel %vm823, %v1903, %v1905
        %v1913 = vsel %vm722, %v1897, 0
        %1915 = vmatprep.subr.bf16.mxu0 %v1907
        %1916 = vmatpush1.bf16.msra.mxu0 %v1906
        %1917 = vmatprep.subr.bf16.mxu0 0
        %1918 = vmatpush1.bf16.msra.mxu0 0
        %1919 = vmatprep.subr.bf16.mxu0 0
        %1920 = vmatpush1.bf16.msra.mxu0 0
        %1921 = vmatprep.subr.bf16.mxu0 0
        %1922 = vmatpush1.bf16.msra.mxu0 0
        %1923 = vmatprep.subr.bf16.mxu0 0
        %1924 = vmatpush1.bf16.msra.mxu0 0
        %1925 = vmatprep.subr.bf16.mxu0 0
        %1926 = vmatpush1.bf16.msra.mxu0 0
        %1927 = vmatprep.subr.bf16.mxu0 0
        %1928 = vmatpush1.bf16.msra.mxu0 0
        %1929 = vmatprep.subr.bf16.mxu0 0
        %1930 = vmatpush1.bf16.msra.mxu0 0
        %1931 = vmatprep.subr.bf16.mxu0 0
        %1932 = vmatpush1.bf16.msra.mxu0 0
        %1933 = vmatprep.subr.bf16.mxu0 0
        %1934 = vmatpush1.bf16.msra.mxu0 0
        %1935 = vmatprep.subr.bf16.mxu0 0
        %1936 = vmatpush1.bf16.msra.mxu0 0
        %1937 = vmatprep.subr.bf16.mxu0 0
        %1938 = vmatpush1.bf16.msra.mxu0 0
        %1939 = vmatprep.subr.bf16.mxu0 0
        %1940 = vmatpush1.bf16.msra.mxu0 0
        %1941 = vmatprep.subr.bf16.mxu0 0
        %1942 = vmatpush1.bf16.msra.mxu0 0
        %1943 = vmatprep.subr.bf16.mxu0 0
        %1944 = vmatpush1.bf16.msra.mxu0 0
        %1945 = vmatprep.subr.bf16.mxu0 0
        %1946 = vmatpush1.bf16.msra.mxu0 0
        %1947 = vmatprep.mubr.bf16.mxu0 0
        %1948 = vmatmul.mubr.bf16.gmra.mrb[0].mxu0 %v1913
        %v1949 = vpop.f32.mrb[0].mxu0
        %v1950 = vadd.f32 %v1844, %v1949
        %v1951 = vpop.f32.mrb[0].mxu0
        %v1952 = vadd.f32 %v1846, %v1951
        %v1953 = vpop.f32.mrb[0].mxu0
        %v1954 = vadd.f32 %v1848, %v1953
        %v1955 = vpop.f32.mrb[0].mxu0
        %v1956 = vadd.f32 %v1850, %v1955
        %1957 = vdwg.mxu0
        %1958 = vmatprep.subr.bf16.mxu0 0
        %1959 = vmatpush1.bf16.msra.mxu0 %v1908
        %1960 = vmatprep.subr.bf16.mxu0 0
        %1961 = vmatpush1.bf16.msra.mxu0 0
        %1962 = vmatprep.subr.bf16.mxu0 0
        %1963 = vmatpush1.bf16.msra.mxu0 0
        %1964 = vmatprep.subr.bf16.mxu0 0
        %1965 = vmatpush1.bf16.msra.mxu0 0
        %1966 = vmatprep.subr.bf16.mxu0 0
        %1967 = vmatpush1.bf16.msra.mxu0 0
        %1968 = vmatprep.subr.bf16.mxu0 0
        %1969 = vmatpush1.bf16.msra.mxu0 0
        %1970 = vmatprep.subr.bf16.mxu0 0
        %1971 = vmatpush1.bf16.msra.mxu0 0
        %1972 = vmatprep.subr.bf16.mxu0 0
        %1973 = vmatpush1.bf16.msra.mxu0 0
        %1974 = vmatprep.subr.bf16.mxu0 0
        %1975 = vmatpush1.bf16.msra.mxu0 0
        %1976 = vmatprep.subr.bf16.mxu0 0
        %1977 = vmatpush1.bf16.msra.mxu0 0
        %1978 = vmatprep.subr.bf16.mxu0 0
        %1979 = vmatpush1.bf16.msra.mxu0 0
        %1980 = vmatprep.subr.bf16.mxu0 0
        %1981 = vmatpush1.bf16.msra.mxu0 0
        %1982 = vmatprep.subr.bf16.mxu0 0
        %1983 = vmatpush1.bf16.msra.mxu0 0
        %1984 = vmatprep.subr.bf16.mxu0 0
        %1985 = vmatpush1.bf16.msra.mxu0 0
        %1986 = vmatprep.subr.bf16.mxu0 0
        %1987 = vmatpush1.bf16.msra.mxu0 0
        %1988 = vmatprep.subr.bf16.mxu0 0
        %1989 = vmatpush1.bf16.msra.mxu0 0
        %1990 = vmatprep.mubr.bf16.mxu0 0
        %1991 = vmatmul.mubr.bf16.gmra.mrb[0].mxu0 %v1913
        %v1992 = vpop.f32.mrb[0].mxu0
        %v1993 = vadd.f32 %v1887, %v1992
        %v1994 = vpop.f32.mrb[0].mxu0
        %v1995 = vpop.f32.mrb[0].mxu0
        %v1996 = vadd.f32 %v1890, %v1995
        %v1997 = vpop.f32.mrb[0].mxu0
        %1998 = vdwg.mxu0
        %s1999 = scalar_lea.vmem %s4, 16
        %v2000 = vld [vmem:[%s1999] sm:$0xf]
        %v2001 = vld [vmem:[%s1999 + $0x4] sm:$0xf]
        %v2004 = vunpack.c.l.b16 %v2000
        %v2005 = vunpack.c.l.b16 %v2001
        %v2006 = vpack.c.b16 %v2005, %v2004
        %2007 = vrot.lane.b32.xlu0 %v1774, 17
        %v2008 = vpop.permute.xlu0 %2007
        %2009 = vrot.lane.b32.xlu0 %v1775, 17
        %v2010 = vpop.permute.xlu0 %2009
        %2011 = vrot.lane.b32.xlu0 %v1776, 17
        %v2012 = vpop.permute.xlu0 %2011
        %2013 = vrot.lane.b32.xlu0 %v1777, 17
        %v2014 = vpop.permute.xlu0 %2013
        %v2015 = vsel %vm933, %v2008, %v2010
        %v2016 = vsel %vm933, %v2010, %v2012
        %v2017 = vsel %vm933, %v2012, %v2014
        %v2022 = vsel %vm722, %v2006, 0
        %2024 = vmatprep.subr.bf16.mxu0 %v2016
        %2025 = vmatpush1.bf16.msra.mxu0 %v2015
        %2026 = vmatprep.subr.bf16.mxu0 0
        %2027 = vmatpush1.bf16.msra.mxu0 0
        %2028 = vmatprep.subr.bf16.mxu0 0
        %2029 = vmatpush1.bf16.msra.mxu0 0
        %2030 = vmatprep.subr.bf16.mxu0 0
        %2031 = vmatpush1.bf16.msra.mxu0 0
        %2032 = vmatprep.subr.bf16.mxu0 0
        %2033 = vmatpush1.bf16.msra.mxu0 0
        %2034 = vmatprep.subr.bf16.mxu0 0
        %2035 = vmatpush1.bf16.msra.mxu0 0
        %2036 = vmatprep.subr.bf16.mxu0 0
        %2037 = vmatpush1.bf16.msra.mxu0 0
        %2038 = vmatprep.subr.bf16.mxu0 0
        %2039 = vmatpush1.bf16.msra.mxu0 0
        %2040 = vmatprep.subr.bf16.mxu0 0
        %2041 = vmatpush1.bf16.msra.mxu0 0
        %2042 = vmatprep.subr.bf16.mxu0 0
        %2043 = vmatpush1.bf16.msra.mxu0 0
        %2044 = vmatprep.subr.bf16.mxu0 0
        %2045 = vmatpush1.bf16.msra.mxu0 0
        %2046 = vmatprep.subr.bf16.mxu0 0
        %2047 = vmatpush1.bf16.msra.mxu0 0
        %2048 = vmatprep.subr.bf16.mxu0 0
        %2049 = vmatpush1.bf16.msra.mxu0 0
        %2050 = vmatprep.subr.bf16.mxu0 0
        %2051 = vmatpush1.bf16.msra.mxu0 0
        %2052 = vmatprep.subr.bf16.mxu0 0
        %2053 = vmatpush1.bf16.msra.mxu0 0
        %2054 = vmatprep.subr.bf16.mxu0 0
        %2055 = vmatpush1.bf16.msra.mxu0 0
        %2056 = vmatprep.mubr.bf16.mxu0 0
        %2057 = vmatmul.mubr.bf16.gmra.mrb[0].mxu0 %v2022
        %v2058 = vpop.f32.mrb[0].mxu0
        %v2059 = vadd.f32 0.0, %v2058
        %v2060 = vpop.f32.mrb[0].mxu0
        %v2061 = vadd.f32 0.0, %v2060
        %v2062 = vpop.f32.mrb[0].mxu0
        %v2063 = vadd.f32 0.0, %v2062
        %v2064 = vpop.f32.mrb[0].mxu0
        %v2065 = vadd.f32 0.0, %v2064
        %2066 = vdwg.mxu0
        %2067 = vmatprep.subr.bf16.mxu0 0
        %2068 = vmatpush1.bf16.msra.mxu0 %v2017
        %2069 = vmatprep.subr.bf16.mxu0 0
        %2070 = vmatpush1.bf16.msra.mxu0 0
        %2071 = vmatprep.subr.bf16.mxu0 0
        %2072 = vmatpush1.bf16.msra.mxu0 0
        %2073 = vmatprep.subr.bf16.mxu0 0
        %2074 = vmatpush1.bf16.msra.mxu0 0
        %2075 = vmatprep.subr.bf16.mxu0 0
        %2076 = vmatpush1.bf16.msra.mxu0 0
        %2077 = vmatprep.subr.bf16.mxu0 0
        %2078 = vmatpush1.bf16.msra.mxu0 0
        %2079 = vmatprep.subr.bf16.mxu0 0
        %2080 = vmatpush1.bf16.msra.mxu0 0
        %2081 = vmatprep.subr.bf16.mxu0 0
        %2082 = vmatpush1.bf16.msra.mxu0 0
        %2083 = vmatprep.subr.bf16.mxu0 0
        %2084 = vmatpush1.bf16.msra.mxu0 0
        %2085 = vmatprep.subr.bf16.mxu0 0
        %2086 = vmatpush1.bf16.msra.mxu0 0
        %2087 = vmatprep.subr.bf16.mxu0 0
        %2088 = vmatpush1.bf16.msra.mxu0 0
        %2089 = vmatprep.subr.bf16.mxu0 0
        %2090 = vmatpush1.bf16.msra.mxu0 0
        %2091 = vmatprep.subr.bf16.mxu0 0
        %2092 = vmatpush1.bf16.msra.mxu0 0
        %2093 = vmatprep.subr.bf16.mxu0 0
        %2094 = vmatpush1.bf16.msra.mxu0 0
        %2095 = vmatprep.subr.bf16.mxu0 0
        %2096 = vmatpush1.bf16.msra.mxu0 0
        %2097 = vmatprep.subr.bf16.mxu0 0
        %2098 = vmatpush1.bf16.msra.mxu0 0
        %2099 = vmatprep.mubr.bf16.mxu0 0
        %2100 = vmatmul.mubr.bf16.gmra.mrb[0].mxu0 %v2022
        %v2101 = vpop.f32.mrb[0].mxu0
        %v2102 = vadd.f32 0.0, %v2101
        %v2103 = vpop.f32.mrb[0].mxu0
        %v2104 = vpop.f32.mrb[0].mxu0
        %v2105 = vadd.f32 0.0, %v2104
        %v2106 = vpop.f32.mrb[0].mxu0
        %2107 = vdwg.mxu0
        %v2108 = vadd.f32 %v1950, %v2059
        %v2109 = vadd.f32 %v1952, %v2061
        %v2110 = vadd.f32 %v1993, %v2102
        %v2111 = vadd.f32 %v1954, %v2063
        %v2112 = vadd.f32 %v1956, %v2065
        %v2113 = vadd.f32 %v1996, %v2105
        %s2114 = scalar_lea.vmem %s4, 24
        %v2115 = vld [vmem:[%s2114] sm:$0xf]
        %v2116 = vld [vmem:[%s2114 + $0x4] sm:$0xf]
        %v2119 = vunpack.c.l.b16 %v2115
        %v2120 = vunpack.c.l.b16 %v2116
        %v2121 = vpack.c.b16 %v2120, %v2119
        %2122 = vrot.lane.b32.xlu0 %v1774, 1
        %v2123 = vpop.permute.xlu0 %2122
        %2124 = vrot.lane.b32.xlu0 %v1775, 1
        %v2125 = vpop.permute.xlu0 %2124
        %2126 = vrot.lane.b32.xlu0 %v1776, 1
        %v2127 = vpop.permute.xlu0 %2126
        %2128 = vrot.lane.b32.xlu0 %v1777, 1
        %v2129 = vpop.permute.xlu0 %2128
        %v2130 = vsel %vm1049, %v2123, %v2125
        %v2131 = vsel %vm1049, %v2125, %v2127
        %v2132 = vsel %vm1049, %v2127, %v2129
        %v2137 = vsel %vm722, %v2121, 0
        %2139 = vmatprep.subr.bf16.mxu0 %v2131
        %2140 = vmatpush1.bf16.msra.mxu0 %v2130
        %2141 = vmatprep.subr.bf16.mxu0 0
        %2142 = vmatpush1.bf16.msra.mxu0 0
        %2143 = vmatprep.subr.bf16.mxu0 0
        %2144 = vmatpush1.bf16.msra.mxu0 0
        %2145 = vmatprep.subr.bf16.mxu0 0
        %2146 = vmatpush1.bf16.msra.mxu0 0
        %2147 = vmatprep.subr.bf16.mxu0 0
        %2148 = vmatpush1.bf16.msra.mxu0 0
        %2149 = vmatprep.subr.bf16.mxu0 0
        %2150 = vmatpush1.bf16.msra.mxu0 0
        %2151 = vmatprep.subr.bf16.mxu0 0
        %2152 = vmatpush1.bf16.msra.mxu0 0
        %2153 = vmatprep.subr.bf16.mxu0 0
        %2154 = vmatpush1.bf16.msra.mxu0 0
        %2155 = vmatprep.subr.bf16.mxu0 0
        %2156 = vmatpush1.bf16.msra.mxu0 0
        %2157 = vmatprep.subr.bf16.mxu0 0
        %2158 = vmatpush1.bf16.msra.mxu0 0
        %2159 = vmatprep.subr.bf16.mxu0 0
        %2160 = vmatpush1.bf16.msra.mxu0 0
        %2161 = vmatprep.subr.bf16.mxu0 0
        %2162 = vmatpush1.bf16.msra.mxu0 0
        %2163 = vmatprep.subr.bf16.mxu0 0
        %2164 = vmatpush1.bf16.msra.mxu0 0
        %2165 = vmatprep.subr.bf16.mxu0 0
        %2166 = vmatpush1.bf16.msra.mxu0 0
        %2167 = vmatprep.subr.bf16.mxu0 0
        %2168 = vmatpush1.bf16.msra.mxu0 0
        %2169 = vmatprep.subr.bf16.mxu0 0
        %2170 = vmatpush1.bf16.msra.mxu0 0
        %2171 = vmatprep.mubr.bf16.mxu0 0
        %2172 = vmatmul.mubr.bf16.gmra.mrb[0].mxu0 %v2137
        %v2173 = vpop.f32.mrb[0].mxu0
        %v2174 = vadd.f32 0.0, %v2173
        %v2175 = vpop.f32.mrb[0].mxu0
        %v2176 = vadd.f32 0.0, %v2175
        %v2177 = vpop.f32.mrb[0].mxu0
        %v2178 = vadd.f32 0.0, %v2177
        %v2179 = vpop.f32.mrb[0].mxu0
        %v2180 = vadd.f32 0.0, %v2179
        %2181 = vdwg.mxu0
        %2182 = vmatprep.subr.bf16.mxu0 0
        %2183 = vmatpush1.bf16.msra.mxu0 %v2132
        %2184 = vmatprep.subr.bf16.mxu0 0
        %2185 = vmatpush1.bf16.msra.mxu0 0
        %2186 = vmatprep.subr.bf16.mxu0 0
        %2187 = vmatpush1.bf16.msra.mxu0 0
        %2188 = vmatprep.subr.bf16.mxu0 0
        %2189 = vmatpush1.bf16.msra.mxu0 0
        %2190 = vmatprep.subr.bf16.mxu0 0
        %2191 = vmatpush1.bf16.msra.mxu0 0
        %2192 = vmatprep.subr.bf16.mxu0 0
        %2193 = vmatpush1.bf16.msra.mxu0 0
        %2194 = vmatprep.subr.bf16.mxu0 0
        %2195 = vmatpush1.bf16.msra.mxu0 0
        %2196 = vmatprep.subr.bf16.mxu0 0
        %2197 = vmatpush1.bf16.msra.mxu0 0
        %2198 = vmatprep.subr.bf16.mxu0 0
        %2199 = vmatpush1.bf16.msra.mxu0 0
        %2200 = vmatprep.subr.bf16.mxu0 0
        %2201 = vmatpush1.bf16.msra.mxu0 0
        %2202 = vmatprep.subr.bf16.mxu0 0
        %2203 = vmatpush1.bf16.msra.mxu0 0
        %2204 = vmatprep.subr.bf16.mxu0 0
        %2205 = vmatpush1.bf16.msra.mxu0 0
        %2206 = vmatprep.subr.bf16.mxu0 0
        %2207 = vmatpush1.bf16.msra.mxu0 0
        %2208 = vmatprep.subr.bf16.mxu0 0
        %2209 = vmatpush1.bf16.msra.mxu0 0
        %2210 = vmatprep.subr.bf16.mxu0 0
        %2211 = vmatpush1.bf16.msra.mxu0 0
        %2212 = vmatprep.subr.bf16.mxu0 0
        %2213 = vmatpush1.bf16.msra.mxu0 0
        %2214 = vmatprep.mubr.bf16.mxu0 0
        %2215 = vmatmul.mubr.bf16.gmra.mrb[0].mxu0 %v2137
        %v2216 = vpop.f32.mrb[0].mxu0
        %v2217 = vadd.f32 0.0, %v2216
        %v2218 = vpop.f32.mrb[0].mxu0
        %v2219 = vpop.f32.mrb[0].mxu0
        %v2220 = vadd.f32 0.0, %v2219
        %v2221 = vpop.f32.mrb[0].mxu0
        %2222 = vdwg.mxu0
        %v2223 = vadd.f32 %v2108, %v2174
        %v2224 = vadd.f32 %v2109, %v2176
        %v2225 = vadd.f32 %v2110, %v2217
        %v2226 = vadd.f32 %v2111, %v2178
        %v2227 = vadd.f32 %v2112, %v2180
        %v2228 = vadd.f32 %v2113, %v2220
        %s2229 = scalar_lea.vmem %s4, 32
        %v2230 = vld [vmem:[%s2229] sm:$0xf]
        %v2231 = vld [vmem:[%s2229 + $0x4] sm:$0xf]
        %v2234 = vunpack.c.l.b16 %v2230
        %v2235 = vunpack.c.l.b16 %v2231
        %v2236 = vpack.c.b16 %v2235, %v2234
        %v2238 = vsel %vm722, %v2236, 0
        %2240 = vmatprep.subr.bf16.mxu0 %v1776
        %2241 = vmatpush1.bf16.msra.mxu0 %v1775
        %2242 = vmatprep.subr.bf16.mxu0 0
        %2243 = vmatpush1.bf16.msra.mxu0 0
        %2244 = vmatprep.subr.bf16.mxu0 0
        %2245 = vmatpush1.bf16.msra.mxu0 0
        %2246 = vmatprep.subr.bf16.mxu0 0
        %2247 = vmatpush1.bf16.msra.mxu0 0
        %2248 = vmatprep.subr.bf16.mxu0 0
        %2249 = vmatpush1.bf16.msra.mxu0 0
        %2250 = vmatprep.subr.bf16.mxu0 0
        %2251 = vmatpush1.bf16.msra.mxu0 0
        %2252 = vmatprep.subr.bf16.mxu0 0
        %2253 = vmatpush1.bf16.msra.mxu0 0
        %2254 = vmatprep.subr.bf16.mxu0 0
        %2255 = vmatpush1.bf16.msra.mxu0 0
        %2256 = vmatprep.subr.bf16.mxu0 0
        %2257 = vmatpush1.bf16.msra.mxu0 0
        %2258 = vmatprep.subr.bf16.mxu0 0
        %2259 = vmatpush1.bf16.msra.mxu0 0
        %2260 = vmatprep.subr.bf16.mxu0 0
        %2261 = vmatpush1.bf16.msra.mxu0 0
        %2262 = vmatprep.subr.bf16.mxu0 0
        %2263 = vmatpush1.bf16.msra.mxu0 0
        %2264 = vmatprep.subr.bf16.mxu0 0
        %2265 = vmatpush1.bf16.msra.mxu0 0
        %2266 = vmatprep.subr.bf16.mxu0 0
        %2267 = vmatpush1.bf16.msra.mxu0 0
        %2268 = vmatprep.subr.bf16.mxu0 0
        %2269 = vmatpush1.bf16.msra.mxu0 0
        %2270 = vmatprep.subr.bf16.mxu0 0
        %2271 = vmatpush1.bf16.msra.mxu0 0
        %2272 = vmatprep.mubr.bf16.mxu0 0
        %2273 = vmatmul.mubr.bf16.gmra.mrb[0].mxu0 %v2238
        %v2274 = vpop.f32.mrb[0].mxu0
        %v2275 = vadd.f32 0.0, %v2274
        %v2276 = vpop.f32.mrb[0].mxu0
        %v2277 = vadd.f32 0.0, %v2276
        %v2278 = vpop.f32.mrb[0].mxu0
        %v2279 = vadd.f32 0.0, %v2278
        %v2280 = vpop.f32.mrb[0].mxu0
        %v2281 = vadd.f32 0.0, %v2280
        %2282 = vdwg.mxu0
        %2283 = vmatprep.subr.bf16.mxu0 0
        %2284 = vmatpush1.bf16.msra.mxu0 %v1777
        %2285 = vmatprep.subr.bf16.mxu0 0
        %2286 = vmatpush1.bf16.msra.mxu0 0
        %2287 = vmatprep.subr.bf16.mxu0 0
        %2288 = vmatpush1.bf16.msra.mxu0 0
        %2289 = vmatprep.subr.bf16.mxu0 0
        %2290 = vmatpush1.bf16.msra.mxu0 0
        %2291 = vmatprep.subr.bf16.mxu0 0
        %2292 = vmatpush1.bf16.msra.mxu0 0
        %2293 = vmatprep.subr.bf16.mxu0 0
        %2294 = vmatpush1.bf16.msra.mxu0 0
        %2295 = vmatprep.subr.bf16.mxu0 0
        %2296 = vmatpush1.bf16.msra.mxu0 0
        %2297 = vmatprep.subr.bf16.mxu0 0
        %2298 = vmatpush1.bf16.msra.mxu0 0
        %2299 = vmatprep.subr.bf16.mxu0 0
        %2300 = vmatpush1.bf16.msra.mxu0 0
        %2301 = vmatprep.subr.bf16.mxu0 0
        %2302 = vmatpush1.bf16.msra.mxu0 0
        %2303 = vmatprep.subr.bf16.mxu0 0
        %2304 = vmatpush1.bf16.msra.mxu0 0
        %2305 = vmatprep.subr.bf16.mxu0 0
        %2306 = vmatpush1.bf16.msra.mxu0 0
        %2307 = vmatprep.subr.bf16.mxu0 0
        %2308 = vmatpush1.bf16.msra.mxu0 0
        %2309 = vmatprep.subr.bf16.mxu0 0
        %2310 = vmatpush1.bf16.msra.mxu0 0
        %2311 = vmatprep.subr.bf16.mxu0 0
        %2312 = vmatpush1.bf16.msra.mxu0 0
        %2313 = vmatprep.subr.bf16.mxu0 0
        %2314 = vmatpush1.bf16.msra.mxu0 0
        %2315 = vmatprep.mubr.bf16.mxu0 0
        %2316 = vmatmul.mubr.bf16.gmra.mrb[0].mxu0 %v2238
        %v2317 = vpop.f32.mrb[0].mxu0
        %v2318 = vadd.f32 0.0, %v2317
        %v2319 = vpop.f32.mrb[0].mxu0
        %v2320 = vpop.f32.mrb[0].mxu0
        %v2321 = vadd.f32 0.0, %v2320
        %v2322 = vpop.f32.mrb[0].mxu0
        %2323 = vdwg.mxu0
        %v2324 = vadd.f32 %v2223, %v2275
        %v2325 = vadd.f32 %v2224, %v2277
        %v2326 = vadd.f32 %v2225, %v2318
        %v2327 = vadd.f32 %v2226, %v2279
        %v2328 = vadd.f32 %v2227, %v2281
        %v2329 = vadd.f32 %v2228, %v2321
        %v2330 = vld [vmem:[#allocation2 + $0x30] sm:$0xff]
        %v2331 = vld [vmem:[#allocation2 + $0x38] sm:$0xff]
        %v2332 = vld [vmem:[#allocation2 + $0x40] sm:$0xff]
        %v2333 = vld [vmem:[#allocation2 + $0x48] sm:$0xff]
        %s2334 = scalar_lea.vmem %s4, 40
        %v2335 = vld [vmem:[%s2334] sm:$0xf]
        %v2336 = vld [vmem:[%s2334 + $0x4] sm:$0xf]
        %v2339 = vunpack.c.l.b16 %v2335
        %v2340 = vunpack.c.l.b16 %v2336
        %v2341 = vpack.c.b16 %v2340, %v2339
        %2346 = vrot.lane.b32.xlu0 %v2330, 127
        %v2347 = vpop.permute.xlu0 %2346
        %2348 = vrot.lane.b32.xlu0 %v2331, 127
        %v2349 = vpop.permute.xlu0 %2348
        %2350 = vrot.lane.b32.xlu0 %v2332, 127
        %v2351 = vpop.permute.xlu0 %2350
        %2352 = vrot.lane.b32.xlu0 %v2333, 127
        %v2353 = vpop.permute.xlu0 %2352
        %v2354 = vsel %vm1274, %v2347, %v2349
        %v2355 = vsel %vm1274, %v2349, %v2351
        %v2356 = vsel %vm1274, %v2351, %v2353
        %v2361 = vsel %vm722, %v2341, 0
        %2363 = vmatprep.subr.bf16.mxu0 %v2355
        %2364 = vmatpush1.bf16.msra.mxu0 %v2354
        %2365 = vmatprep.subr.bf16.mxu0 0
        %2366 = vmatpush1.bf16.msra.mxu0 0
        %2367 = vmatprep.subr.bf16.mxu0 0
        %2368 = vmatpush1.bf16.msra.mxu0 0
        %2369 = vmatprep.subr.bf16.mxu0 0
        %2370 = vmatpush1.bf16.msra.mxu0 0
        %2371 = vmatprep.subr.bf16.mxu0 0
        %2372 = vmatpush1.bf16.msra.mxu0 0
        %2373 = vmatprep.subr.bf16.mxu0 0
        %2374 = vmatpush1.bf16.msra.mxu0 0
        %2375 = vmatprep.subr.bf16.mxu0 0
        %2376 = vmatpush1.bf16.msra.mxu0 0
        %2377 = vmatprep.subr.bf16.mxu0 0
        %2378 = vmatpush1.bf16.msra.mxu0 0
        %2379 = vmatprep.subr.bf16.mxu0 0
        %2380 = vmatpush1.bf16.msra.mxu0 0
        %2381 = vmatprep.subr.bf16.mxu0 0
        %2382 = vmatpush1.bf16.msra.mxu0 0
        %2383 = vmatprep.subr.bf16.mxu0 0
        %2384 = vmatpush1.bf16.msra.mxu0 0
        %2385 = vmatprep.subr.bf16.mxu0 0
        %2386 = vmatpush1.bf16.msra.mxu0 0
        %2387 = vmatprep.subr.bf16.mxu0 0
        %2388 = vmatpush1.bf16.msra.mxu0 0
        %2389 = vmatprep.subr.bf16.mxu0 0
        %2390 = vmatpush1.bf16.msra.mxu0 0
        %2391 = vmatprep.subr.bf16.mxu0 0
        %2392 = vmatpush1.bf16.msra.mxu0 0
        %2393 = vmatprep.subr.bf16.mxu0 0
        %2394 = vmatpush1.bf16.msra.mxu0 0
        %2395 = vmatprep.mubr.bf16.mxu0 0
        %2396 = vmatmul.mubr.bf16.gmra.mrb[0].mxu0 %v2361
        %v2397 = vpop.f32.mrb[0].mxu0
        %v2398 = vadd.f32 0.0, %v2397
        %v2399 = vpop.f32.mrb[0].mxu0
        %v2400 = vadd.f32 0.0, %v2399
        %v2401 = vpop.f32.mrb[0].mxu0
        %v2402 = vadd.f32 0.0, %v2401
        %v2403 = vpop.f32.mrb[0].mxu0
        %v2404 = vadd.f32 0.0, %v2403
        %2405 = vdwg.mxu0
        %2406 = vmatprep.subr.bf16.mxu0 0
        %2407 = vmatpush1.bf16.msra.mxu0 %v2356
        %2408 = vmatprep.subr.bf16.mxu0 0
        %2409 = vmatpush1.bf16.msra.mxu0 0
        %2410 = vmatprep.subr.bf16.mxu0 0
        %2411 = vmatpush1.bf16.msra.mxu0 0
        %2412 = vmatprep.subr.bf16.mxu0 0
        %2413 = vmatpush1.bf16.msra.mxu0 0
        %2414 = vmatprep.subr.bf16.mxu0 0
        %2415 = vmatpush1.bf16.msra.mxu0 0
        %2416 = vmatprep.subr.bf16.mxu0 0
        %2417 = vmatpush1.bf16.msra.mxu0 0
        %2418 = vmatprep.subr.bf16.mxu0 0
        %2419 = vmatpush1.bf16.msra.mxu0 0
        %2420 = vmatprep.subr.bf16.mxu0 0
        %2421 = vmatpush1.bf16.msra.mxu0 0
        %2422 = vmatprep.subr.bf16.mxu0 0
        %2423 = vmatpush1.bf16.msra.mxu0 0
        %2424 = vmatprep.subr.bf16.mxu0 0
        %2425 = vmatpush1.bf16.msra.mxu0 0
        %2426 = vmatprep.subr.bf16.mxu0 0
        %2427 = vmatpush1.bf16.msra.mxu0 0
        %2428 = vmatprep.subr.bf16.mxu0 0
        %2429 = vmatpush1.bf16.msra.mxu0 0
        %2430 = vmatprep.subr.bf16.mxu0 0
        %2431 = vmatpush1.bf16.msra.mxu0 0
        %2432 = vmatprep.subr.bf16.mxu0 0
        %2433 = vmatpush1.bf16.msra.mxu0 0
        %2434 = vmatprep.subr.bf16.mxu0 0
        %2435 = vmatpush1.bf16.msra.mxu0 0
        %2436 = vmatprep.subr.bf16.mxu0 0
        %2437 = vmatpush1.bf16.msra.mxu0 0
        %2438 = vmatprep.mubr.bf16.mxu0 0
        %2439 = vmatmul.mubr.bf16.gmra.mrb[0].mxu0 %v2361
        %v2440 = vpop.f32.mrb[0].mxu0
        %v2441 = vadd.f32 0.0, %v2440
        %v2442 = vpop.f32.mrb[0].mxu0
        %v2443 = vpop.f32.mrb[0].mxu0
        %v2444 = vadd.f32 0.0, %v2443
        %v2445 = vpop.f32.mrb[0].mxu0
        %2446 = vdwg.mxu0
        %v2447 = vadd.f32 %v2324, %v2398
        %v2448 = vadd.f32 %v2325, %v2400
        %v2449 = vadd.f32 %v2326, %v2441
        %v2450 = vadd.f32 %v2327, %v2402
        %v2451 = vadd.f32 %v2328, %v2404
        %v2452 = vadd.f32 %v2329, %v2444
        %s2453 = scalar_lea.vmem %s4, 48
        %v2454 = vld [vmem:[%s2453] sm:$0xf]
        %v2455 = vld [vmem:[%s2453 + $0x4] sm:$0xf]
        %v2458 = vunpack.c.l.b16 %v2454
        %v2459 = vunpack.c.l.b16 %v2455
        %v2460 = vpack.c.b16 %v2459, %v2458
        %2461 = vrot.lane.b32.xlu0 %v2330, 111
        %v2462 = vpop.permute.xlu0 %2461
        %2463 = vrot.lane.b32.xlu0 %v2331, 111
        %v2464 = vpop.permute.xlu0 %2463
        %2465 = vrot.lane.b32.xlu0 %v2332, 111
        %v2466 = vpop.permute.xlu0 %2465
        %2467 = vrot.lane.b32.xlu0 %v2333, 111
        %v2468 = vpop.permute.xlu0 %2467
        %v2469 = vsel %vm1390, %v2462, %v2464
        %v2470 = vsel %vm1390, %v2464, %v2466
        %v2471 = vsel %vm1390, %v2466, %v2468
        %v2476 = vsel %vm722, %v2460, 0
        %2478 = vmatprep.subr.bf16.mxu0 %v2470
        %2479 = vmatpush1.bf16.msra.mxu0 %v2469
        %2480 = vmatprep.subr.bf16.mxu0 0
        %2481 = vmatpush1.bf16.msra.mxu0 0
        %2482 = vmatprep.subr.bf16.mxu0 0
        %2483 = vmatpush1.bf16.msra.mxu0 0
        %2484 = vmatprep.subr.bf16.mxu0 0
        %2485 = vmatpush1.bf16.msra.mxu0 0
        %2486 = vmatprep.subr.bf16.mxu0 0
        %2487 = vmatpush1.bf16.msra.mxu0 0
        %2488 = vmatprep.subr.bf16.mxu0 0
        %2489 = vmatpush1.bf16.msra.mxu0 0
        %2490 = vmatprep.subr.bf16.mxu0 0
        %2491 = vmatpush1.bf16.msra.mxu0 0
        %2492 = vmatprep.subr.bf16.mxu0 0
        %2493 = vmatpush1.bf16.msra.mxu0 0
        %2494 = vmatprep.subr.bf16.mxu0 0
        %2495 = vmatpush1.bf16.msra.mxu0 0
        %2496 = vmatprep.subr.bf16.mxu0 0
        %2497 = vmatpush1.bf16.msra.mxu0 0
        %2498 = vmatprep.subr.bf16.mxu0 0
        %2499 = vmatpush1.bf16.msra.mxu0 0
        %2500 = vmatprep.subr.bf16.mxu0 0
        %2501 = vmatpush1.bf16.msra.mxu0 0
        %2502 = vmatprep.subr.bf16.mxu0 0
        %2503 = vmatpush1.bf16.msra.mxu0 0
        %2504 = vmatprep.subr.bf16.mxu0 0
        %2505 = vmatpush1.bf16.msra.mxu0 0
        %2506 = vmatprep.subr.bf16.mxu0 0
        %2507 = vmatpush1.bf16.msra.mxu0 0
        %2508 = vmatprep.subr.bf16.mxu0 0
        %2509 = vmatpush1.bf16.msra.mxu0 0
        %2510 = vmatprep.mubr.bf16.mxu0 0
        %2511 = vmatmul.mubr.bf16.gmra.mrb[0].mxu0 %v2476
        %v2512 = vpop.f32.mrb[0].mxu0
        %v2513 = vadd.f32 0.0, %v2512
        %v2514 = vpop.f32.mrb[0].mxu0
        %v2515 = vadd.f32 0.0, %v2514
        %v2516 = vpop.f32.mrb[0].mxu0
        %v2517 = vadd.f32 0.0, %v2516
        %v2518 = vpop.f32.mrb[0].mxu0
        %v2519 = vadd.f32 0.0, %v2518
        %2520 = vdwg.mxu0
        %2521 = vmatprep.subr.bf16.mxu0 0
        %2522 = vmatpush1.bf16.msra.mxu0 %v2471
        %2523 = vmatprep.subr.bf16.mxu0 0
        %2524 = vmatpush1.bf16.msra.mxu0 0
        %2525 = vmatprep.subr.bf16.mxu0 0
        %2526 = vmatpush1.bf16.msra.mxu0 0
        %2527 = vmatprep.subr.bf16.mxu0 0
        %2528 = vmatpush1.bf16.msra.mxu0 0
        %2529 = vmatprep.subr.bf16.mxu0 0
        %2530 = vmatpush1.bf16.msra.mxu0 0
        %2531 = vmatprep.subr.bf16.mxu0 0
        %2532 = vmatpush1.bf16.msra.mxu0 0
        %2533 = vmatprep.subr.bf16.mxu0 0
        %2534 = vmatpush1.bf16.msra.mxu0 0
        %2535 = vmatprep.subr.bf16.mxu0 0
        %2536 = vmatpush1.bf16.msra.mxu0 0
        %2537 = vmatprep.subr.bf16.mxu0 0
        %2538 = vmatpush1.bf16.msra.mxu0 0
        %2539 = vmatprep.subr.bf16.mxu0 0
        %2540 = vmatpush1.bf16.msra.mxu0 0
        %2541 = vmatprep.subr.bf16.mxu0 0
        %2542 = vmatpush1.bf16.msra.mxu0 0
        %2543 = vmatprep.subr.bf16.mxu0 0
        %2544 = vmatpush1.bf16.msra.mxu0 0
        %2545 = vmatprep.subr.bf16.mxu0 0
        %2546 = vmatpush1.bf16.msra.mxu0 0
        %2547 = vmatprep.subr.bf16.mxu0 0
        %2548 = vmatpush1.bf16.msra.mxu0 0
        %2549 = vmatprep.subr.bf16.mxu0 0
        %2550 = vmatpush1.bf16.msra.mxu0 0
        %2551 = vmatprep.subr.bf16.mxu0 0
        %2552 = vmatpush1.bf16.msra.mxu0 0
        %2553 = vmatprep.mubr.bf16.mxu0 0
        %2554 = vmatmul.mubr.bf16.gmra.mrb[0].mxu0 %v2476
        %v2555 = vpop.f32.mrb[0].mxu0
        %v2556 = vadd.f32 0.0, %v2555
        %v2557 = vpop.f32.mrb[0].mxu0
        %v2558 = vpop.f32.mrb[0].mxu0
        %v2559 = vadd.f32 0.0, %v2558
        %v2560 = vpop.f32.mrb[0].mxu0
        %2561 = vdwg.mxu0
        %v2562 = vadd.f32 %v2447, %v2513
        %v2563 = vadd.f32 %v2448, %v2515
        %v2564 = vadd.f32 %v2449, %v2556
        %v2565 = vadd.f32 %v2450, %v2517
        %v2566 = vadd.f32 %v2451, %v2519
        %v2567 = vadd.f32 %v2452, %v2559
        %s2568 = scalar_lea.vmem %s4, 56
        %v2569 = vld [vmem:[%s2568] sm:$0xf]
        %v2570 = vld [vmem:[%s2568 + $0x4] sm:$0xf]
        %v2573 = vunpack.c.l.b16 %v2569
        %v2574 = vunpack.c.l.b16 %v2570
        %v2575 = vpack.c.b16 %v2574, %v2573
        %2576 = vrot.lane.b32.xlu0 %v2330, 110
        %v2577 = vpop.permute.xlu0 %2576
        %2578 = vrot.lane.b32.xlu0 %v2331, 110
        %v2579 = vpop.permute.xlu0 %2578
        %2580 = vrot.lane.b32.xlu0 %v2332, 110
        %v2581 = vpop.permute.xlu0 %2580
        %2582 = vrot.lane.b32.xlu0 %v2333, 110
        %v2583 = vpop.permute.xlu0 %2582
        %v2584 = vsel %vm1506, %v2577, %v2579
        %v2585 = vsel %vm1506, %v2579, %v2581
        %v2586 = vsel %vm1506, %v2581, %v2583
        %v2591 = vsel %vm722, %v2575, 0
        %2593 = vmatprep.subr.bf16.mxu0 %v2585
        %2594 = vmatpush1.bf16.msra.mxu0 %v2584
        %2595 = vmatprep.subr.bf16.mxu0 0
        %2596 = vmatpush1.bf16.msra.mxu0 0
        %2597 = vmatprep.subr.bf16.mxu0 0
        %2598 = vmatpush1.bf16.msra.mxu0 0
        %2599 = vmatprep.subr.bf16.mxu0 0
        %2600 = vmatpush1.bf16.msra.mxu0 0
        %2601 = vmatprep.subr.bf16.mxu0 0
        %2602 = vmatpush1.bf16.msra.mxu0 0
        %2603 = vmatprep.subr.bf16.mxu0 0
        %2604 = vmatpush1.bf16.msra.mxu0 0
        %2605 = vmatprep.subr.bf16.mxu0 0
        %2606 = vmatpush1.bf16.msra.mxu0 0
        %2607 = vmatprep.subr.bf16.mxu0 0
        %2608 = vmatpush1.bf16.msra.mxu0 0
        %2609 = vmatprep.subr.bf16.mxu0 0
        %2610 = vmatpush1.bf16.msra.mxu0 0
        %2611 = vmatprep.subr.bf16.mxu0 0
        %2612 = vmatpush1.bf16.msra.mxu0 0
        %2613 = vmatprep.subr.bf16.mxu0 0
        %2614 = vmatpush1.bf16.msra.mxu0 0
        %2615 = vmatprep.subr.bf16.mxu0 0
        %2616 = vmatpush1.bf16.msra.mxu0 0
        %2617 = vmatprep.subr.bf16.mxu0 0
        %2618 = vmatpush1.bf16.msra.mxu0 0
        %2619 = vmatprep.subr.bf16.mxu0 0
        %2620 = vmatpush1.bf16.msra.mxu0 0
        %2621 = vmatprep.subr.bf16.mxu0 0
        %2622 = vmatpush1.bf16.msra.mxu0 0
        %2623 = vmatprep.subr.bf16.mxu0 0
        %2624 = vmatpush1.bf16.msra.mxu0 0
        %2625 = vmatprep.mubr.bf16.mxu0 0
        %2626 = vmatmul.mubr.bf16.gmra.mrb[0].mxu0 %v2591
        %v2627 = vpop.f32.mrb[0].mxu0
        %v2628 = vadd.f32 0.0, %v2627
        %v2629 = vpop.f32.mrb[0].mxu0
        %v2630 = vadd.f32 0.0, %v2629
        %v2631 = vpop.f32.mrb[0].mxu0
        %v2632 = vadd.f32 0.0, %v2631
        %v2633 = vpop.f32.mrb[0].mxu0
        %v2634 = vadd.f32 0.0, %v2633
        %2635 = vdwg.mxu0
        %2636 = vmatprep.subr.bf16.mxu0 0
        %2637 = vmatpush1.bf16.msra.mxu0 %v2586
        %2638 = vmatprep.subr.bf16.mxu0 0
        %2639 = vmatpush1.bf16.msra.mxu0 0
        %2640 = vmatprep.subr.bf16.mxu0 0
        %2641 = vmatpush1.bf16.msra.mxu0 0
        %2642 = vmatprep.subr.bf16.mxu0 0
        %2643 = vmatpush1.bf16.msra.mxu0 0
        %2644 = vmatprep.subr.bf16.mxu0 0
        %2645 = vmatpush1.bf16.msra.mxu0 0
        %2646 = vmatprep.subr.bf16.mxu0 0
        %2647 = vmatpush1.bf16.msra.mxu0 0
        %2648 = vmatprep.subr.bf16.mxu0 0
        %2649 = vmatpush1.bf16.msra.mxu0 0
        %2650 = vmatprep.subr.bf16.mxu0 0
        %2651 = vmatpush1.bf16.msra.mxu0 0
        %2652 = vmatprep.subr.bf16.mxu0 0
        %2653 = vmatpush1.bf16.msra.mxu0 0
        %2654 = vmatprep.subr.bf16.mxu0 0
        %2655 = vmatpush1.bf16.msra.mxu0 0
        %2656 = vmatprep.subr.bf16.mxu0 0
        %2657 = vmatpush1.bf16.msra.mxu0 0
        %2658 = vmatprep.subr.bf16.mxu0 0
        %2659 = vmatpush1.bf16.msra.mxu0 0
        %2660 = vmatprep.subr.bf16.mxu0 0
        %2661 = vmatpush1.bf16.msra.mxu0 0
        %2662 = vmatprep.subr.bf16.mxu0 0
        %2663 = vmatpush1.bf16.msra.mxu0 0
        %2664 = vmatprep.subr.bf16.mxu0 0
        %2665 = vmatpush1.bf16.msra.mxu0 0
        %2666 = vmatprep.subr.bf16.mxu0 0
        %2667 = vmatpush1.bf16.msra.mxu0 0
        %2668 = vmatprep.mubr.bf16.mxu0 0
        %2669 = vmatmul.mubr.bf16.gmra.mrb[0].mxu0 %v2591
        %v2670 = vpop.f32.mrb[0].mxu0
        %v2671 = vadd.f32 0.0, %v2670
        %v2672 = vpop.f32.mrb[0].mxu0
        %v2673 = vpop.f32.mrb[0].mxu0
        %v2674 = vadd.f32 0.0, %v2673
        %v2675 = vpop.f32.mrb[0].mxu0
        %2676 = vdwg.mxu0
        %v2677 = vadd.f32 %v2562, %v2628
        %v2678 = vadd.f32 %v2563, %v2630
        %v2679 = vadd.f32 %v2564, %v2671
        %v2680 = vadd.f32 %v2565, %v2632
        %v2681 = vadd.f32 %v2566, %v2634
        %v2682 = vadd.f32 %v2567, %v2674
        %s2683 = scalar_lea.vmem %s4, 64
        %v2684 = vld [vmem:[%s2683] sm:$0xf]
        %v2685 = vld [vmem:[%s2683 + $0x4] sm:$0xf]
        %v2688 = vunpack.c.l.b16 %v2684
        %v2689 = vunpack.c.l.b16 %v2685
        %v2690 = vpack.c.b16 %v2689, %v2688
        %2691 = vrot.lane.b32.xlu0 %v2330, 109
        %v2692 = vpop.permute.xlu0 %2691
        %2693 = vrot.lane.b32.xlu0 %v2331, 109
        %v2694 = vpop.permute.xlu0 %2693
        %2695 = vrot.lane.b32.xlu0 %v2332, 109
        %v2696 = vpop.permute.xlu0 %2695
        %2697 = vrot.lane.b32.xlu0 %v2333, 109
        %v2698 = vpop.permute.xlu0 %2697
        %v2699 = vsel %vm1622, %v2692, %v2694
        %v2700 = vsel %vm1622, %v2694, %v2696
        %v2701 = vsel %vm1622, %v2696, %v2698
        %v2706 = vsel %vm722, %v2690, 0
        %2708 = vmatprep.subr.bf16.mxu0 %v2700
        %2709 = vmatpush1.bf16.msra.mxu0 %v2699
        %2710 = vmatprep.subr.bf16.mxu0 0
        %2711 = vmatpush1.bf16.msra.mxu0 0
        %2712 = vmatprep.subr.bf16.mxu0 0
        %2713 = vmatpush1.bf16.msra.mxu0 0
        %2714 = vmatprep.subr.bf16.mxu0 0
        %2715 = vmatpush1.bf16.msra.mxu0 0
        %2716 = vmatprep.subr.bf16.mxu0 0
        %2717 = vmatpush1.bf16.msra.mxu0 0
        %2718 = vmatprep.subr.bf16.mxu0 0
        %2719 = vmatpush1.bf16.msra.mxu0 0
        %2720 = vmatprep.subr.bf16.mxu0 0
        %2721 = vmatpush1.bf16.msra.mxu0 0
        %2722 = vmatprep.subr.bf16.mxu0 0
        %2723 = vmatpush1.bf16.msra.mxu0 0
        %2724 = vmatprep.subr.bf16.mxu0 0
        %2725 = vmatpush1.bf16.msra.mxu0 0
        %2726 = vmatprep.subr.bf16.mxu0 0
        %2727 = vmatpush1.bf16.msra.mxu0 0
        %2728 = vmatprep.subr.bf16.mxu0 0
        %2729 = vmatpush1.bf16.msra.mxu0 0
        %2730 = vmatprep.subr.bf16.mxu0 0
        %2731 = vmatpush1.bf16.msra.mxu0 0
        %2732 = vmatprep.subr.bf16.mxu0 0
        %2733 = vmatpush1.bf16.msra.mxu0 0
        %2734 = vmatprep.subr.bf16.mxu0 0
        %2735 = vmatpush1.bf16.msra.mxu0 0
        %2736 = vmatprep.subr.bf16.mxu0 0
        %2737 = vmatpush1.bf16.msra.mxu0 0
        %2738 = vmatprep.subr.bf16.mxu0 0
        %2739 = vmatpush1.bf16.msra.mxu0 0
        %2740 = vmatprep.mubr.bf16.mxu0 0
        %2741 = vmatmul.mubr.bf16.gmra.mrb[0].mxu0 %v2706
        %v2742 = vpop.f32.mrb[0].mxu0
        %v2743 = vadd.f32 0.0, %v2742
        %v2744 = vpop.f32.mrb[0].mxu0
        %v2745 = vadd.f32 0.0, %v2744
        %v2746 = vpop.f32.mrb[0].mxu0
        %v2747 = vadd.f32 0.0, %v2746
        %v2748 = vpop.f32.mrb[0].mxu0
        %v2749 = vadd.f32 0.0, %v2748
        %2750 = vdwg.mxu0
        %2751 = vmatprep.subr.bf16.mxu0 0
        %2752 = vmatpush1.bf16.msra.mxu0 %v2701
        %2753 = vmatprep.subr.bf16.mxu0 0
        %2754 = vmatpush1.bf16.msra.mxu0 0
        %2755 = vmatprep.subr.bf16.mxu0 0
        %2756 = vmatpush1.bf16.msra.mxu0 0
        %2757 = vmatprep.subr.bf16.mxu0 0
        %2758 = vmatpush1.bf16.msra.mxu0 0
        %2759 = vmatprep.subr.bf16.mxu0 0
        %2760 = vmatpush1.bf16.msra.mxu0 0
        %2761 = vmatprep.subr.bf16.mxu0 0
        %2762 = vmatpush1.bf16.msra.mxu0 0
        %2763 = vmatprep.subr.bf16.mxu0 0
        %2764 = vmatpush1.bf16.msra.mxu0 0
        %2765 = vmatprep.subr.bf16.mxu0 0
        %2766 = vmatpush1.bf16.msra.mxu0 0
        %2767 = vmatprep.subr.bf16.mxu0 0
        %2768 = vmatpush1.bf16.msra.mxu0 0
        %2769 = vmatprep.subr.bf16.mxu0 0
        %2770 = vmatpush1.bf16.msra.mxu0 0
        %2771 = vmatprep.subr.bf16.mxu0 0
        %2772 = vmatpush1.bf16.msra.mxu0 0
        %2773 = vmatprep.subr.bf16.mxu0 0
        %2774 = vmatpush1.bf16.msra.mxu0 0
        %2775 = vmatprep.subr.bf16.mxu0 0
        %2776 = vmatpush1.bf16.msra.mxu0 0
        %2777 = vmatprep.subr.bf16.mxu0 0
        %2778 = vmatpush1.bf16.msra.mxu0 0
        %2779 = vmatprep.subr.bf16.mxu0 0
        %2780 = vmatpush1.bf16.msra.mxu0 0
        %2781 = vmatprep.subr.bf16.mxu0 0
        %2782 = vmatpush1.bf16.msra.mxu0 0
        %2783 = vmatprep.mubr.bf16.mxu0 0
        %2784 = vmatmul.mubr.bf16.gmra.mrb[0].mxu0 %v2706
        %v2785 = vpop.f32.mrb[0].mxu0
        %v2786 = vadd.f32 0.0, %v2785
        %v2787 = vpop.f32.mrb[0].mxu0
        %v2788 = vpop.f32.mrb[0].mxu0
        %v2789 = vadd.f32 0.0, %v2788
        %v2790 = vpop.f32.mrb[0].mxu0
        %2791 = vdwg.mxu0
        %v2792 = vadd.f32 %v2677, %v2743
        %v2793 = vadd.f32 %v2678, %v2745
        %v2794 = vadd.f32 %v2679, %v2786
        %v2795 = vadd.f32 %v2680, %v2747
        %v2796 = vadd.f32 %v2681, %v2749
        %v2797 = vadd.f32 %v2682, %v2789
        %v2798 = vld [vmem:[%s5] sm:$0xff]
        %v2799 = vld [vmem:[%s5 + $0x8] sm:$0xff]
        %2801 = vset.pattern.permute.xlu0 0
        %2802 = vperm.xlu0 %2801, %v2798
        %v2803 = vpop.permute.xlu0 %2802
        %2806 = vset.pattern.permute.xlu0 0
        %2807 = vperm.xlu0 %2806, %v2799
        %v2808 = vpop.permute.xlu0 %2807
        %v2810 = vadd.f32 %v2792, %v2803
        %v2811 = vadd.f32 %v2793, %v2803
        %v2812 = vadd.f32 %v2794, %v2803
        %v2813 = vadd.f32 %v2795, %v2808
        %v2814 = vadd.f32 %v2796, %v2808
        %v2815 = vadd.f32 %v2797, %v2808
        %v2816 = vmax.f32 %v2810, 0.0
        %v2817 = vmax.f32 %v2811, 0.0
        %v2818 = vmax.f32 %v2812, 0.0
        %v2819 = vmax.f32 %v2813, 0.0
        %v2820 = vmax.f32 %v2814, 0.0
        %v2821 = vmax.f32 %v2815, 0.0
        %v2822 = vmul.f32 %v2816, %v1750
        %v2823 = vmul.f32 %v2817, %v1754
        %v2824 = vmul.f32 %v2818, %v1758
        %v2825 = vmul.f32 %v2819, %v1750
        %v2826 = vmul.f32 %v2820, %v1754
        %v2827 = vmul.f32 %v2821, %v1758
        %v2828 = vpack.c.bf16 %v2825, %v2822
        %v2829 = vpack.c.bf16 %v2826, %v2823
        %v2830 = vpack.c.bf16 %v2827, %v2824
        %2831 = vst [vmem:[#allocation2 + $0x58] sm:$0xff] %v2828
        %2832 = vst [vmem:[#allocation2 + $0x60] sm:$0xff] %v2829
        %2833 = vst [vmem:[#allocation2 + $0x68] sm:$0xff] %v2830
        %v2834 = vld [vmem:[#allocation2 + $0x50] sm:$0xff]
        %v2835 = vld [vmem:[#allocation2 + $0x58] sm:$0xff]
        %v2836 = vld [vmem:[#allocation2 + $0x60] sm:$0xff]
        %v2837 = vld [vmem:[#allocation2 + $0x68] sm:$0xff]
        %v2838 = vld [vmem:[#allocation8] sm:$0xf]
        %v2839 = vld [vmem:[#allocation8 + $0x4] sm:$0xf]
        %s2840 = scalar_lea.vmem [#allocation8], 8
        %v2841 = vld [vmem:[%s2840] sm:$0xf]
        %v2842 = vld [vmem:[%s2840 + $0x4] sm:$0xf]
        %v2845 = vunpack.c.l.b16 %v2841
        %v2846 = vunpack.c.l.b16 %v2842
        %v2847 = vpack.c.b16 %v2846, %v2845
        %2852 = vrot.lane.b32.xlu0 %v2834, 18
        %v2853 = vpop.permute.xlu0 %2852
        %2854 = vrot.lane.b32.xlu0 %v2835, 18
        %v2855 = vpop.permute.xlu0 %2854
        %2856 = vrot.lane.b32.xlu0 %v2836, 18
        %v2857 = vpop.permute.xlu0 %2856
        %2858 = vrot.lane.b32.xlu0 %v2837, 18
        %v2859 = vpop.permute.xlu0 %2858
        %v2860 = vsel %vm715, %v2853, %v2855
        %v2861 = vsel %vm715, %v2855, %v2857
        %v2862 = vsel %vm715, %v2857, %v2859
        %v2867 = vsel %vm722, %v2847, 0
        %2869 = vmatprep.subr.bf16.mxu0 %v2861
        %2870 = vmatpush1.bf16.msra.mxu0 %v2860
        %2871 = vmatprep.subr.bf16.mxu0 0
        %2872 = vmatpush1.bf16.msra.mxu0 0
        %2873 = vmatprep.subr.bf16.mxu0 0
        %2874 = vmatpush1.bf16.msra.mxu0 0
        %2875 = vmatprep.subr.bf16.mxu0 0
        %2876 = vmatpush1.bf16.msra.mxu0 0
        %2877 = vmatprep.subr.bf16.mxu0 0
        %2878 = vmatpush1.bf16.msra.mxu0 0
        %2879 = vmatprep.subr.bf16.mxu0 0
        %2880 = vmatpush1.bf16.msra.mxu0 0
        %2881 = vmatprep.subr.bf16.mxu0 0
        %2882 = vmatpush1.bf16.msra.mxu0 0
        %2883 = vmatprep.subr.bf16.mxu0 0
        %2884 = vmatpush1.bf16.msra.mxu0 0
        %2885 = vmatprep.subr.bf16.mxu0 0
        %2886 = vmatpush1.bf16.msra.mxu0 0
        %2887 = vmatprep.subr.bf16.mxu0 0
        %2888 = vmatpush1.bf16.msra.mxu0 0
        %2889 = vmatprep.subr.bf16.mxu0 0
        %2890 = vmatpush1.bf16.msra.mxu0 0
        %2891 = vmatprep.subr.bf16.mxu0 0
        %2892 = vmatpush1.bf16.msra.mxu0 0
        %2893 = vmatprep.subr.bf16.mxu0 0
        %2894 = vmatpush1.bf16.msra.mxu0 0
        %2895 = vmatprep.subr.bf16.mxu0 0
        %2896 = vmatpush1.bf16.msra.mxu0 0
        %2897 = vmatprep.subr.bf16.mxu0 0
        %2898 = vmatpush1.bf16.msra.mxu0 0
        %2899 = vmatprep.subr.bf16.mxu0 0
        %2900 = vmatpush1.bf16.msra.mxu0 0
        %2901 = vmatprep.mubr.bf16.mxu0 0
        %2902 = vmatmul.mubr.bf16.gmra.mrb[0].mxu0 %v2867
        %v2903 = vpop.f32.mrb[0].mxu0
        %v2904 = vadd.f32 0.0, %v2903
        %v2905 = vpop.f32.mrb[0].mxu0
        %v2906 = vadd.f32 0.0, %v2905
        %v2907 = vpop.f32.mrb[0].mxu0
        %v2908 = vadd.f32 0.0, %v2907
        %v2909 = vpop.f32.mrb[0].mxu0
        %v2910 = vadd.f32 0.0, %v2909
        %2911 = vdwg.mxu0
        %2912 = vmatprep.subr.bf16.mxu0 0
        %2913 = vmatpush1.bf16.msra.mxu0 %v2862
        %2914 = vmatprep.subr.bf16.mxu0 0
        %2915 = vmatpush1.bf16.msra.mxu0 0
        %2916 = vmatprep.subr.bf16.mxu0 0
        %2917 = vmatpush1.bf16.msra.mxu0 0
        %2918 = vmatprep.subr.bf16.mxu0 0
        %2919 = vmatpush1.bf16.msra.mxu0 0
        %2920 = vmatprep.subr.bf16.mxu0 0
        %2921 = vmatpush1.bf16.msra.mxu0 0
        %2922 = vmatprep.subr.bf16.mxu0 0
        %2923 = vmatpush1.bf16.msra.mxu0 0
        %2924 = vmatprep.subr.bf16.mxu0 0
        %2925 = vmatpush1.bf16.msra.mxu0 0
        %2926 = vmatprep.subr.bf16.mxu0 0
        %2927 = vmatpush1.bf16.msra.mxu0 0
        %2928 = vmatprep.subr.bf16.mxu0 0
        %2929 = vmatpush1.bf16.msra.mxu0 0
        %2930 = vmatprep.subr.bf16.mxu0 0
        %2931 = vmatpush1.bf16.msra.mxu0 0
        %2932 = vmatprep.subr.bf16.mxu0 0
        %2933 = vmatpush1.bf16.msra.mxu0 0
        %2934 = vmatprep.subr.bf16.mxu0 0
        %2935 = vmatpush1.bf16.msra.mxu0 0
        %2936 = vmatprep.subr.bf16.mxu0 0
        %2937 = vmatpush1.bf16.msra.mxu0 0
        %2938 = vmatprep.subr.bf16.mxu0 0
        %2939 = vmatpush1.bf16.msra.mxu0 0
        %2940 = vmatprep.subr.bf16.mxu0 0
        %2941 = vmatpush1.bf16.msra.mxu0 0
        %2942 = vmatprep.subr.bf16.mxu0 0
        %2943 = vmatpush1.bf16.msra.mxu0 0
        %2944 = vmatprep.mubr.bf16.mxu0 0
        %2945 = vmatmul.mubr.bf16.gmra.mrb[0].mxu0 %v2867
        %v2946 = vpop.f32.mrb[0].mxu0
        %v2947 = vadd.f32 0.0, %v2946
        %v2948 = vpop.f32.mrb[0].mxu0
        %v2949 = vpop.f32.mrb[0].mxu0
        %v2950 = vadd.f32 0.0, %v2949
        %v2951 = vpop.f32.mrb[0].mxu0
        %2952 = vdwg.mxu0
        %v2955 = vunpack.c.l.b16 %v2838
        %v2956 = vunpack.c.l.b16 %v2839
        %v2957 = vpack.c.b16 %v2956, %v2955
        %2958 = vrot.lane.b32.xlu0 %v2834, 19
        %v2959 = vpop.permute.xlu0 %2958
        %2960 = vrot.lane.b32.xlu0 %v2835, 19
        %v2961 = vpop.permute.xlu0 %2960
        %2962 = vrot.lane.b32.xlu0 %v2836, 19
        %v2963 = vpop.permute.xlu0 %2962
        %2964 = vrot.lane.b32.xlu0 %v2837, 19
        %v2965 = vpop.permute.xlu0 %2964
        %v2966 = vsel %vm823, %v2959, %v2961
        %v2967 = vsel %vm823, %v2961, %v2963
        %v2968 = vsel %vm823, %v2963, %v2965
        %v2973 = vsel %vm722, %v2957, 0
        %2975 = vmatprep.subr.bf16.mxu0 %v2967
        %2976 = vmatpush1.bf16.msra.mxu0 %v2966
        %2977 = vmatprep.subr.bf16.mxu0 0
        %2978 = vmatpush1.bf16.msra.mxu0 0
        %2979 = vmatprep.subr.bf16.mxu0 0
        %2980 = vmatpush1.bf16.msra.mxu0 0
        %2981 = vmatprep.subr.bf16.mxu0 0
        %2982 = vmatpush1.bf16.msra.mxu0 0
        %2983 = vmatprep.subr.bf16.mxu0 0
        %2984 = vmatpush1.bf16.msra.mxu0 0
        %2985 = vmatprep.subr.bf16.mxu0 0
        %2986 = vmatpush1.bf16.msra.mxu0 0
        %2987 = vmatprep.subr.bf16.mxu0 0
        %2988 = vmatpush1.bf16.msra.mxu0 0
        %2989 = vmatprep.subr.bf16.mxu0 0
        %2990 = vmatpush1.bf16.msra.mxu0 0
        %2991 = vmatprep.subr.bf16.mxu0 0
        %2992 = vmatpush1.bf16.msra.mxu0 0
        %2993 = vmatprep.subr.bf16.mxu0 0
        %2994 = vmatpush1.bf16.msra.mxu0 0
        %2995 = vmatprep.subr.bf16.mxu0 0
        %2996 = vmatpush1.bf16.msra.mxu0 0
        %2997 = vmatprep.subr.bf16.mxu0 0
        %2998 = vmatpush1.bf16.msra.mxu0 0
        %2999 = vmatprep.subr.bf16.mxu0 0
        %3000 = vmatpush1.bf16.msra.mxu0 0
        %3001 = vmatprep.subr.bf16.mxu0 0
        %3002 = vmatpush1.bf16.msra.mxu0 0
        %3003 = vmatprep.subr.bf16.mxu0 0
        %3004 = vmatpush1.bf16.msra.mxu0 0
        %3005 = vmatprep.subr.bf16.mxu0 0
        %3006 = vmatpush1.bf16.msra.mxu0 0
        %3007 = vmatprep.mubr.bf16.mxu0 0
        %3008 = vmatmul.mubr.bf16.gmra.mrb[0].mxu0 %v2973
        %v3009 = vpop.f32.mrb[0].mxu0
        %v3010 = vadd.f32 %v2904, %v3009
        %v3011 = vpop.f32.mrb[0].mxu0
        %v3012 = vadd.f32 %v2906, %v3011
        %v3013 = vpop.f32.mrb[0].mxu0
        %v3014 = vadd.f32 %v2908, %v3013
        %v3015 = vpop.f32.mrb[0].mxu0
        %v3016 = vadd.f32 %v2910, %v3015
        %3017 = vdwg.mxu0
        %3018 = vmatprep.subr.bf16.mxu0 0
        %3019 = vmatpush1.bf16.msra.mxu0 %v2968
        %3020 = vmatprep.subr.bf16.mxu0 0
        %3021 = vmatpush1.bf16.msra.mxu0 0
        %3022 = vmatprep.subr.bf16.mxu0 0
        %3023 = vmatpush1.bf16.msra.mxu0 0
        %3024 = vmatprep.subr.bf16.mxu0 0
        %3025 = vmatpush1.bf16.msra.mxu0 0
        %3026 = vmatprep.subr.bf16.mxu0 0
        %3027 = vmatpush1.bf16.msra.mxu0 0
        %3028 = vmatprep.subr.bf16.mxu0 0
        %3029 = vmatpush1.bf16.msra.mxu0 0
        %3030 = vmatprep.subr.bf16.mxu0 0
        %3031 = vmatpush1.bf16.msra.mxu0 0
        %3032 = vmatprep.subr.bf16.mxu0 0
        %3033 = vmatpush1.bf16.msra.mxu0 0
        %3034 = vmatprep.subr.bf16.mxu0 0
        %3035 = vmatpush1.bf16.msra.mxu0 0
        %3036 = vmatprep.subr.bf16.mxu0 0
        %3037 = vmatpush1.bf16.msra.mxu0 0
        %3038 = vmatprep.subr.bf16.mxu0 0
        %3039 = vmatpush1.bf16.msra.mxu0 0
        %3040 = vmatprep.subr.bf16.mxu0 0
        %3041 = vmatpush1.bf16.msra.mxu0 0
        %3042 = vmatprep.subr.bf16.mxu0 0
        %3043 = vmatpush1.bf16.msra.mxu0 0
        %3044 = vmatprep.subr.bf16.mxu0 0
        %3045 = vmatpush1.bf16.msra.mxu0 0
        %3046 = vmatprep.subr.bf16.mxu0 0
        %3047 = vmatpush1.bf16.msra.mxu0 0
        %3048 = vmatprep.subr.bf16.mxu0 0
        %3049 = vmatpush1.bf16.msra.mxu0 0
        %3050 = vmatprep.mubr.bf16.mxu0 0
        %3051 = vmatmul.mubr.bf16.gmra.mrb[0].mxu0 %v2973
        %v3052 = vpop.f32.mrb[0].mxu0
        %v3053 = vadd.f32 %v2947, %v3052
        %v3054 = vpop.f32.mrb[0].mxu0
        %v3055 = vpop.f32.mrb[0].mxu0
        %v3056 = vadd.f32 %v2950, %v3055
        %v3057 = vpop.f32.mrb[0].mxu0
        %3058 = vdwg.mxu0
        %s3059 = scalar_lea.vmem [#allocation8], 16
        %v3060 = vld [vmem:[%s3059] sm:$0xf]
        %v3061 = vld [vmem:[%s3059 + $0x4] sm:$0xf]
        %v3064 = vunpack.c.l.b16 %v3060
        %v3065 = vunpack.c.l.b16 %v3061
        %v3066 = vpack.c.b16 %v3065, %v3064
        %3067 = vrot.lane.b32.xlu0 %v2834, 17
        %v3068 = vpop.permute.xlu0 %3067
        %3069 = vrot.lane.b32.xlu0 %v2835, 17
        %v3070 = vpop.permute.xlu0 %3069
        %3071 = vrot.lane.b32.xlu0 %v2836, 17
        %v3072 = vpop.permute.xlu0 %3071
        %3073 = vrot.lane.b32.xlu0 %v2837, 17
        %v3074 = vpop.permute.xlu0 %3073
        %v3075 = vsel %vm933, %v3068, %v3070
        %v3076 = vsel %vm933, %v3070, %v3072
        %v3077 = vsel %vm933, %v3072, %v3074
        %v3082 = vsel %vm722, %v3066, 0
        %3084 = vmatprep.subr.bf16.mxu0 %v3076
        %3085 = vmatpush1.bf16.msra.mxu0 %v3075
        %3086 = vmatprep.subr.bf16.mxu0 0
        %3087 = vmatpush1.bf16.msra.mxu0 0
        %3088 = vmatprep.subr.bf16.mxu0 0
        %3089 = vmatpush1.bf16.msra.mxu0 0
        %3090 = vmatprep.subr.bf16.mxu0 0
        %3091 = vmatpush1.bf16.msra.mxu0 0
        %3092 = vmatprep.subr.bf16.mxu0 0
        %3093 = vmatpush1.bf16.msra.mxu0 0
        %3094 = vmatprep.subr.bf16.mxu0 0
        %3095 = vmatpush1.bf16.msra.mxu0 0
        %3096 = vmatprep.subr.bf16.mxu0 0
        %3097 = vmatpush1.bf16.msra.mxu0 0
        %3098 = vmatprep.subr.bf16.mxu0 0
        %3099 = vmatpush1.bf16.msra.mxu0 0
        %3100 = vmatprep.subr.bf16.mxu0 0
        %3101 = vmatpush1.bf16.msra.mxu0 0
        %3102 = vmatprep.subr.bf16.mxu0 0
        %3103 = vmatpush1.bf16.msra.mxu0 0
        %3104 = vmatprep.subr.bf16.mxu0 0
        %3105 = vmatpush1.bf16.msra.mxu0 0
        %3106 = vmatprep.subr.bf16.mxu0 0
        %3107 = vmatpush1.bf16.msra.mxu0 0
        %3108 = vmatprep.subr.bf16.mxu0 0
        %3109 = vmatpush1.bf16.msra.mxu0 0
        %3110 = vmatprep.subr.bf16.mxu0 0
        %3111 = vmatpush1.bf16.msra.mxu0 0
        %3112 = vmatprep.subr.bf16.mxu0 0
        %3113 = vmatpush1.bf16.msra.mxu0 0
        %3114 = vmatprep.subr.bf16.mxu0 0
        %3115 = vmatpush1.bf16.msra.mxu0 0
        %3116 = vmatprep.mubr.bf16.mxu0 0
        %3117 = vmatmul.mubr.bf16.gmra.mrb[0].mxu0 %v3082
        %v3118 = vpop.f32.mrb[0].mxu0
        %v3119 = vadd.f32 0.0, %v3118
        %v3120 = vpop.f32.mrb[0].mxu0
        %v3121 = vadd.f32 0.0, %v3120
        %v3122 = vpop.f32.mrb[0].mxu0
        %v3123 = vadd.f32 0.0, %v3122
        %v3124 = vpop.f32.mrb[0].mxu0
        %v3125 = vadd.f32 0.0, %v3124
        %3126 = vdwg.mxu0
        %3127 = vmatprep.subr.bf16.mxu0 0
        %3128 = vmatpush1.bf16.msra.mxu0 %v3077
        %3129 = vmatprep.subr.bf16.mxu0 0
        %3130 = vmatpush1.bf16.msra.mxu0 0
        %3131 = vmatprep.subr.bf16.mxu0 0
        %3132 = vmatpush1.bf16.msra.mxu0 0
        %3133 = vmatprep.subr.bf16.mxu0 0
        %3134 = vmatpush1.bf16.msra.mxu0 0
        %3135 = vmatprep.subr.bf16.mxu0 0
        %3136 = vmatpush1.bf16.msra.mxu0 0
        %3137 = vmatprep.subr.bf16.mxu0 0
        %3138 = vmatpush1.bf16.msra.mxu0 0
        %3139 = vmatprep.subr.bf16.mxu0 0
        %3140 = vmatpush1.bf16.msra.mxu0 0
        %3141 = vmatprep.subr.bf16.mxu0 0
        %3142 = vmatpush1.bf16.msra.mxu0 0
        %3143 = vmatprep.subr.bf16.mxu0 0
        %3144 = vmatpush1.bf16.msra.mxu0 0
        %3145 = vmatprep.subr.bf16.mxu0 0
        %3146 = vmatpush1.bf16.msra.mxu0 0
        %3147 = vmatprep.subr.bf16.mxu0 0
        %3148 = vmatpush1.bf16.msra.mxu0 0
        %3149 = vmatprep.subr.bf16.mxu0 0
        %3150 = vmatpush1.bf16.msra.mxu0 0
        %3151 = vmatprep.subr.bf16.mxu0 0
        %3152 = vmatpush1.bf16.msra.mxu0 0
        %3153 = vmatprep.subr.bf16.mxu0 0
        %3154 = vmatpush1.bf16.msra.mxu0 0
        %3155 = vmatprep.subr.bf16.mxu0 0
        %3156 = vmatpush1.bf16.msra.mxu0 0
        %3157 = vmatprep.subr.bf16.mxu0 0
        %3158 = vmatpush1.bf16.msra.mxu0 0
        %3159 = vmatprep.mubr.bf16.mxu0 0
        %3160 = vmatmul.mubr.bf16.gmra.mrb[0].mxu0 %v3082
        %v3161 = vpop.f32.mrb[0].mxu0
        %v3162 = vadd.f32 0.0, %v3161
        %v3163 = vpop.f32.mrb[0].mxu0
        %v3164 = vpop.f32.mrb[0].mxu0
        %v3165 = vadd.f32 0.0, %v3164
        %v3166 = vpop.f32.mrb[0].mxu0
        %3167 = vdwg.mxu0
        %v3168 = vadd.f32 %v3010, %v3119
        %v3169 = vadd.f32 %v3012, %v3121
        %v3170 = vadd.f32 %v3053, %v3162
        %v3171 = vadd.f32 %v3014, %v3123
        %v3172 = vadd.f32 %v3016, %v3125
        %v3173 = vadd.f32 %v3056, %v3165
        %s3174 = scalar_lea.vmem [#allocation8], 24
        %v3175 = vld [vmem:[%s3174] sm:$0xf]
        %v3176 = vld [vmem:[%s3174 + $0x4] sm:$0xf]
        %v3179 = vunpack.c.l.b16 %v3175
        %v3180 = vunpack.c.l.b16 %v3176
        %v3181 = vpack.c.b16 %v3180, %v3179
        %3182 = vrot.lane.b32.xlu0 %v2834, 1
        %v3183 = vpop.permute.xlu0 %3182
        %3184 = vrot.lane.b32.xlu0 %v2835, 1
        %v3185 = vpop.permute.xlu0 %3184
        %3186 = vrot.lane.b32.xlu0 %v2836, 1
        %v3187 = vpop.permute.xlu0 %3186
        %3188 = vrot.lane.b32.xlu0 %v2837, 1
        %v3189 = vpop.permute.xlu0 %3188
        %v3190 = vsel %vm1049, %v3183, %v3185
        %v3191 = vsel %vm1049, %v3185, %v3187
        %v3192 = vsel %vm1049, %v3187, %v3189
        %v3197 = vsel %vm722, %v3181, 0
        %3199 = vmatprep.subr.bf16.mxu0 %v3191
        %3200 = vmatpush1.bf16.msra.mxu0 %v3190
        %3201 = vmatprep.subr.bf16.mxu0 0
        %3202 = vmatpush1.bf16.msra.mxu0 0
        %3203 = vmatprep.subr.bf16.mxu0 0
        %3204 = vmatpush1.bf16.msra.mxu0 0
        %3205 = vmatprep.subr.bf16.mxu0 0
        %3206 = vmatpush1.bf16.msra.mxu0 0
        %3207 = vmatprep.subr.bf16.mxu0 0
        %3208 = vmatpush1.bf16.msra.mxu0 0
        %3209 = vmatprep.subr.bf16.mxu0 0
        %3210 = vmatpush1.bf16.msra.mxu0 0
        %3211 = vmatprep.subr.bf16.mxu0 0
        %3212 = vmatpush1.bf16.msra.mxu0 0
        %3213 = vmatprep.subr.bf16.mxu0 0
        %3214 = vmatpush1.bf16.msra.mxu0 0
        %3215 = vmatprep.subr.bf16.mxu0 0
        %3216 = vmatpush1.bf16.msra.mxu0 0
        %3217 = vmatprep.subr.bf16.mxu0 0
        %3218 = vmatpush1.bf16.msra.mxu0 0
        %3219 = vmatprep.subr.bf16.mxu0 0
        %3220 = vmatpush1.bf16.msra.mxu0 0
        %3221 = vmatprep.subr.bf16.mxu0 0
        %3222 = vmatpush1.bf16.msra.mxu0 0
        %3223 = vmatprep.subr.bf16.mxu0 0
        %3224 = vmatpush1.bf16.msra.mxu0 0
        %3225 = vmatprep.subr.bf16.mxu0 0
        %3226 = vmatpush1.bf16.msra.mxu0 0
        %3227 = vmatprep.subr.bf16.mxu0 0
        %3228 = vmatpush1.bf16.msra.mxu0 0
        %3229 = vmatprep.subr.bf16.mxu0 0
        %3230 = vmatpush1.bf16.msra.mxu0 0
        %3231 = vmatprep.mubr.bf16.mxu0 0
        %3232 = vmatmul.mubr.bf16.gmra.mrb[0].mxu0 %v3197
        %v3233 = vpop.f32.mrb[0].mxu0
        %v3234 = vadd.f32 0.0, %v3233
        %v3235 = vpop.f32.mrb[0].mxu0
        %v3236 = vadd.f32 0.0, %v3235
        %v3237 = vpop.f32.mrb[0].mxu0
        %v3238 = vadd.f32 0.0, %v3237
        %v3239 = vpop.f32.mrb[0].mxu0
        %v3240 = vadd.f32 0.0, %v3239
        %3241 = vdwg.mxu0
        %3242 = vmatprep.subr.bf16.mxu0 0
        %3243 = vmatpush1.bf16.msra.mxu0 %v3192
        %3244 = vmatprep.subr.bf16.mxu0 0
        %3245 = vmatpush1.bf16.msra.mxu0 0
        %3246 = vmatprep.subr.bf16.mxu0 0
        %3247 = vmatpush1.bf16.msra.mxu0 0
        %3248 = vmatprep.subr.bf16.mxu0 0
        %3249 = vmatpush1.bf16.msra.mxu0 0
        %3250 = vmatprep.subr.bf16.mxu0 0
        %3251 = vmatpush1.bf16.msra.mxu0 0
        %3252 = vmatprep.subr.bf16.mxu0 0
        %3253 = vmatpush1.bf16.msra.mxu0 0
        %3254 = vmatprep.subr.bf16.mxu0 0
        %3255 = vmatpush1.bf16.msra.mxu0 0
        %3256 = vmatprep.subr.bf16.mxu0 0
        %3257 = vmatpush1.bf16.msra.mxu0 0
        %3258 = vmatprep.subr.bf16.mxu0 0
        %3259 = vmatpush1.bf16.msra.mxu0 0
        %3260 = vmatprep.subr.bf16.mxu0 0
        %3261 = vmatpush1.bf16.msra.mxu0 0
        %3262 = vmatprep.subr.bf16.mxu0 0
        %3263 = vmatpush1.bf16.msra.mxu0 0
        %3264 = vmatprep.subr.bf16.mxu0 0
        %3265 = vmatpush1.bf16.msra.mxu0 0
        %3266 = vmatprep.subr.bf16.mxu0 0
        %3267 = vmatpush1.bf16.msra.mxu0 0
        %3268 = vmatprep.subr.bf16.mxu0 0
        %3269 = vmatpush1.bf16.msra.mxu0 0
        %3270 = vmatprep.subr.bf16.mxu0 0
        %3271 = vmatpush1.bf16.msra.mxu0 0
        %3272 = vmatprep.subr.bf16.mxu0 0
        %3273 = vmatpush1.bf16.msra.mxu0 0
        %3274 = vmatprep.mubr.bf16.mxu0 0
        %3275 = vmatmul.mubr.bf16.gmra.mrb[0].mxu0 %v3197
        %v3276 = vpop.f32.mrb[0].mxu0
        %v3277 = vadd.f32 0.0, %v3276
        %v3278 = vpop.f32.mrb[0].mxu0
        %v3279 = vpop.f32.mrb[0].mxu0
        %v3280 = vadd.f32 0.0, %v3279
        %v3281 = vpop.f32.mrb[0].mxu0
        %3282 = vdwg.mxu0
        %v3283 = vadd.f32 %v3168, %v3234
        %v3284 = vadd.f32 %v3169, %v3236
        %v3285 = vadd.f32 %v3170, %v3277
        %v3286 = vadd.f32 %v3171, %v3238
        %v3287 = vadd.f32 %v3172, %v3240
        %v3288 = vadd.f32 %v3173, %v3280
        %s3289 = scalar_lea.vmem [#allocation8], 32
        %v3290 = vld [vmem:[%s3289] sm:$0xf]
        %v3291 = vld [vmem:[%s3289 + $0x4] sm:$0xf]
        %v3294 = vunpack.c.l.b16 %v3290
        %v3295 = vunpack.c.l.b16 %v3291
        %v3296 = vpack.c.b16 %v3295, %v3294
        %v3298 = vsel %vm722, %v3296, 0
        %3300 = vmatprep.subr.bf16.mxu0 %v2836
        %3301 = vmatpush1.bf16.msra.mxu0 %v2835
        %3302 = vmatprep.subr.bf16.mxu0 0
        %3303 = vmatpush1.bf16.msra.mxu0 0
        %3304 = vmatprep.subr.bf16.mxu0 0
        %3305 = vmatpush1.bf16.msra.mxu0 0
        %3306 = vmatprep.subr.bf16.mxu0 0
        %3307 = vmatpush1.bf16.msra.mxu0 0
        %3308 = vmatprep.subr.bf16.mxu0 0
        %3309 = vmatpush1.bf16.msra.mxu0 0
        %3310 = vmatprep.subr.bf16.mxu0 0
        %3311 = vmatpush1.bf16.msra.mxu0 0
        %3312 = vmatprep.subr.bf16.mxu0 0
        %3313 = vmatpush1.bf16.msra.mxu0 0
        %3314 = vmatprep.subr.bf16.mxu0 0
        %3315 = vmatpush1.bf16.msra.mxu0 0
        %3316 = vmatprep.subr.bf16.mxu0 0
        %3317 = vmatpush1.bf16.msra.mxu0 0
        %3318 = vmatprep.subr.bf16.mxu0 0
        %3319 = vmatpush1.bf16.msra.mxu0 0
        %3320 = vmatprep.subr.bf16.mxu0 0
        %3321 = vmatpush1.bf16.msra.mxu0 0
        %3322 = vmatprep.subr.bf16.mxu0 0
        %3323 = vmatpush1.bf16.msra.mxu0 0
        %3324 = vmatprep.subr.bf16.mxu0 0
        %3325 = vmatpush1.bf16.msra.mxu0 0
        %3326 = vmatprep.subr.bf16.mxu0 0
        %3327 = vmatpush1.bf16.msra.mxu0 0
        %3328 = vmatprep.subr.bf16.mxu0 0
        %3329 = vmatpush1.bf16.msra.mxu0 0
        %3330 = vmatprep.subr.bf16.mxu0 0
        %3331 = vmatpush1.bf16.msra.mxu0 0
        %3332 = vmatprep.mubr.bf16.mxu0 0
        %3333 = vmatmul.mubr.bf16.gmra.mrb[0].mxu0 %v3298
        %v3334 = vpop.f32.mrb[0].mxu0
        %v3335 = vadd.f32 0.0, %v3334
        %v3336 = vpop.f32.mrb[0].mxu0
        %v3337 = vadd.f32 0.0, %v3336
        %v3338 = vpop.f32.mrb[0].mxu0
        %v3339 = vadd.f32 0.0, %v3338
        %v3340 = vpop.f32.mrb[0].mxu0
        %v3341 = vadd.f32 0.0, %v3340
        %3342 = vdwg.mxu0
        %3343 = vmatprep.subr.bf16.mxu0 0
        %3344 = vmatpush1.bf16.msra.mxu0 %v2837
        %3345 = vmatprep.subr.bf16.mxu0 0
        %3346 = vmatpush1.bf16.msra.mxu0 0
        %3347 = vmatprep.subr.bf16.mxu0 0
        %3348 = vmatpush1.bf16.msra.mxu0 0
        %3349 = vmatprep.subr.bf16.mxu0 0
        %3350 = vmatpush1.bf16.msra.mxu0 0
        %3351 = vmatprep.subr.bf16.mxu0 0
        %3352 = vmatpush1.bf16.msra.mxu0 0
        %3353 = vmatprep.subr.bf16.mxu0 0
        %3354 = vmatpush1.bf16.msra.mxu0 0
        %3355 = vmatprep.subr.bf16.mxu0 0
        %3356 = vmatpush1.bf16.msra.mxu0 0
        %3357 = vmatprep.subr.bf16.mxu0 0
        %3358 = vmatpush1.bf16.msra.mxu0 0
        %3359 = vmatprep.subr.bf16.mxu0 0
        %3360 = vmatpush1.bf16.msra.mxu0 0
        %3361 = vmatprep.subr.bf16.mxu0 0
        %3362 = vmatpush1.bf16.msra.mxu0 0
        %3363 = vmatprep.subr.bf16.mxu0 0
        %3364 = vmatpush1.bf16.msra.mxu0 0
        %3365 = vmatprep.subr.bf16.mxu0 0
        %3366 = vmatpush1.bf16.msra.mxu0 0
        %3367 = vmatprep.subr.bf16.mxu0 0
        %3368 = vmatpush1.bf16.msra.mxu0 0
        %3369 = vmatprep.subr.bf16.mxu0 0
        %3370 = vmatpush1.bf16.msra.mxu0 0
        %3371 = vmatprep.subr.bf16.mxu0 0
        %3372 = vmatpush1.bf16.msra.mxu0 0
        %3373 = vmatprep.subr.bf16.mxu0 0
        %3374 = vmatpush1.bf16.msra.mxu0 0
        %3375 = vmatprep.mubr.bf16.mxu0 0
        %3376 = vmatmul.mubr.bf16.gmra.mrb[0].mxu0 %v3298
        %v3377 = vpop.f32.mrb[0].mxu0
        %v3378 = vadd.f32 0.0, %v3377
        %v3379 = vpop.f32.mrb[0].mxu0
        %v3380 = vpop.f32.mrb[0].mxu0
        %v3381 = vadd.f32 0.0, %v3380
        %v3382 = vpop.f32.mrb[0].mxu0
        %3383 = vdwg.mxu0
        %v3384 = vadd.f32 %v3283, %v3335
        %v3385 = vadd.f32 %v3284, %v3337
        %v3386 = vadd.f32 %v3285, %v3378
        %v3387 = vadd.f32 %v3286, %v3339
        %v3388 = vadd.f32 %v3287, %v3341
        %v3389 = vadd.f32 %v3288, %v3381
        %v3390 = vld [vmem:[#allocation2 + $0x58] sm:$0xff]
        %v3391 = vld [vmem:[#allocation2 + $0x60] sm:$0xff]
        %v3392 = vld [vmem:[#allocation2 + $0x68] sm:$0xff]
        %v3393 = vld [vmem:[#allocation2 + $0x70] sm:$0xff]
        %s3394 = scalar_lea.vmem [#allocation8], 40
        %v3395 = vld [vmem:[%s3394] sm:$0xf]
        %v3396 = vld [vmem:[%s3394 + $0x4] sm:$0xf]
        %v3399 = vunpack.c.l.b16 %v3395
        %v3400 = vunpack.c.l.b16 %v3396
        %v3401 = vpack.c.b16 %v3400, %v3399
        %3406 = vrot.lane.b32.xlu0 %v3390, 127
        %v3407 = vpop.permute.xlu0 %3406
        %3408 = vrot.lane.b32.xlu0 %v3391, 127
        %v3409 = vpop.permute.xlu0 %3408
        %3410 = vrot.lane.b32.xlu0 %v3392, 127
        %v3411 = vpop.permute.xlu0 %3410
        %3412 = vrot.lane.b32.xlu0 %v3393, 127
        %v3413 = vpop.permute.xlu0 %3412
        %v3414 = vsel %vm1274, %v3407, %v3409
        %v3415 = vsel %vm1274, %v3409, %v3411
        %v3416 = vsel %vm1274, %v3411, %v3413
        %v3421 = vsel %vm722, %v3401, 0
        %3423 = vmatprep.subr.bf16.mxu0 %v3415
        %3424 = vmatpush1.bf16.msra.mxu0 %v3414
        %3425 = vmatprep.subr.bf16.mxu0 0
        %3426 = vmatpush1.bf16.msra.mxu0 0
        %3427 = vmatprep.subr.bf16.mxu0 0
        %3428 = vmatpush1.bf16.msra.mxu0 0
        %3429 = vmatprep.subr.bf16.mxu0 0
        %3430 = vmatpush1.bf16.msra.mxu0 0
        %3431 = vmatprep.subr.bf16.mxu0 0
        %3432 = vmatpush1.bf16.msra.mxu0 0
        %3433 = vmatprep.subr.bf16.mxu0 0
        %3434 = vmatpush1.bf16.msra.mxu0 0
        %3435 = vmatprep.subr.bf16.mxu0 0
        %3436 = vmatpush1.bf16.msra.mxu0 0
        %3437 = vmatprep.subr.bf16.mxu0 0
        %3438 = vmatpush1.bf16.msra.mxu0 0
        %3439 = vmatprep.subr.bf16.mxu0 0
        %3440 = vmatpush1.bf16.msra.mxu0 0
        %3441 = vmatprep.subr.bf16.mxu0 0
        %3442 = vmatpush1.bf16.msra.mxu0 0
        %3443 = vmatprep.subr.bf16.mxu0 0
        %3444 = vmatpush1.bf16.msra.mxu0 0
        %3445 = vmatprep.subr.bf16.mxu0 0
        %3446 = vmatpush1.bf16.msra.mxu0 0
        %3447 = vmatprep.subr.bf16.mxu0 0
        %3448 = vmatpush1.bf16.msra.mxu0 0
        %3449 = vmatprep.subr.bf16.mxu0 0
        %3450 = vmatpush1.bf16.msra.mxu0 0
        %3451 = vmatprep.subr.bf16.mxu0 0
        %3452 = vmatpush1.bf16.msra.mxu0 0
        %3453 = vmatprep.subr.bf16.mxu0 0
        %3454 = vmatpush1.bf16.msra.mxu0 0
        %3455 = vmatprep.mubr.bf16.mxu0 0
        %3456 = vmatmul.mubr.bf16.gmra.mrb[0].mxu0 %v3421
        %v3457 = vpop.f32.mrb[0].mxu0
        %v3458 = vadd.f32 0.0, %v3457
        %v3459 = vpop.f32.mrb[0].mxu0
        %v3460 = vadd.f32 0.0, %v3459
        %v3461 = vpop.f32.mrb[0].mxu0
        %v3462 = vadd.f32 0.0, %v3461
        %v3463 = vpop.f32.mrb[0].mxu0
        %v3464 = vadd.f32 0.0, %v3463
        %3465 = vdwg.mxu0
        %3466 = vmatprep.subr.bf16.mxu0 0
        %3467 = vmatpush1.bf16.msra.mxu0 %v3416
        %3468 = vmatprep.subr.bf16.mxu0 0
        %3469 = vmatpush1.bf16.msra.mxu0 0
        %3470 = vmatprep.subr.bf16.mxu0 0
        %3471 = vmatpush1.bf16.msra.mxu0 0
        %3472 = vmatprep.subr.bf16.mxu0 0
        %3473 = vmatpush1.bf16.msra.mxu0 0
        %3474 = vmatprep.subr.bf16.mxu0 0
        %3475 = vmatpush1.bf16.msra.mxu0 0
        %3476 = vmatprep.subr.bf16.mxu0 0
        %3477 = vmatpush1.bf16.msra.mxu0 0
        %3478 = vmatprep.subr.bf16.mxu0 0
        %3479 = vmatpush1.bf16.msra.mxu0 0
        %3480 = vmatprep.subr.bf16.mxu0 0
        %3481 = vmatpush1.bf16.msra.mxu0 0
        %3482 = vmatprep.subr.bf16.mxu0 0
        %3483 = vmatpush1.bf16.msra.mxu0 0
        %3484 = vmatprep.subr.bf16.mxu0 0
        %3485 = vmatpush1.bf16.msra.mxu0 0
        %3486 = vmatprep.subr.bf16.mxu0 0
        %3487 = vmatpush1.bf16.msra.mxu0 0
        %3488 = vmatprep.subr.bf16.mxu0 0
        %3489 = vmatpush1.bf16.msra.mxu0 0
        %3490 = vmatprep.subr.bf16.mxu0 0
        %3491 = vmatpush1.bf16.msra.mxu0 0
        %3492 = vmatprep.subr.bf16.mxu0 0
        %3493 = vmatpush1.bf16.msra.mxu0 0
        %3494 = vmatprep.subr.bf16.mxu0 0
        %3495 = vmatpush1.bf16.msra.mxu0 0
        %3496 = vmatprep.subr.bf16.mxu0 0
        %3497 = vmatpush1.bf16.msra.mxu0 0
        %3498 = vmatprep.mubr.bf16.mxu0 0
        %3499 = vmatmul.mubr.bf16.gmra.mrb[0].mxu0 %v3421
        %v3500 = vpop.f32.mrb[0].mxu0
        %v3501 = vadd.f32 0.0, %v3500
        %v3502 = vpop.f32.mrb[0].mxu0
        %v3503 = vpop.f32.mrb[0].mxu0
        %v3504 = vadd.f32 0.0, %v3503
        %v3505 = vpop.f32.mrb[0].mxu0
        %3506 = vdwg.mxu0
        %v3507 = vadd.f32 %v3384, %v3458
        %v3508 = vadd.f32 %v3385, %v3460
        %v3509 = vadd.f32 %v3386, %v3501
        %v3510 = vadd.f32 %v3387, %v3462
        %v3511 = vadd.f32 %v3388, %v3464
        %v3512 = vadd.f32 %v3389, %v3504
        %s3513 = scalar_lea.vmem [#allocation8], 48
        %v3514 = vld [vmem:[%s3513] sm:$0xf]
        %v3515 = vld [vmem:[%s3513 + $0x4] sm:$0xf]
        %v3518 = vunpack.c.l.b16 %v3514
        %v3519 = vunpack.c.l.b16 %v3515
        %v3520 = vpack.c.b16 %v3519, %v3518
        %3521 = vrot.lane.b32.xlu0 %v3390, 111
        %v3522 = vpop.permute.xlu0 %3521
        %3523 = vrot.lane.b32.xlu0 %v3391, 111
        %v3524 = vpop.permute.xlu0 %3523
        %3525 = vrot.lane.b32.xlu0 %v3392, 111
        %v3526 = vpop.permute.xlu0 %3525
        %3527 = vrot.lane.b32.xlu0 %v3393, 111
        %v3528 = vpop.permute.xlu0 %3527
        %v3529 = vsel %vm1390, %v3522, %v3524
        %v3530 = vsel %vm1390, %v3524, %v3526
        %v3531 = vsel %vm1390, %v3526, %v3528
        %v3536 = vsel %vm722, %v3520, 0
        %3538 = vmatprep.subr.bf16.mxu0 %v3530
        %3539 = vmatpush1.bf16.msra.mxu0 %v3529
        %3540 = vmatprep.subr.bf16.mxu0 0
        %3541 = vmatpush1.bf16.msra.mxu0 0
        %3542 = vmatprep.subr.bf16.mxu0 0
        %3543 = vmatpush1.bf16.msra.mxu0 0
        %3544 = vmatprep.subr.bf16.mxu0 0
        %3545 = vmatpush1.bf16.msra.mxu0 0
        %3546 = vmatprep.subr.bf16.mxu0 0
        %3547 = vmatpush1.bf16.msra.mxu0 0
        %3548 = vmatprep.subr.bf16.mxu0 0
        %3549 = vmatpush1.bf16.msra.mxu0 0
        %3550 = vmatprep.subr.bf16.mxu0 0
        %3551 = vmatpush1.bf16.msra.mxu0 0
        %3552 = vmatprep.subr.bf16.mxu0 0
        %3553 = vmatpush1.bf16.msra.mxu0 0
        %3554 = vmatprep.subr.bf16.mxu0 0
        %3555 = vmatpush1.bf16.msra.mxu0 0
        %3556 = vmatprep.subr.bf16.mxu0 0
        %3557 = vmatpush1.bf16.msra.mxu0 0
        %3558 = vmatprep.subr.bf16.mxu0 0
        %3559 = vmatpush1.bf16.msra.mxu0 0
        %3560 = vmatprep.subr.bf16.mxu0 0
        %3561 = vmatpush1.bf16.msra.mxu0 0
        %3562 = vmatprep.subr.bf16.mxu0 0
        %3563 = vmatpush1.bf16.msra.mxu0 0
        %3564 = vmatprep.subr.bf16.mxu0 0
        %3565 = vmatpush1.bf16.msra.mxu0 0
        %3566 = vmatprep.subr.bf16.mxu0 0
        %3567 = vmatpush1.bf16.msra.mxu0 0
        %3568 = vmatprep.subr.bf16.mxu0 0
        %3569 = vmatpush1.bf16.msra.mxu0 0
        %3570 = vmatprep.mubr.bf16.mxu0 0
        %3571 = vmatmul.mubr.bf16.gmra.mrb[0].mxu0 %v3536
        %v3572 = vpop.f32.mrb[0].mxu0
        %v3573 = vadd.f32 0.0, %v3572
        %v3574 = vpop.f32.mrb[0].mxu0
        %v3575 = vadd.f32 0.0, %v3574
        %v3576 = vpop.f32.mrb[0].mxu0
        %v3577 = vadd.f32 0.0, %v3576
        %v3578 = vpop.f32.mrb[0].mxu0
        %v3579 = vadd.f32 0.0, %v3578
        %3580 = vdwg.mxu0
        %3581 = vmatprep.subr.bf16.mxu0 0
        %3582 = vmatpush1.bf16.msra.mxu0 %v3531
        %3583 = vmatprep.subr.bf16.mxu0 0
        %3584 = vmatpush1.bf16.msra.mxu0 0
        %3585 = vmatprep.subr.bf16.mxu0 0
        %3586 = vmatpush1.bf16.msra.mxu0 0
        %3587 = vmatprep.subr.bf16.mxu0 0
        %3588 = vmatpush1.bf16.msra.mxu0 0
        %3589 = vmatprep.subr.bf16.mxu0 0
        %3590 = vmatpush1.bf16.msra.mxu0 0
        %3591 = vmatprep.subr.bf16.mxu0 0
        %3592 = vmatpush1.bf16.msra.mxu0 0
        %3593 = vmatprep.subr.bf16.mxu0 0
        %3594 = vmatpush1.bf16.msra.mxu0 0
        %3595 = vmatprep.subr.bf16.mxu0 0
        %3596 = vmatpush1.bf16.msra.mxu0 0
        %3597 = vmatprep.subr.bf16.mxu0 0
        %3598 = vmatpush1.bf16.msra.mxu0 0
        %3599 = vmatprep.subr.bf16.mxu0 0
        %3600 = vmatpush1.bf16.msra.mxu0 0
        %3601 = vmatprep.subr.bf16.mxu0 0
        %3602 = vmatpush1.bf16.msra.mxu0 0
        %3603 = vmatprep.subr.bf16.mxu0 0
        %3604 = vmatpush1.bf16.msra.mxu0 0
        %3605 = vmatprep.subr.bf16.mxu0 0
        %3606 = vmatpush1.bf16.msra.mxu0 0
        %3607 = vmatprep.subr.bf16.mxu0 0
        %3608 = vmatpush1.bf16.msra.mxu0 0
        %3609 = vmatprep.subr.bf16.mxu0 0
        %3610 = vmatpush1.bf16.msra.mxu0 0
        %3611 = vmatprep.subr.bf16.mxu0 0
        %3612 = vmatpush1.bf16.msra.mxu0 0
        %3613 = vmatprep.mubr.bf16.mxu0 0
        %3614 = vmatmul.mubr.bf16.gmra.mrb[0].mxu0 %v3536
        %v3615 = vpop.f32.mrb[0].mxu0
        %v3616 = vadd.f32 0.0, %v3615
        %v3617 = vpop.f32.mrb[0].mxu0
        %v3618 = vpop.f32.mrb[0].mxu0
        %v3619 = vadd.f32 0.0, %v3618
        %v3620 = vpop.f32.mrb[0].mxu0
        %3621 = vdwg.mxu0
        %v3622 = vadd.f32 %v3507, %v3573
        %v3623 = vadd.f32 %v3508, %v3575
        %v3624 = vadd.f32 %v3509, %v3616
        %v3625 = vadd.f32 %v3510, %v3577
        %v3626 = vadd.f32 %v3511, %v3579
        %v3627 = vadd.f32 %v3512, %v3619
        %s3628 = scalar_lea.vmem [#allocation8], 56
        %v3629 = vld [vmem:[%s3628] sm:$0xf]
        %v3630 = vld [vmem:[%s3628 + $0x4] sm:$0xf]
        %v3633 = vunpack.c.l.b16 %v3629
        %v3634 = vunpack.c.l.b16 %v3630
        %v3635 = vpack.c.b16 %v3634, %v3633
        %3636 = vrot.lane.b32.xlu0 %v3390, 110
        %v3637 = vpop.permute.xlu0 %3636
        %3638 = vrot.lane.b32.xlu0 %v3391, 110
        %v3639 = vpop.permute.xlu0 %3638
        %3640 = vrot.lane.b32.xlu0 %v3392, 110
        %v3641 = vpop.permute.xlu0 %3640
        %3642 = vrot.lane.b32.xlu0 %v3393, 110
        %v3643 = vpop.permute.xlu0 %3642
        %v3644 = vsel %vm1506, %v3637, %v3639
        %v3645 = vsel %vm1506, %v3639, %v3641
        %v3646 = vsel %vm1506, %v3641, %v3643
        %v3651 = vsel %vm722, %v3635, 0
        %3653 = vmatprep.subr.bf16.mxu0 %v3645
        %3654 = vmatpush1.bf16.msra.mxu0 %v3644
        %3655 = vmatprep.subr.bf16.mxu0 0
        %3656 = vmatpush1.bf16.msra.mxu0 0
        %3657 = vmatprep.subr.bf16.mxu0 0
        %3658 = vmatpush1.bf16.msra.mxu0 0
        %3659 = vmatprep.subr.bf16.mxu0 0
        %3660 = vmatpush1.bf16.msra.mxu0 0
        %3661 = vmatprep.subr.bf16.mxu0 0
        %3662 = vmatpush1.bf16.msra.mxu0 0
        %3663 = vmatprep.subr.bf16.mxu0 0
        %3664 = vmatpush1.bf16.msra.mxu0 0
        %3665 = vmatprep.subr.bf16.mxu0 0
        %3666 = vmatpush1.bf16.msra.mxu0 0
        %3667 = vmatprep.subr.bf16.mxu0 0
        %3668 = vmatpush1.bf16.msra.mxu0 0
        %3669 = vmatprep.subr.bf16.mxu0 0
        %3670 = vmatpush1.bf16.msra.mxu0 0
        %3671 = vmatprep.subr.bf16.mxu0 0
        %3672 = vmatpush1.bf16.msra.mxu0 0
        %3673 = vmatprep.subr.bf16.mxu0 0
        %3674 = vmatpush1.bf16.msra.mxu0 0
        %3675 = vmatprep.subr.bf16.mxu0 0
        %3676 = vmatpush1.bf16.msra.mxu0 0
        %3677 = vmatprep.subr.bf16.mxu0 0
        %3678 = vmatpush1.bf16.msra.mxu0 0
        %3679 = vmatprep.subr.bf16.mxu0 0
        %3680 = vmatpush1.bf16.msra.mxu0 0
        %3681 = vmatprep.subr.bf16.mxu0 0
        %3682 = vmatpush1.bf16.msra.mxu0 0
        %3683 = vmatprep.subr.bf16.mxu0 0
        %3684 = vmatpush1.bf16.msra.mxu0 0
        %3685 = vmatprep.mubr.bf16.mxu0 0
        %3686 = vmatmul.mubr.bf16.gmra.mrb[0].mxu0 %v3651
        %v3687 = vpop.f32.mrb[0].mxu0
        %v3688 = vadd.f32 0.0, %v3687
        %v3689 = vpop.f32.mrb[0].mxu0
        %v3690 = vadd.f32 0.0, %v3689
        %v3691 = vpop.f32.mrb[0].mxu0
        %v3692 = vadd.f32 0.0, %v3691
        %v3693 = vpop.f32.mrb[0].mxu0
        %v3694 = vadd.f32 0.0, %v3693
        %3695 = vdwg.mxu0
        %3696 = vmatprep.subr.bf16.mxu0 0
        %3697 = vmatpush1.bf16.msra.mxu0 %v3646
        %3698 = vmatprep.subr.bf16.mxu0 0
        %3699 = vmatpush1.bf16.msra.mxu0 0
        %3700 = vmatprep.subr.bf16.mxu0 0
        %3701 = vmatpush1.bf16.msra.mxu0 0
        %3702 = vmatprep.subr.bf16.mxu0 0
        %3703 = vmatpush1.bf16.msra.mxu0 0
        %3704 = vmatprep.subr.bf16.mxu0 0
        %3705 = vmatpush1.bf16.msra.mxu0 0
        %3706 = vmatprep.subr.bf16.mxu0 0
        %3707 = vmatpush1.bf16.msra.mxu0 0
        %3708 = vmatprep.subr.bf16.mxu0 0
        %3709 = vmatpush1.bf16.msra.mxu0 0
        %3710 = vmatprep.subr.bf16.mxu0 0
        %3711 = vmatpush1.bf16.msra.mxu0 0
        %3712 = vmatprep.subr.bf16.mxu0 0
        %3713 = vmatpush1.bf16.msra.mxu0 0
        %3714 = vmatprep.subr.bf16.mxu0 0
        %3715 = vmatpush1.bf16.msra.mxu0 0
        %3716 = vmatprep.subr.bf16.mxu0 0
        %3717 = vmatpush1.bf16.msra.mxu0 0
        %3718 = vmatprep.subr.bf16.mxu0 0
        %3719 = vmatpush1.bf16.msra.mxu0 0
        %3720 = vmatprep.subr.bf16.mxu0 0
        %3721 = vmatpush1.bf16.msra.mxu0 0
        %3722 = vmatprep.subr.bf16.mxu0 0
        %3723 = vmatpush1.bf16.msra.mxu0 0
        %3724 = vmatprep.subr.bf16.mxu0 0
        %3725 = vmatpush1.bf16.msra.mxu0 0
        %3726 = vmatprep.subr.bf16.mxu0 0
        %3727 = vmatpush1.bf16.msra.mxu0 0
        %3728 = vmatprep.mubr.bf16.mxu0 0
        %3729 = vmatmul.mubr.bf16.gmra.mrb[0].mxu0 %v3651
        %v3730 = vpop.f32.mrb[0].mxu0
        %v3731 = vadd.f32 0.0, %v3730
        %v3732 = vpop.f32.mrb[0].mxu0
        %v3733 = vpop.f32.mrb[0].mxu0
        %v3734 = vadd.f32 0.0, %v3733
        %v3735 = vpop.f32.mrb[0].mxu0
        %3736 = vdwg.mxu0
        %v3737 = vadd.f32 %v3622, %v3688
        %v3738 = vadd.f32 %v3623, %v3690
        %v3739 = vadd.f32 %v3624, %v3731
        %v3740 = vadd.f32 %v3625, %v3692
        %v3741 = vadd.f32 %v3626, %v3694
        %v3742 = vadd.f32 %v3627, %v3734
        %s3743 = scalar_lea.vmem [#allocation8], 64
        %v3744 = vld [vmem:[%s3743] sm:$0xf]
        %v3745 = vld [vmem:[%s3743 + $0x4] sm:$0xf]
        %v3748 = vunpack.c.l.b16 %v3744
        %v3749 = vunpack.c.l.b16 %v3745
        %v3750 = vpack.c.b16 %v3749, %v3748
        %3751 = vrot.lane.b32.xlu0 %v3390, 109
        %v3752 = vpop.permute.xlu0 %3751
        %3753 = vrot.lane.b32.xlu0 %v3391, 109
        %v3754 = vpop.permute.xlu0 %3753
        %3755 = vrot.lane.b32.xlu0 %v3392, 109
        %v3756 = vpop.permute.xlu0 %3755
        %3757 = vrot.lane.b32.xlu0 %v3393, 109
        %v3758 = vpop.permute.xlu0 %3757
        %v3759 = vsel %vm1622, %v3752, %v3754
        %v3760 = vsel %vm1622, %v3754, %v3756
        %v3761 = vsel %vm1622, %v3756, %v3758
        %v3766 = vsel %vm722, %v3750, 0
        %3768 = vmatprep.subr.bf16.mxu0 %v3760
        %3769 = vmatpush1.bf16.msra.mxu0 %v3759
        %3770 = vmatprep.subr.bf16.mxu0 0
        %3771 = vmatpush1.bf16.msra.mxu0 0
        %3772 = vmatprep.subr.bf16.mxu0 0
        %3773 = vmatpush1.bf16.msra.mxu0 0
        %3774 = vmatprep.subr.bf16.mxu0 0
        %3775 = vmatpush1.bf16.msra.mxu0 0
        %3776 = vmatprep.subr.bf16.mxu0 0
        %3777 = vmatpush1.bf16.msra.mxu0 0
        %3778 = vmatprep.subr.bf16.mxu0 0
        %3779 = vmatpush1.bf16.msra.mxu0 0
        %3780 = vmatprep.subr.bf16.mxu0 0
        %3781 = vmatpush1.bf16.msra.mxu0 0
        %3782 = vmatprep.subr.bf16.mxu0 0
        %3783 = vmatpush1.bf16.msra.mxu0 0
        %3784 = vmatprep.subr.bf16.mxu0 0
        %3785 = vmatpush1.bf16.msra.mxu0 0
        %3786 = vmatprep.subr.bf16.mxu0 0
        %3787 = vmatpush1.bf16.msra.mxu0 0
        %3788 = vmatprep.subr.bf16.mxu0 0
        %3789 = vmatpush1.bf16.msra.mxu0 0
        %3790 = vmatprep.subr.bf16.mxu0 0
        %3791 = vmatpush1.bf16.msra.mxu0 0
        %3792 = vmatprep.subr.bf16.mxu0 0
        %3793 = vmatpush1.bf16.msra.mxu0 0
        %3794 = vmatprep.subr.bf16.mxu0 0
        %3795 = vmatpush1.bf16.msra.mxu0 0
        %3796 = vmatprep.subr.bf16.mxu0 0
        %3797 = vmatpush1.bf16.msra.mxu0 0
        %3798 = vmatprep.subr.bf16.mxu0 0
        %3799 = vmatpush1.bf16.msra.mxu0 0
        %3800 = vmatprep.mubr.bf16.mxu0 0
        %3801 = vmatmul.mubr.bf16.gmra.mrb[0].mxu0 %v3766
        %v3802 = vpop.f32.mrb[0].mxu0
        %v3803 = vadd.f32 0.0, %v3802
        %v3804 = vpop.f32.mrb[0].mxu0
        %v3805 = vadd.f32 0.0, %v3804
        %v3806 = vpop.f32.mrb[0].mxu0
        %v3807 = vadd.f32 0.0, %v3806
        %v3808 = vpop.f32.mrb[0].mxu0
        %v3809 = vadd.f32 0.0, %v3808
        %3810 = vdwg.mxu0
        %3811 = vmatprep.subr.bf16.mxu0 0
        %3812 = vmatpush1.bf16.msra.mxu0 %v3761
        %3813 = vmatprep.subr.bf16.mxu0 0
        %3814 = vmatpush1.bf16.msra.mxu0 0
        %3815 = vmatprep.subr.bf16.mxu0 0
        %3816 = vmatpush1.bf16.msra.mxu0 0
        %3817 = vmatprep.subr.bf16.mxu0 0
        %3818 = vmatpush1.bf16.msra.mxu0 0
        %3819 = vmatprep.subr.bf16.mxu0 0
        %3820 = vmatpush1.bf16.msra.mxu0 0
        %3821 = vmatprep.subr.bf16.mxu0 0
        %3822 = vmatpush1.bf16.msra.mxu0 0
        %3823 = vmatprep.subr.bf16.mxu0 0
        %3824 = vmatpush1.bf16.msra.mxu0 0
        %3825 = vmatprep.subr.bf16.mxu0 0
        %3826 = vmatpush1.bf16.msra.mxu0 0
        %3827 = vmatprep.subr.bf16.mxu0 0
        %3828 = vmatpush1.bf16.msra.mxu0 0
        %3829 = vmatprep.subr.bf16.mxu0 0
        %3830 = vmatpush1.bf16.msra.mxu0 0
        %3831 = vmatprep.subr.bf16.mxu0 0
        %3832 = vmatpush1.bf16.msra.mxu0 0
        %3833 = vmatprep.subr.bf16.mxu0 0
        %3834 = vmatpush1.bf16.msra.mxu0 0
        %3835 = vmatprep.subr.bf16.mxu0 0
        %3836 = vmatpush1.bf16.msra.mxu0 0
        %3837 = vmatprep.subr.bf16.mxu0 0
        %3838 = vmatpush1.bf16.msra.mxu0 0
        %3839 = vmatprep.subr.bf16.mxu0 0
        %3840 = vmatpush1.bf16.msra.mxu0 0
        %3841 = vmatprep.subr.bf16.mxu0 0
        %3842 = vmatpush1.bf16.msra.mxu0 0
        %3843 = vmatprep.mubr.bf16.mxu0 0
        %3844 = vmatmul.mubr.bf16.gmra.mrb[0].mxu0 %v3766
        %v3845 = vpop.f32.mrb[0].mxu0
        %v3846 = vadd.f32 0.0, %v3845
        %v3847 = vpop.f32.mrb[0].mxu0
        %v3848 = vpop.f32.mrb[0].mxu0
        %v3849 = vadd.f32 0.0, %v3848
        %v3850 = vpop.f32.mrb[0].mxu0
        %3851 = vdwg.mxu0
        %v3852 = vadd.f32 %v3737, %v3803
        %v3853 = vadd.f32 %v3738, %v3805
        %v3854 = vadd.f32 %v3739, %v3846
        %v3855 = vadd.f32 %v3740, %v3807
        %v3856 = vadd.f32 %v3741, %v3809
        %v3857 = vadd.f32 %v3742, %v3849
        %v3858 = vld [vmem:[%s7] sm:$0xff]
        %v3859 = vld [vmem:[%s7 + $0x8] sm:$0xff]
        %3861 = vset.pattern.permute.xlu0 0
        %3862 = vperm.xlu0 %3861, %v3858
        %v3863 = vpop.permute.xlu0 %3862
        %3866 = vset.pattern.permute.xlu0 0
        %3867 = vperm.xlu0 %3866, %v3859
        %v3868 = vpop.permute.xlu0 %3867
        %v3870 = vadd.f32 %v3852, %v3863
        %v3871 = vadd.f32 %v3853, %v3863
        %v3872 = vadd.f32 %v3854, %v3863
        %v3873 = vadd.f32 %v3855, %v3868
        %v3874 = vadd.f32 %v3856, %v3868
        %v3875 = vadd.f32 %v3857, %v3868
        %v3876 = vmax.f32 %v3870, 0.0
        %v3877 = vmax.f32 %v3871, 0.0
        %v3878 = vmax.f32 %v3872, 0.0
        %v3879 = vmax.f32 %v3873, 0.0
        %v3880 = vmax.f32 %v3874, 0.0
        %v3881 = vmax.f32 %v3875, 0.0
        %v3882 = vmul.f32 %v3876, %v1750
        %v3883 = vmul.f32 %v3877, %v1754
        %v3884 = vmul.f32 %v3878, %v1758
        %v3885 = vmul.f32 %v3879, %v1750
        %v3886 = vmul.f32 %v3880, %v1754
        %v3887 = vmul.f32 %v3881, %v1758
        %v3888 = vpack.c.bf16 %v3885, %v3882
        %v3889 = vpack.c.bf16 %v3886, %v3883
        %v3890 = vpack.c.bf16 %v3887, %v3884
        %3891 = vst [vmem:[#allocation2 + $0x80] sm:$0xff] %v3888
        %3892 = vst [vmem:[#allocation2 + $0x88] sm:$0xff] %v3889
        %3893 = vst [vmem:[#allocation2 + $0x90] sm:$0xff] %v3890
        %v3894 = vld [vmem:[#allocation2 + $0x78] sm:$0xff]
        %v3895 = vld [vmem:[#allocation2 + $0x80] sm:$0xff]
        %v3896 = vld [vmem:[#allocation2 + $0x88] sm:$0xff]
        %v3897 = vld [vmem:[#allocation2 + $0x90] sm:$0xff]
        %v3898 = vld [vmem:[#allocation9] sm:$0xf]
        %v3899 = vld [vmem:[#allocation9 + $0x4] sm:$0xf]
        %s3900 = scalar_lea.vmem [#allocation9], 8
        %v3901 = vld [vmem:[%s3900] sm:$0xf]
        %v3902 = vld [vmem:[%s3900 + $0x4] sm:$0xf]
        %v3905 = vunpack.c.l.b16 %v3901
        %v3906 = vunpack.c.l.b16 %v3902
        %v3907 = vpack.c.b16 %v3906, %v3905
        %3912 = vrot.lane.b32.xlu0 %v3894, 18
        %v3913 = vpop.permute.xlu0 %3912
        %3914 = vrot.lane.b32.xlu0 %v3895, 18
        %v3915 = vpop.permute.xlu0 %3914
        %3916 = vrot.lane.b32.xlu0 %v3896, 18
        %v3917 = vpop.permute.xlu0 %3916
        %3918 = vrot.lane.b32.xlu0 %v3897, 18
        %v3919 = vpop.permute.xlu0 %3918
        %v3920 = vsel %vm715, %v3913, %v3915
        %v3921 = vsel %vm715, %v3915, %v3917
        %v3922 = vsel %vm715, %v3917, %v3919
        %v3927 = vsel %vm722, %v3907, 0
        %3929 = vmatprep.subr.bf16.mxu0 %v3921
        %3930 = vmatpush1.bf16.msra.mxu0 %v3920
        %3931 = vmatprep.subr.bf16.mxu0 0
        %3932 = vmatpush1.bf16.msra.mxu0 0
        %3933 = vmatprep.subr.bf16.mxu0 0
        %3934 = vmatpush1.bf16.msra.mxu0 0
        %3935 = vmatprep.subr.bf16.mxu0 0
        %3936 = vmatpush1.bf16.msra.mxu0 0
        %3937 = vmatprep.subr.bf16.mxu0 0
        %3938 = vmatpush1.bf16.msra.mxu0 0
        %3939 = vmatprep.subr.bf16.mxu0 0
        %3940 = vmatpush1.bf16.msra.mxu0 0
        %3941 = vmatprep.subr.bf16.mxu0 0
        %3942 = vmatpush1.bf16.msra.mxu0 0
        %3943 = vmatprep.subr.bf16.mxu0 0
        %3944 = vmatpush1.bf16.msra.mxu0 0
        %3945 = vmatprep.subr.bf16.mxu0 0
        %3946 = vmatpush1.bf16.msra.mxu0 0
        %3947 = vmatprep.subr.bf16.mxu0 0
        %3948 = vmatpush1.bf16.msra.mxu0 0
        %3949 = vmatprep.subr.bf16.mxu0 0
        %3950 = vmatpush1.bf16.msra.mxu0 0
        %3951 = vmatprep.subr.bf16.mxu0 0
        %3952 = vmatpush1.bf16.msra.mxu0 0
        %3953 = vmatprep.subr.bf16.mxu0 0
        %3954 = vmatpush1.bf16.msra.mxu0 0
        %3955 = vmatprep.subr.bf16.mxu0 0
        %3956 = vmatpush1.bf16.msra.mxu0 0
        %3957 = vmatprep.subr.bf16.mxu0 0
        %3958 = vmatpush1.bf16.msra.mxu0 0
        %3959 = vmatprep.subr.bf16.mxu0 0
        %3960 = vmatpush1.bf16.msra.mxu0 0
        %3961 = vmatprep.mubr.bf16.mxu0 0
        %3962 = vmatmul.mubr.bf16.gmra.mrb[0].mxu0 %v3927
        %v3963 = vpop.f32.mrb[0].mxu0
        %v3964 = vadd.f32 0.0, %v3963
        %v3965 = vpop.f32.mrb[0].mxu0
        %v3966 = vadd.f32 0.0, %v3965
        %v3967 = vpop.f32.mrb[0].mxu0
        %v3968 = vadd.f32 0.0, %v3967
        %v3969 = vpop.f32.mrb[0].mxu0
        %v3970 = vadd.f32 0.0, %v3969
        %3971 = vdwg.mxu0
        %3972 = vmatprep.subr.bf16.mxu0 0
        %3973 = vmatpush1.bf16.msra.mxu0 %v3922
        %3974 = vmatprep.subr.bf16.mxu0 0
        %3975 = vmatpush1.bf16.msra.mxu0 0
        %3976 = vmatprep.subr.bf16.mxu0 0
        %3977 = vmatpush1.bf16.msra.mxu0 0
        %3978 = vmatprep.subr.bf16.mxu0 0
        %3979 = vmatpush1.bf16.msra.mxu0 0
        %3980 = vmatprep.subr.bf16.mxu0 0
        %3981 = vmatpush1.bf16.msra.mxu0 0
        %3982 = vmatprep.subr.bf16.mxu0 0
        %3983 = vmatpush1.bf16.msra.mxu0 0
        %3984 = vmatprep.subr.bf16.mxu0 0
        %3985 = vmatpush1.bf16.msra.mxu0 0
        %3986 = vmatprep.subr.bf16.mxu0 0
        %3987 = vmatpush1.bf16.msra.mxu0 0
        %3988 = vmatprep.subr.bf16.mxu0 0
        %3989 = vmatpush1.bf16.msra.mxu0 0
        %3990 = vmatprep.subr.bf16.mxu0 0
        %3991 = vmatpush1.bf16.msra.mxu0 0
        %3992 = vmatprep.subr.bf16.mxu0 0
        %3993 = vmatpush1.bf16.msra.mxu0 0
        %3994 = vmatprep.subr.bf16.mxu0 0
        %3995 = vmatpush1.bf16.msra.mxu0 0
        %3996 = vmatprep.subr.bf16.mxu0 0
        %3997 = vmatpush1.bf16.msra.mxu0 0
        %3998 = vmatprep.subr.bf16.mxu0 0
        %3999 = vmatpush1.bf16.msra.mxu0 0
        %4000 = vmatprep.subr.bf16.mxu0 0
        %4001 = vmatpush1.bf16.msra.mxu0 0
        %4002 = vmatprep.subr.bf16.mxu0 0
        %4003 = vmatpush1.bf16.msra.mxu0 0
        %4004 = vmatprep.mubr.bf16.mxu0 0
        %4005 = vmatmul.mubr.bf16.gmra.mrb[0].mxu0 %v3927
        %v4006 = vpop.f32.mrb[0].mxu0
        %v4007 = vadd.f32 0.0, %v4006
        %v4008 = vpop.f32.mrb[0].mxu0
        %v4009 = vpop.f32.mrb[0].mxu0
        %v4010 = vadd.f32 0.0, %v4009
        %v4011 = vpop.f32.mrb[0].mxu0
        %4012 = vdwg.mxu0
        %v4015 = vunpack.c.l.b16 %v3898
        %v4016 = vunpack.c.l.b16 %v3899
        %v4017 = vpack.c.b16 %v4016, %v4015
        %4018 = vrot.lane.b32.xlu0 %v3894, 19
        %v4019 = vpop.permute.xlu0 %4018
        %4020 = vrot.lane.b32.xlu0 %v3895, 19
        %v4021 = vpop.permute.xlu0 %4020
        %4022 = vrot.lane.b32.xlu0 %v3896, 19
        %v4023 = vpop.permute.xlu0 %4022
        %4024 = vrot.lane.b32.xlu0 %v3897, 19
        %v4025 = vpop.permute.xlu0 %4024
        %v4026 = vsel %vm823, %v4019, %v4021
        %v4027 = vsel %vm823, %v4021, %v4023
        %v4028 = vsel %vm823, %v4023, %v4025
        %v4033 = vsel %vm722, %v4017, 0
        %4035 = vmatprep.subr.bf16.mxu0 %v4027
        %4036 = vmatpush1.bf16.msra.mxu0 %v4026
        %4037 = vmatprep.subr.bf16.mxu0 0
        %4038 = vmatpush1.bf16.msra.mxu0 0
        %4039 = vmatprep.subr.bf16.mxu0 0
        %4040 = vmatpush1.bf16.msra.mxu0 0
        %4041 = vmatprep.subr.bf16.mxu0 0
        %4042 = vmatpush1.bf16.msra.mxu0 0
        %4043 = vmatprep.subr.bf16.mxu0 0
        %4044 = vmatpush1.bf16.msra.mxu0 0
        %4045 = vmatprep.subr.bf16.mxu0 0
        %4046 = vmatpush1.bf16.msra.mxu0 0
        %4047 = vmatprep.subr.bf16.mxu0 0
        %4048 = vmatpush1.bf16.msra.mxu0 0
        %4049 = vmatprep.subr.bf16.mxu0 0
        %4050 = vmatpush1.bf16.msra.mxu0 0
        %4051 = vmatprep.subr.bf16.mxu0 0
        %4052 = vmatpush1.bf16.msra.mxu0 0
        %4053 = vmatprep.subr.bf16.mxu0 0
        %4054 = vmatpush1.bf16.msra.mxu0 0
        %4055 = vmatprep.subr.bf16.mxu0 0
        %4056 = vmatpush1.bf16.msra.mxu0 0
        %4057 = vmatprep.subr.bf16.mxu0 0
        %4058 = vmatpush1.bf16.msra.mxu0 0
        %4059 = vmatprep.subr.bf16.mxu0 0
        %4060 = vmatpush1.bf16.msra.mxu0 0
        %4061 = vmatprep.subr.bf16.mxu0 0
        %4062 = vmatpush1.bf16.msra.mxu0 0
        %4063 = vmatprep.subr.bf16.mxu0 0
        %4064 = vmatpush1.bf16.msra.mxu0 0
        %4065 = vmatprep.subr.bf16.mxu0 0
        %4066 = vmatpush1.bf16.msra.mxu0 0
        %4067 = vmatprep.mubr.bf16.mxu0 0
        %4068 = vmatmul.mubr.bf16.gmra.mrb[0].mxu0 %v4033
        %v4069 = vpop.f32.mrb[0].mxu0
        %v4070 = vadd.f32 %v3964, %v4069
        %v4071 = vpop.f32.mrb[0].mxu0
        %v4072 = vadd.f32 %v3966, %v4071
        %v4073 = vpop.f32.mrb[0].mxu0
        %v4074 = vadd.f32 %v3968, %v4073
        %v4075 = vpop.f32.mrb[0].mxu0
        %v4076 = vadd.f32 %v3970, %v4075
        %4077 = vdwg.mxu0
        %4078 = vmatprep.subr.bf16.mxu0 0
        %4079 = vmatpush1.bf16.msra.mxu0 %v4028
        %4080 = vmatprep.subr.bf16.mxu0 0
        %4081 = vmatpush1.bf16.msra.mxu0 0
        %4082 = vmatprep.subr.bf16.mxu0 0
        %4083 = vmatpush1.bf16.msra.mxu0 0
        %4084 = vmatprep.subr.bf16.mxu0 0
        %4085 = vmatpush1.bf16.msra.mxu0 0
        %4086 = vmatprep.subr.bf16.mxu0 0
        %4087 = vmatpush1.bf16.msra.mxu0 0
        %4088 = vmatprep.subr.bf16.mxu0 0
        %4089 = vmatpush1.bf16.msra.mxu0 0
        %4090 = vmatprep.subr.bf16.mxu0 0
        %4091 = vmatpush1.bf16.msra.mxu0 0
        %4092 = vmatprep.subr.bf16.mxu0 0
        %4093 = vmatpush1.bf16.msra.mxu0 0
        %4094 = vmatprep.subr.bf16.mxu0 0
        %4095 = vmatpush1.bf16.msra.mxu0 0
        %4096 = vmatprep.subr.bf16.mxu0 0
        %4097 = vmatpush1.bf16.msra.mxu0 0
        %4098 = vmatprep.subr.bf16.mxu0 0
        %4099 = vmatpush1.bf16.msra.mxu0 0
        %4100 = vmatprep.subr.bf16.mxu0 0
        %4101 = vmatpush1.bf16.msra.mxu0 0
        %4102 = vmatprep.subr.bf16.mxu0 0
        %4103 = vmatpush1.bf16.msra.mxu0 0
        %4104 = vmatprep.subr.bf16.mxu0 0
        %4105 = vmatpush1.bf16.msra.mxu0 0
        %4106 = vmatprep.subr.bf16.mxu0 0
        %4107 = vmatpush1.bf16.msra.mxu0 0
        %4108 = vmatprep.subr.bf16.mxu0 0
        %4109 = vmatpush1.bf16.msra.mxu0 0
        %4110 = vmatprep.mubr.bf16.mxu0 0
        %4111 = vmatmul.mubr.bf16.gmra.mrb[0].mxu0 %v4033
        %v4112 = vpop.f32.mrb[0].mxu0
        %v4113 = vadd.f32 %v4007, %v4112
        %v4114 = vpop.f32.mrb[0].mxu0
        %v4115 = vpop.f32.mrb[0].mxu0
        %v4116 = vadd.f32 %v4010, %v4115
        %v4117 = vpop.f32.mrb[0].mxu0
        %4118 = vdwg.mxu0
        %s4119 = scalar_lea.vmem [#allocation9], 16
        %v4120 = vld [vmem:[%s4119] sm:$0xf]
        %v4121 = vld [vmem:[%s4119 + $0x4] sm:$0xf]
        %v4124 = vunpack.c.l.b16 %v4120
        %v4125 = vunpack.c.l.b16 %v4121
        %v4126 = vpack.c.b16 %v4125, %v4124
        %4127 = vrot.lane.b32.xlu0 %v3894, 17
        %v4128 = vpop.permute.xlu0 %4127
        %4129 = vrot.lane.b32.xlu0 %v3895, 17
        %v4130 = vpop.permute.xlu0 %4129
        %4131 = vrot.lane.b32.xlu0 %v3896, 17
        %v4132 = vpop.permute.xlu0 %4131
        %4133 = vrot.lane.b32.xlu0 %v3897, 17
        %v4134 = vpop.permute.xlu0 %4133
        %v4135 = vsel %vm933, %v4128, %v4130
        %v4136 = vsel %vm933, %v4130, %v4132
        %v4137 = vsel %vm933, %v4132, %v4134
        %v4142 = vsel %vm722, %v4126, 0
        %4144 = vmatprep.subr.bf16.mxu0 %v4136
        %4145 = vmatpush1.bf16.msra.mxu0 %v4135
        %4146 = vmatprep.subr.bf16.mxu0 0
        %4147 = vmatpush1.bf16.msra.mxu0 0
        %4148 = vmatprep.subr.bf16.mxu0 0
        %4149 = vmatpush1.bf16.msra.mxu0 0
        %4150 = vmatprep.subr.bf16.mxu0 0
        %4151 = vmatpush1.bf16.msra.mxu0 0
        %4152 = vmatprep.subr.bf16.mxu0 0
        %4153 = vmatpush1.bf16.msra.mxu0 0
        %4154 = vmatprep.subr.bf16.mxu0 0
        %4155 = vmatpush1.bf16.msra.mxu0 0
        %4156 = vmatprep.subr.bf16.mxu0 0
        %4157 = vmatpush1.bf16.msra.mxu0 0
        %4158 = vmatprep.subr.bf16.mxu0 0
        %4159 = vmatpush1.bf16.msra.mxu0 0
        %4160 = vmatprep.subr.bf16.mxu0 0
        %4161 = vmatpush1.bf16.msra.mxu0 0
        %4162 = vmatprep.subr.bf16.mxu0 0
        %4163 = vmatpush1.bf16.msra.mxu0 0
        %4164 = vmatprep.subr.bf16.mxu0 0
        %4165 = vmatpush1.bf16.msra.mxu0 0
        %4166 = vmatprep.subr.bf16.mxu0 0
        %4167 = vmatpush1.bf16.msra.mxu0 0
        %4168 = vmatprep.subr.bf16.mxu0 0
        %4169 = vmatpush1.bf16.msra.mxu0 0
        %4170 = vmatprep.subr.bf16.mxu0 0
        %4171 = vmatpush1.bf16.msra.mxu0 0
        %4172 = vmatprep.subr.bf16.mxu0 0
        %4173 = vmatpush1.bf16.msra.mxu0 0
        %4174 = vmatprep.subr.bf16.mxu0 0
        %4175 = vmatpush1.bf16.msra.mxu0 0
        %4176 = vmatprep.mubr.bf16.mxu0 0
        %4177 = vmatmul.mubr.bf16.gmra.mrb[0].mxu0 %v4142
        %v4178 = vpop.f32.mrb[0].mxu0
        %v4179 = vadd.f32 0.0, %v4178
        %v4180 = vpop.f32.mrb[0].mxu0
        %v4181 = vadd.f32 0.0, %v4180
        %v4182 = vpop.f32.mrb[0].mxu0
        %v4183 = vadd.f32 0.0, %v4182
        %v4184 = vpop.f32.mrb[0].mxu0
        %v4185 = vadd.f32 0.0, %v4184
        %4186 = vdwg.mxu0
        %4187 = vmatprep.subr.bf16.mxu0 0
        %4188 = vmatpush1.bf16.msra.mxu0 %v4137
        %4189 = vmatprep.subr.bf16.mxu0 0
        %4190 = vmatpush1.bf16.msra.mxu0 0
        %4191 = vmatprep.subr.bf16.mxu0 0
        %4192 = vmatpush1.bf16.msra.mxu0 0
        %4193 = vmatprep.subr.bf16.mxu0 0
        %4194 = vmatpush1.bf16.msra.mxu0 0
        %4195 = vmatprep.subr.bf16.mxu0 0
        %4196 = vmatpush1.bf16.msra.mxu0 0
        %4197 = vmatprep.subr.bf16.mxu0 0
        %4198 = vmatpush1.bf16.msra.mxu0 0
        %4199 = vmatprep.subr.bf16.mxu0 0
        %4200 = vmatpush1.bf16.msra.mxu0 0
        %4201 = vmatprep.subr.bf16.mxu0 0
        %4202 = vmatpush1.bf16.msra.mxu0 0
        %4203 = vmatprep.subr.bf16.mxu0 0
        %4204 = vmatpush1.bf16.msra.mxu0 0
        %4205 = vmatprep.subr.bf16.mxu0 0
        %4206 = vmatpush1.bf16.msra.mxu0 0
        %4207 = vmatprep.subr.bf16.mxu0 0
        %4208 = vmatpush1.bf16.msra.mxu0 0
        %4209 = vmatprep.subr.bf16.mxu0 0
        %4210 = vmatpush1.bf16.msra.mxu0 0
        %4211 = vmatprep.subr.bf16.mxu0 0
        %4212 = vmatpush1.bf16.msra.mxu0 0
        %4213 = vmatprep.subr.bf16.mxu0 0
        %4214 = vmatpush1.bf16.msra.mxu0 0
        %4215 = vmatprep.subr.bf16.mxu0 0
        %4216 = vmatpush1.bf16.msra.mxu0 0
        %4217 = vmatprep.subr.bf16.mxu0 0
        %4218 = vmatpush1.bf16.msra.mxu0 0
        %4219 = vmatprep.mubr.bf16.mxu0 0
        %4220 = vmatmul.mubr.bf16.gmra.mrb[0].mxu0 %v4142
        %v4221 = vpop.f32.mrb[0].mxu0
        %v4222 = vadd.f32 0.0, %v4221
        %v4223 = vpop.f32.mrb[0].mxu0
        %v4224 = vpop.f32.mrb[0].mxu0
        %v4225 = vadd.f32 0.0, %v4224
        %v4226 = vpop.f32.mrb[0].mxu0
        %4227 = vdwg.mxu0
        %v4228 = vadd.f32 %v4070, %v4179
        %v4229 = vadd.f32 %v4072, %v4181
        %v4230 = vadd.f32 %v4113, %v4222
        %v4231 = vadd.f32 %v4074, %v4183
        %v4232 = vadd.f32 %v4076, %v4185
        %v4233 = vadd.f32 %v4116, %v4225
        %s4234 = scalar_lea.vmem [#allocation9], 24
        %v4235 = vld [vmem:[%s4234] sm:$0xf]
        %v4236 = vld [vmem:[%s4234 + $0x4] sm:$0xf]
        %v4239 = vunpack.c.l.b16 %v4235
        %v4240 = vunpack.c.l.b16 %v4236
        %v4241 = vpack.c.b16 %v4240, %v4239
        %4242 = vrot.lane.b32.xlu0 %v3894, 1
        %v4243 = vpop.permute.xlu0 %4242
        %4244 = vrot.lane.b32.xlu0 %v3895, 1
        %v4245 = vpop.permute.xlu0 %4244
        %4246 = vrot.lane.b32.xlu0 %v3896, 1
        %v4247 = vpop.permute.xlu0 %4246
        %4248 = vrot.lane.b32.xlu0 %v3897, 1
        %v4249 = vpop.permute.xlu0 %4248
        %v4250 = vsel %vm1049, %v4243, %v4245
        %v4251 = vsel %vm1049, %v4245, %v4247
        %v4252 = vsel %vm1049, %v4247, %v4249
        %v4257 = vsel %vm722, %v4241, 0
        %4259 = vmatprep.subr.bf16.mxu0 %v4251
        %4260 = vmatpush1.bf16.msra.mxu0 %v4250
        %4261 = vmatprep.subr.bf16.mxu0 0
        %4262 = vmatpush1.bf16.msra.mxu0 0
        %4263 = vmatprep.subr.bf16.mxu0 0
        %4264 = vmatpush1.bf16.msra.mxu0 0
        %4265 = vmatprep.subr.bf16.mxu0 0
        %4266 = vmatpush1.bf16.msra.mxu0 0
        %4267 = vmatprep.subr.bf16.mxu0 0
        %4268 = vmatpush1.bf16.msra.mxu0 0
        %4269 = vmatprep.subr.bf16.mxu0 0
        %4270 = vmatpush1.bf16.msra.mxu0 0
        %4271 = vmatprep.subr.bf16.mxu0 0
        %4272 = vmatpush1.bf16.msra.mxu0 0
        %4273 = vmatprep.subr.bf16.mxu0 0
        %4274 = vmatpush1.bf16.msra.mxu0 0
        %4275 = vmatprep.subr.bf16.mxu0 0
        %4276 = vmatpush1.bf16.msra.mxu0 0
        %4277 = vmatprep.subr.bf16.mxu0 0
        %4278 = vmatpush1.bf16.msra.mxu0 0
        %4279 = vmatprep.subr.bf16.mxu0 0
        %4280 = vmatpush1.bf16.msra.mxu0 0
        %4281 = vmatprep.subr.bf16.mxu0 0
        %4282 = vmatpush1.bf16.msra.mxu0 0
        %4283 = vmatprep.subr.bf16.mxu0 0
        %4284 = vmatpush1.bf16.msra.mxu0 0
        %4285 = vmatprep.subr.bf16.mxu0 0
        %4286 = vmatpush1.bf16.msra.mxu0 0
        %4287 = vmatprep.subr.bf16.mxu0 0
        %4288 = vmatpush1.bf16.msra.mxu0 0
        %4289 = vmatprep.subr.bf16.mxu0 0
        %4290 = vmatpush1.bf16.msra.mxu0 0
        %4291 = vmatprep.mubr.bf16.mxu0 0
        %4292 = vmatmul.mubr.bf16.gmra.mrb[0].mxu0 %v4257
        %v4293 = vpop.f32.mrb[0].mxu0
        %v4294 = vadd.f32 0.0, %v4293
        %v4295 = vpop.f32.mrb[0].mxu0
        %v4296 = vadd.f32 0.0, %v4295
        %v4297 = vpop.f32.mrb[0].mxu0
        %v4298 = vadd.f32 0.0, %v4297
        %v4299 = vpop.f32.mrb[0].mxu0
        %v4300 = vadd.f32 0.0, %v4299
        %4301 = vdwg.mxu0
        %4302 = vmatprep.subr.bf16.mxu0 0
        %4303 = vmatpush1.bf16.msra.mxu0 %v4252
        %4304 = vmatprep.subr.bf16.mxu0 0
        %4305 = vmatpush1.bf16.msra.mxu0 0
        %4306 = vmatprep.subr.bf16.mxu0 0
        %4307 = vmatpush1.bf16.msra.mxu0 0
        %4308 = vmatprep.subr.bf16.mxu0 0
        %4309 = vmatpush1.bf16.msra.mxu0 0
        %4310 = vmatprep.subr.bf16.mxu0 0
        %4311 = vmatpush1.bf16.msra.mxu0 0
        %4312 = vmatprep.subr.bf16.mxu0 0
        %4313 = vmatpush1.bf16.msra.mxu0 0
        %4314 = vmatprep.subr.bf16.mxu0 0
        %4315 = vmatpush1.bf16.msra.mxu0 0
        %4316 = vmatprep.subr.bf16.mxu0 0
        %4317 = vmatpush1.bf16.msra.mxu0 0
        %4318 = vmatprep.subr.bf16.mxu0 0
        %4319 = vmatpush1.bf16.msra.mxu0 0
        %4320 = vmatprep.subr.bf16.mxu0 0
        %4321 = vmatpush1.bf16.msra.mxu0 0
        %4322 = vmatprep.subr.bf16.mxu0 0
        %4323 = vmatpush1.bf16.msra.mxu0 0
        %4324 = vmatprep.subr.bf16.mxu0 0
        %4325 = vmatpush1.bf16.msra.mxu0 0
        %4326 = vmatprep.subr.bf16.mxu0 0
        %4327 = vmatpush1.bf16.msra.mxu0 0
        %4328 = vmatprep.subr.bf16.mxu0 0
        %4329 = vmatpush1.bf16.msra.mxu0 0
        %4330 = vmatprep.subr.bf16.mxu0 0
        %4331 = vmatpush1.bf16.msra.mxu0 0
        %4332 = vmatprep.subr.bf16.mxu0 0
        %4333 = vmatpush1.bf16.msra.mxu0 0
        %4334 = vmatprep.mubr.bf16.mxu0 0
        %4335 = vmatmul.mubr.bf16.gmra.mrb[0].mxu0 %v4257
        %v4336 = vpop.f32.mrb[0].mxu0
        %v4337 = vadd.f32 0.0, %v4336
        %v4338 = vpop.f32.mrb[0].mxu0
        %v4339 = vpop.f32.mrb[0].mxu0
        %v4340 = vadd.f32 0.0, %v4339
        %v4341 = vpop.f32.mrb[0].mxu0
        %4342 = vdwg.mxu0
        %v4343 = vadd.f32 %v4228, %v4294
        %v4344 = vadd.f32 %v4229, %v4296
        %v4345 = vadd.f32 %v4230, %v4337
        %v4346 = vadd.f32 %v4231, %v4298
        %v4347 = vadd.f32 %v4232, %v4300
        %v4348 = vadd.f32 %v4233, %v4340
        %s4349 = scalar_lea.vmem [#allocation9], 32
        %v4350 = vld [vmem:[%s4349] sm:$0xf]
        %v4351 = vld [vmem:[%s4349 + $0x4] sm:$0xf]
        %v4354 = vunpack.c.l.b16 %v4350
        %v4355 = vunpack.c.l.b16 %v4351
        %v4356 = vpack.c.b16 %v4355, %v4354
        %v4358 = vsel %vm722, %v4356, 0
        %4360 = vmatprep.subr.bf16.mxu0 %v3896
        %4361 = vmatpush1.bf16.msra.mxu0 %v3895
        %4362 = vmatprep.subr.bf16.mxu0 0
        %4363 = vmatpush1.bf16.msra.mxu0 0
        %4364 = vmatprep.subr.bf16.mxu0 0
        %4365 = vmatpush1.bf16.msra.mxu0 0
        %4366 = vmatprep.subr.bf16.mxu0 0
        %4367 = vmatpush1.bf16.msra.mxu0 0
        %4368 = vmatprep.subr.bf16.mxu0 0
        %4369 = vmatpush1.bf16.msra.mxu0 0
        %4370 = vmatprep.subr.bf16.mxu0 0
        %4371 = vmatpush1.bf16.msra.mxu0 0
        %4372 = vmatprep.subr.bf16.mxu0 0
        %4373 = vmatpush1.bf16.msra.mxu0 0
        %4374 = vmatprep.subr.bf16.mxu0 0
        %4375 = vmatpush1.bf16.msra.mxu0 0
        %4376 = vmatprep.subr.bf16.mxu0 0
        %4377 = vmatpush1.bf16.msra.mxu0 0
        %4378 = vmatprep.subr.bf16.mxu0 0
        %4379 = vmatpush1.bf16.msra.mxu0 0
        %4380 = vmatprep.subr.bf16.mxu0 0
        %4381 = vmatpush1.bf16.msra.mxu0 0
        %4382 = vmatprep.subr.bf16.mxu0 0
        %4383 = vmatpush1.bf16.msra.mxu0 0
        %4384 = vmatprep.subr.bf16.mxu0 0
        %4385 = vmatpush1.bf16.msra.mxu0 0
        %4386 = vmatprep.subr.bf16.mxu0 0
        %4387 = vmatpush1.bf16.msra.mxu0 0
        %4388 = vmatprep.subr.bf16.mxu0 0
        %4389 = vmatpush1.bf16.msra.mxu0 0
        %4390 = vmatprep.subr.bf16.mxu0 0
        %4391 = vmatpush1.bf16.msra.mxu0 0
        %4392 = vmatprep.mubr.bf16.mxu0 0
        %4393 = vmatmul.mubr.bf16.gmra.mrb[0].mxu0 %v4358
        %v4394 = vpop.f32.mrb[0].mxu0
        %v4395 = vadd.f32 0.0, %v4394
        %v4396 = vpop.f32.mrb[0].mxu0
        %v4397 = vadd.f32 0.0, %v4396
        %v4398 = vpop.f32.mrb[0].mxu0
        %v4399 = vadd.f32 0.0, %v4398
        %v4400 = vpop.f32.mrb[0].mxu0
        %v4401 = vadd.f32 0.0, %v4400
        %4402 = vdwg.mxu0
        %4403 = vmatprep.subr.bf16.mxu0 0
        %4404 = vmatpush1.bf16.msra.mxu0 %v3897
        %4405 = vmatprep.subr.bf16.mxu0 0
        %4406 = vmatpush1.bf16.msra.mxu0 0
        %4407 = vmatprep.subr.bf16.mxu0 0
        %4408 = vmatpush1.bf16.msra.mxu0 0
        %4409 = vmatprep.subr.bf16.mxu0 0
        %4410 = vmatpush1.bf16.msra.mxu0 0
        %4411 = vmatprep.subr.bf16.mxu0 0
        %4412 = vmatpush1.bf16.msra.mxu0 0
        %4413 = vmatprep.subr.bf16.mxu0 0
        %4414 = vmatpush1.bf16.msra.mxu0 0
        %4415 = vmatprep.subr.bf16.mxu0 0
        %4416 = vmatpush1.bf16.msra.mxu0 0
        %4417 = vmatprep.subr.bf16.mxu0 0
        %4418 = vmatpush1.bf16.msra.mxu0 0
        %4419 = vmatprep.subr.bf16.mxu0 0
        %4420 = vmatpush1.bf16.msra.mxu0 0
        %4421 = vmatprep.subr.bf16.mxu0 0
        %4422 = vmatpush1.bf16.msra.mxu0 0
        %4423 = vmatprep.subr.bf16.mxu0 0
        %4424 = vmatpush1.bf16.msra.mxu0 0
        %4425 = vmatprep.subr.bf16.mxu0 0
        %4426 = vmatpush1.bf16.msra.mxu0 0
        %4427 = vmatprep.subr.bf16.mxu0 0
        %4428 = vmatpush1.bf16.msra.mxu0 0
        %4429 = vmatprep.subr.bf16.mxu0 0
        %4430 = vmatpush1.bf16.msra.mxu0 0
        %4431 = vmatprep.subr.bf16.mxu0 0
        %4432 = vmatpush1.bf16.msra.mxu0 0
        %4433 = vmatprep.subr.bf16.mxu0 0
        %4434 = vmatpush1.bf16.msra.mxu0 0
        %4435 = vmatprep.mubr.bf16.mxu0 0
        %4436 = vmatmul.mubr.bf16.gmra.mrb[0].mxu0 %v4358
        %v4437 = vpop.f32.mrb[0].mxu0
        %v4438 = vadd.f32 0.0, %v4437
        %v4439 = vpop.f32.mrb[0].mxu0
        %v4440 = vpop.f32.mrb[0].mxu0
        %v4441 = vadd.f32 0.0, %v4440
        %v4442 = vpop.f32.mrb[0].mxu0
        %4443 = vdwg.mxu0
        %v4444 = vadd.f32 %v4343, %v4395
        %v4445 = vadd.f32 %v4344, %v4397
        %v4446 = vadd.f32 %v4345, %v4438
        %v4447 = vadd.f32 %v4346, %v4399
        %v4448 = vadd.f32 %v4347, %v4401
        %v4449 = vadd.f32 %v4348, %v4441
        %v4450 = vld [vmem:[#allocation2 + $0x80] sm:$0xff]
        %v4451 = vld [vmem:[#allocation2 + $0x88] sm:$0xff]
        %v4452 = vld [vmem:[#allocation2 + $0x90] sm:$0xff]
        %v4453 = vld [vmem:[#allocation2 + $0x98] sm:$0xff]
        %s4454 = scalar_lea.vmem [#allocation9], 40
        %v4455 = vld [vmem:[%s4454] sm:$0xf]
        %v4456 = vld [vmem:[%s4454 + $0x4] sm:$0xf]
        %v4459 = vunpack.c.l.b16 %v4455
        %v4460 = vunpack.c.l.b16 %v4456
        %v4461 = vpack.c.b16 %v4460, %v4459
        %4466 = vrot.lane.b32.xlu0 %v4450, 127
        %v4467 = vpop.permute.xlu0 %4466
        %4468 = vrot.lane.b32.xlu0 %v4451, 127
        %v4469 = vpop.permute.xlu0 %4468
        %4470 = vrot.lane.b32.xlu0 %v4452, 127
        %v4471 = vpop.permute.xlu0 %4470
        %4472 = vrot.lane.b32.xlu0 %v4453, 127
        %v4473 = vpop.permute.xlu0 %4472
        %v4474 = vsel %vm1274, %v4467, %v4469
        %v4475 = vsel %vm1274, %v4469, %v4471
        %v4476 = vsel %vm1274, %v4471, %v4473
        %v4481 = vsel %vm722, %v4461, 0
        %4483 = vmatprep.subr.bf16.mxu0 %v4475
        %4484 = vmatpush1.bf16.msra.mxu0 %v4474
        %4485 = vmatprep.subr.bf16.mxu0 0
        %4486 = vmatpush1.bf16.msra.mxu0 0
        %4487 = vmatprep.subr.bf16.mxu0 0
        %4488 = vmatpush1.bf16.msra.mxu0 0
        %4489 = vmatprep.subr.bf16.mxu0 0
        %4490 = vmatpush1.bf16.msra.mxu0 0
        %4491 = vmatprep.subr.bf16.mxu0 0
        %4492 = vmatpush1.bf16.msra.mxu0 0
        %4493 = vmatprep.subr.bf16.mxu0 0
        %4494 = vmatpush1.bf16.msra.mxu0 0
        %4495 = vmatprep.subr.bf16.mxu0 0
        %4496 = vmatpush1.bf16.msra.mxu0 0
        %4497 = vmatprep.subr.bf16.mxu0 0
        %4498 = vmatpush1.bf16.msra.mxu0 0
        %4499 = vmatprep.subr.bf16.mxu0 0
        %4500 = vmatpush1.bf16.msra.mxu0 0
        %4501 = vmatprep.subr.bf16.mxu0 0
        %4502 = vmatpush1.bf16.msra.mxu0 0
        %4503 = vmatprep.subr.bf16.mxu0 0
        %4504 = vmatpush1.bf16.msra.mxu0 0
        %4505 = vmatprep.subr.bf16.mxu0 0
        %4506 = vmatpush1.bf16.msra.mxu0 0
        %4507 = vmatprep.subr.bf16.mxu0 0
        %4508 = vmatpush1.bf16.msra.mxu0 0
        %4509 = vmatprep.subr.bf16.mxu0 0
        %4510 = vmatpush1.bf16.msra.mxu0 0
        %4511 = vmatprep.subr.bf16.mxu0 0
        %4512 = vmatpush1.bf16.msra.mxu0 0
        %4513 = vmatprep.subr.bf16.mxu0 0
        %4514 = vmatpush1.bf16.msra.mxu0 0
        %4515 = vmatprep.mubr.bf16.mxu0 0
        %4516 = vmatmul.mubr.bf16.gmra.mrb[0].mxu0 %v4481
        %v4517 = vpop.f32.mrb[0].mxu0
        %v4518 = vadd.f32 0.0, %v4517
        %v4519 = vpop.f32.mrb[0].mxu0
        %v4520 = vadd.f32 0.0, %v4519
        %v4521 = vpop.f32.mrb[0].mxu0
        %v4522 = vadd.f32 0.0, %v4521
        %v4523 = vpop.f32.mrb[0].mxu0
        %v4524 = vadd.f32 0.0, %v4523
        %4525 = vdwg.mxu0
        %4526 = vmatprep.subr.bf16.mxu0 0
        %4527 = vmatpush1.bf16.msra.mxu0 %v4476
        %4528 = vmatprep.subr.bf16.mxu0 0
        %4529 = vmatpush1.bf16.msra.mxu0 0
        %4530 = vmatprep.subr.bf16.mxu0 0
        %4531 = vmatpush1.bf16.msra.mxu0 0
        %4532 = vmatprep.subr.bf16.mxu0 0
        %4533 = vmatpush1.bf16.msra.mxu0 0
        %4534 = vmatprep.subr.bf16.mxu0 0
        %4535 = vmatpush1.bf16.msra.mxu0 0
        %4536 = vmatprep.subr.bf16.mxu0 0
        %4537 = vmatpush1.bf16.msra.mxu0 0
        %4538 = vmatprep.subr.bf16.mxu0 0
        %4539 = vmatpush1.bf16.msra.mxu0 0
        %4540 = vmatprep.subr.bf16.mxu0 0
        %4541 = vmatpush1.bf16.msra.mxu0 0
        %4542 = vmatprep.subr.bf16.mxu0 0
        %4543 = vmatpush1.bf16.msra.mxu0 0
        %4544 = vmatprep.subr.bf16.mxu0 0
        %4545 = vmatpush1.bf16.msra.mxu0 0
        %4546 = vmatprep.subr.bf16.mxu0 0
        %4547 = vmatpush1.bf16.msra.mxu0 0
        %4548 = vmatprep.subr.bf16.mxu0 0
        %4549 = vmatpush1.bf16.msra.mxu0 0
        %4550 = vmatprep.subr.bf16.mxu0 0
        %4551 = vmatpush1.bf16.msra.mxu0 0
        %4552 = vmatprep.subr.bf16.mxu0 0
        %4553 = vmatpush1.bf16.msra.mxu0 0
        %4554 = vmatprep.subr.bf16.mxu0 0
        %4555 = vmatpush1.bf16.msra.mxu0 0
        %4556 = vmatprep.subr.bf16.mxu0 0
        %4557 = vmatpush1.bf16.msra.mxu0 0
        %4558 = vmatprep.mubr.bf16.mxu0 0
        %4559 = vmatmul.mubr.bf16.gmra.mrb[0].mxu0 %v4481
        %v4560 = vpop.f32.mrb[0].mxu0
        %v4561 = vadd.f32 0.0, %v4560
        %v4562 = vpop.f32.mrb[0].mxu0
        %v4563 = vpop.f32.mrb[0].mxu0
        %v4564 = vadd.f32 0.0, %v4563
        %v4565 = vpop.f32.mrb[0].mxu0
        %4566 = vdwg.mxu0
        %v4567 = vadd.f32 %v4444, %v4518
        %v4568 = vadd.f32 %v4445, %v4520
        %v4569 = vadd.f32 %v4446, %v4561
        %v4570 = vadd.f32 %v4447, %v4522
        %v4571 = vadd.f32 %v4448, %v4524
        %v4572 = vadd.f32 %v4449, %v4564
        %s4573 = scalar_lea.vmem [#allocation9], 48
        %v4574 = vld [vmem:[%s4573] sm:$0xf]
        %v4575 = vld [vmem:[%s4573 + $0x4] sm:$0xf]
        %v4578 = vunpack.c.l.b16 %v4574
        %v4579 = vunpack.c.l.b16 %v4575
        %v4580 = vpack.c.b16 %v4579, %v4578
        %4581 = vrot.lane.b32.xlu0 %v4450, 111
        %v4582 = vpop.permute.xlu0 %4581
        %4583 = vrot.lane.b32.xlu0 %v4451, 111
        %v4584 = vpop.permute.xlu0 %4583
        %4585 = vrot.lane.b32.xlu0 %v4452, 111
        %v4586 = vpop.permute.xlu0 %4585
        %4587 = vrot.lane.b32.xlu0 %v4453, 111
        %v4588 = vpop.permute.xlu0 %4587
        %v4589 = vsel %vm1390, %v4582, %v4584
        %v4590 = vsel %vm1390, %v4584, %v4586
        %v4591 = vsel %vm1390, %v4586, %v4588
        %v4596 = vsel %vm722, %v4580, 0
        %4598 = vmatprep.subr.bf16.mxu0 %v4590
        %4599 = vmatpush1.bf16.msra.mxu0 %v4589
        %4600 = vmatprep.subr.bf16.mxu0 0
        %4601 = vmatpush1.bf16.msra.mxu0 0
        %4602 = vmatprep.subr.bf16.mxu0 0
        %4603 = vmatpush1.bf16.msra.mxu0 0
        %4604 = vmatprep.subr.bf16.mxu0 0
        %4605 = vmatpush1.bf16.msra.mxu0 0
        %4606 = vmatprep.subr.bf16.mxu0 0
        %4607 = vmatpush1.bf16.msra.mxu0 0
        %4608 = vmatprep.subr.bf16.mxu0 0
        %4609 = vmatpush1.bf16.msra.mxu0 0
        %4610 = vmatprep.subr.bf16.mxu0 0
        %4611 = vmatpush1.bf16.msra.mxu0 0
        %4612 = vmatprep.subr.bf16.mxu0 0
        %4613 = vmatpush1.bf16.msra.mxu0 0
        %4614 = vmatprep.subr.bf16.mxu0 0
        %4615 = vmatpush1.bf16.msra.mxu0 0
        %4616 = vmatprep.subr.bf16.mxu0 0
        %4617 = vmatpush1.bf16.msra.mxu0 0
        %4618 = vmatprep.subr.bf16.mxu0 0
        %4619 = vmatpush1.bf16.msra.mxu0 0
        %4620 = vmatprep.subr.bf16.mxu0 0
        %4621 = vmatpush1.bf16.msra.mxu0 0
        %4622 = vmatprep.subr.bf16.mxu0 0
        %4623 = vmatpush1.bf16.msra.mxu0 0
        %4624 = vmatprep.subr.bf16.mxu0 0
        %4625 = vmatpush1.bf16.msra.mxu0 0
        %4626 = vmatprep.subr.bf16.mxu0 0
        %4627 = vmatpush1.bf16.msra.mxu0 0
        %4628 = vmatprep.subr.bf16.mxu0 0
        %4629 = vmatpush1.bf16.msra.mxu0 0
        %4630 = vmatprep.mubr.bf16.mxu0 0
        %4631 = vmatmul.mubr.bf16.gmra.mrb[0].mxu0 %v4596
        %v4632 = vpop.f32.mrb[0].mxu0
        %v4633 = vadd.f32 0.0, %v4632
        %v4634 = vpop.f32.mrb[0].mxu0
        %v4635 = vadd.f32 0.0, %v4634
        %v4636 = vpop.f32.mrb[0].mxu0
        %v4637 = vadd.f32 0.0, %v4636
        %v4638 = vpop.f32.mrb[0].mxu0
        %v4639 = vadd.f32 0.0, %v4638
        %4640 = vdwg.mxu0
        %4641 = vmatprep.subr.bf16.mxu0 0
        %4642 = vmatpush1.bf16.msra.mxu0 %v4591
        %4643 = vmatprep.subr.bf16.mxu0 0
        %4644 = vmatpush1.bf16.msra.mxu0 0
        %4645 = vmatprep.subr.bf16.mxu0 0
        %4646 = vmatpush1.bf16.msra.mxu0 0
        %4647 = vmatprep.subr.bf16.mxu0 0
        %4648 = vmatpush1.bf16.msra.mxu0 0
        %4649 = vmatprep.subr.bf16.mxu0 0
        %4650 = vmatpush1.bf16.msra.mxu0 0
        %4651 = vmatprep.subr.bf16.mxu0 0
        %4652 = vmatpush1.bf16.msra.mxu0 0
        %4653 = vmatprep.subr.bf16.mxu0 0
        %4654 = vmatpush1.bf16.msra.mxu0 0
        %4655 = vmatprep.subr.bf16.mxu0 0
        %4656 = vmatpush1.bf16.msra.mxu0 0
        %4657 = vmatprep.subr.bf16.mxu0 0
        %4658 = vmatpush1.bf16.msra.mxu0 0
        %4659 = vmatprep.subr.bf16.mxu0 0
        %4660 = vmatpush1.bf16.msra.mxu0 0
        %4661 = vmatprep.subr.bf16.mxu0 0
        %4662 = vmatpush1.bf16.msra.mxu0 0
        %4663 = vmatprep.subr.bf16.mxu0 0
        %4664 = vmatpush1.bf16.msra.mxu0 0
        %4665 = vmatprep.subr.bf16.mxu0 0
        %4666 = vmatpush1.bf16.msra.mxu0 0
        %4667 = vmatprep.subr.bf16.mxu0 0
        %4668 = vmatpush1.bf16.msra.mxu0 0
        %4669 = vmatprep.subr.bf16.mxu0 0
        %4670 = vmatpush1.bf16.msra.mxu0 0
        %4671 = vmatprep.subr.bf16.mxu0 0
        %4672 = vmatpush1.bf16.msra.mxu0 0
        %4673 = vmatprep.mubr.bf16.mxu0 0
        %4674 = vmatmul.mubr.bf16.gmra.mrb[0].mxu0 %v4596
        %v4675 = vpop.f32.mrb[0].mxu0
        %v4676 = vadd.f32 0.0, %v4675
        %v4677 = vpop.f32.mrb[0].mxu0
        %v4678 = vpop.f32.mrb[0].mxu0
        %v4679 = vadd.f32 0.0, %v4678
        %v4680 = vpop.f32.mrb[0].mxu0
        %4681 = vdwg.mxu0
        %v4682 = vadd.f32 %v4567, %v4633
        %v4683 = vadd.f32 %v4568, %v4635
        %v4684 = vadd.f32 %v4569, %v4676
        %v4685 = vadd.f32 %v4570, %v4637
        %v4686 = vadd.f32 %v4571, %v4639
        %v4687 = vadd.f32 %v4572, %v4679
        %s4688 = scalar_lea.vmem [#allocation9], 56
        %v4689 = vld [vmem:[%s4688] sm:$0xf]
        %v4690 = vld [vmem:[%s4688 + $0x4] sm:$0xf]
        %v4693 = vunpack.c.l.b16 %v4689
        %v4694 = vunpack.c.l.b16 %v4690
        %v4695 = vpack.c.b16 %v4694, %v4693
        %4696 = vrot.lane.b32.xlu0 %v4450, 110
        %v4697 = vpop.permute.xlu0 %4696
        %4698 = vrot.lane.b32.xlu0 %v4451, 110
        %v4699 = vpop.permute.xlu0 %4698
        %4700 = vrot.lane.b32.xlu0 %v4452, 110
        %v4701 = vpop.permute.xlu0 %4700
        %4702 = vrot.lane.b32.xlu0 %v4453, 110
        %v4703 = vpop.permute.xlu0 %4702
        %v4704 = vsel %vm1506, %v4697, %v4699
        %v4705 = vsel %vm1506, %v4699, %v4701
        %v4706 = vsel %vm1506, %v4701, %v4703
        %v4711 = vsel %vm722, %v4695, 0
        %4713 = vmatprep.subr.bf16.mxu0 %v4705
        %4714 = vmatpush1.bf16.msra.mxu0 %v4704
        %4715 = vmatprep.subr.bf16.mxu0 0
        %4716 = vmatpush1.bf16.msra.mxu0 0
        %4717 = vmatprep.subr.bf16.mxu0 0
        %4718 = vmatpush1.bf16.msra.mxu0 0
        %4719 = vmatprep.subr.bf16.mxu0 0
        %4720 = vmatpush1.bf16.msra.mxu0 0
        %4721 = vmatprep.subr.bf16.mxu0 0
        %4722 = vmatpush1.bf16.msra.mxu0 0
        %4723 = vmatprep.subr.bf16.mxu0 0
        %4724 = vmatpush1.bf16.msra.mxu0 0
        %4725 = vmatprep.subr.bf16.mxu0 0
        %4726 = vmatpush1.bf16.msra.mxu0 0
        %4727 = vmatprep.subr.bf16.mxu0 0
        %4728 = vmatpush1.bf16.msra.mxu0 0
        %4729 = vmatprep.subr.bf16.mxu0 0
        %4730 = vmatpush1.bf16.msra.mxu0 0
        %4731 = vmatprep.subr.bf16.mxu0 0
        %4732 = vmatpush1.bf16.msra.mxu0 0
        %4733 = vmatprep.subr.bf16.mxu0 0
        %4734 = vmatpush1.bf16.msra.mxu0 0
        %4735 = vmatprep.subr.bf16.mxu0 0
        %4736 = vmatpush1.bf16.msra.mxu0 0
        %4737 = vmatprep.subr.bf16.mxu0 0
        %4738 = vmatpush1.bf16.msra.mxu0 0
        %4739 = vmatprep.subr.bf16.mxu0 0
        %4740 = vmatpush1.bf16.msra.mxu0 0
        %4741 = vmatprep.subr.bf16.mxu0 0
        %4742 = vmatpush1.bf16.msra.mxu0 0
        %4743 = vmatprep.subr.bf16.mxu0 0
        %4744 = vmatpush1.bf16.msra.mxu0 0
        %4745 = vmatprep.mubr.bf16.mxu0 0
        %4746 = vmatmul.mubr.bf16.gmra.mrb[0].mxu0 %v4711
        %v4747 = vpop.f32.mrb[0].mxu0
        %v4748 = vadd.f32 0.0, %v4747
        %v4749 = vpop.f32.mrb[0].mxu0
        %v4750 = vadd.f32 0.0, %v4749
        %v4751 = vpop.f32.mrb[0].mxu0
        %v4752 = vadd.f32 0.0, %v4751
        %v4753 = vpop.f32.mrb[0].mxu0
        %v4754 = vadd.f32 0.0, %v4753
        %4755 = vdwg.mxu0
        %4756 = vmatprep.subr.bf16.mxu0 0
        %4757 = vmatpush1.bf16.msra.mxu0 %v4706
        %4758 = vmatprep.subr.bf16.mxu0 0
        %4759 = vmatpush1.bf16.msra.mxu0 0
        %4760 = vmatprep.subr.bf16.mxu0 0
        %4761 = vmatpush1.bf16.msra.mxu0 0
        %4762 = vmatprep.subr.bf16.mxu0 0
        %4763 = vmatpush1.bf16.msra.mxu0 0
        %4764 = vmatprep.subr.bf16.mxu0 0
        %4765 = vmatpush1.bf16.msra.mxu0 0
        %4766 = vmatprep.subr.bf16.mxu0 0
        %4767 = vmatpush1.bf16.msra.mxu0 0
        %4768 = vmatprep.subr.bf16.mxu0 0
        %4769 = vmatpush1.bf16.msra.mxu0 0
        %4770 = vmatprep.subr.bf16.mxu0 0
        %4771 = vmatpush1.bf16.msra.mxu0 0
        %4772 = vmatprep.subr.bf16.mxu0 0
        %4773 = vmatpush1.bf16.msra.mxu0 0
        %4774 = vmatprep.subr.bf16.mxu0 0
        %4775 = vmatpush1.bf16.msra.mxu0 0
        %4776 = vmatprep.subr.bf16.mxu0 0
        %4777 = vmatpush1.bf16.msra.mxu0 0
        %4778 = vmatprep.subr.bf16.mxu0 0
        %4779 = vmatpush1.bf16.msra.mxu0 0
        %4780 = vmatprep.subr.bf16.mxu0 0
        %4781 = vmatpush1.bf16.msra.mxu0 0
        %4782 = vmatprep.subr.bf16.mxu0 0
        %4783 = vmatpush1.bf16.msra.mxu0 0
        %4784 = vmatprep.subr.bf16.mxu0 0
        %4785 = vmatpush1.bf16.msra.mxu0 0
        %4786 = vmatprep.subr.bf16.mxu0 0
        %4787 = vmatpush1.bf16.msra.mxu0 0
        %4788 = vmatprep.mubr.bf16.mxu0 0
        %4789 = vmatmul.mubr.bf16.gmra.mrb[0].mxu0 %v4711
        %v4790 = vpop.f32.mrb[0].mxu0
        %v4791 = vadd.f32 0.0, %v4790
        %v4792 = vpop.f32.mrb[0].mxu0
        %v4793 = vpop.f32.mrb[0].mxu0
        %v4794 = vadd.f32 0.0, %v4793
        %v4795 = vpop.f32.mrb[0].mxu0
        %4796 = vdwg.mxu0
        %v4797 = vadd.f32 %v4682, %v4748
        %v4798 = vadd.f32 %v4683, %v4750
        %v4799 = vadd.f32 %v4684, %v4791
        %v4800 = vadd.f32 %v4685, %v4752
        %v4801 = vadd.f32 %v4686, %v4754
        %v4802 = vadd.f32 %v4687, %v4794
        %s4803 = scalar_lea.vmem [#allocation9], 64
        %v4804 = vld [vmem:[%s4803] sm:$0xf]
        %v4805 = vld [vmem:[%s4803 + $0x4] sm:$0xf]
        %v4808 = vunpack.c.l.b16 %v4804
        %v4809 = vunpack.c.l.b16 %v4805
        %v4810 = vpack.c.b16 %v4809, %v4808
        %4811 = vrot.lane.b32.xlu0 %v4450, 109
        %v4812 = vpop.permute.xlu0 %4811
        %4813 = vrot.lane.b32.xlu0 %v4451, 109
        %v4814 = vpop.permute.xlu0 %4813
        %4815 = vrot.lane.b32.xlu0 %v4452, 109
        %v4816 = vpop.permute.xlu0 %4815
        %4817 = vrot.lane.b32.xlu0 %v4453, 109
        %v4818 = vpop.permute.xlu0 %4817
        %v4819 = vsel %vm1622, %v4812, %v4814
        %v4820 = vsel %vm1622, %v4814, %v4816
        %v4821 = vsel %vm1622, %v4816, %v4818
        %v4826 = vsel %vm722, %v4810, 0
        %4828 = vmatprep.subr.bf16.mxu0 %v4820
        %4829 = vmatpush1.bf16.msra.mxu0 %v4819
        %4830 = vmatprep.subr.bf16.mxu0 0
        %4831 = vmatpush1.bf16.msra.mxu0 0
        %4832 = vmatprep.subr.bf16.mxu0 0
        %4833 = vmatpush1.bf16.msra.mxu0 0
        %4834 = vmatprep.subr.bf16.mxu0 0
        %4835 = vmatpush1.bf16.msra.mxu0 0
        %4836 = vmatprep.subr.bf16.mxu0 0
        %4837 = vmatpush1.bf16.msra.mxu0 0
        %4838 = vmatprep.subr.bf16.mxu0 0
        %4839 = vmatpush1.bf16.msra.mxu0 0
        %4840 = vmatprep.subr.bf16.mxu0 0
        %4841 = vmatpush1.bf16.msra.mxu0 0
        %4842 = vmatprep.subr.bf16.mxu0 0
        %4843 = vmatpush1.bf16.msra.mxu0 0
        %4844 = vmatprep.subr.bf16.mxu0 0
        %4845 = vmatpush1.bf16.msra.mxu0 0
        %4846 = vmatprep.subr.bf16.mxu0 0
        %4847 = vmatpush1.bf16.msra.mxu0 0
        %4848 = vmatprep.subr.bf16.mxu0 0
        %4849 = vmatpush1.bf16.msra.mxu0 0
        %4850 = vmatprep.subr.bf16.mxu0 0
        %4851 = vmatpush1.bf16.msra.mxu0 0
        %4852 = vmatprep.subr.bf16.mxu0 0
        %4853 = vmatpush1.bf16.msra.mxu0 0
        %4854 = vmatprep.subr.bf16.mxu0 0
        %4855 = vmatpush1.bf16.msra.mxu0 0
        %4856 = vmatprep.subr.bf16.mxu0 0
        %4857 = vmatpush1.bf16.msra.mxu0 0
        %4858 = vmatprep.subr.bf16.mxu0 0
        %4859 = vmatpush1.bf16.msra.mxu0 0
        %4860 = vmatprep.mubr.bf16.mxu0 0
        %4861 = vmatmul.mubr.bf16.gmra.mrb[0].mxu0 %v4826
        %v4862 = vpop.f32.mrb[0].mxu0
        %v4863 = vadd.f32 0.0, %v4862
        %v4864 = vpop.f32.mrb[0].mxu0
        %v4865 = vadd.f32 0.0, %v4864
        %v4866 = vpop.f32.mrb[0].mxu0
        %v4867 = vadd.f32 0.0, %v4866
        %v4868 = vpop.f32.mrb[0].mxu0
        %v4869 = vadd.f32 0.0, %v4868
        %4870 = vdwg.mxu0
        %4871 = vmatprep.subr.bf16.mxu0 0
        %4872 = vmatpush1.bf16.msra.mxu0 %v4821
        %4873 = vmatprep.subr.bf16.mxu0 0
        %4874 = vmatpush1.bf16.msra.mxu0 0
        %4875 = vmatprep.subr.bf16.mxu0 0
        %4876 = vmatpush1.bf16.msra.mxu0 0
        %4877 = vmatprep.subr.bf16.mxu0 0
        %4878 = vmatpush1.bf16.msra.mxu0 0
        %4879 = vmatprep.subr.bf16.mxu0 0
        %4880 = vmatpush1.bf16.msra.mxu0 0
        %4881 = vmatprep.subr.bf16.mxu0 0
        %4882 = vmatpush1.bf16.msra.mxu0 0
        %4883 = vmatprep.subr.bf16.mxu0 0
        %4884 = vmatpush1.bf16.msra.mxu0 0
        %4885 = vmatprep.subr.bf16.mxu0 0
        %4886 = vmatpush1.bf16.msra.mxu0 0
        %4887 = vmatprep.subr.bf16.mxu0 0
        %4888 = vmatpush1.bf16.msra.mxu0 0
        %4889 = vmatprep.subr.bf16.mxu0 0
        %4890 = vmatpush1.bf16.msra.mxu0 0
        %4891 = vmatprep.subr.bf16.mxu0 0
        %4892 = vmatpush1.bf16.msra.mxu0 0
        %4893 = vmatprep.subr.bf16.mxu0 0
        %4894 = vmatpush1.bf16.msra.mxu0 0
        %4895 = vmatprep.subr.bf16.mxu0 0
        %4896 = vmatpush1.bf16.msra.mxu0 0
        %4897 = vmatprep.subr.bf16.mxu0 0
        %4898 = vmatpush1.bf16.msra.mxu0 0
        %4899 = vmatprep.subr.bf16.mxu0 0
        %4900 = vmatpush1.bf16.msra.mxu0 0
        %4901 = vmatprep.subr.bf16.mxu0 0
        %4902 = vmatpush1.bf16.msra.mxu0 0
        %4903 = vmatprep.mubr.bf16.mxu0 0
        %4904 = vmatmul.mubr.bf16.gmra.mrb[0].mxu0 %v4826
        %v4905 = vpop.f32.mrb[0].mxu0
        %v4906 = vadd.f32 0.0, %v4905
        %v4907 = vpop.f32.mrb[0].mxu0
        %v4908 = vpop.f32.mrb[0].mxu0
        %v4909 = vadd.f32 0.0, %v4908
        %v4910 = vpop.f32.mrb[0].mxu0
        %4911 = vdwg.mxu0
        %v4912 = vadd.f32 %v4797, %v4863
        %v4913 = vadd.f32 %v4798, %v4865
        %v4914 = vadd.f32 %v4799, %v4906
        %v4915 = vadd.f32 %v4800, %v4867
        %v4916 = vadd.f32 %v4801, %v4869
        %v4917 = vadd.f32 %v4802, %v4909
        %v4918 = vld [vmem:[%s9] sm:$0xff]
        %v4919 = vld [vmem:[%s9 + $0x8] sm:$0xff]
        %4921 = vset.pattern.permute.xlu0 0
        %4922 = vperm.xlu0 %4921, %v4918
        %v4923 = vpop.permute.xlu0 %4922
        %4926 = vset.pattern.permute.xlu0 0
        %4927 = vperm.xlu0 %4926, %v4919
        %v4928 = vpop.permute.xlu0 %4927
        %v4930 = vadd.f32 %v4912, %v4923
        %v4931 = vadd.f32 %v4913, %v4923
        %v4932 = vadd.f32 %v4914, %v4923
        %v4933 = vadd.f32 %v4915, %v4928
        %v4934 = vadd.f32 %v4916, %v4928
        %v4935 = vadd.f32 %v4917, %v4928
        %v4936 = vmax.f32 %v4930, 0.0
        %v4937 = vmax.f32 %v4931, 0.0
        %v4938 = vmax.f32 %v4932, 0.0
        %v4939 = vmax.f32 %v4933, 0.0
        %v4940 = vmax.f32 %v4934, 0.0
        %v4941 = vmax.f32 %v4935, 0.0
        %v4942 = vmul.f32 %v4936, %v1750
        %v4943 = vmul.f32 %v4937, %v1754
        %v4944 = vmul.f32 %v4938, %v1758
        %v4945 = vmul.f32 %v4939, %v1750
        %v4946 = vmul.f32 %v4940, %v1754
        %v4947 = vmul.f32 %v4941, %v1758
        %v4948 = vpack.c.bf16 %v4945, %v4942
        %v4949 = vpack.c.bf16 %v4946, %v4943
        %v4950 = vpack.c.bf16 %v4947, %v4944
        %4951 = vst [vmem:[#allocation2 + $0xa8] sm:$0xff] %v4948
        %4952 = vst [vmem:[#allocation2 + $0xb0] sm:$0xff] %v4949
        %4953 = vst [vmem:[#allocation2 + $0xb8] sm:$0xff] %v4950
        %v4954 = vld [vmem:[#allocation2 + $0xa0] sm:$0xff]
        %v4955 = vld [vmem:[#allocation2 + $0xa8] sm:$0xff]
        %v4956 = vld [vmem:[#allocation2 + $0xb0] sm:$0xff]
        %v4957 = vld [vmem:[#allocation2 + $0xb8] sm:$0xff]
        %v4958 = vld [vmem:[#allocation11] sm:$0xf]
        %v4959 = vld [vmem:[#allocation11 + $0x4] sm:$0xf]
        %s4960 = scalar_lea.vmem [#allocation11], 8
        %v4961 = vld [vmem:[%s4960] sm:$0xf]
        %v4962 = vld [vmem:[%s4960 + $0x4] sm:$0xf]
        %v4965 = vunpack.c.l.b16 %v4961
        %v4966 = vunpack.c.l.b16 %v4962
        %v4967 = vpack.c.b16 %v4966, %v4965
        %4972 = vrot.lane.b32.xlu0 %v4954, 18
        %v4973 = vpop.permute.xlu0 %4972
        %4974 = vrot.lane.b32.xlu0 %v4955, 18
        %v4975 = vpop.permute.xlu0 %4974
        %4976 = vrot.lane.b32.xlu0 %v4956, 18
        %v4977 = vpop.permute.xlu0 %4976
        %4978 = vrot.lane.b32.xlu0 %v4957, 18
        %v4979 = vpop.permute.xlu0 %4978
        %v4980 = vsel %vm715, %v4973, %v4975
        %v4981 = vsel %vm715, %v4975, %v4977
        %v4982 = vsel %vm715, %v4977, %v4979
        %v4987 = vsel %vm722, %v4967, 0
        %4989 = vmatprep.subr.bf16.mxu0 %v4981
        %4990 = vmatpush1.bf16.msra.mxu0 %v4980
        %4991 = vmatprep.subr.bf16.mxu0 0
        %4992 = vmatpush1.bf16.msra.mxu0 0
        %4993 = vmatprep.subr.bf16.mxu0 0
        %4994 = vmatpush1.bf16.msra.mxu0 0
        %4995 = vmatprep.subr.bf16.mxu0 0
        %4996 = vmatpush1.bf16.msra.mxu0 0
        %4997 = vmatprep.subr.bf16.mxu0 0
        %4998 = vmatpush1.bf16.msra.mxu0 0
        %4999 = vmatprep.subr.bf16.mxu0 0
        %5000 = vmatpush1.bf16.msra.mxu0 0
        %5001 = vmatprep.subr.bf16.mxu0 0
        %5002 = vmatpush1.bf16.msra.mxu0 0
        %5003 = vmatprep.subr.bf16.mxu0 0
        %5004 = vmatpush1.bf16.msra.mxu0 0
        %5005 = vmatprep.subr.bf16.mxu0 0
        %5006 = vmatpush1.bf16.msra.mxu0 0
        %5007 = vmatprep.subr.bf16.mxu0 0
        %5008 = vmatpush1.bf16.msra.mxu0 0
        %5009 = vmatprep.subr.bf16.mxu0 0
        %5010 = vmatpush1.bf16.msra.mxu0 0
        %5011 = vmatprep.subr.bf16.mxu0 0
        %5012 = vmatpush1.bf16.msra.mxu0 0
        %5013 = vmatprep.subr.bf16.mxu0 0
        %5014 = vmatpush1.bf16.msra.mxu0 0
        %5015 = vmatprep.subr.bf16.mxu0 0
        %5016 = vmatpush1.bf16.msra.mxu0 0
        %5017 = vmatprep.subr.bf16.mxu0 0
        %5018 = vmatpush1.bf16.msra.mxu0 0
        %5019 = vmatprep.subr.bf16.mxu0 0
        %5020 = vmatpush1.bf16.msra.mxu0 0
        %5021 = vmatprep.mubr.bf16.mxu0 0
        %5022 = vmatmul.mubr.bf16.gmra.mrb[0].mxu0 %v4987
        %v5023 = vpop.f32.mrb[0].mxu0
        %v5024 = vadd.f32 0.0, %v5023
        %v5025 = vpop.f32.mrb[0].mxu0
        %v5026 = vadd.f32 0.0, %v5025
        %v5027 = vpop.f32.mrb[0].mxu0
        %v5028 = vadd.f32 0.0, %v5027
        %v5029 = vpop.f32.mrb[0].mxu0
        %v5030 = vadd.f32 0.0, %v5029
        %5031 = vdwg.mxu0
        %5032 = vmatprep.subr.bf16.mxu0 0
        %5033 = vmatpush1.bf16.msra.mxu0 %v4982
        %5034 = vmatprep.subr.bf16.mxu0 0
        %5035 = vmatpush1.bf16.msra.mxu0 0
        %5036 = vmatprep.subr.bf16.mxu0 0
        %5037 = vmatpush1.bf16.msra.mxu0 0
        %5038 = vmatprep.subr.bf16.mxu0 0
        %5039 = vmatpush1.bf16.msra.mxu0 0
        %5040 = vmatprep.subr.bf16.mxu0 0
        %5041 = vmatpush1.bf16.msra.mxu0 0
        %5042 = vmatprep.subr.bf16.mxu0 0
        %5043 = vmatpush1.bf16.msra.mxu0 0
        %5044 = vmatprep.subr.bf16.mxu0 0
        %5045 = vmatpush1.bf16.msra.mxu0 0
        %5046 = vmatprep.subr.bf16.mxu0 0
        %5047 = vmatpush1.bf16.msra.mxu0 0
        %5048 = vmatprep.subr.bf16.mxu0 0
        %5049 = vmatpush1.bf16.msra.mxu0 0
        %5050 = vmatprep.subr.bf16.mxu0 0
        %5051 = vmatpush1.bf16.msra.mxu0 0
        %5052 = vmatprep.subr.bf16.mxu0 0
        %5053 = vmatpush1.bf16.msra.mxu0 0
        %5054 = vmatprep.subr.bf16.mxu0 0
        %5055 = vmatpush1.bf16.msra.mxu0 0
        %5056 = vmatprep.subr.bf16.mxu0 0
        %5057 = vmatpush1.bf16.msra.mxu0 0
        %5058 = vmatprep.subr.bf16.mxu0 0
        %5059 = vmatpush1.bf16.msra.mxu0 0
        %5060 = vmatprep.subr.bf16.mxu0 0
        %5061 = vmatpush1.bf16.msra.mxu0 0
        %5062 = vmatprep.subr.bf16.mxu0 0
        %5063 = vmatpush1.bf16.msra.mxu0 0
        %5064 = vmatprep.mubr.bf16.mxu0 0
        %5065 = vmatmul.mubr.bf16.gmra.mrb[0].mxu0 %v4987
        %v5066 = vpop.f32.mrb[0].mxu0
        %v5067 = vadd.f32 0.0, %v5066
        %v5068 = vpop.f32.mrb[0].mxu0
        %v5069 = vpop.f32.mrb[0].mxu0
        %v5070 = vadd.f32 0.0, %v5069
        %v5071 = vpop.f32.mrb[0].mxu0
        %5072 = vdwg.mxu0
        %v5075 = vunpack.c.l.b16 %v4958
        %v5076 = vunpack.c.l.b16 %v4959
        %v5077 = vpack.c.b16 %v5076, %v5075
        %5078 = vrot.lane.b32.xlu0 %v4954, 19
        %v5079 = vpop.permute.xlu0 %5078
        %5080 = vrot.lane.b32.xlu0 %v4955, 19
        %v5081 = vpop.permute.xlu0 %5080
        %5082 = vrot.lane.b32.xlu0 %v4956, 19
        %v5083 = vpop.permute.xlu0 %5082
        %5084 = vrot.lane.b32.xlu0 %v4957, 19
        %v5085 = vpop.permute.xlu0 %5084
        %v5086 = vsel %vm823, %v5079, %v5081
        %v5087 = vsel %vm823, %v5081, %v5083
        %v5088 = vsel %vm823, %v5083, %v5085
        %v5093 = vsel %vm722, %v5077, 0
        %5095 = vmatprep.subr.bf16.mxu0 %v5087
        %5096 = vmatpush1.bf16.msra.mxu0 %v5086
        %5097 = vmatprep.subr.bf16.mxu0 0
        %5098 = vmatpush1.bf16.msra.mxu0 0
        %5099 = vmatprep.subr.bf16.mxu0 0
        %5100 = vmatpush1.bf16.msra.mxu0 0
        %5101 = vmatprep.subr.bf16.mxu0 0
        %5102 = vmatpush1.bf16.msra.mxu0 0
        %5103 = vmatprep.subr.bf16.mxu0 0
        %5104 = vmatpush1.bf16.msra.mxu0 0
        %5105 = vmatprep.subr.bf16.mxu0 0
        %5106 = vmatpush1.bf16.msra.mxu0 0
        %5107 = vmatprep.subr.bf16.mxu0 0
        %5108 = vmatpush1.bf16.msra.mxu0 0
        %5109 = vmatprep.subr.bf16.mxu0 0
        %5110 = vmatpush1.bf16.msra.mxu0 0
        %5111 = vmatprep.subr.bf16.mxu0 0
        %5112 = vmatpush1.bf16.msra.mxu0 0
        %5113 = vmatprep.subr.bf16.mxu0 0
        %5114 = vmatpush1.bf16.msra.mxu0 0
        %5115 = vmatprep.subr.bf16.mxu0 0
        %5116 = vmatpush1.bf16.msra.mxu0 0
        %5117 = vmatprep.subr.bf16.mxu0 0
        %5118 = vmatpush1.bf16.msra.mxu0 0
        %5119 = vmatprep.subr.bf16.mxu0 0
        %5120 = vmatpush1.bf16.msra.mxu0 0
        %5121 = vmatprep.subr.bf16.mxu0 0
        %5122 = vmatpush1.bf16.msra.mxu0 0
        %5123 = vmatprep.subr.bf16.mxu0 0
        %5124 = vmatpush1.bf16.msra.mxu0 0
        %5125 = vmatprep.subr.bf16.mxu0 0
        %5126 = vmatpush1.bf16.msra.mxu0 0
        %5127 = vmatprep.mubr.bf16.mxu0 0
        %5128 = vmatmul.mubr.bf16.gmra.mrb[0].mxu0 %v5093
        %v5129 = vpop.f32.mrb[0].mxu0
        %v5130 = vadd.f32 %v5024, %v5129
        %v5131 = vpop.f32.mrb[0].mxu0
        %v5132 = vadd.f32 %v5026, %v5131
        %v5133 = vpop.f32.mrb[0].mxu0
        %v5134 = vadd.f32 %v5028, %v5133
        %v5135 = vpop.f32.mrb[0].mxu0
        %v5136 = vadd.f32 %v5030, %v5135
        %5137 = vdwg.mxu0
        %5138 = vmatprep.subr.bf16.mxu0 0
        %5139 = vmatpush1.bf16.msra.mxu0 %v5088
        %5140 = vmatprep.subr.bf16.mxu0 0
        %5141 = vmatpush1.bf16.msra.mxu0 0
        %5142 = vmatprep.subr.bf16.mxu0 0
        %5143 = vmatpush1.bf16.msra.mxu0 0
        %5144 = vmatprep.subr.bf16.mxu0 0
        %5145 = vmatpush1.bf16.msra.mxu0 0
        %5146 = vmatprep.subr.bf16.mxu0 0
        %5147 = vmatpush1.bf16.msra.mxu0 0
        %5148 = vmatprep.subr.bf16.mxu0 0
        %5149 = vmatpush1.bf16.msra.mxu0 0
        %5150 = vmatprep.subr.bf16.mxu0 0
        %5151 = vmatpush1.bf16.msra.mxu0 0
        %5152 = vmatprep.subr.bf16.mxu0 0
        %5153 = vmatpush1.bf16.msra.mxu0 0
        %5154 = vmatprep.subr.bf16.mxu0 0
        %5155 = vmatpush1.bf16.msra.mxu0 0
        %5156 = vmatprep.subr.bf16.mxu0 0
        %5157 = vmatpush1.bf16.msra.mxu0 0
        %5158 = vmatprep.subr.bf16.mxu0 0
        %5159 = vmatpush1.bf16.msra.mxu0 0
        %5160 = vmatprep.subr.bf16.mxu0 0
        %5161 = vmatpush1.bf16.msra.mxu0 0
        %5162 = vmatprep.subr.bf16.mxu0 0
        %5163 = vmatpush1.bf16.msra.mxu0 0
        %5164 = vmatprep.subr.bf16.mxu0 0
        %5165 = vmatpush1.bf16.msra.mxu0 0
        %5166 = vmatprep.subr.bf16.mxu0 0
        %5167 = vmatpush1.bf16.msra.mxu0 0
        %5168 = vmatprep.subr.bf16.mxu0 0
        %5169 = vmatpush1.bf16.msra.mxu0 0
        %5170 = vmatprep.mubr.bf16.mxu0 0
        %5171 = vmatmul.mubr.bf16.gmra.mrb[0].mxu0 %v5093
        %v5172 = vpop.f32.mrb[0].mxu0
        %v5173 = vadd.f32 %v5067, %v5172
        %v5174 = vpop.f32.mrb[0].mxu0
        %v5175 = vpop.f32.mrb[0].mxu0
        %v5176 = vadd.f32 %v5070, %v5175
        %v5177 = vpop.f32.mrb[0].mxu0
        %5178 = vdwg.mxu0
        %s5179 = scalar_lea.vmem [#allocation11], 16
        %v5180 = vld [vmem:[%s5179] sm:$0xf]
        %v5181 = vld [vmem:[%s5179 + $0x4] sm:$0xf]
        %v5184 = vunpack.c.l.b16 %v5180
        %v5185 = vunpack.c.l.b16 %v5181
        %v5186 = vpack.c.b16 %v5185, %v5184
        %5187 = vrot.lane.b32.xlu0 %v4954, 17
        %v5188 = vpop.permute.xlu0 %5187
        %5189 = vrot.lane.b32.xlu0 %v4955, 17
        %v5190 = vpop.permute.xlu0 %5189
        %5191 = vrot.lane.b32.xlu0 %v4956, 17
        %v5192 = vpop.permute.xlu0 %5191
        %5193 = vrot.lane.b32.xlu0 %v4957, 17
        %v5194 = vpop.permute.xlu0 %5193
        %v5195 = vsel %vm933, %v5188, %v5190
        %v5196 = vsel %vm933, %v5190, %v5192
        %v5197 = vsel %vm933, %v5192, %v5194
        %v5202 = vsel %vm722, %v5186, 0
        %5204 = vmatprep.subr.bf16.mxu0 %v5196
        %5205 = vmatpush1.bf16.msra.mxu0 %v5195
        %5206 = vmatprep.subr.bf16.mxu0 0
        %5207 = vmatpush1.bf16.msra.mxu0 0
        %5208 = vmatprep.subr.bf16.mxu0 0
        %5209 = vmatpush1.bf16.msra.mxu0 0
        %5210 = vmatprep.subr.bf16.mxu0 0
        %5211 = vmatpush1.bf16.msra.mxu0 0
        %5212 = vmatprep.subr.bf16.mxu0 0
        %5213 = vmatpush1.bf16.msra.mxu0 0
        %5214 = vmatprep.subr.bf16.mxu0 0
        %5215 = vmatpush1.bf16.msra.mxu0 0
        %5216 = vmatprep.subr.bf16.mxu0 0
        %5217 = vmatpush1.bf16.msra.mxu0 0
        %5218 = vmatprep.subr.bf16.mxu0 0
        %5219 = vmatpush1.bf16.msra.mxu0 0
        %5220 = vmatprep.subr.bf16.mxu0 0
        %5221 = vmatpush1.bf16.msra.mxu0 0
        %5222 = vmatprep.subr.bf16.mxu0 0
        %5223 = vmatpush1.bf16.msra.mxu0 0
        %5224 = vmatprep.subr.bf16.mxu0 0
        %5225 = vmatpush1.bf16.msra.mxu0 0
        %5226 = vmatprep.subr.bf16.mxu0 0
        %5227 = vmatpush1.bf16.msra.mxu0 0
        %5228 = vmatprep.subr.bf16.mxu0 0
        %5229 = vmatpush1.bf16.msra.mxu0 0
        %5230 = vmatprep.subr.bf16.mxu0 0
        %5231 = vmatpush1.bf16.msra.mxu0 0
        %5232 = vmatprep.subr.bf16.mxu0 0
        %5233 = vmatpush1.bf16.msra.mxu0 0
        %5234 = vmatprep.subr.bf16.mxu0 0
        %5235 = vmatpush1.bf16.msra.mxu0 0
        %5236 = vmatprep.mubr.bf16.mxu0 0
        %5237 = vmatmul.mubr.bf16.gmra.mrb[0].mxu0 %v5202
        %v5238 = vpop.f32.mrb[0].mxu0
        %v5239 = vadd.f32 0.0, %v5238
        %v5240 = vpop.f32.mrb[0].mxu0
        %v5241 = vadd.f32 0.0, %v5240
        %v5242 = vpop.f32.mrb[0].mxu0
        %v5243 = vadd.f32 0.0, %v5242
        %v5244 = vpop.f32.mrb[0].mxu0
        %v5245 = vadd.f32 0.0, %v5244
        %5246 = vdwg.mxu0
        %5247 = vmatprep.subr.bf16.mxu0 0
        %5248 = vmatpush1.bf16.msra.mxu0 %v5197
        %5249 = vmatprep.subr.bf16.mxu0 0
        %5250 = vmatpush1.bf16.msra.mxu0 0
        %5251 = vmatprep.subr.bf16.mxu0 0
        %5252 = vmatpush1.bf16.msra.mxu0 0
        %5253 = vmatprep.subr.bf16.mxu0 0
        %5254 = vmatpush1.bf16.msra.mxu0 0
        %5255 = vmatprep.subr.bf16.mxu0 0
        %5256 = vmatpush1.bf16.msra.mxu0 0
        %5257 = vmatprep.subr.bf16.mxu0 0
        %5258 = vmatpush1.bf16.msra.mxu0 0
        %5259 = vmatprep.subr.bf16.mxu0 0
        %5260 = vmatpush1.bf16.msra.mxu0 0
        %5261 = vmatprep.subr.bf16.mxu0 0
        %5262 = vmatpush1.bf16.msra.mxu0 0
        %5263 = vmatprep.subr.bf16.mxu0 0
        %5264 = vmatpush1.bf16.msra.mxu0 0
        %5265 = vmatprep.subr.bf16.mxu0 0
        %5266 = vmatpush1.bf16.msra.mxu0 0
        %5267 = vmatprep.subr.bf16.mxu0 0
        %5268 = vmatpush1.bf16.msra.mxu0 0
        %5269 = vmatprep.subr.bf16.mxu0 0
        %5270 = vmatpush1.bf16.msra.mxu0 0
        %5271 = vmatprep.subr.bf16.mxu0 0
        %5272 = vmatpush1.bf16.msra.mxu0 0
        %5273 = vmatprep.subr.bf16.mxu0 0
        %5274 = vmatpush1.bf16.msra.mxu0 0
        %5275 = vmatprep.subr.bf16.mxu0 0
        %5276 = vmatpush1.bf16.msra.mxu0 0
        %5277 = vmatprep.subr.bf16.mxu0 0
        %5278 = vmatpush1.bf16.msra.mxu0 0
        %5279 = vmatprep.mubr.bf16.mxu0 0
        %5280 = vmatmul.mubr.bf16.gmra.mrb[0].mxu0 %v5202
        %v5281 = vpop.f32.mrb[0].mxu0
        %v5282 = vadd.f32 0.0, %v5281
        %v5283 = vpop.f32.mrb[0].mxu0
        %v5284 = vpop.f32.mrb[0].mxu0
        %v5285 = vadd.f32 0.0, %v5284
        %v5286 = vpop.f32.mrb[0].mxu0
        %5287 = vdwg.mxu0
        %v5288 = vadd.f32 %v5130, %v5239
        %v5289 = vadd.f32 %v5132, %v5241
        %v5290 = vadd.f32 %v5173, %v5282
        %v5291 = vadd.f32 %v5134, %v5243
        %v5292 = vadd.f32 %v5136, %v5245
        %v5293 = vadd.f32 %v5176, %v5285
        %s5294 = scalar_lea.vmem [#allocation11], 24
        %v5295 = vld [vmem:[%s5294] sm:$0xf]
        %v5296 = vld [vmem:[%s5294 + $0x4] sm:$0xf]
        %v5299 = vunpack.c.l.b16 %v5295
        %v5300 = vunpack.c.l.b16 %v5296
        %v5301 = vpack.c.b16 %v5300, %v5299
        %5302 = vrot.lane.b32.xlu0 %v4954, 1
        %v5303 = vpop.permute.xlu0 %5302
        %5304 = vrot.lane.b32.xlu0 %v4955, 1
        %v5305 = vpop.permute.xlu0 %5304
        %5306 = vrot.lane.b32.xlu0 %v4956, 1
        %v5307 = vpop.permute.xlu0 %5306
        %5308 = vrot.lane.b32.xlu0 %v4957, 1
        %v5309 = vpop.permute.xlu0 %5308
        %v5310 = vsel %vm1049, %v5303, %v5305
        %v5311 = vsel %vm1049, %v5305, %v5307
        %v5312 = vsel %vm1049, %v5307, %v5309
        %v5317 = vsel %vm722, %v5301, 0
        %5319 = vmatprep.subr.bf16.mxu0 %v5311
        %5320 = vmatpush1.bf16.msra.mxu0 %v5310
        %5321 = vmatprep.subr.bf16.mxu0 0
        %5322 = vmatpush1.bf16.msra.mxu0 0
        %5323 = vmatprep.subr.bf16.mxu0 0
        %5324 = vmatpush1.bf16.msra.mxu0 0
        %5325 = vmatprep.subr.bf16.mxu0 0
        %5326 = vmatpush1.bf16.msra.mxu0 0
        %5327 = vmatprep.subr.bf16.mxu0 0
        %5328 = vmatpush1.bf16.msra.mxu0 0
        %5329 = vmatprep.subr.bf16.mxu0 0
        %5330 = vmatpush1.bf16.msra.mxu0 0
        %5331 = vmatprep.subr.bf16.mxu0 0
        %5332 = vmatpush1.bf16.msra.mxu0 0
        %5333 = vmatprep.subr.bf16.mxu0 0
        %5334 = vmatpush1.bf16.msra.mxu0 0
        %5335 = vmatprep.subr.bf16.mxu0 0
        %5336 = vmatpush1.bf16.msra.mxu0 0
        %5337 = vmatprep.subr.bf16.mxu0 0
        %5338 = vmatpush1.bf16.msra.mxu0 0
        %5339 = vmatprep.subr.bf16.mxu0 0
        %5340 = vmatpush1.bf16.msra.mxu0 0
        %5341 = vmatprep.subr.bf16.mxu0 0
        %5342 = vmatpush1.bf16.msra.mxu0 0
        %5343 = vmatprep.subr.bf16.mxu0 0
        %5344 = vmatpush1.bf16.msra.mxu0 0
        %5345 = vmatprep.subr.bf16.mxu0 0
        %5346 = vmatpush1.bf16.msra.mxu0 0
        %5347 = vmatprep.subr.bf16.mxu0 0
        %5348 = vmatpush1.bf16.msra.mxu0 0
        %5349 = vmatprep.subr.bf16.mxu0 0
        %5350 = vmatpush1.bf16.msra.mxu0 0
        %5351 = vmatprep.mubr.bf16.mxu0 0
        %5352 = vmatmul.mubr.bf16.gmra.mrb[0].mxu0 %v5317
        %v5353 = vpop.f32.mrb[0].mxu0
        %v5354 = vadd.f32 0.0, %v5353
        %v5355 = vpop.f32.mrb[0].mxu0
        %v5356 = vadd.f32 0.0, %v5355
        %v5357 = vpop.f32.mrb[0].mxu0
        %v5358 = vadd.f32 0.0, %v5357
        %v5359 = vpop.f32.mrb[0].mxu0
        %v5360 = vadd.f32 0.0, %v5359
        %5361 = vdwg.mxu0
        %5362 = vmatprep.subr.bf16.mxu0 0
        %5363 = vmatpush1.bf16.msra.mxu0 %v5312
        %5364 = vmatprep.subr.bf16.mxu0 0
        %5365 = vmatpush1.bf16.msra.mxu0 0
        %5366 = vmatprep.subr.bf16.mxu0 0
        %5367 = vmatpush1.bf16.msra.mxu0 0
        %5368 = vmatprep.subr.bf16.mxu0 0
        %5369 = vmatpush1.bf16.msra.mxu0 0
        %5370 = vmatprep.subr.bf16.mxu0 0
        %5371 = vmatpush1.bf16.msra.mxu0 0
        %5372 = vmatprep.subr.bf16.mxu0 0
        %5373 = vmatpush1.bf16.msra.mxu0 0
        %5374 = vmatprep.subr.bf16.mxu0 0
        %5375 = vmatpush1.bf16.msra.mxu0 0
        %5376 = vmatprep.subr.bf16.mxu0 0
        %5377 = vmatpush1.bf16.msra.mxu0 0
        %5378 = vmatprep.subr.bf16.mxu0 0
        %5379 = vmatpush1.bf16.msra.mxu0 0
        %5380 = vmatprep.subr.bf16.mxu0 0
        %5381 = vmatpush1.bf16.msra.mxu0 0
        %5382 = vmatprep.subr.bf16.mxu0 0
        %5383 = vmatpush1.bf16.msra.mxu0 0
        %5384 = vmatprep.subr.bf16.mxu0 0
        %5385 = vmatpush1.bf16.msra.mxu0 0
        %5386 = vmatprep.subr.bf16.mxu0 0
        %5387 = vmatpush1.bf16.msra.mxu0 0
        %5388 = vmatprep.subr.bf16.mxu0 0
        %5389 = vmatpush1.bf16.msra.mxu0 0
        %5390 = vmatprep.subr.bf16.mxu0 0
        %5391 = vmatpush1.bf16.msra.mxu0 0
        %5392 = vmatprep.subr.bf16.mxu0 0
        %5393 = vmatpush1.bf16.msra.mxu0 0
        %5394 = vmatprep.mubr.bf16.mxu0 0
        %5395 = vmatmul.mubr.bf16.gmra.mrb[0].mxu0 %v5317
        %v5396 = vpop.f32.mrb[0].mxu0
        %v5397 = vadd.f32 0.0, %v5396
        %v5398 = vpop.f32.mrb[0].mxu0
        %v5399 = vpop.f32.mrb[0].mxu0
        %v5400 = vadd.f32 0.0, %v5399
        %v5401 = vpop.f32.mrb[0].mxu0
        %5402 = vdwg.mxu0
        %v5403 = vadd.f32 %v5288, %v5354
        %v5404 = vadd.f32 %v5289, %v5356
        %v5405 = vadd.f32 %v5290, %v5397
        %v5406 = vadd.f32 %v5291, %v5358
        %v5407 = vadd.f32 %v5292, %v5360
        %v5408 = vadd.f32 %v5293, %v5400
        %s5409 = scalar_lea.vmem [#allocation11], 32
        %v5410 = vld [vmem:[%s5409] sm:$0xf]
        %v5411 = vld [vmem:[%s5409 + $0x4] sm:$0xf]
        %v5414 = vunpack.c.l.b16 %v5410
        %v5415 = vunpack.c.l.b16 %v5411
        %v5416 = vpack.c.b16 %v5415, %v5414
        %v5418 = vsel %vm722, %v5416, 0
        %5420 = vmatprep.subr.bf16.mxu0 %v4956
        %5421 = vmatpush1.bf16.msra.mxu0 %v4955
        %5422 = vmatprep.subr.bf16.mxu0 0
        %5423 = vmatpush1.bf16.msra.mxu0 0
        %5424 = vmatprep.subr.bf16.mxu0 0
        %5425 = vmatpush1.bf16.msra.mxu0 0
        %5426 = vmatprep.subr.bf16.mxu0 0
        %5427 = vmatpush1.bf16.msra.mxu0 0
        %5428 = vmatprep.subr.bf16.mxu0 0
        %5429 = vmatpush1.bf16.msra.mxu0 0
        %5430 = vmatprep.subr.bf16.mxu0 0
        %5431 = vmatpush1.bf16.msra.mxu0 0
        %5432 = vmatprep.subr.bf16.mxu0 0
        %5433 = vmatpush1.bf16.msra.mxu0 0
        %5434 = vmatprep.subr.bf16.mxu0 0
        %5435 = vmatpush1.bf16.msra.mxu0 0
        %5436 = vmatprep.subr.bf16.mxu0 0
        %5437 = vmatpush1.bf16.msra.mxu0 0
        %5438 = vmatprep.subr.bf16.mxu0 0
        %5439 = vmatpush1.bf16.msra.mxu0 0
        %5440 = vmatprep.subr.bf16.mxu0 0
        %5441 = vmatpush1.bf16.msra.mxu0 0
        %5442 = vmatprep.subr.bf16.mxu0 0
        %5443 = vmatpush1.bf16.msra.mxu0 0
        %5444 = vmatprep.subr.bf16.mxu0 0
        %5445 = vmatpush1.bf16.msra.mxu0 0
        %5446 = vmatprep.subr.bf16.mxu0 0
        %5447 = vmatpush1.bf16.msra.mxu0 0
        %5448 = vmatprep.subr.bf16.mxu0 0
        %5449 = vmatpush1.bf16.msra.mxu0 0
        %5450 = vmatprep.subr.bf16.mxu0 0
        %5451 = vmatpush1.bf16.msra.mxu0 0
        %5452 = vmatprep.mubr.bf16.mxu0 0
        %5453 = vmatmul.mubr.bf16.gmra.mrb[0].mxu0 %v5418
        %v5454 = vpop.f32.mrb[0].mxu0
        %v5455 = vadd.f32 0.0, %v5454
        %v5456 = vpop.f32.mrb[0].mxu0
        %v5457 = vadd.f32 0.0, %v5456
        %v5458 = vpop.f32.mrb[0].mxu0
        %v5459 = vadd.f32 0.0, %v5458
        %v5460 = vpop.f32.mrb[0].mxu0
        %v5461 = vadd.f32 0.0, %v5460
        %5462 = vdwg.mxu0
        %5463 = vmatprep.subr.bf16.mxu0 0
        %5464 = vmatpush1.bf16.msra.mxu0 %v4957
        %5465 = vmatprep.subr.bf16.mxu0 0
        %5466 = vmatpush1.bf16.msra.mxu0 0
        %5467 = vmatprep.subr.bf16.mxu0 0
        %5468 = vmatpush1.bf16.msra.mxu0 0
        %5469 = vmatprep.subr.bf16.mxu0 0
        %5470 = vmatpush1.bf16.msra.mxu0 0
        %5471 = vmatprep.subr.bf16.mxu0 0
        %5472 = vmatpush1.bf16.msra.mxu0 0
        %5473 = vmatprep.subr.bf16.mxu0 0
        %5474 = vmatpush1.bf16.msra.mxu0 0
        %5475 = vmatprep.subr.bf16.mxu0 0
        %5476 = vmatpush1.bf16.msra.mxu0 0
        %5477 = vmatprep.subr.bf16.mxu0 0
        %5478 = vmatpush1.bf16.msra.mxu0 0
        %5479 = vmatprep.subr.bf16.mxu0 0
        %5480 = vmatpush1.bf16.msra.mxu0 0
        %5481 = vmatprep.subr.bf16.mxu0 0
        %5482 = vmatpush1.bf16.msra.mxu0 0
        %5483 = vmatprep.subr.bf16.mxu0 0
        %5484 = vmatpush1.bf16.msra.mxu0 0
        %5485 = vmatprep.subr.bf16.mxu0 0
        %5486 = vmatpush1.bf16.msra.mxu0 0
        %5487 = vmatprep.subr.bf16.mxu0 0
        %5488 = vmatpush1.bf16.msra.mxu0 0
        %5489 = vmatprep.subr.bf16.mxu0 0
        %5490 = vmatpush1.bf16.msra.mxu0 0
        %5491 = vmatprep.subr.bf16.mxu0 0
        %5492 = vmatpush1.bf16.msra.mxu0 0
        %5493 = vmatprep.subr.bf16.mxu0 0
        %5494 = vmatpush1.bf16.msra.mxu0 0
        %5495 = vmatprep.mubr.bf16.mxu0 0
        %5496 = vmatmul.mubr.bf16.gmra.mrb[0].mxu0 %v5418
        %v5497 = vpop.f32.mrb[0].mxu0
        %v5498 = vadd.f32 0.0, %v5497
        %v5499 = vpop.f32.mrb[0].mxu0
        %v5500 = vpop.f32.mrb[0].mxu0
        %v5501 = vadd.f32 0.0, %v5500
        %v5502 = vpop.f32.mrb[0].mxu0
        %5503 = vdwg.mxu0
        %v5504 = vadd.f32 %v5403, %v5455
        %v5505 = vadd.f32 %v5404, %v5457
        %v5506 = vadd.f32 %v5405, %v5498
        %v5507 = vadd.f32 %v5406, %v5459
        %v5508 = vadd.f32 %v5407, %v5461
        %v5509 = vadd.f32 %v5408, %v5501
        %v5510 = vld [vmem:[#allocation2 + $0xa8] sm:$0xff]
        %v5511 = vld [vmem:[#allocation2 + $0xb0] sm:$0xff]
        %v5512 = vld [vmem:[#allocation2 + $0xb8] sm:$0xff]
        %v5513 = vld [vmem:[#allocation2 + $0xc0] sm:$0xff]
        %s5514 = scalar_lea.vmem [#allocation11], 40
        %v5515 = vld [vmem:[%s5514] sm:$0xf]
        %v5516 = vld [vmem:[%s5514 + $0x4] sm:$0xf]
        %v5519 = vunpack.c.l.b16 %v5515
        %v5520 = vunpack.c.l.b16 %v5516
        %v5521 = vpack.c.b16 %v5520, %v5519
        %5526 = vrot.lane.b32.xlu0 %v5510, 127
        %v5527 = vpop.permute.xlu0 %5526
        %5528 = vrot.lane.b32.xlu0 %v5511, 127
        %v5529 = vpop.permute.xlu0 %5528
        %5530 = vrot.lane.b32.xlu0 %v5512, 127
        %v5531 = vpop.permute.xlu0 %5530
        %5532 = vrot.lane.b32.xlu0 %v5513, 127
        %v5533 = vpop.permute.xlu0 %5532
        %v5534 = vsel %vm1274, %v5527, %v5529
        %v5535 = vsel %vm1274, %v5529, %v5531
        %v5536 = vsel %vm1274, %v5531, %v5533
        %v5541 = vsel %vm722, %v5521, 0
        %5543 = vmatprep.subr.bf16.mxu0 %v5535
        %5544 = vmatpush1.bf16.msra.mxu0 %v5534
        %5545 = vmatprep.subr.bf16.mxu0 0
        %5546 = vmatpush1.bf16.msra.mxu0 0
        %5547 = vmatprep.subr.bf16.mxu0 0
        %5548 = vmatpush1.bf16.msra.mxu0 0
        %5549 = vmatprep.subr.bf16.mxu0 0
        %5550 = vmatpush1.bf16.msra.mxu0 0
        %5551 = vmatprep.subr.bf16.mxu0 0
        %5552 = vmatpush1.bf16.msra.mxu0 0
        %5553 = vmatprep.subr.bf16.mxu0 0
        %5554 = vmatpush1.bf16.msra.mxu0 0
        %5555 = vmatprep.subr.bf16.mxu0 0
        %5556 = vmatpush1.bf16.msra.mxu0 0
        %5557 = vmatprep.subr.bf16.mxu0 0
        %5558 = vmatpush1.bf16.msra.mxu0 0
        %5559 = vmatprep.subr.bf16.mxu0 0
        %5560 = vmatpush1.bf16.msra.mxu0 0
        %5561 = vmatprep.subr.bf16.mxu0 0
        %5562 = vmatpush1.bf16.msra.mxu0 0
        %5563 = vmatprep.subr.bf16.mxu0 0
        %5564 = vmatpush1.bf16.msra.mxu0 0
        %5565 = vmatprep.subr.bf16.mxu0 0
        %5566 = vmatpush1.bf16.msra.mxu0 0
        %5567 = vmatprep.subr.bf16.mxu0 0
        %5568 = vmatpush1.bf16.msra.mxu0 0
        %5569 = vmatprep.subr.bf16.mxu0 0
        %5570 = vmatpush1.bf16.msra.mxu0 0
        %5571 = vmatprep.subr.bf16.mxu0 0
        %5572 = vmatpush1.bf16.msra.mxu0 0
        %5573 = vmatprep.subr.bf16.mxu0 0
        %5574 = vmatpush1.bf16.msra.mxu0 0
        %5575 = vmatprep.mubr.bf16.mxu0 0
        %5576 = vmatmul.mubr.bf16.gmra.mrb[0].mxu0 %v5541
        %v5577 = vpop.f32.mrb[0].mxu0
        %v5578 = vadd.f32 0.0, %v5577
        %v5579 = vpop.f32.mrb[0].mxu0
        %v5580 = vadd.f32 0.0, %v5579
        %v5581 = vpop.f32.mrb[0].mxu0
        %v5582 = vadd.f32 0.0, %v5581
        %v5583 = vpop.f32.mrb[0].mxu0
        %v5584 = vadd.f32 0.0, %v5583
        %5585 = vdwg.mxu0
        %5586 = vmatprep.subr.bf16.mxu0 0
        %5587 = vmatpush1.bf16.msra.mxu0 %v5536
        %5588 = vmatprep.subr.bf16.mxu0 0
        %5589 = vmatpush1.bf16.msra.mxu0 0
        %5590 = vmatprep.subr.bf16.mxu0 0
        %5591 = vmatpush1.bf16.msra.mxu0 0
        %5592 = vmatprep.subr.bf16.mxu0 0
        %5593 = vmatpush1.bf16.msra.mxu0 0
        %5594 = vmatprep.subr.bf16.mxu0 0
        %5595 = vmatpush1.bf16.msra.mxu0 0
        %5596 = vmatprep.subr.bf16.mxu0 0
        %5597 = vmatpush1.bf16.msra.mxu0 0
        %5598 = vmatprep.subr.bf16.mxu0 0
        %5599 = vmatpush1.bf16.msra.mxu0 0
        %5600 = vmatprep.subr.bf16.mxu0 0
        %5601 = vmatpush1.bf16.msra.mxu0 0
        %5602 = vmatprep.subr.bf16.mxu0 0
        %5603 = vmatpush1.bf16.msra.mxu0 0
        %5604 = vmatprep.subr.bf16.mxu0 0
        %5605 = vmatpush1.bf16.msra.mxu0 0
        %5606 = vmatprep.subr.bf16.mxu0 0
        %5607 = vmatpush1.bf16.msra.mxu0 0
        %5608 = vmatprep.subr.bf16.mxu0 0
        %5609 = vmatpush1.bf16.msra.mxu0 0
        %5610 = vmatprep.subr.bf16.mxu0 0
        %5611 = vmatpush1.bf16.msra.mxu0 0
        %5612 = vmatprep.subr.bf16.mxu0 0
        %5613 = vmatpush1.bf16.msra.mxu0 0
        %5614 = vmatprep.subr.bf16.mxu0 0
        %5615 = vmatpush1.bf16.msra.mxu0 0
        %5616 = vmatprep.subr.bf16.mxu0 0
        %5617 = vmatpush1.bf16.msra.mxu0 0
        %5618 = vmatprep.mubr.bf16.mxu0 0
        %5619 = vmatmul.mubr.bf16.gmra.mrb[0].mxu0 %v5541
        %v5620 = vpop.f32.mrb[0].mxu0
        %v5621 = vadd.f32 0.0, %v5620
        %v5622 = vpop.f32.mrb[0].mxu0
        %v5623 = vpop.f32.mrb[0].mxu0
        %v5624 = vadd.f32 0.0, %v5623
        %v5625 = vpop.f32.mrb[0].mxu0
        %5626 = vdwg.mxu0
        %v5627 = vadd.f32 %v5504, %v5578
        %v5628 = vadd.f32 %v5505, %v5580
        %v5629 = vadd.f32 %v5506, %v5621
        %v5630 = vadd.f32 %v5507, %v5582
        %v5631 = vadd.f32 %v5508, %v5584
        %v5632 = vadd.f32 %v5509, %v5624
        %s5633 = scalar_lea.vmem [#allocation11], 48
        %v5634 = vld [vmem:[%s5633] sm:$0xf]
        %v5635 = vld [vmem:[%s5633 + $0x4] sm:$0xf]
        %v5638 = vunpack.c.l.b16 %v5634
        %v5639 = vunpack.c.l.b16 %v5635
        %v5640 = vpack.c.b16 %v5639, %v5638
        %5641 = vrot.lane.b32.xlu0 %v5510, 111
        %v5642 = vpop.permute.xlu0 %5641
        %5643 = vrot.lane.b32.xlu0 %v5511, 111
        %v5644 = vpop.permute.xlu0 %5643
        %5645 = vrot.lane.b32.xlu0 %v5512, 111
        %v5646 = vpop.permute.xlu0 %5645
        %5647 = vrot.lane.b32.xlu0 %v5513, 111
        %v5648 = vpop.permute.xlu0 %5647
        %v5649 = vsel %vm1390, %v5642, %v5644
        %v5650 = vsel %vm1390, %v5644, %v5646
        %v5651 = vsel %vm1390, %v5646, %v5648
        %v5656 = vsel %vm722, %v5640, 0
        %5658 = vmatprep.subr.bf16.mxu0 %v5650
        %5659 = vmatpush1.bf16.msra.mxu0 %v5649
        %5660 = vmatprep.subr.bf16.mxu0 0
        %5661 = vmatpush1.bf16.msra.mxu0 0
        %5662 = vmatprep.subr.bf16.mxu0 0
        %5663 = vmatpush1.bf16.msra.mxu0 0
        %5664 = vmatprep.subr.bf16.mxu0 0
        %5665 = vmatpush1.bf16.msra.mxu0 0
        %5666 = vmatprep.subr.bf16.mxu0 0
        %5667 = vmatpush1.bf16.msra.mxu0 0
        %5668 = vmatprep.subr.bf16.mxu0 0
        %5669 = vmatpush1.bf16.msra.mxu0 0
        %5670 = vmatprep.subr.bf16.mxu0 0
        %5671 = vmatpush1.bf16.msra.mxu0 0
        %5672 = vmatprep.subr.bf16.mxu0 0
        %5673 = vmatpush1.bf16.msra.mxu0 0
        %5674 = vmatprep.subr.bf16.mxu0 0
        %5675 = vmatpush1.bf16.msra.mxu0 0
        %5676 = vmatprep.subr.bf16.mxu0 0
        %5677 = vmatpush1.bf16.msra.mxu0 0
        %5678 = vmatprep.subr.bf16.mxu0 0
        %5679 = vmatpush1.bf16.msra.mxu0 0
        %5680 = vmatprep.subr.bf16.mxu0 0
        %5681 = vmatpush1.bf16.msra.mxu0 0
        %5682 = vmatprep.subr.bf16.mxu0 0
        %5683 = vmatpush1.bf16.msra.mxu0 0
        %5684 = vmatprep.subr.bf16.mxu0 0
        %5685 = vmatpush1.bf16.msra.mxu0 0
        %5686 = vmatprep.subr.bf16.mxu0 0
        %5687 = vmatpush1.bf16.msra.mxu0 0
        %5688 = vmatprep.subr.bf16.mxu0 0
        %5689 = vmatpush1.bf16.msra.mxu0 0
        %5690 = vmatprep.mubr.bf16.mxu0 0
        %5691 = vmatmul.mubr.bf16.gmra.mrb[0].mxu0 %v5656
        %v5692 = vpop.f32.mrb[0].mxu0
        %v5693 = vadd.f32 0.0, %v5692
        %v5694 = vpop.f32.mrb[0].mxu0
        %v5695 = vadd.f32 0.0, %v5694
        %v5696 = vpop.f32.mrb[0].mxu0
        %v5697 = vadd.f32 0.0, %v5696
        %v5698 = vpop.f32.mrb[0].mxu0
        %v5699 = vadd.f32 0.0, %v5698
        %5700 = vdwg.mxu0
        %5701 = vmatprep.subr.bf16.mxu0 0
        %5702 = vmatpush1.bf16.msra.mxu0 %v5651
        %5703 = vmatprep.subr.bf16.mxu0 0
        %5704 = vmatpush1.bf16.msra.mxu0 0
        %5705 = vmatprep.subr.bf16.mxu0 0
        %5706 = vmatpush1.bf16.msra.mxu0 0
        %5707 = vmatprep.subr.bf16.mxu0 0
        %5708 = vmatpush1.bf16.msra.mxu0 0
        %5709 = vmatprep.subr.bf16.mxu0 0
        %5710 = vmatpush1.bf16.msra.mxu0 0
        %5711 = vmatprep.subr.bf16.mxu0 0
        %5712 = vmatpush1.bf16.msra.mxu0 0
        %5713 = vmatprep.subr.bf16.mxu0 0
        %5714 = vmatpush1.bf16.msra.mxu0 0
        %5715 = vmatprep.subr.bf16.mxu0 0
        %5716 = vmatpush1.bf16.msra.mxu0 0
        %5717 = vmatprep.subr.bf16.mxu0 0
        %5718 = vmatpush1.bf16.msra.mxu0 0
        %5719 = vmatprep.subr.bf16.mxu0 0
        %5720 = vmatpush1.bf16.msra.mxu0 0
        %5721 = vmatprep.subr.bf16.mxu0 0
        %5722 = vmatpush1.bf16.msra.mxu0 0
        %5723 = vmatprep.subr.bf16.mxu0 0
        %5724 = vmatpush1.bf16.msra.mxu0 0
        %5725 = vmatprep.subr.bf16.mxu0 0
        %5726 = vmatpush1.bf16.msra.mxu0 0
        %5727 = vmatprep.subr.bf16.mxu0 0
        %5728 = vmatpush1.bf16.msra.mxu0 0
        %5729 = vmatprep.subr.bf16.mxu0 0
        %5730 = vmatpush1.bf16.msra.mxu0 0
        %5731 = vmatprep.subr.bf16.mxu0 0
        %5732 = vmatpush1.bf16.msra.mxu0 0
        %5733 = vmatprep.mubr.bf16.mxu0 0
        %5734 = vmatmul.mubr.bf16.gmra.mrb[0].mxu0 %v5656
        %v5735 = vpop.f32.mrb[0].mxu0
        %v5736 = vadd.f32 0.0, %v5735
        %v5737 = vpop.f32.mrb[0].mxu0
        %v5738 = vpop.f32.mrb[0].mxu0
        %v5739 = vadd.f32 0.0, %v5738
        %v5740 = vpop.f32.mrb[0].mxu0
        %5741 = vdwg.mxu0
        %v5742 = vadd.f32 %v5627, %v5693
        %v5743 = vadd.f32 %v5628, %v5695
        %v5744 = vadd.f32 %v5629, %v5736
        %v5745 = vadd.f32 %v5630, %v5697
        %v5746 = vadd.f32 %v5631, %v5699
        %v5747 = vadd.f32 %v5632, %v5739
        %s5748 = scalar_lea.vmem [#allocation11], 56
        %v5749 = vld [vmem:[%s5748] sm:$0xf]
        %v5750 = vld [vmem:[%s5748 + $0x4] sm:$0xf]
        %v5753 = vunpack.c.l.b16 %v5749
        %v5754 = vunpack.c.l.b16 %v5750
        %v5755 = vpack.c.b16 %v5754, %v5753
        %5756 = vrot.lane.b32.xlu0 %v5510, 110
        %v5757 = vpop.permute.xlu0 %5756
        %5758 = vrot.lane.b32.xlu0 %v5511, 110
        %v5759 = vpop.permute.xlu0 %5758
        %5760 = vrot.lane.b32.xlu0 %v5512, 110
        %v5761 = vpop.permute.xlu0 %5760
        %5762 = vrot.lane.b32.xlu0 %v5513, 110
        %v5763 = vpop.permute.xlu0 %5762
        %v5764 = vsel %vm1506, %v5757, %v5759
        %v5765 = vsel %vm1506, %v5759, %v5761
        %v5766 = vsel %vm1506, %v5761, %v5763
        %v5771 = vsel %vm722, %v5755, 0
        %5773 = vmatprep.subr.bf16.mxu0 %v5765
        %5774 = vmatpush1.bf16.msra.mxu0 %v5764
        %5775 = vmatprep.subr.bf16.mxu0 0
        %5776 = vmatpush1.bf16.msra.mxu0 0
        %5777 = vmatprep.subr.bf16.mxu0 0
        %5778 = vmatpush1.bf16.msra.mxu0 0
        %5779 = vmatprep.subr.bf16.mxu0 0
        %5780 = vmatpush1.bf16.msra.mxu0 0
        %5781 = vmatprep.subr.bf16.mxu0 0
        %5782 = vmatpush1.bf16.msra.mxu0 0
        %5783 = vmatprep.subr.bf16.mxu0 0
        %5784 = vmatpush1.bf16.msra.mxu0 0
        %5785 = vmatprep.subr.bf16.mxu0 0
        %5786 = vmatpush1.bf16.msra.mxu0 0
        %5787 = vmatprep.subr.bf16.mxu0 0
        %5788 = vmatpush1.bf16.msra.mxu0 0
        %5789 = vmatprep.subr.bf16.mxu0 0
        %5790 = vmatpush1.bf16.msra.mxu0 0
        %5791 = vmatprep.subr.bf16.mxu0 0
        %5792 = vmatpush1.bf16.msra.mxu0 0
        %5793 = vmatprep.subr.bf16.mxu0 0
        %5794 = vmatpush1.bf16.msra.mxu0 0
        %5795 = vmatprep.subr.bf16.mxu0 0
        %5796 = vmatpush1.bf16.msra.mxu0 0
        %5797 = vmatprep.subr.bf16.mxu0 0
        %5798 = vmatpush1.bf16.msra.mxu0 0
        %5799 = vmatprep.subr.bf16.mxu0 0
        %5800 = vmatpush1.bf16.msra.mxu0 0
        %5801 = vmatprep.subr.bf16.mxu0 0
        %5802 = vmatpush1.bf16.msra.mxu0 0
        %5803 = vmatprep.subr.bf16.mxu0 0
        %5804 = vmatpush1.bf16.msra.mxu0 0
        %5805 = vmatprep.mubr.bf16.mxu0 0
        %5806 = vmatmul.mubr.bf16.gmra.mrb[0].mxu0 %v5771
        %v5807 = vpop.f32.mrb[0].mxu0
        %v5808 = vadd.f32 0.0, %v5807
        %v5809 = vpop.f32.mrb[0].mxu0
        %v5810 = vadd.f32 0.0, %v5809
        %v5811 = vpop.f32.mrb[0].mxu0
        %v5812 = vadd.f32 0.0, %v5811
        %v5813 = vpop.f32.mrb[0].mxu0
        %v5814 = vadd.f32 0.0, %v5813
        %5815 = vdwg.mxu0
        %5816 = vmatprep.subr.bf16.mxu0 0
        %5817 = vmatpush1.bf16.msra.mxu0 %v5766
        %5818 = vmatprep.subr.bf16.mxu0 0
        %5819 = vmatpush1.bf16.msra.mxu0 0
        %5820 = vmatprep.subr.bf16.mxu0 0
        %5821 = vmatpush1.bf16.msra.mxu0 0
        %5822 = vmatprep.subr.bf16.mxu0 0
        %5823 = vmatpush1.bf16.msra.mxu0 0
        %5824 = vmatprep.subr.bf16.mxu0 0
        %5825 = vmatpush1.bf16.msra.mxu0 0
        %5826 = vmatprep.subr.bf16.mxu0 0
        %5827 = vmatpush1.bf16.msra.mxu0 0
        %5828 = vmatprep.subr.bf16.mxu0 0
        %5829 = vmatpush1.bf16.msra.mxu0 0
        %5830 = vmatprep.subr.bf16.mxu0 0
        %5831 = vmatpush1.bf16.msra.mxu0 0
        %5832 = vmatprep.subr.bf16.mxu0 0
        %5833 = vmatpush1.bf16.msra.mxu0 0
        %5834 = vmatprep.subr.bf16.mxu0 0
        %5835 = vmatpush1.bf16.msra.mxu0 0
        %5836 = vmatprep.subr.bf16.mxu0 0
        %5837 = vmatpush1.bf16.msra.mxu0 0
        %5838 = vmatprep.subr.bf16.mxu0 0
        %5839 = vmatpush1.bf16.msra.mxu0 0
        %5840 = vmatprep.subr.bf16.mxu0 0
        %5841 = vmatpush1.bf16.msra.mxu0 0
        %5842 = vmatprep.subr.bf16.mxu0 0
        %5843 = vmatpush1.bf16.msra.mxu0 0
        %5844 = vmatprep.subr.bf16.mxu0 0
        %5845 = vmatpush1.bf16.msra.mxu0 0
        %5846 = vmatprep.subr.bf16.mxu0 0
        %5847 = vmatpush1.bf16.msra.mxu0 0
        %5848 = vmatprep.mubr.bf16.mxu0 0
        %5849 = vmatmul.mubr.bf16.gmra.mrb[0].mxu0 %v5771
        %v5850 = vpop.f32.mrb[0].mxu0
        %v5851 = vadd.f32 0.0, %v5850
        %v5852 = vpop.f32.mrb[0].mxu0
        %v5853 = vpop.f32.mrb[0].mxu0
        %v5854 = vadd.f32 0.0, %v5853
        %v5855 = vpop.f32.mrb[0].mxu0
        %5856 = vdwg.mxu0
        %v5857 = vadd.f32 %v5742, %v5808
        %v5858 = vadd.f32 %v5743, %v5810
        %v5859 = vadd.f32 %v5744, %v5851
        %v5860 = vadd.f32 %v5745, %v5812
        %v5861 = vadd.f32 %v5746, %v5814
        %v5862 = vadd.f32 %v5747, %v5854
        %s5863 = scalar_lea.vmem [#allocation11], 64
        %v5864 = vld [vmem:[%s5863] sm:$0xf]
        %v5865 = vld [vmem:[%s5863 + $0x4] sm:$0xf]
        %v5868 = vunpack.c.l.b16 %v5864
        %v5869 = vunpack.c.l.b16 %v5865
        %v5870 = vpack.c.b16 %v5869, %v5868
        %5871 = vrot.lane.b32.xlu0 %v5510, 109
        %v5872 = vpop.permute.xlu0 %5871
        %5873 = vrot.lane.b32.xlu0 %v5511, 109
        %v5874 = vpop.permute.xlu0 %5873
        %5875 = vrot.lane.b32.xlu0 %v5512, 109
        %v5876 = vpop.permute.xlu0 %5875
        %5877 = vrot.lane.b32.xlu0 %v5513, 109
        %v5878 = vpop.permute.xlu0 %5877
        %v5879 = vsel %vm1622, %v5872, %v5874
        %v5880 = vsel %vm1622, %v5874, %v5876
        %v5881 = vsel %vm1622, %v5876, %v5878
        %v5886 = vsel %vm722, %v5870, 0
        %5888 = vmatprep.subr.bf16.mxu0 %v5880
        %5889 = vmatpush1.bf16.msra.mxu0 %v5879
        %5890 = vmatprep.subr.bf16.mxu0 0
        %5891 = vmatpush1.bf16.msra.mxu0 0
        %5892 = vmatprep.subr.bf16.mxu0 0
        %5893 = vmatpush1.bf16.msra.mxu0 0
        %5894 = vmatprep.subr.bf16.mxu0 0
        %5895 = vmatpush1.bf16.msra.mxu0 0
        %5896 = vmatprep.subr.bf16.mxu0 0
        %5897 = vmatpush1.bf16.msra.mxu0 0
        %5898 = vmatprep.subr.bf16.mxu0 0
        %5899 = vmatpush1.bf16.msra.mxu0 0
        %5900 = vmatprep.subr.bf16.mxu0 0
        %5901 = vmatpush1.bf16.msra.mxu0 0
        %5902 = vmatprep.subr.bf16.mxu0 0
        %5903 = vmatpush1.bf16.msra.mxu0 0
        %5904 = vmatprep.subr.bf16.mxu0 0
        %5905 = vmatpush1.bf16.msra.mxu0 0
        %5906 = vmatprep.subr.bf16.mxu0 0
        %5907 = vmatpush1.bf16.msra.mxu0 0
        %5908 = vmatprep.subr.bf16.mxu0 0
        %5909 = vmatpush1.bf16.msra.mxu0 0
        %5910 = vmatprep.subr.bf16.mxu0 0
        %5911 = vmatpush1.bf16.msra.mxu0 0
        %5912 = vmatprep.subr.bf16.mxu0 0
        %5913 = vmatpush1.bf16.msra.mxu0 0
        %5914 = vmatprep.subr.bf16.mxu0 0
        %5915 = vmatpush1.bf16.msra.mxu0 0
        %5916 = vmatprep.subr.bf16.mxu0 0
        %5917 = vmatpush1.bf16.msra.mxu0 0
        %5918 = vmatprep.subr.bf16.mxu0 0
        %5919 = vmatpush1.bf16.msra.mxu0 0
        %5920 = vmatprep.mubr.bf16.mxu0 0
        %5921 = vmatmul.mubr.bf16.gmra.mrb[0].mxu0 %v5886
        %v5922 = vpop.f32.mrb[0].mxu0
        %v5923 = vadd.f32 0.0, %v5922
        %v5924 = vpop.f32.mrb[0].mxu0
        %v5925 = vadd.f32 0.0, %v5924
        %v5926 = vpop.f32.mrb[0].mxu0
        %v5927 = vadd.f32 0.0, %v5926
        %v5928 = vpop.f32.mrb[0].mxu0
        %v5929 = vadd.f32 0.0, %v5928
        %5930 = vdwg.mxu0
        %5931 = vmatprep.subr.bf16.mxu0 0
        %5932 = vmatpush1.bf16.msra.mxu0 %v5881
        %5933 = vmatprep.subr.bf16.mxu0 0
        %5934 = vmatpush1.bf16.msra.mxu0 0
        %5935 = vmatprep.subr.bf16.mxu0 0
        %5936 = vmatpush1.bf16.msra.mxu0 0
        %5937 = vmatprep.subr.bf16.mxu0 0
        %5938 = vmatpush1.bf16.msra.mxu0 0
        %5939 = vmatprep.subr.bf16.mxu0 0
        %5940 = vmatpush1.bf16.msra.mxu0 0
        %5941 = vmatprep.subr.bf16.mxu0 0
        %5942 = vmatpush1.bf16.msra.mxu0 0
        %5943 = vmatprep.subr.bf16.mxu0 0
        %5944 = vmatpush1.bf16.msra.mxu0 0
        %5945 = vmatprep.subr.bf16.mxu0 0
        %5946 = vmatpush1.bf16.msra.mxu0 0
        %5947 = vmatprep.subr.bf16.mxu0 0
        %5948 = vmatpush1.bf16.msra.mxu0 0
        %5949 = vmatprep.subr.bf16.mxu0 0
        %5950 = vmatpush1.bf16.msra.mxu0 0
        %5951 = vmatprep.subr.bf16.mxu0 0
        %5952 = vmatpush1.bf16.msra.mxu0 0
        %5953 = vmatprep.subr.bf16.mxu0 0
        %5954 = vmatpush1.bf16.msra.mxu0 0
        %5955 = vmatprep.subr.bf16.mxu0 0
        %5956 = vmatpush1.bf16.msra.mxu0 0
        %5957 = vmatprep.subr.bf16.mxu0 0
        %5958 = vmatpush1.bf16.msra.mxu0 0
        %5959 = vmatprep.subr.bf16.mxu0 0
        %5960 = vmatpush1.bf16.msra.mxu0 0
        %5961 = vmatprep.subr.bf16.mxu0 0
        %5962 = vmatpush1.bf16.msra.mxu0 0
        %5963 = vmatprep.mubr.bf16.mxu0 0
        %5964 = vmatmul.mubr.bf16.gmra.mrb[0].mxu0 %v5886
        %v5965 = vpop.f32.mrb[0].mxu0
        %v5966 = vadd.f32 0.0, %v5965
        %v5967 = vpop.f32.mrb[0].mxu0
        %v5968 = vpop.f32.mrb[0].mxu0
        %v5969 = vadd.f32 0.0, %v5968
        %v5970 = vpop.f32.mrb[0].mxu0
        %5971 = vdwg.mxu0
        %v5972 = vadd.f32 %v5857, %v5923
        %v5973 = vadd.f32 %v5858, %v5925
        %v5974 = vadd.f32 %v5859, %v5966
        %v5975 = vadd.f32 %v5860, %v5927
        %v5976 = vadd.f32 %v5861, %v5929
        %v5977 = vadd.f32 %v5862, %v5969
        %v5978 = vld [vmem:[%s11] sm:$0xff]
        %v5979 = vld [vmem:[%s11 + $0x8] sm:$0xff]
        %5981 = vset.pattern.permute.xlu0 0
        %5982 = vperm.xlu0 %5981, %v5978
        %v5983 = vpop.permute.xlu0 %5982
        %5986 = vset.pattern.permute.xlu0 0
        %5987 = vperm.xlu0 %5986, %v5979
        %v5988 = vpop.permute.xlu0 %5987
        %v5990 = vadd.f32 %v5972, %v5983
        %v5991 = vadd.f32 %v5973, %v5983
        %v5992 = vadd.f32 %v5974, %v5983
        %v5993 = vadd.f32 %v5975, %v5988
        %v5994 = vadd.f32 %v5976, %v5988
        %v5995 = vadd.f32 %v5977, %v5988
        %v5996 = vmax.f32 %v5990, 0.0
        %v5997 = vmax.f32 %v5991, 0.0
        %v5998 = vmax.f32 %v5992, 0.0
        %v5999 = vmax.f32 %v5993, 0.0
        %v6000 = vmax.f32 %v5994, 0.0
        %v6001 = vmax.f32 %v5995, 0.0
        %v6002 = vmul.f32 %v5996, %v1750
        %v6003 = vmul.f32 %v5997, %v1754
        %v6004 = vmul.f32 %v5998, %v1758
        %v6005 = vmul.f32 %v5999, %v1750
        %v6006 = vmul.f32 %v6000, %v1754
        %v6007 = vmul.f32 %v6001, %v1758
        %v6008 = vpack.c.bf16 %v6005, %v6002
        %v6009 = vpack.c.bf16 %v6006, %v6003
        %v6010 = vpack.c.bf16 %v6007, %v6004
        %6011 = vst [vmem:[#allocation2 + $0xd0] sm:$0xff] %v6008
        %6012 = vst [vmem:[#allocation2 + $0xd8] sm:$0xff] %v6009
        %6013 = vst [vmem:[#allocation2 + $0xe0] sm:$0xff] %v6010
        %v6014 = vld [vmem:[#allocation2 + $0xc8] sm:$0xff]
        %v6015 = vld [vmem:[#allocation2 + $0xd0] sm:$0xff]
        %v6016 = vld [vmem:[#allocation2 + $0xd8] sm:$0xff]
        %v6017 = vld [vmem:[#allocation2 + $0xe0] sm:$0xff]
        %v6018 = vld [vmem:[%s12] sm:$0xf]
        %v6019 = vld [vmem:[%s12 + $0x4] sm:$0xf]
        %s6020 = scalar_lea.vmem %s12, 8
        %v6021 = vld [vmem:[%s6020] sm:$0xf]
        %v6022 = vld [vmem:[%s6020 + $0x4] sm:$0xf]
        %v6025 = vunpack.c.l.b16 %v6021
        %v6026 = vunpack.c.l.b16 %v6022
        %v6027 = vpack.c.b16 %v6026, %v6025
        %6032 = vrot.lane.b32.xlu0 %v6014, 18
        %v6033 = vpop.permute.xlu0 %6032
        %6034 = vrot.lane.b32.xlu0 %v6015, 18
        %v6035 = vpop.permute.xlu0 %6034
        %6036 = vrot.lane.b32.xlu0 %v6016, 18
        %v6037 = vpop.permute.xlu0 %6036
        %6038 = vrot.lane.b32.xlu0 %v6017, 18
        %v6039 = vpop.permute.xlu0 %6038
        %v6040 = vsel %vm715, %v6033, %v6035
        %v6041 = vsel %vm715, %v6035, %v6037
        %v6042 = vsel %vm715, %v6037, %v6039
        %v6047 = vsel %vm722, %v6027, 0
        %6049 = vmatprep.subr.bf16.mxu0 %v6041
        %6050 = vmatpush1.bf16.msra.mxu0 %v6040
        %6051 = vmatprep.subr.bf16.mxu0 0
        %6052 = vmatpush1.bf16.msra.mxu0 0
        %6053 = vmatprep.subr.bf16.mxu0 0
        %6054 = vmatpush1.bf16.msra.mxu0 0
        %6055 = vmatprep.subr.bf16.mxu0 0
        %6056 = vmatpush1.bf16.msra.mxu0 0
        %6057 = vmatprep.subr.bf16.mxu0 0
        %6058 = vmatpush1.bf16.msra.mxu0 0
        %6059 = vmatprep.subr.bf16.mxu0 0
        %6060 = vmatpush1.bf16.msra.mxu0 0
        %6061 = vmatprep.subr.bf16.mxu0 0
        %6062 = vmatpush1.bf16.msra.mxu0 0
        %6063 = vmatprep.subr.bf16.mxu0 0
        %6064 = vmatpush1.bf16.msra.mxu0 0
        %6065 = vmatprep.subr.bf16.mxu0 0
        %6066 = vmatpush1.bf16.msra.mxu0 0
        %6067 = vmatprep.subr.bf16.mxu0 0
        %6068 = vmatpush1.bf16.msra.mxu0 0
        %6069 = vmatprep.subr.bf16.mxu0 0
        %6070 = vmatpush1.bf16.msra.mxu0 0
        %6071 = vmatprep.subr.bf16.mxu0 0
        %6072 = vmatpush1.bf16.msra.mxu0 0
        %6073 = vmatprep.subr.bf16.mxu0 0
        %6074 = vmatpush1.bf16.msra.mxu0 0
        %6075 = vmatprep.subr.bf16.mxu0 0
        %6076 = vmatpush1.bf16.msra.mxu0 0
        %6077 = vmatprep.subr.bf16.mxu0 0
        %6078 = vmatpush1.bf16.msra.mxu0 0
        %6079 = vmatprep.subr.bf16.mxu0 0
        %6080 = vmatpush1.bf16.msra.mxu0 0
        %6081 = vmatprep.mubr.bf16.mxu0 0
        %6082 = vmatmul.mubr.bf16.gmra.mrb[0].mxu0 %v6047
        %v6083 = vpop.f32.mrb[0].mxu0
        %v6084 = vadd.f32 0.0, %v6083
        %v6085 = vpop.f32.mrb[0].mxu0
        %v6086 = vadd.f32 0.0, %v6085
        %v6087 = vpop.f32.mrb[0].mxu0
        %v6088 = vadd.f32 0.0, %v6087
        %v6089 = vpop.f32.mrb[0].mxu0
        %v6090 = vadd.f32 0.0, %v6089
        %6091 = vdwg.mxu0
        %6092 = vmatprep.subr.bf16.mxu0 0
        %6093 = vmatpush1.bf16.msra.mxu0 %v6042
        %6094 = vmatprep.subr.bf16.mxu0 0
        %6095 = vmatpush1.bf16.msra.mxu0 0
        %6096 = vmatprep.subr.bf16.mxu0 0
        %6097 = vmatpush1.bf16.msra.mxu0 0
        %6098 = vmatprep.subr.bf16.mxu0 0
        %6099 = vmatpush1.bf16.msra.mxu0 0
        %6100 = vmatprep.subr.bf16.mxu0 0
        %6101 = vmatpush1.bf16.msra.mxu0 0
        %6102 = vmatprep.subr.bf16.mxu0 0
        %6103 = vmatpush1.bf16.msra.mxu0 0
        %6104 = vmatprep.subr.bf16.mxu0 0
        %6105 = vmatpush1.bf16.msra.mxu0 0
        %6106 = vmatprep.subr.bf16.mxu0 0
        %6107 = vmatpush1.bf16.msra.mxu0 0
        %6108 = vmatprep.subr.bf16.mxu0 0
        %6109 = vmatpush1.bf16.msra.mxu0 0
        %6110 = vmatprep.subr.bf16.mxu0 0
        %6111 = vmatpush1.bf16.msra.mxu0 0
        %6112 = vmatprep.subr.bf16.mxu0 0
        %6113 = vmatpush1.bf16.msra.mxu0 0
        %6114 = vmatprep.subr.bf16.mxu0 0
        %6115 = vmatpush1.bf16.msra.mxu0 0
        %6116 = vmatprep.subr.bf16.mxu0 0
        %6117 = vmatpush1.bf16.msra.mxu0 0
        %6118 = vmatprep.subr.bf16.mxu0 0
        %6119 = vmatpush1.bf16.msra.mxu0 0
        %6120 = vmatprep.subr.bf16.mxu0 0
        %6121 = vmatpush1.bf16.msra.mxu0 0
        %6122 = vmatprep.subr.bf16.mxu0 0
        %6123 = vmatpush1.bf16.msra.mxu0 0
        %6124 = vmatprep.mubr.bf16.mxu0 0
        %6125 = vmatmul.mubr.bf16.gmra.mrb[0].mxu0 %v6047
        %v6126 = vpop.f32.mrb[0].mxu0
        %v6127 = vadd.f32 0.0, %v6126
        %v6128 = vpop.f32.mrb[0].mxu0
        %v6129 = vpop.f32.mrb[0].mxu0
        %v6130 = vadd.f32 0.0, %v6129
        %v6131 = vpop.f32.mrb[0].mxu0
        %6132 = vdwg.mxu0
        %v6135 = vunpack.c.l.b16 %v6018
        %v6136 = vunpack.c.l.b16 %v6019
        %v6137 = vpack.c.b16 %v6136, %v6135
        %6138 = vrot.lane.b32.xlu0 %v6014, 19
        %v6139 = vpop.permute.xlu0 %6138
        %6140 = vrot.lane.b32.xlu0 %v6015, 19
        %v6141 = vpop.permute.xlu0 %6140
        %6142 = vrot.lane.b32.xlu0 %v6016, 19
        %v6143 = vpop.permute.xlu0 %6142
        %6144 = vrot.lane.b32.xlu0 %v6017, 19
        %v6145 = vpop.permute.xlu0 %6144
        %v6146 = vsel %vm823, %v6139, %v6141
        %v6147 = vsel %vm823, %v6141, %v6143
        %v6148 = vsel %vm823, %v6143, %v6145
        %v6153 = vsel %vm722, %v6137, 0
        %6155 = vmatprep.subr.bf16.mxu0 %v6147
        %6156 = vmatpush1.bf16.msra.mxu0 %v6146
        %6157 = vmatprep.subr.bf16.mxu0 0
        %6158 = vmatpush1.bf16.msra.mxu0 0
        %6159 = vmatprep.subr.bf16.mxu0 0
        %6160 = vmatpush1.bf16.msra.mxu0 0
        %6161 = vmatprep.subr.bf16.mxu0 0
        %6162 = vmatpush1.bf16.msra.mxu0 0
        %6163 = vmatprep.subr.bf16.mxu0 0
        %6164 = vmatpush1.bf16.msra.mxu0 0
        %6165 = vmatprep.subr.bf16.mxu0 0
        %6166 = vmatpush1.bf16.msra.mxu0 0
        %6167 = vmatprep.subr.bf16.mxu0 0
        %6168 = vmatpush1.bf16.msra.mxu0 0
        %6169 = vmatprep.subr.bf16.mxu0 0
        %6170 = vmatpush1.bf16.msra.mxu0 0
        %6171 = vmatprep.subr.bf16.mxu0 0
        %6172 = vmatpush1.bf16.msra.mxu0 0
        %6173 = vmatprep.subr.bf16.mxu0 0
        %6174 = vmatpush1.bf16.msra.mxu0 0
        %6175 = vmatprep.subr.bf16.mxu0 0
        %6176 = vmatpush1.bf16.msra.mxu0 0
        %6177 = vmatprep.subr.bf16.mxu0 0
        %6178 = vmatpush1.bf16.msra.mxu0 0
        %6179 = vmatprep.subr.bf16.mxu0 0
        %6180 = vmatpush1.bf16.msra.mxu0 0
        %6181 = vmatprep.subr.bf16.mxu0 0
        %6182 = vmatpush1.bf16.msra.mxu0 0
        %6183 = vmatprep.subr.bf16.mxu0 0
        %6184 = vmatpush1.bf16.msra.mxu0 0
        %6185 = vmatprep.subr.bf16.mxu0 0
        %6186 = vmatpush1.bf16.msra.mxu0 0
        %6187 = vmatprep.mubr.bf16.mxu0 0
        %6188 = vmatmul.mubr.bf16.gmra.mrb[0].mxu0 %v6153
        %v6189 = vpop.f32.mrb[0].mxu0
        %v6190 = vadd.f32 %v6084, %v6189
        %v6191 = vpop.f32.mrb[0].mxu0
        %v6192 = vadd.f32 %v6086, %v6191
        %v6193 = vpop.f32.mrb[0].mxu0
        %v6194 = vadd.f32 %v6088, %v6193
        %v6195 = vpop.f32.mrb[0].mxu0
        %v6196 = vadd.f32 %v6090, %v6195
        %6197 = vdwg.mxu0
        %6198 = vmatprep.subr.bf16.mxu0 0
        %6199 = vmatpush1.bf16.msra.mxu0 %v6148
        %6200 = vmatprep.subr.bf16.mxu0 0
        %6201 = vmatpush1.bf16.msra.mxu0 0
        %6202 = vmatprep.subr.bf16.mxu0 0
        %6203 = vmatpush1.bf16.msra.mxu0 0
        %6204 = vmatprep.subr.bf16.mxu0 0
        %6205 = vmatpush1.bf16.msra.mxu0 0
        %6206 = vmatprep.subr.bf16.mxu0 0
        %6207 = vmatpush1.bf16.msra.mxu0 0
        %6208 = vmatprep.subr.bf16.mxu0 0
        %6209 = vmatpush1.bf16.msra.mxu0 0
        %6210 = vmatprep.subr.bf16.mxu0 0
        %6211 = vmatpush1.bf16.msra.mxu0 0
        %6212 = vmatprep.subr.bf16.mxu0 0
        %6213 = vmatpush1.bf16.msra.mxu0 0
        %6214 = vmatprep.subr.bf16.mxu0 0
        %6215 = vmatpush1.bf16.msra.mxu0 0
        %6216 = vmatprep.subr.bf16.mxu0 0
        %6217 = vmatpush1.bf16.msra.mxu0 0
        %6218 = vmatprep.subr.bf16.mxu0 0
        %6219 = vmatpush1.bf16.msra.mxu0 0
        %6220 = vmatprep.subr.bf16.mxu0 0
        %6221 = vmatpush1.bf16.msra.mxu0 0
        %6222 = vmatprep.subr.bf16.mxu0 0
        %6223 = vmatpush1.bf16.msra.mxu0 0
        %6224 = vmatprep.subr.bf16.mxu0 0
        %6225 = vmatpush1.bf16.msra.mxu0 0
        %6226 = vmatprep.subr.bf16.mxu0 0
        %6227 = vmatpush1.bf16.msra.mxu0 0
        %6228 = vmatprep.subr.bf16.mxu0 0
        %6229 = vmatpush1.bf16.msra.mxu0 0
        %6230 = vmatprep.mubr.bf16.mxu0 0
        %6231 = vmatmul.mubr.bf16.gmra.mrb[0].mxu0 %v6153
        %v6232 = vpop.f32.mrb[0].mxu0
        %v6233 = vadd.f32 %v6127, %v6232
        %v6234 = vpop.f32.mrb[0].mxu0
        %v6235 = vpop.f32.mrb[0].mxu0
        %v6236 = vadd.f32 %v6130, %v6235
        %v6237 = vpop.f32.mrb[0].mxu0
        %6238 = vdwg.mxu0
        %s6239 = scalar_lea.vmem %s12, 16
        %v6240 = vld [vmem:[%s6239] sm:$0xf]
        %v6241 = vld [vmem:[%s6239 + $0x4] sm:$0xf]
        %v6244 = vunpack.c.l.b16 %v6240
        %v6245 = vunpack.c.l.b16 %v6241
        %v6246 = vpack.c.b16 %v6245, %v6244
        %6247 = vrot.lane.b32.xlu0 %v6014, 17
        %v6248 = vpop.permute.xlu0 %6247
        %6249 = vrot.lane.b32.xlu0 %v6015, 17
        %v6250 = vpop.permute.xlu0 %6249
        %6251 = vrot.lane.b32.xlu0 %v6016, 17
        %v6252 = vpop.permute.xlu0 %6251
        %6253 = vrot.lane.b32.xlu0 %v6017, 17
        %v6254 = vpop.permute.xlu0 %6253
        %v6255 = vsel %vm933, %v6248, %v6250
        %v6256 = vsel %vm933, %v6250, %v6252
        %v6257 = vsel %vm933, %v6252, %v6254
        %v6262 = vsel %vm722, %v6246, 0
        %6264 = vmatprep.subr.bf16.mxu0 %v6256
        %6265 = vmatpush1.bf16.msra.mxu0 %v6255
        %6266 = vmatprep.subr.bf16.mxu0 0
        %6267 = vmatpush1.bf16.msra.mxu0 0
        %6268 = vmatprep.subr.bf16.mxu0 0
        %6269 = vmatpush1.bf16.msra.mxu0 0
        %6270 = vmatprep.subr.bf16.mxu0 0
        %6271 = vmatpush1.bf16.msra.mxu0 0
        %6272 = vmatprep.subr.bf16.mxu0 0
        %6273 = vmatpush1.bf16.msra.mxu0 0
        %6274 = vmatprep.subr.bf16.mxu0 0
        %6275 = vmatpush1.bf16.msra.mxu0 0
        %6276 = vmatprep.subr.bf16.mxu0 0
        %6277 = vmatpush1.bf16.msra.mxu0 0
        %6278 = vmatprep.subr.bf16.mxu0 0
        %6279 = vmatpush1.bf16.msra.mxu0 0
        %6280 = vmatprep.subr.bf16.mxu0 0
        %6281 = vmatpush1.bf16.msra.mxu0 0
        %6282 = vmatprep.subr.bf16.mxu0 0
        %6283 = vmatpush1.bf16.msra.mxu0 0
        %6284 = vmatprep.subr.bf16.mxu0 0
        %6285 = vmatpush1.bf16.msra.mxu0 0
        %6286 = vmatprep.subr.bf16.mxu0 0
        %6287 = vmatpush1.bf16.msra.mxu0 0
        %6288 = vmatprep.subr.bf16.mxu0 0
        %6289 = vmatpush1.bf16.msra.mxu0 0
        %6290 = vmatprep.subr.bf16.mxu0 0
        %6291 = vmatpush1.bf16.msra.mxu0 0
        %6292 = vmatprep.subr.bf16.mxu0 0
        %6293 = vmatpush1.bf16.msra.mxu0 0
        %6294 = vmatprep.subr.bf16.mxu0 0
        %6295 = vmatpush1.bf16.msra.mxu0 0
        %6296 = vmatprep.mubr.bf16.mxu0 0
        %6297 = vmatmul.mubr.bf16.gmra.mrb[0].mxu0 %v6262
        %v6298 = vpop.f32.mrb[0].mxu0
        %v6299 = vadd.f32 0.0, %v6298
        %v6300 = vpop.f32.mrb[0].mxu0
        %v6301 = vadd.f32 0.0, %v6300
        %v6302 = vpop.f32.mrb[0].mxu0
        %v6303 = vadd.f32 0.0, %v6302
        %v6304 = vpop.f32.mrb[0].mxu0
        %v6305 = vadd.f32 0.0, %v6304
        %6306 = vdwg.mxu0
        %6307 = vmatprep.subr.bf16.mxu0 0
        %6308 = vmatpush1.bf16.msra.mxu0 %v6257
        %6309 = vmatprep.subr.bf16.mxu0 0
        %6310 = vmatpush1.bf16.msra.mxu0 0
        %6311 = vmatprep.subr.bf16.mxu0 0
        %6312 = vmatpush1.bf16.msra.mxu0 0
        %6313 = vmatprep.subr.bf16.mxu0 0
        %6314 = vmatpush1.bf16.msra.mxu0 0
        %6315 = vmatprep.subr.bf16.mxu0 0
        %6316 = vmatpush1.bf16.msra.mxu0 0
        %6317 = vmatprep.subr.bf16.mxu0 0
        %6318 = vmatpush1.bf16.msra.mxu0 0
        %6319 = vmatprep.subr.bf16.mxu0 0
        %6320 = vmatpush1.bf16.msra.mxu0 0
        %6321 = vmatprep.subr.bf16.mxu0 0
        %6322 = vmatpush1.bf16.msra.mxu0 0
        %6323 = vmatprep.subr.bf16.mxu0 0
        %6324 = vmatpush1.bf16.msra.mxu0 0
        %6325 = vmatprep.subr.bf16.mxu0 0
        %6326 = vmatpush1.bf16.msra.mxu0 0
        %6327 = vmatprep.subr.bf16.mxu0 0
        %6328 = vmatpush1.bf16.msra.mxu0 0
        %6329 = vmatprep.subr.bf16.mxu0 0
        %6330 = vmatpush1.bf16.msra.mxu0 0
        %6331 = vmatprep.subr.bf16.mxu0 0
        %6332 = vmatpush1.bf16.msra.mxu0 0
        %6333 = vmatprep.subr.bf16.mxu0 0
        %6334 = vmatpush1.bf16.msra.mxu0 0
        %6335 = vmatprep.subr.bf16.mxu0 0
        %6336 = vmatpush1.bf16.msra.mxu0 0
        %6337 = vmatprep.subr.bf16.mxu0 0
        %6338 = vmatpush1.bf16.msra.mxu0 0
        %6339 = vmatprep.mubr.bf16.mxu0 0
        %6340 = vmatmul.mubr.bf16.gmra.mrb[0].mxu0 %v6262
        %v6341 = vpop.f32.mrb[0].mxu0
        %v6342 = vadd.f32 0.0, %v6341
        %v6343 = vpop.f32.mrb[0].mxu0
        %v6344 = vpop.f32.mrb[0].mxu0
        %v6345 = vadd.f32 0.0, %v6344
        %v6346 = vpop.f32.mrb[0].mxu0
        %6347 = vdwg.mxu0
        %v6348 = vadd.f32 %v6190, %v6299
        %v6349 = vadd.f32 %v6192, %v6301
        %v6350 = vadd.f32 %v6233, %v6342
        %v6351 = vadd.f32 %v6194, %v6303
        %v6352 = vadd.f32 %v6196, %v6305
        %v6353 = vadd.f32 %v6236, %v6345
        %s6354 = scalar_lea.vmem %s12, 24
        %v6355 = vld [vmem:[%s6354] sm:$0xf]
        %v6356 = vld [vmem:[%s6354 + $0x4] sm:$0xf]
        %v6359 = vunpack.c.l.b16 %v6355
        %v6360 = vunpack.c.l.b16 %v6356
        %v6361 = vpack.c.b16 %v6360, %v6359
        %6362 = vrot.lane.b32.xlu0 %v6014, 1
        %v6363 = vpop.permute.xlu0 %6362
        %6364 = vrot.lane.b32.xlu0 %v6015, 1
        %v6365 = vpop.permute.xlu0 %6364
        %6366 = vrot.lane.b32.xlu0 %v6016, 1
        %v6367 = vpop.permute.xlu0 %6366
        %6368 = vrot.lane.b32.xlu0 %v6017, 1
        %v6369 = vpop.permute.xlu0 %6368
        %v6370 = vsel %vm1049, %v6363, %v6365
        %v6371 = vsel %vm1049, %v6365, %v6367
        %v6372 = vsel %vm1049, %v6367, %v6369
        %v6377 = vsel %vm722, %v6361, 0
        %6379 = vmatprep.subr.bf16.mxu0 %v6371
        %6380 = vmatpush1.bf16.msra.mxu0 %v6370
        %6381 = vmatprep.subr.bf16.mxu0 0
        %6382 = vmatpush1.bf16.msra.mxu0 0
        %6383 = vmatprep.subr.bf16.mxu0 0
        %6384 = vmatpush1.bf16.msra.mxu0 0
        %6385 = vmatprep.subr.bf16.mxu0 0
        %6386 = vmatpush1.bf16.msra.mxu0 0
        %6387 = vmatprep.subr.bf16.mxu0 0
        %6388 = vmatpush1.bf16.msra.mxu0 0
        %6389 = vmatprep.subr.bf16.mxu0 0
        %6390 = vmatpush1.bf16.msra.mxu0 0
        %6391 = vmatprep.subr.bf16.mxu0 0
        %6392 = vmatpush1.bf16.msra.mxu0 0
        %6393 = vmatprep.subr.bf16.mxu0 0
        %6394 = vmatpush1.bf16.msra.mxu0 0
        %6395 = vmatprep.subr.bf16.mxu0 0
        %6396 = vmatpush1.bf16.msra.mxu0 0
        %6397 = vmatprep.subr.bf16.mxu0 0
        %6398 = vmatpush1.bf16.msra.mxu0 0
        %6399 = vmatprep.subr.bf16.mxu0 0
        %6400 = vmatpush1.bf16.msra.mxu0 0
        %6401 = vmatprep.subr.bf16.mxu0 0
        %6402 = vmatpush1.bf16.msra.mxu0 0
        %6403 = vmatprep.subr.bf16.mxu0 0
        %6404 = vmatpush1.bf16.msra.mxu0 0
        %6405 = vmatprep.subr.bf16.mxu0 0
        %6406 = vmatpush1.bf16.msra.mxu0 0
        %6407 = vmatprep.subr.bf16.mxu0 0
        %6408 = vmatpush1.bf16.msra.mxu0 0
        %6409 = vmatprep.subr.bf16.mxu0 0
        %6410 = vmatpush1.bf16.msra.mxu0 0
        %6411 = vmatprep.mubr.bf16.mxu0 0
        %6412 = vmatmul.mubr.bf16.gmra.mrb[0].mxu0 %v6377
        %v6413 = vpop.f32.mrb[0].mxu0
        %v6414 = vadd.f32 0.0, %v6413
        %v6415 = vpop.f32.mrb[0].mxu0
        %v6416 = vadd.f32 0.0, %v6415
        %v6417 = vpop.f32.mrb[0].mxu0
        %v6418 = vadd.f32 0.0, %v6417
        %v6419 = vpop.f32.mrb[0].mxu0
        %v6420 = vadd.f32 0.0, %v6419
        %6421 = vdwg.mxu0
        %6422 = vmatprep.subr.bf16.mxu0 0
        %6423 = vmatpush1.bf16.msra.mxu0 %v6372
        %6424 = vmatprep.subr.bf16.mxu0 0
        %6425 = vmatpush1.bf16.msra.mxu0 0
        %6426 = vmatprep.subr.bf16.mxu0 0
        %6427 = vmatpush1.bf16.msra.mxu0 0
        %6428 = vmatprep.subr.bf16.mxu0 0
        %6429 = vmatpush1.bf16.msra.mxu0 0
        %6430 = vmatprep.subr.bf16.mxu0 0
        %6431 = vmatpush1.bf16.msra.mxu0 0
        %6432 = vmatprep.subr.bf16.mxu0 0
        %6433 = vmatpush1.bf16.msra.mxu0 0
        %6434 = vmatprep.subr.bf16.mxu0 0
        %6435 = vmatpush1.bf16.msra.mxu0 0
        %6436 = vmatprep.subr.bf16.mxu0 0
        %6437 = vmatpush1.bf16.msra.mxu0 0
        %6438 = vmatprep.subr.bf16.mxu0 0
        %6439 = vmatpush1.bf16.msra.mxu0 0
        %6440 = vmatprep.subr.bf16.mxu0 0
        %6441 = vmatpush1.bf16.msra.mxu0 0
        %6442 = vmatprep.subr.bf16.mxu0 0
        %6443 = vmatpush1.bf16.msra.mxu0 0
        %6444 = vmatprep.subr.bf16.mxu0 0
        %6445 = vmatpush1.bf16.msra.mxu0 0
        %6446 = vmatprep.subr.bf16.mxu0 0
        %6447 = vmatpush1.bf16.msra.mxu0 0
        %6448 = vmatprep.subr.bf16.mxu0 0
        %6449 = vmatpush1.bf16.msra.mxu0 0
        %6450 = vmatprep.subr.bf16.mxu0 0
        %6451 = vmatpush1.bf16.msra.mxu0 0
        %6452 = vmatprep.subr.bf16.mxu0 0
        %6453 = vmatpush1.bf16.msra.mxu0 0
        %6454 = vmatprep.mubr.bf16.mxu0 0
        %6455 = vmatmul.mubr.bf16.gmra.mrb[0].mxu0 %v6377
        %v6456 = vpop.f32.mrb[0].mxu0
        %v6457 = vadd.f32 0.0, %v6456
        %v6458 = vpop.f32.mrb[0].mxu0
        %v6459 = vpop.f32.mrb[0].mxu0
        %v6460 = vadd.f32 0.0, %v6459
        %v6461 = vpop.f32.mrb[0].mxu0
        %6462 = vdwg.mxu0
        %v6463 = vadd.f32 %v6348, %v6414
        %v6464 = vadd.f32 %v6349, %v6416
        %v6465 = vadd.f32 %v6350, %v6457
        %v6466 = vadd.f32 %v6351, %v6418
        %v6467 = vadd.f32 %v6352, %v6420
        %v6468 = vadd.f32 %v6353, %v6460
        %s6469 = scalar_lea.vmem %s12, 32
        %v6470 = vld [vmem:[%s6469] sm:$0xf]
        %v6471 = vld [vmem:[%s6469 + $0x4] sm:$0xf]
        %v6474 = vunpack.c.l.b16 %v6470
        %v6475 = vunpack.c.l.b16 %v6471
        %v6476 = vpack.c.b16 %v6475, %v6474
        %v6478 = vsel %vm722, %v6476, 0
        %6480 = vmatprep.subr.bf16.mxu0 %v6016
        %6481 = vmatpush1.bf16.msra.mxu0 %v6015
        %6482 = vmatprep.subr.bf16.mxu0 0
        %6483 = vmatpush1.bf16.msra.mxu0 0
        %6484 = vmatprep.subr.bf16.mxu0 0
        %6485 = vmatpush1.bf16.msra.mxu0 0
        %6486 = vmatprep.subr.bf16.mxu0 0
        %6487 = vmatpush1.bf16.msra.mxu0 0
        %6488 = vmatprep.subr.bf16.mxu0 0
        %6489 = vmatpush1.bf16.msra.mxu0 0
        %6490 = vmatprep.subr.bf16.mxu0 0
        %6491 = vmatpush1.bf16.msra.mxu0 0
        %6492 = vmatprep.subr.bf16.mxu0 0
        %6493 = vmatpush1.bf16.msra.mxu0 0
        %6494 = vmatprep.subr.bf16.mxu0 0
        %6495 = vmatpush1.bf16.msra.mxu0 0
        %6496 = vmatprep.subr.bf16.mxu0 0
        %6497 = vmatpush1.bf16.msra.mxu0 0
        %6498 = vmatprep.subr.bf16.mxu0 0
        %6499 = vmatpush1.bf16.msra.mxu0 0
        %6500 = vmatprep.subr.bf16.mxu0 0
        %6501 = vmatpush1.bf16.msra.mxu0 0
        %6502 = vmatprep.subr.bf16.mxu0 0
        %6503 = vmatpush1.bf16.msra.mxu0 0
        %6504 = vmatprep.subr.bf16.mxu0 0
        %6505 = vmatpush1.bf16.msra.mxu0 0
        %6506 = vmatprep.subr.bf16.mxu0 0
        %6507 = vmatpush1.bf16.msra.mxu0 0
        %6508 = vmatprep.subr.bf16.mxu0 0
        %6509 = vmatpush1.bf16.msra.mxu0 0
        %6510 = vmatprep.subr.bf16.mxu0 0
        %6511 = vmatpush1.bf16.msra.mxu0 0
        %6512 = vmatprep.mubr.bf16.mxu0 0
        %6513 = vmatmul.mubr.bf16.gmra.mrb[0].mxu0 %v6478
        %v6514 = vpop.f32.mrb[0].mxu0
        %v6515 = vadd.f32 0.0, %v6514
        %v6516 = vpop.f32.mrb[0].mxu0
        %v6517 = vadd.f32 0.0, %v6516
        %v6518 = vpop.f32.mrb[0].mxu0
        %v6519 = vadd.f32 0.0, %v6518
        %v6520 = vpop.f32.mrb[0].mxu0
        %v6521 = vadd.f32 0.0, %v6520
        %6522 = vdwg.mxu0
        %6523 = vmatprep.subr.bf16.mxu0 0
        %6524 = vmatpush1.bf16.msra.mxu0 %v6017
        %6525 = vmatprep.subr.bf16.mxu0 0
        %6526 = vmatpush1.bf16.msra.mxu0 0
        %6527 = vmatprep.subr.bf16.mxu0 0
        %6528 = vmatpush1.bf16.msra.mxu0 0
        %6529 = vmatprep.subr.bf16.mxu0 0
        %6530 = vmatpush1.bf16.msra.mxu0 0
        %6531 = vmatprep.subr.bf16.mxu0 0
        %6532 = vmatpush1.bf16.msra.mxu0 0
        %6533 = vmatprep.subr.bf16.mxu0 0
        %6534 = vmatpush1.bf16.msra.mxu0 0
        %6535 = vmatprep.subr.bf16.mxu0 0
        %6536 = vmatpush1.bf16.msra.mxu0 0
        %6537 = vmatprep.subr.bf16.mxu0 0
        %6538 = vmatpush1.bf16.msra.mxu0 0
        %6539 = vmatprep.subr.bf16.mxu0 0
        %6540 = vmatpush1.bf16.msra.mxu0 0
        %6541 = vmatprep.subr.bf16.mxu0 0
        %6542 = vmatpush1.bf16.msra.mxu0 0
        %6543 = vmatprep.subr.bf16.mxu0 0
        %6544 = vmatpush1.bf16.msra.mxu0 0
        %6545 = vmatprep.subr.bf16.mxu0 0
        %6546 = vmatpush1.bf16.msra.mxu0 0
        %6547 = vmatprep.subr.bf16.mxu0 0
        %6548 = vmatpush1.bf16.msra.mxu0 0
        %6549 = vmatprep.subr.bf16.mxu0 0
        %6550 = vmatpush1.bf16.msra.mxu0 0
        %6551 = vmatprep.subr.bf16.mxu0 0
        %6552 = vmatpush1.bf16.msra.mxu0 0
        %6553 = vmatprep.subr.bf16.mxu0 0
        %6554 = vmatpush1.bf16.msra.mxu0 0
        %6555 = vmatprep.mubr.bf16.mxu0 0
        %6556 = vmatmul.mubr.bf16.gmra.mrb[0].mxu0 %v6478
        %v6557 = vpop.f32.mrb[0].mxu0
        %v6558 = vadd.f32 0.0, %v6557
        %v6559 = vpop.f32.mrb[0].mxu0
        %v6560 = vpop.f32.mrb[0].mxu0
        %v6561 = vadd.f32 0.0, %v6560
        %v6562 = vpop.f32.mrb[0].mxu0
        %6563 = vdwg.mxu0
        %v6564 = vadd.f32 %v6463, %v6515
        %v6565 = vadd.f32 %v6464, %v6517
        %v6566 = vadd.f32 %v6465, %v6558
        %v6567 = vadd.f32 %v6466, %v6519
        %v6568 = vadd.f32 %v6467, %v6521
        %v6569 = vadd.f32 %v6468, %v6561
        %v6570 = vld [vmem:[#allocation2 + $0xd0] sm:$0xff]
        %v6571 = vld [vmem:[#allocation2 + $0xd8] sm:$0xff]
        %v6572 = vld [vmem:[#allocation2 + $0xe0] sm:$0xff]
        %v6573 = vld [vmem:[#allocation2 + $0xe8] sm:$0xff]
        %s6574 = scalar_lea.vmem %s12, 40
        %v6575 = vld [vmem:[%s6574] sm:$0xf]
        %v6576 = vld [vmem:[%s6574 + $0x4] sm:$0xf]
        %v6579 = vunpack.c.l.b16 %v6575
        %v6580 = vunpack.c.l.b16 %v6576
        %v6581 = vpack.c.b16 %v6580, %v6579
        %6586 = vrot.lane.b32.xlu0 %v6570, 127
        %v6587 = vpop.permute.xlu0 %6586
        %6588 = vrot.lane.b32.xlu0 %v6571, 127
        %v6589 = vpop.permute.xlu0 %6588
        %6590 = vrot.lane.b32.xlu0 %v6572, 127
        %v6591 = vpop.permute.xlu0 %6590
        %6592 = vrot.lane.b32.xlu0 %v6573, 127
        %v6593 = vpop.permute.xlu0 %6592
        %v6594 = vsel %vm1274, %v6587, %v6589
        %v6595 = vsel %vm1274, %v6589, %v6591
        %v6596 = vsel %vm1274, %v6591, %v6593
        %v6601 = vsel %vm722, %v6581, 0
        %6603 = vmatprep.subr.bf16.mxu0 %v6595
        %6604 = vmatpush1.bf16.msra.mxu0 %v6594
        %6605 = vmatprep.subr.bf16.mxu0 0
        %6606 = vmatpush1.bf16.msra.mxu0 0
        %6607 = vmatprep.subr.bf16.mxu0 0
        %6608 = vmatpush1.bf16.msra.mxu0 0
        %6609 = vmatprep.subr.bf16.mxu0 0
        %6610 = vmatpush1.bf16.msra.mxu0 0
        %6611 = vmatprep.subr.bf16.mxu0 0
        %6612 = vmatpush1.bf16.msra.mxu0 0
        %6613 = vmatprep.subr.bf16.mxu0 0
        %6614 = vmatpush1.bf16.msra.mxu0 0
        %6615 = vmatprep.subr.bf16.mxu0 0
        %6616 = vmatpush1.bf16.msra.mxu0 0
        %6617 = vmatprep.subr.bf16.mxu0 0
        %6618 = vmatpush1.bf16.msra.mxu0 0
        %6619 = vmatprep.subr.bf16.mxu0 0
        %6620 = vmatpush1.bf16.msra.mxu0 0
        %6621 = vmatprep.subr.bf16.mxu0 0
        %6622 = vmatpush1.bf16.msra.mxu0 0
        %6623 = vmatprep.subr.bf16.mxu0 0
        %6624 = vmatpush1.bf16.msra.mxu0 0
        %6625 = vmatprep.subr.bf16.mxu0 0
        %6626 = vmatpush1.bf16.msra.mxu0 0
        %6627 = vmatprep.subr.bf16.mxu0 0
        %6628 = vmatpush1.bf16.msra.mxu0 0
        %6629 = vmatprep.subr.bf16.mxu0 0
        %6630 = vmatpush1.bf16.msra.mxu0 0
        %6631 = vmatprep.subr.bf16.mxu0 0
        %6632 = vmatpush1.bf16.msra.mxu0 0
        %6633 = vmatprep.subr.bf16.mxu0 0
        %6634 = vmatpush1.bf16.msra.mxu0 0
        %6635 = vmatprep.mubr.bf16.mxu0 0
        %6636 = vmatmul.mubr.bf16.gmra.mrb[0].mxu0 %v6601
        %v6637 = vpop.f32.mrb[0].mxu0
        %v6638 = vadd.f32 0.0, %v6637
        %v6639 = vpop.f32.mrb[0].mxu0
        %v6640 = vadd.f32 0.0, %v6639
        %v6641 = vpop.f32.mrb[0].mxu0
        %v6642 = vadd.f32 0.0, %v6641
        %v6643 = vpop.f32.mrb[0].mxu0
        %v6644 = vadd.f32 0.0, %v6643
        %6645 = vdwg.mxu0
        %6646 = vmatprep.subr.bf16.mxu0 0
        %6647 = vmatpush1.bf16.msra.mxu0 %v6596
        %6648 = vmatprep.subr.bf16.mxu0 0
        %6649 = vmatpush1.bf16.msra.mxu0 0
        %6650 = vmatprep.subr.bf16.mxu0 0
        %6651 = vmatpush1.bf16.msra.mxu0 0
        %6652 = vmatprep.subr.bf16.mxu0 0
        %6653 = vmatpush1.bf16.msra.mxu0 0
        %6654 = vmatprep.subr.bf16.mxu0 0
        %6655 = vmatpush1.bf16.msra.mxu0 0
        %6656 = vmatprep.subr.bf16.mxu0 0
        %6657 = vmatpush1.bf16.msra.mxu0 0
        %6658 = vmatprep.subr.bf16.mxu0 0
        %6659 = vmatpush1.bf16.msra.mxu0 0
        %6660 = vmatprep.subr.bf16.mxu0 0
        %6661 = vmatpush1.bf16.msra.mxu0 0
        %6662 = vmatprep.subr.bf16.mxu0 0
        %6663 = vmatpush1.bf16.msra.mxu0 0
        %6664 = vmatprep.subr.bf16.mxu0 0
        %6665 = vmatpush1.bf16.msra.mxu0 0
        %6666 = vmatprep.subr.bf16.mxu0 0
        %6667 = vmatpush1.bf16.msra.mxu0 0
        %6668 = vmatprep.subr.bf16.mxu0 0
        %6669 = vmatpush1.bf16.msra.mxu0 0
        %6670 = vmatprep.subr.bf16.mxu0 0
        %6671 = vmatpush1.bf16.msra.mxu0 0
        %6672 = vmatprep.subr.bf16.mxu0 0
        %6673 = vmatpush1.bf16.msra.mxu0 0
        %6674 = vmatprep.subr.bf16.mxu0 0
        %6675 = vmatpush1.bf16.msra.mxu0 0
        %6676 = vmatprep.subr.bf16.mxu0 0
        %6677 = vmatpush1.bf16.msra.mxu0 0
        %6678 = vmatprep.mubr.bf16.mxu0 0
        %6679 = vmatmul.mubr.bf16.gmra.mrb[0].mxu0 %v6601
        %v6680 = vpop.f32.mrb[0].mxu0
        %v6681 = vadd.f32 0.0, %v6680
        %v6682 = vpop.f32.mrb[0].mxu0
        %v6683 = vpop.f32.mrb[0].mxu0
        %v6684 = vadd.f32 0.0, %v6683
        %v6685 = vpop.f32.mrb[0].mxu0
        %6686 = vdwg.mxu0
        %v6687 = vadd.f32 %v6564, %v6638
        %v6688 = vadd.f32 %v6565, %v6640
        %v6689 = vadd.f32 %v6566, %v6681
        %v6690 = vadd.f32 %v6567, %v6642
        %v6691 = vadd.f32 %v6568, %v6644
        %v6692 = vadd.f32 %v6569, %v6684
        %s6693 = scalar_lea.vmem %s12, 48
        %v6694 = vld [vmem:[%s6693] sm:$0xf]
        %v6695 = vld [vmem:[%s6693 + $0x4] sm:$0xf]
        %v6698 = vunpack.c.l.b16 %v6694
        %v6699 = vunpack.c.l.b16 %v6695
        %v6700 = vpack.c.b16 %v6699, %v6698
        %6701 = vrot.lane.b32.xlu0 %v6570, 111
        %v6702 = vpop.permute.xlu0 %6701
        %6703 = vrot.lane.b32.xlu0 %v6571, 111
        %v6704 = vpop.permute.xlu0 %6703
        %6705 = vrot.lane.b32.xlu0 %v6572, 111
        %v6706 = vpop.permute.xlu0 %6705
        %6707 = vrot.lane.b32.xlu0 %v6573, 111
        %v6708 = vpop.permute.xlu0 %6707
        %v6709 = vsel %vm1390, %v6702, %v6704
        %v6710 = vsel %vm1390, %v6704, %v6706
        %v6711 = vsel %vm1390, %v6706, %v6708
        %v6716 = vsel %vm722, %v6700, 0
        %6718 = vmatprep.subr.bf16.mxu0 %v6710
        %6719 = vmatpush1.bf16.msra.mxu0 %v6709
        %6720 = vmatprep.subr.bf16.mxu0 0
        %6721 = vmatpush1.bf16.msra.mxu0 0
        %6722 = vmatprep.subr.bf16.mxu0 0
        %6723 = vmatpush1.bf16.msra.mxu0 0
        %6724 = vmatprep.subr.bf16.mxu0 0
        %6725 = vmatpush1.bf16.msra.mxu0 0
        %6726 = vmatprep.subr.bf16.mxu0 0
        %6727 = vmatpush1.bf16.msra.mxu0 0
        %6728 = vmatprep.subr.bf16.mxu0 0
        %6729 = vmatpush1.bf16.msra.mxu0 0
        %6730 = vmatprep.subr.bf16.mxu0 0
        %6731 = vmatpush1.bf16.msra.mxu0 0
        %6732 = vmatprep.subr.bf16.mxu0 0
        %6733 = vmatpush1.bf16.msra.mxu0 0
        %6734 = vmatprep.subr.bf16.mxu0 0
        %6735 = vmatpush1.bf16.msra.mxu0 0
        %6736 = vmatprep.subr.bf16.mxu0 0
        %6737 = vmatpush1.bf16.msra.mxu0 0
        %6738 = vmatprep.subr.bf16.mxu0 0
        %6739 = vmatpush1.bf16.msra.mxu0 0
        %6740 = vmatprep.subr.bf16.mxu0 0
        %6741 = vmatpush1.bf16.msra.mxu0 0
        %6742 = vmatprep.subr.bf16.mxu0 0
        %6743 = vmatpush1.bf16.msra.mxu0 0
        %6744 = vmatprep.subr.bf16.mxu0 0
        %6745 = vmatpush1.bf16.msra.mxu0 0
        %6746 = vmatprep.subr.bf16.mxu0 0
        %6747 = vmatpush1.bf16.msra.mxu0 0
        %6748 = vmatprep.subr.bf16.mxu0 0
        %6749 = vmatpush1.bf16.msra.mxu0 0
        %6750 = vmatprep.mubr.bf16.mxu0 0
        %6751 = vmatmul.mubr.bf16.gmra.mrb[0].mxu0 %v6716
        %v6752 = vpop.f32.mrb[0].mxu0
        %v6753 = vadd.f32 0.0, %v6752
        %v6754 = vpop.f32.mrb[0].mxu0
        %v6755 = vadd.f32 0.0, %v6754
        %v6756 = vpop.f32.mrb[0].mxu0
        %v6757 = vadd.f32 0.0, %v6756
        %v6758 = vpop.f32.mrb[0].mxu0
        %v6759 = vadd.f32 0.0, %v6758
        %6760 = vdwg.mxu0
        %6761 = vmatprep.subr.bf16.mxu0 0
        %6762 = vmatpush1.bf16.msra.mxu0 %v6711
        %6763 = vmatprep.subr.bf16.mxu0 0
        %6764 = vmatpush1.bf16.msra.mxu0 0
        %6765 = vmatprep.subr.bf16.mxu0 0
        %6766 = vmatpush1.bf16.msra.mxu0 0
        %6767 = vmatprep.subr.bf16.mxu0 0
        %6768 = vmatpush1.bf16.msra.mxu0 0
        %6769 = vmatprep.subr.bf16.mxu0 0
        %6770 = vmatpush1.bf16.msra.mxu0 0
        %6771 = vmatprep.subr.bf16.mxu0 0
        %6772 = vmatpush1.bf16.msra.mxu0 0
        %6773 = vmatprep.subr.bf16.mxu0 0
        %6774 = vmatpush1.bf16.msra.mxu0 0
        %6775 = vmatprep.subr.bf16.mxu0 0
        %6776 = vmatpush1.bf16.msra.mxu0 0
        %6777 = vmatprep.subr.bf16.mxu0 0
        %6778 = vmatpush1.bf16.msra.mxu0 0
        %6779 = vmatprep.subr.bf16.mxu0 0
        %6780 = vmatpush1.bf16.msra.mxu0 0
        %6781 = vmatprep.subr.bf16.mxu0 0
        %6782 = vmatpush1.bf16.msra.mxu0 0
        %6783 = vmatprep.subr.bf16.mxu0 0
        %6784 = vmatpush1.bf16.msra.mxu0 0
        %6785 = vmatprep.subr.bf16.mxu0 0
        %6786 = vmatpush1.bf16.msra.mxu0 0
        %6787 = vmatprep.subr.bf16.mxu0 0
        %6788 = vmatpush1.bf16.msra.mxu0 0
        %6789 = vmatprep.subr.bf16.mxu0 0
        %6790 = vmatpush1.bf16.msra.mxu0 0
        %6791 = vmatprep.subr.bf16.mxu0 0
        %6792 = vmatpush1.bf16.msra.mxu0 0
        %6793 = vmatprep.mubr.bf16.mxu0 0
        %6794 = vmatmul.mubr.bf16.gmra.mrb[0].mxu0 %v6716
        %v6795 = vpop.f32.mrb[0].mxu0
        %v6796 = vadd.f32 0.0, %v6795
        %v6797 = vpop.f32.mrb[0].mxu0
        %v6798 = vpop.f32.mrb[0].mxu0
        %v6799 = vadd.f32 0.0, %v6798
        %v6800 = vpop.f32.mrb[0].mxu0
        %6801 = vdwg.mxu0
        %v6802 = vadd.f32 %v6687, %v6753
        %v6803 = vadd.f32 %v6688, %v6755
        %v6804 = vadd.f32 %v6689, %v6796
        %v6805 = vadd.f32 %v6690, %v6757
        %v6806 = vadd.f32 %v6691, %v6759
        %v6807 = vadd.f32 %v6692, %v6799
        %s6808 = scalar_lea.vmem %s12, 56
        %v6809 = vld [vmem:[%s6808] sm:$0xf]
        %v6810 = vld [vmem:[%s6808 + $0x4] sm:$0xf]
        %v6813 = vunpack.c.l.b16 %v6809
        %v6814 = vunpack.c.l.b16 %v6810
        %v6815 = vpack.c.b16 %v6814, %v6813
        %6816 = vrot.lane.b32.xlu0 %v6570, 110
        %v6817 = vpop.permute.xlu0 %6816
        %6818 = vrot.lane.b32.xlu0 %v6571, 110
        %v6819 = vpop.permute.xlu0 %6818
        %6820 = vrot.lane.b32.xlu0 %v6572, 110
        %v6821 = vpop.permute.xlu0 %6820
        %6822 = vrot.lane.b32.xlu0 %v6573, 110
        %v6823 = vpop.permute.xlu0 %6822
        %v6824 = vsel %vm1506, %v6817, %v6819
        %v6825 = vsel %vm1506, %v6819, %v6821
        %v6826 = vsel %vm1506, %v6821, %v6823
        %v6831 = vsel %vm722, %v6815, 0
        %6833 = vmatprep.subr.bf16.mxu0 %v6825
        %6834 = vmatpush1.bf16.msra.mxu0 %v6824
        %6835 = vmatprep.subr.bf16.mxu0 0
        %6836 = vmatpush1.bf16.msra.mxu0 0
        %6837 = vmatprep.subr.bf16.mxu0 0
        %6838 = vmatpush1.bf16.msra.mxu0 0
        %6839 = vmatprep.subr.bf16.mxu0 0
        %6840 = vmatpush1.bf16.msra.mxu0 0
        %6841 = vmatprep.subr.bf16.mxu0 0
        %6842 = vmatpush1.bf16.msra.mxu0 0
        %6843 = vmatprep.subr.bf16.mxu0 0
        %6844 = vmatpush1.bf16.msra.mxu0 0
        %6845 = vmatprep.subr.bf16.mxu0 0
        %6846 = vmatpush1.bf16.msra.mxu0 0
        %6847 = vmatprep.subr.bf16.mxu0 0
        %6848 = vmatpush1.bf16.msra.mxu0 0
        %6849 = vmatprep.subr.bf16.mxu0 0
        %6850 = vmatpush1.bf16.msra.mxu0 0
        %6851 = vmatprep.subr.bf16.mxu0 0
        %6852 = vmatpush1.bf16.msra.mxu0 0
        %6853 = vmatprep.subr.bf16.mxu0 0
        %6854 = vmatpush1.bf16.msra.mxu0 0
        %6855 = vmatprep.subr.bf16.mxu0 0
        %6856 = vmatpush1.bf16.msra.mxu0 0
        %6857 = vmatprep.subr.bf16.mxu0 0
        %6858 = vmatpush1.bf16.msra.mxu0 0
        %6859 = vmatprep.subr.bf16.mxu0 0
        %6860 = vmatpush1.bf16.msra.mxu0 0
        %6861 = vmatprep.subr.bf16.mxu0 0
        %6862 = vmatpush1.bf16.msra.mxu0 0
        %6863 = vmatprep.subr.bf16.mxu0 0
        %6864 = vmatpush1.bf16.msra.mxu0 0
        %6865 = vmatprep.mubr.bf16.mxu0 0
        %6866 = vmatmul.mubr.bf16.gmra.mrb[0].mxu0 %v6831
        %v6867 = vpop.f32.mrb[0].mxu0
        %v6868 = vadd.f32 0.0, %v6867
        %v6869 = vpop.f32.mrb[0].mxu0
        %v6870 = vadd.f32 0.0, %v6869
        %v6871 = vpop.f32.mrb[0].mxu0
        %v6872 = vadd.f32 0.0, %v6871
        %v6873 = vpop.f32.mrb[0].mxu0
        %v6874 = vadd.f32 0.0, %v6873
        %6875 = vdwg.mxu0
        %6876 = vmatprep.subr.bf16.mxu0 0
        %6877 = vmatpush1.bf16.msra.mxu0 %v6826
        %6878 = vmatprep.subr.bf16.mxu0 0
        %6879 = vmatpush1.bf16.msra.mxu0 0
        %6880 = vmatprep.subr.bf16.mxu0 0
        %6881 = vmatpush1.bf16.msra.mxu0 0
        %6882 = vmatprep.subr.bf16.mxu0 0
        %6883 = vmatpush1.bf16.msra.mxu0 0
        %6884 = vmatprep.subr.bf16.mxu0 0
        %6885 = vmatpush1.bf16.msra.mxu0 0
        %6886 = vmatprep.subr.bf16.mxu0 0
        %6887 = vmatpush1.bf16.msra.mxu0 0
        %6888 = vmatprep.subr.bf16.mxu0 0
        %6889 = vmatpush1.bf16.msra.mxu0 0
        %6890 = vmatprep.subr.bf16.mxu0 0
        %6891 = vmatpush1.bf16.msra.mxu0 0
        %6892 = vmatprep.subr.bf16.mxu0 0
        %6893 = vmatpush1.bf16.msra.mxu0 0
        %6894 = vmatprep.subr.bf16.mxu0 0
        %6895 = vmatpush1.bf16.msra.mxu0 0
        %6896 = vmatprep.subr.bf16.mxu0 0
        %6897 = vmatpush1.bf16.msra.mxu0 0
        %6898 = vmatprep.subr.bf16.mxu0 0
        %6899 = vmatpush1.bf16.msra.mxu0 0
        %6900 = vmatprep.subr.bf16.mxu0 0
        %6901 = vmatpush1.bf16.msra.mxu0 0
        %6902 = vmatprep.subr.bf16.mxu0 0
        %6903 = vmatpush1.bf16.msra.mxu0 0
        %6904 = vmatprep.subr.bf16.mxu0 0
        %6905 = vmatpush1.bf16.msra.mxu0 0
        %6906 = vmatprep.subr.bf16.mxu0 0
        %6907 = vmatpush1.bf16.msra.mxu0 0
        %6908 = vmatprep.mubr.bf16.mxu0 0
        %6909 = vmatmul.mubr.bf16.gmra.mrb[0].mxu0 %v6831
        %v6910 = vpop.f32.mrb[0].mxu0
        %v6911 = vadd.f32 0.0, %v6910
        %v6912 = vpop.f32.mrb[0].mxu0
        %v6913 = vpop.f32.mrb[0].mxu0
        %v6914 = vadd.f32 0.0, %v6913
        %v6915 = vpop.f32.mrb[0].mxu0
        %6916 = vdwg.mxu0
        %v6917 = vadd.f32 %v6802, %v6868
        %v6918 = vadd.f32 %v6803, %v6870
        %v6919 = vadd.f32 %v6804, %v6911
        %v6920 = vadd.f32 %v6805, %v6872
        %v6921 = vadd.f32 %v6806, %v6874
        %v6922 = vadd.f32 %v6807, %v6914
        %s6923 = scalar_lea.vmem %s12, 64
        %v6924 = vld [vmem:[%s6923] sm:$0xf]
        %v6925 = vld [vmem:[%s6923 + $0x4] sm:$0xf]
        %v6928 = vunpack.c.l.b16 %v6924
        %v6929 = vunpack.c.l.b16 %v6925
        %v6930 = vpack.c.b16 %v6929, %v6928
        %6931 = vrot.lane.b32.xlu0 %v6570, 109
        %v6932 = vpop.permute.xlu0 %6931
        %6933 = vrot.lane.b32.xlu0 %v6571, 109
        %v6934 = vpop.permute.xlu0 %6933
        %6935 = vrot.lane.b32.xlu0 %v6572, 109
        %v6936 = vpop.permute.xlu0 %6935
        %6937 = vrot.lane.b32.xlu0 %v6573, 109
        %v6938 = vpop.permute.xlu0 %6937
        %v6939 = vsel %vm1622, %v6932, %v6934
        %v6940 = vsel %vm1622, %v6934, %v6936
        %v6941 = vsel %vm1622, %v6936, %v6938
        %v6946 = vsel %vm722, %v6930, 0
        %6948 = vmatprep.subr.bf16.mxu0 %v6940
        %6949 = vmatpush1.bf16.msra.mxu0 %v6939
        %6950 = vmatprep.subr.bf16.mxu0 0
        %6951 = vmatpush1.bf16.msra.mxu0 0
        %6952 = vmatprep.subr.bf16.mxu0 0
        %6953 = vmatpush1.bf16.msra.mxu0 0
        %6954 = vmatprep.subr.bf16.mxu0 0
        %6955 = vmatpush1.bf16.msra.mxu0 0
        %6956 = vmatprep.subr.bf16.mxu0 0
        %6957 = vmatpush1.bf16.msra.mxu0 0
        %6958 = vmatprep.subr.bf16.mxu0 0
        %6959 = vmatpush1.bf16.msra.mxu0 0
        %6960 = vmatprep.subr.bf16.mxu0 0
        %6961 = vmatpush1.bf16.msra.mxu0 0
        %6962 = vmatprep.subr.bf16.mxu0 0
        %6963 = vmatpush1.bf16.msra.mxu0 0
        %6964 = vmatprep.subr.bf16.mxu0 0
        %6965 = vmatpush1.bf16.msra.mxu0 0
        %6966 = vmatprep.subr.bf16.mxu0 0
        %6967 = vmatpush1.bf16.msra.mxu0 0
        %6968 = vmatprep.subr.bf16.mxu0 0
        %6969 = vmatpush1.bf16.msra.mxu0 0
        %6970 = vmatprep.subr.bf16.mxu0 0
        %6971 = vmatpush1.bf16.msra.mxu0 0
        %6972 = vmatprep.subr.bf16.mxu0 0
        %6973 = vmatpush1.bf16.msra.mxu0 0
        %6974 = vmatprep.subr.bf16.mxu0 0
        %6975 = vmatpush1.bf16.msra.mxu0 0
        %6976 = vmatprep.subr.bf16.mxu0 0
        %6977 = vmatpush1.bf16.msra.mxu0 0
        %6978 = vmatprep.subr.bf16.mxu0 0
        %6979 = vmatpush1.bf16.msra.mxu0 0
        %6980 = vmatprep.mubr.bf16.mxu0 0
        %6981 = vmatmul.mubr.bf16.gmra.mrb[0].mxu0 %v6946
        %v6982 = vpop.f32.mrb[0].mxu0
        %v6983 = vadd.f32 0.0, %v6982
        %v6984 = vpop.f32.mrb[0].mxu0
        %v6985 = vadd.f32 0.0, %v6984
        %v6986 = vpop.f32.mrb[0].mxu0
        %v6987 = vadd.f32 0.0, %v6986
        %v6988 = vpop.f32.mrb[0].mxu0
        %v6989 = vadd.f32 0.0, %v6988
        %6990 = vdwg.mxu0
        %6991 = vmatprep.subr.bf16.mxu0 0
        %6992 = vmatpush1.bf16.msra.mxu0 %v6941
        %6993 = vmatprep.subr.bf16.mxu0 0
        %6994 = vmatpush1.bf16.msra.mxu0 0
        %6995 = vmatprep.subr.bf16.mxu0 0
        %6996 = vmatpush1.bf16.msra.mxu0 0
        %6997 = vmatprep.subr.bf16.mxu0 0
        %6998 = vmatpush1.bf16.msra.mxu0 0
        %6999 = vmatprep.subr.bf16.mxu0 0
        %7000 = vmatpush1.bf16.msra.mxu0 0
        %7001 = vmatprep.subr.bf16.mxu0 0
        %7002 = vmatpush1.bf16.msra.mxu0 0
        %7003 = vmatprep.subr.bf16.mxu0 0
        %7004 = vmatpush1.bf16.msra.mxu0 0
        %7005 = vmatprep.subr.bf16.mxu0 0
        %7006 = vmatpush1.bf16.msra.mxu0 0
        %7007 = vmatprep.subr.bf16.mxu0 0
        %7008 = vmatpush1.bf16.msra.mxu0 0
        %7009 = vmatprep.subr.bf16.mxu0 0
        %7010 = vmatpush1.bf16.msra.mxu0 0
        %7011 = vmatprep.subr.bf16.mxu0 0
        %7012 = vmatpush1.bf16.msra.mxu0 0
        %7013 = vmatprep.subr.bf16.mxu0 0
        %7014 = vmatpush1.bf16.msra.mxu0 0
        %7015 = vmatprep.subr.bf16.mxu0 0
        %7016 = vmatpush1.bf16.msra.mxu0 0
        %7017 = vmatprep.subr.bf16.mxu0 0
        %7018 = vmatpush1.bf16.msra.mxu0 0
        %7019 = vmatprep.subr.bf16.mxu0 0
        %7020 = vmatpush1.bf16.msra.mxu0 0
        %7021 = vmatprep.subr.bf16.mxu0 0
        %7022 = vmatpush1.bf16.msra.mxu0 0
        %7023 = vmatprep.mubr.bf16.mxu0 0
        %7024 = vmatmul.mubr.bf16.gmra.mrb[0].mxu0 %v6946
        %v7025 = vpop.f32.mrb[0].mxu0
        %v7026 = vadd.f32 0.0, %v7025
        %v7027 = vpop.f32.mrb[0].mxu0
        %v7028 = vpop.f32.mrb[0].mxu0
        %v7029 = vadd.f32 0.0, %v7028
        %v7030 = vpop.f32.mrb[0].mxu0
        %7031 = vdwg.mxu0
        %v7032 = vadd.f32 %v6917, %v6983
        %v7033 = vadd.f32 %v6918, %v6985
        %v7034 = vadd.f32 %v6919, %v7026
        %v7035 = vadd.f32 %v6920, %v6987
        %v7036 = vadd.f32 %v6921, %v6989
        %v7037 = vadd.f32 %v6922, %v7029
        %v7038 = vld [vmem:[%s13] sm:$0xff]
        %v7039 = vld [vmem:[%s13 + $0x8] sm:$0xff]
        %7041 = vset.pattern.permute.xlu0 0
        %7042 = vperm.xlu0 %7041, %v7038
        %v7043 = vpop.permute.xlu0 %7042
        %7046 = vset.pattern.permute.xlu0 0
        %7047 = vperm.xlu0 %7046, %v7039
        %v7048 = vpop.permute.xlu0 %7047
        %v7050 = vadd.f32 %v7032, %v7043
        %v7051 = vadd.f32 %v7033, %v7043
        %v7052 = vadd.f32 %v7034, %v7043
        %v7053 = vadd.f32 %v7035, %v7048
        %v7054 = vadd.f32 %v7036, %v7048
        %v7055 = vadd.f32 %v7037, %v7048
        %v7056 = vmax.f32 %v7050, 0.0
        %v7057 = vmax.f32 %v7051, 0.0
        %v7058 = vmax.f32 %v7052, 0.0
        %v7059 = vmax.f32 %v7053, 0.0
        %v7060 = vmax.f32 %v7054, 0.0
        %v7061 = vmax.f32 %v7055, 0.0
        %v7062 = vmul.f32 %v7056, %v1750
        %v7063 = vmul.f32 %v7057, %v1754
        %v7064 = vmul.f32 %v7058, %v1758
        %v7065 = vmul.f32 %v7059, %v1750
        %v7066 = vmul.f32 %v7060, %v1754
        %v7067 = vmul.f32 %v7061, %v1758
        %v7068 = vpack.c.bf16 %v7065, %v7062
        %v7069 = vpack.c.bf16 %v7066, %v7063
        %v7070 = vpack.c.bf16 %v7067, %v7064
        %7071 = vst [vmem:[#allocation2 + $0xf8] sm:$0xff] %v7068
        %7072 = vst [vmem:[#allocation2 + $0x100] sm:$0xff] %v7069
        %7073 = vst [vmem:[#allocation2 + $0x108] sm:$0xff] %v7070
        %v7074 = vld [vmem:[#allocation2 + $0x8] sm:$0xff]
        %v7075 = vld [vmem:[#allocation2 + $0x10] sm:$0xff]
        %v7076 = vld [vmem:[#allocation2 + $0x18] sm:$0xff]
        %v7077 = vld [vmem:[#allocation2 + $0x30] sm:$0xff]
        %v7078 = vld [vmem:[#allocation2 + $0x38] sm:$0xff]
        %v7079 = vld [vmem:[#allocation2 + $0x40] sm:$0xff]
        %v7080 = vld [vmem:[#allocation2 + $0x58] sm:$0xff]
        %v7081 = vld [vmem:[#allocation2 + $0x60] sm:$0xff]
        %v7082 = vld [vmem:[#allocation2 + $0x68] sm:$0xff]
        %v7083 = vld [vmem:[#allocation2 + $0x80] sm:$0xff]
        %v7084 = vld [vmem:[#allocation2 + $0x88] sm:$0xff]
        %v7085 = vld [vmem:[#allocation2 + $0x90] sm:$0xff]
        %v7086 = vld [vmem:[#allocation2 + $0xa8] sm:$0xff]
        %v7087 = vld [vmem:[#allocation2 + $0xb0] sm:$0xff]
        %v7088 = vld [vmem:[#allocation2 + $0xb8] sm:$0xff]
        %v7089 = vld [vmem:[#allocation2 + $0xd0] sm:$0xff]
        %v7090 = vld [vmem:[#allocation2 + $0xd8] sm:$0xff]
        %v7091 = vld [vmem:[#allocation2 + $0xe0] sm:$0xff]
        %v7092 = vld [vmem:[#allocation2 + $0xf8] sm:$0xff]
        %v7093 = vld [vmem:[#allocation2 + $0x100] sm:$0xff]
        %v7094 = vld [vmem:[#allocation2 + $0x108] sm:$0xff]
        %v7095 = vld [vmem:[%s14] sm:$0xf]
        %v7096 = vld [vmem:[%s14 + $0x4] sm:$0xf]
        %v7097 = vld [vmem:[%s15] sm:$0xff]
        %v7098 = vld [vmem:[%s15 + $0x8] sm:$0xff]
        %7100 = vset.pattern.permute.xlu0 0
        %7101 = vperm.xlu0 %7100, %v7097
        %v7102 = vpop.permute.xlu0 %7101
        %7105 = vset.pattern.permute.xlu0 0
        %7106 = vperm.xlu0 %7105, %v7098
        %v7107 = vpop.permute.xlu0 %7106
        %v7111 = vunpack.c.l.b16 %v7095
        %v7112 = vunpack.c.l.b16 %v7096
        %v7113 = vpack.c.b16 %v7112, %v7111
        %vm7114 = vcmask 916480
        %v7116 = vsel %vm7114, %v7113, 0
        %7118 = vmatprep.subr.bf16.mxu0 %v7075
        %7119 = vmatpush1.bf16.msra.mxu0 %v7074
        %7120 = vmatprep.subr.bf16.mxu0 %v7078
        %7121 = vmatpush1.bf16.msra.mxu0 %v7077
        %7122 = vmatprep.subr.bf16.mxu0 %v7081
        %7123 = vmatpush1.bf16.msra.mxu0 %v7080
        %7124 = vmatprep.subr.bf16.mxu0 %v7084
        %7125 = vmatpush1.bf16.msra.mxu0 %v7083
        %7126 = vmatprep.subr.bf16.mxu0 %v7087
        %7127 = vmatpush1.bf16.msra.mxu0 %v7086
        %7128 = vmatprep.subr.bf16.mxu0 %v7090
        %7129 = vmatpush1.bf16.msra.mxu0 %v7089
        %7130 = vmatprep.subr.bf16.mxu0 %v7093
        %7131 = vmatpush1.bf16.msra.mxu0 %v7092
        %7132 = vmatprep.subr.bf16.mxu0 0
        %7133 = vmatpush1.bf16.msra.mxu0 0
        %7134 = vmatprep.subr.bf16.mxu0 0
        %7135 = vmatpush1.bf16.msra.mxu0 0
        %7136 = vmatprep.subr.bf16.mxu0 0
        %7137 = vmatpush1.bf16.msra.mxu0 0
        %7138 = vmatprep.subr.bf16.mxu0 0
        %7139 = vmatpush1.bf16.msra.mxu0 0
        %7140 = vmatprep.subr.bf16.mxu0 0
        %7141 = vmatpush1.bf16.msra.mxu0 0
        %7142 = vmatprep.subr.bf16.mxu0 0
        %7143 = vmatpush1.bf16.msra.mxu0 0
        %7144 = vmatprep.subr.bf16.mxu0 0
        %7145 = vmatpush1.bf16.msra.mxu0 0
        %7146 = vmatprep.subr.bf16.mxu0 0
        %7147 = vmatpush1.bf16.msra.mxu0 0
        %7148 = vmatprep.subr.bf16.mxu0 0
        %7149 = vmatpush1.bf16.msra.mxu0 0
        %7150 = vmatprep.mubr.bf16.mxu0 0
        %7151 = vmatmul.mubr.bf16.gmra.mrb[0].mxu0 %v7116
        %v7152 = vpop.f32.mrb[0].mxu0
        %v7153 = vadd.f32 %v7102, %v7152
        %v7154 = vpop.f32.mrb[0].mxu0
        %v7155 = vadd.f32 %v7102, %v7154
        %v7156 = vpop.f32.mrb[0].mxu0
        %v7157 = vadd.f32 %v7107, %v7156
        %v7158 = vpop.f32.mrb[0].mxu0
        %v7159 = vadd.f32 %v7107, %v7158
        %7160 = vdwg.mxu0
        %7161 = vmatprep.subr.bf16.mxu0 0
        %7162 = vmatpush1.bf16.msra.mxu0 %v7076
        %7163 = vmatprep.subr.bf16.mxu0 0
        %7164 = vmatpush1.bf16.msra.mxu0 %v7079
        %7165 = vmatprep.subr.bf16.mxu0 0
        %7166 = vmatpush1.bf16.msra.mxu0 %v7082
        %7167 = vmatprep.subr.bf16.mxu0 0
        %7168 = vmatpush1.bf16.msra.mxu0 %v7085
        %7169 = vmatprep.subr.bf16.mxu0 0
        %7170 = vmatpush1.bf16.msra.mxu0 %v7088
        %7171 = vmatprep.subr.bf16.mxu0 0
        %7172 = vmatpush1.bf16.msra.mxu0 %v7091
        %7173 = vmatprep.subr.bf16.mxu0 0
        %7174 = vmatpush1.bf16.msra.mxu0 %v7094
        %7175 = vmatprep.subr.bf16.mxu0 0
        %7176 = vmatpush1.bf16.msra.mxu0 0
        %7177 = vmatprep.subr.bf16.mxu0 0
        %7178 = vmatpush1.bf16.msra.mxu0 0
        %7179 = vmatprep.subr.bf16.mxu0 0
        %7180 = vmatpush1.bf16.msra.mxu0 0
        %7181 = vmatprep.subr.bf16.mxu0 0
        %7182 = vmatpush1.bf16.msra.mxu0 0
        %7183 = vmatprep.subr.bf16.mxu0 0
        %7184 = vmatpush1.bf16.msra.mxu0 0
        %7185 = vmatprep.subr.bf16.mxu0 0
        %7186 = vmatpush1.bf16.msra.mxu0 0
        %7187 = vmatprep.subr.bf16.mxu0 0
        %7188 = vmatpush1.bf16.msra.mxu0 0
        %7189 = vmatprep.subr.bf16.mxu0 0
        %7190 = vmatpush1.bf16.msra.mxu0 0
        %7191 = vmatprep.subr.bf16.mxu0 0
        %7192 = vmatpush1.bf16.msra.mxu0 0
        %7193 = vmatprep.mubr.bf16.mxu0 0
        %7194 = vmatmul.mubr.bf16.gmra.mrb[0].mxu0 %v7116
        %v7195 = vpop.f32.mrb[0].mxu0
        %v7196 = vadd.f32 %v7102, %v7195
        %v7197 = vpop.f32.mrb[0].mxu0
        %v7198 = vpop.f32.mrb[0].mxu0
        %v7199 = vadd.f32 %v7107, %v7198
        %v7200 = vpop.f32.mrb[0].mxu0
        %7201 = vdwg.mxu0
        %v7202 = vmax.f32 %v7153, 0.0
        %v7203 = vmax.f32 %v7155, 0.0
        %v7204 = vmax.f32 %v7196, 0.0
        %v7205 = vmax.f32 %v7157, 0.0
        %v7206 = vmax.f32 %v7159, 0.0
        %v7207 = vmax.f32 %v7199, 0.0
        %v7208 = vpack.c.bf16 %v7205, %v7202
        %v7209 = vpack.c.bf16 %v7206, %v7203
        %v7210 = vpack.c.bf16 %v7207, %v7204
        %v7211 = vld [vmem:[%s16] sm:$0xf]
        %v7212 = vld [vmem:[%s16 + $0x4] sm:$0xf]
        %v7213 = vld [vmem:[%s16 + $0x8] sm:$0xf]
        %v7214 = vld [vmem:[%s16 + $0xc] sm:$0xf]
        %v7215 = vld [vmem:[%s17] sm:$0xff]
        %v7216 = vld [vmem:[%s17 + $0x8] sm:$0xff]
        %v7217 = vld [vmem:[%s17 + $0x10] sm:$0xff]
        %v7218 = vld [vmem:[%s17 + $0x18] sm:$0xff]
        %7220 = vset.pattern.permute.xlu0 0
        %7221 = vperm.xlu0 %7220, %v7215
        %v7222 = vpop.permute.xlu0 %7221
        %7225 = vset.pattern.permute.xlu0 0
        %7226 = vperm.xlu0 %7225, %v7216
        %v7227 = vpop.permute.xlu0 %7226
        %7230 = vset.pattern.permute.xlu0 0
        %7231 = vperm.xlu0 %7230, %v7217
        %v7232 = vpop.permute.xlu0 %7231
        %7235 = vset.pattern.permute.xlu0 0
        %7236 = vperm.xlu0 %7235, %v7218
        %v7237 = vpop.permute.xlu0 %7236
        %v7243 = vunpack.c.l.b16 %v7211
        %v7244 = vunpack.c.l.b16 %v7212
        %v7245 = vunpack.c.l.b16 %v7213
        %v7246 = vunpack.c.l.b16 %v7214
        %v7247 = vpack.c.b16 %v7244, %v7243
        %v7248 = vpack.c.b16 %v7246, %v7245
        %v7250 = vsel %vm722, %v7247, 0
        %v7253 = vsel %vm722, %v7248, 0
        %7255 = vmatprep.subr.bf16.mxu0 %v7209
        %7256 = vmatpush1.bf16.msra.mxu0 %v7208
        %7257 = vmatprep.subr.bf16.mxu0 0
        %7258 = vmatpush1.bf16.msra.mxu0 0
        %7259 = vmatprep.subr.bf16.mxu0 0
        %7260 = vmatpush1.bf16.msra.mxu0 0
        %7261 = vmatprep.subr.bf16.mxu0 0
        %7262 = vmatpush1.bf16.msra.mxu0 0
        %7263 = vmatprep.subr.bf16.mxu0 0
        %7264 = vmatpush1.bf16.msra.mxu0 0
        %7265 = vmatprep.subr.bf16.mxu0 0
        %7266 = vmatpush1.bf16.msra.mxu0 0
        %7267 = vmatprep.subr.bf16.mxu0 0
        %7268 = vmatpush1.bf16.msra.mxu0 0
        %7269 = vmatprep.subr.bf16.mxu0 0
        %7270 = vmatpush1.bf16.msra.mxu0 0
        %7271 = vmatprep.subr.bf16.mxu0 0
        %7272 = vmatpush1.bf16.msra.mxu0 0
        %7273 = vmatprep.subr.bf16.mxu0 0
        %7274 = vmatpush1.bf16.msra.mxu0 0
        %7275 = vmatprep.subr.bf16.mxu0 0
        %7276 = vmatpush1.bf16.msra.mxu0 0
        %7277 = vmatprep.subr.bf16.mxu0 0
        %7278 = vmatpush1.bf16.msra.mxu0 0
        %7279 = vmatprep.subr.bf16.mxu0 0
        %7280 = vmatpush1.bf16.msra.mxu0 0
        %7281 = vmatprep.subr.bf16.mxu0 0
        %7282 = vmatpush1.bf16.msra.mxu0 0
        %7283 = vmatprep.subr.bf16.mxu0 0
        %7284 = vmatpush1.bf16.msra.mxu0 0
        %7285 = vmatprep.subr.bf16.mxu0 0
        %7286 = vmatpush1.bf16.msra.mxu0 0
        %7287 = vmatprep.mubr.bf16.mxu0 0
        %7288 = vmatmul.mubr.bf16.gmra.mrb[0].mxu0 %v7250
        %v7289 = vpop.f32.mrb[0].mxu0
        %v7290 = vadd.f32 %v7222, %v7289
        %v7291 = vpop.f32.mrb[0].mxu0
        %v7292 = vadd.f32 %v7222, %v7291
        %v7293 = vpop.f32.mrb[0].mxu0
        %v7294 = vadd.f32 %v7227, %v7293
        %v7295 = vpop.f32.mrb[0].mxu0
        %v7296 = vadd.f32 %v7227, %v7295
        %7297 = vmatprep.mubr.bf16.mxu0 0
        %7298 = vmatmul.mubr.bf16.gmra.mrb[0].mxu0 %v7253
        %v7299 = vpop.f32.mrb[0].mxu0
        %v7300 = vadd.f32 %v7232, %v7299
        %v7301 = vpop.f32.mrb[0].mxu0
        %v7302 = vadd.f32 %v7232, %v7301
        %v7303 = vpop.f32.mrb[0].mxu0
        %v7304 = vadd.f32 %v7237, %v7303
        %v7305 = vpop.f32.mrb[0].mxu0
        %v7306 = vadd.f32 %v7237, %v7305
        %7307 = vdwg.mxu0
        %7308 = vmatprep.subr.bf16.mxu0 0
        %7309 = vmatpush1.bf16.msra.mxu0 %v7210
        %7310 = vmatprep.subr.bf16.mxu0 0
        %7311 = vmatpush1.bf16.msra.mxu0 0
        %7312 = vmatprep.subr.bf16.mxu0 0
        %7313 = vmatpush1.bf16.msra.mxu0 0
        %7314 = vmatprep.subr.bf16.mxu0 0
        %7315 = vmatpush1.bf16.msra.mxu0 0
        %7316 = vmatprep.subr.bf16.mxu0 0
        %7317 = vmatpush1.bf16.msra.mxu0 0
        %7318 = vmatprep.subr.bf16.mxu0 0
        %7319 = vmatpush1.bf16.msra.mxu0 0
        %7320 = vmatprep.subr.bf16.mxu0 0
        %7321 = vmatpush1.bf16.msra.mxu0 0
        %7322 = vmatprep.subr.bf16.mxu0 0
        %7323 = vmatpush1.bf16.msra.mxu0 0
        %7324 = vmatprep.subr.bf16.mxu0 0
        %7325 = vmatpush1.bf16.msra.mxu0 0
        %7326 = vmatprep.subr.bf16.mxu0 0
        %7327 = vmatpush1.bf16.msra.mxu0 0
        %7328 = vmatprep.subr.bf16.mxu0 0
        %7329 = vmatpush1.bf16.msra.mxu0 0
        %7330 = vmatprep.subr.bf16.mxu0 0
        %7331 = vmatpush1.bf16.msra.mxu0 0
        %7332 = vmatprep.subr.bf16.mxu0 0
        %7333 = vmatpush1.bf16.msra.mxu0 0
        %7334 = vmatprep.subr.bf16.mxu0 0
        %7335 = vmatpush1.bf16.msra.mxu0 0
        %7336 = vmatprep.subr.bf16.mxu0 0
        %7337 = vmatpush1.bf16.msra.mxu0 0
        %7338 = vmatprep.subr.bf16.mxu0 0
        %7339 = vmatpush1.bf16.msra.mxu0 0
        %7340 = vmatprep.mubr.bf16.mxu0 0
        %7341 = vmatmul.mubr.bf16.gmra.mrb[0].mxu0 %v7250
        %v7342 = vpop.f32.mrb[0].mxu0
        %v7343 = vadd.f32 %v7222, %v7342
        %v7344 = vpop.f32.mrb[0].mxu0
        %v7345 = vpop.f32.mrb[0].mxu0
        %v7346 = vadd.f32 %v7227, %v7345
        %v7347 = vpop.f32.mrb[0].mxu0
        %7348 = vmatprep.mubr.bf16.mxu0 0
        %7349 = vmatmul.mubr.bf16.gmra.mrb[0].mxu0 %v7253
        %v7350 = vpop.f32.mrb[0].mxu0
        %v7351 = vadd.f32 %v7232, %v7350
        %v7352 = vpop.f32.mrb[0].mxu0
        %v7353 = vpop.f32.mrb[0].mxu0
        %v7354 = vadd.f32 %v7237, %v7353
        %v7355 = vpop.f32.mrb[0].mxu0
        %7356 = vdwg.mxu0
        %v7357 = vmax.f32 %v7290, 0.0
        %v7358 = vmax.f32 %v7292, 0.0
        %v7359 = vmax.f32 %v7343, 0.0
        %v7360 = vmax.f32 %v7294, 0.0
        %v7361 = vmax.f32 %v7296, 0.0
        %v7362 = vmax.f32 %v7346, 0.0
        %v7363 = vmax.f32 %v7300, 0.0
        %v7364 = vmax.f32 %v7302, 0.0
        %v7365 = vmax.f32 %v7351, 0.0
        %v7366 = vmax.f32 %v7304, 0.0
        %v7367 = vmax.f32 %v7306, 0.0
        %v7368 = vmax.f32 %v7354, 0.0
        %7369 = vst [vmem:[%s649] sm:$0xff] %v7357
        %7370 = vst [vmem:[%s649 + $0x8] sm:$0xff] %v7358
        %7371 = vst [vmem:[%s649 + $0x10] sm:$0xff] %v7359
        %7372 = vst [vmem:[%s649 + $0x18] sm:$0xff] %v7360
        %7373 = vst [vmem:[%s649 + $0x20] sm:$0xff] %v7361
        %7374 = vst [vmem:[%s649 + $0x28] sm:$0xff] %v7362
        %7375 = vst [vmem:[%s649 + $0x30] sm:$0xff] %v7363
        %7376 = vst [vmem:[%s649 + $0x38] sm:$0xff] %v7364
        %7377 = vst [vmem:[%s649 + $0x40] sm:$0xff] %v7365
        %7378 = vst [vmem:[%s649 + $0x48] sm:$0xff] %v7366
        %7379 = vst [vmem:[%s649 + $0x50] sm:$0xff] %v7367
        %7380 = vst [vmem:[%s649 + $0x58] sm:$0xff] %v7368
        %s7381 = sand.u32 %s428, 1
        %s7382 = scalar_lea.sflag [#allocation5], %s7381
        %s7383 = sand.u32 %s428, 1
        %s7384 = smul.addr %s7383, 96
        %s7385 = scalar_lea.vmem [#allocation12], %s7384
        // Predicated region
        $region113: #{tpu_custom_call.1} parent=91 // pred_check
          %p7386 = pneg %p438
        $region114: #{tpu_custom_call.1} parent=91 // pred_check_branch
          %7388 = sbr.rel (%p7386) target = $region116
        $region115: #{tpu_custom_call.1} parent=91 // pred_region
          %s7390 = ssub.s32 1536, 1536
          %7391 = vsyncadd %s7382, %s7390
          %s7392 = smul.addr %s37, 12
          %s7393 = smul.addr %s7392, 128
          %s7394 = scalar_lea.hbm %s18, %s7393
          %s7395 = sshll.u32 %s7385, 4
          %s7396 = int_to_ptr.vmem [resolvable:$true] %s7395
          %7401 = dma.vmem_to_hbm [thread:$0]  %s7396, 1536, %s7394, %s7382, 384, 384, 24
        $region116: #{tpu_custom_call.1} parent=91 // pred_fallthru
          _
      $region92: #{tpu_custom_call.1} parent=5 // pred_fallthru
        _
      %p7402 = scmp.le.s32.totalorder 2, %s32
      // Predicated region
      $region117: #{tpu_custom_call.1} parent=5 // pred_check
        %p7403 = pneg %p7402
      $region118: #{tpu_custom_call.1} parent=5 // pred_check_branch
        %7405 = sbr.rel (%p7403) target = $region120
      $region119: #{tpu_custom_call.1} parent=5 // pred_region
        %s7406 = ssub.s32 %s32, 2
        // Predicated region
        $region121: #{tpu_custom_call.1} parent=119 // pred_check
          %p7407 = pneg %p444
        $region122: #{tpu_custom_call.1} parent=119 // pred_check_branch
          %7409 = sbr.rel (%p7407) target = $region124
        $region123: #{tpu_custom_call.1} parent=119 // pred_region
          %s7410 = sand.u32 %s429, 1
          %s7411 = scalar_lea.sflag [#allocation5], %s7410
          %s7412 = sand.u32 %s429, 1
          %s7413 = smul.addr %s7412, 96
          %s7414 = scalar_lea.vmem [#allocation12], %s7413
          %7415 = dma.done %s7411, 1536
        $region124: #{tpu_custom_call.1} parent=119 // pred_fallthru
          _
      $region120: #{tpu_custom_call.1} parent=5 // pred_fallthru
        _
    $region6: #{tpu_custom_call.1} parent=1 // loop_footer
      %s36 = sadd.s32 1, %s32
    $region7: #{tpu_custom_call.1} parent=1 // loop_footer_branch
      %31 = sbr.rel target = $region3
    $region8: #{tpu_custom_call.1} parent=1 // loop_exit
      _
    %7416 = vsyncpa [#allocation4], 1
    %s7417 = scalar_lea.sflag [#allocation4], 1
    %7418 = vsyncpa %s7417, 1
    %7419 = vsyncpa [#allocation7], 1
    %7420 = vsyncpa [#allocation10], 1
    %7421 = vsyncpa [#allocation5], 1
    %s7422 = scalar_lea.sflag [#allocation5], 1
    %7423 = vsyncpa %s7422, 1

</llo_original>
